<compile_context>
chip_gen: v5e
topology: v5e:2x2
jax: 0.10.0
libtpu: 0.0.40
codegen_flags: <defaults>
</compile_context>

<pallas_src>
import functools

import jax
import jax.numpy as jnp
from jax.experimental import pallas as pl
from jax.experimental.pallas import tpu as pltpu

FEAT_DIM = 1280
PROJ_DIM = 256
CLASSNUM = 8

# Conservative per-call VMEM budget: leaves headroom even on v7x
# (64 MiB physical / 32 MiB default scoped).
_VMEM_BUDGET_BYTES = 32 * 1024 * 1024


# --------------------------------------------------------------------------
# Kernels
# --------------------------------------------------------------------------
def _fused_kernel(feat_ref, w1r_ref, b1_ref, w2_ref, b2_ref, w3_ref, b3_ref,
                  proj_ref, y_ref):
    """grid = (batch_tiles,). Pool + Linear1 fused into one MXU matmul.

    feat_ref : [tb, C*HW]   lane-dense flat feature slab
    w1r_ref  : [C*HW, 256]  repeat(W1, HW)/HW, resident in VMEM
    """
    h1 = jnp.dot(feat_ref[...], w1r_ref[...],
                 preferred_element_type=jnp.float32)
    h1 = jnp.maximum(h1 + b1_ref[...], 0.0)                       # ReLU
    proj = jnp.dot(h1, w2_ref[...],
                   preferred_element_type=jnp.float32) + b2_ref[...]
    proj_ref[...] = proj.astype(proj_ref.dtype)
    # Dropout (eval identity) + standard_head
    y_ref[...] = (jnp.dot(proj, w3_ref[...],
                          preferred_element_type=jnp.float32)
                  + b3_ref[...]).astype(y_ref.dtype)


def _ktiled_kernel(feat_ref, w1r_ref, b1_ref, w2_ref, b2_ref, w3_ref, b3_ref,
                   proj_ref, y_ref, acc_ref):
    """grid = (batch_tiles, k_tiles). Flat C*HW axis is the reduction.

    feat_ref : [tb, kt]   lane-dense flat feature chunk
    w1r_ref  : [kt, 256]  matching chunk of repeat(W1, HW)/HW (streamed)
    acc_ref  : [tb, 256]  f32 accumulator (P3)
    """
    k = pl.program_id(1)

    @pl.when(k == 0)
    def _():
        acc_ref[...] = jnp.zeros_like(acc_ref)

    acc_ref[...] += jnp.dot(feat_ref[...], w1r_ref[...],
                            preferred_element_type=jnp.float32)

    @pl.when(k == pl.num_programs(1) - 1)
    def _():
        h1 = jnp.maximum(acc_ref[...] + b1_ref[...], 0.0)
        proj = jnp.dot(h1, w2_ref[...],
                       preferred_element_type=jnp.float32) + b2_ref[...]
        proj_ref[...] = proj.astype(proj_ref.dtype)
        y_ref[...] = (jnp.dot(proj, w3_ref[...],
                              preferred_element_type=jnp.float32)
                      + b3_ref[...]).astype(y_ref.dtype)


# --------------------------------------------------------------------------
# Planning helpers (static shapes only -> safe under jit)
# --------------------------------------------------------------------------
def _pick_batch_tile(batch):
    cands = [c for c in (128, 64, 32, 16, 8) if batch % c == 0]
    if not cands:
        return batch            # small / odd batch: one block spans the full batch
    tb = cands[0]
    # Keep >=2 batch blocks when possible so the "parallel" batch axis can
    # shard across v7x's two TensorCores.
    while tb > 8 and batch // tb < 2:
        tb //= 2
    return tb


def _plan_k_tiling(flat_k, tb, feat_itemsize, w1r_itemsize, classnum):
    """Pick the number of k tiles (1 => fully fused, no reduction grid)."""
    # Conservative: assume everything is double-buffered.
    small = 4 * 2 * (PROJ_DIM * PROJ_DIM + PROJ_DIM * classnum
                     + 2 * PROJ_DIM + classnum)                 # w2,w3,b1,b2,b3
    outs = 4 * 2 * (tb * PROJ_DIM + tb * classnum)
    acc_bytes = 4 * tb * PROJ_DIM
    for nk in range(1, 257):
        if flat_k % nk:
            continue
        kt = flat_k // nk
        if kt % 128:                     # lane (feat) / sublane (w1r) alignment
            continue
        feat_bufs = 2 * tb * kt * feat_itemsize
        w1r_bufs = 2 * kt * PROJ_DIM * w1r_itemsize
        total = small + outs + feat_bufs + w1r_bufs + (acc_bytes if nk > 1 else 0)
        if total <= _VMEM_BUDGET_BYTES:
            return nk, kt, total
    raise ValueError(f"no VMEM-fitting k tiling for flat_k={flat_k}, tb={tb}")


# --------------------------------------------------------------------------
# Wrapper
# --------------------------------------------------------------------------
@jax.jit
def effnet_moon_heads(feat_nchw, w1, b1, w2, b2, w3, b3):
    """feat_nchw: [B, 1280, H, W] (effnet.features output, NCHW, f32 or bf16).

    Returns (proj_feat [B, 256], y [B, classnum]) matching the PyTorch forward.
    Weights are stored as [in, out] (transposed vs. PyTorch's [out, in]).
    """
    B, C, H, W = feat_nchw.shape
    assert C == FEAT_DIM, f"expected {FEAT_DIM} channels, got {C}"
    hw = H * W
    flat_k = C * hw
    classnum = w3.shape[1]

    # Free reshape (NCHW is row-major): [B, C, H, W] -> lane-dense [B, C*HW].
    feat = feat_nchw.reshape(B, flat_k)

    # Fuse AdaptiveAvgPool2d into Linear1: mean_hw(feat) @ W1 == feat @ W1_rep
    # with W1_rep = repeat(W1, HW, axis=0) / HW. bf16 features use the native
    # bf16 MXU datapath (f32 accumulate); f32 features keep f32 weights.
    w1r_dtype = jnp.bfloat16 if feat.dtype == jnp.bfloat16 else jnp.float32
    w1r = (jnp.repeat(w1, hw, axis=0) * (1.0 / hw)).astype(w1r_dtype)

    b1r = b1.reshape(1, PROJ_DIM).astype(jnp.float32)
    w2f = w2.astype(jnp.float32)
    b2r = b2.reshape(1, PROJ_DIM).astype(jnp.float32)
    w3f = w3.astype(jnp.float32)
    b3r = b3.reshape(1, classnum).astype(jnp.float32)

    tb = _pick_batch_tile(B)
    nk, kt, vmem_est = _plan_k_tiling(flat_k, tb, feat.dtype.itemsize,
                                      w1r.dtype.itemsize, classnum)

    out_shape = (jax.ShapeDtypeStruct((B, PROJ_DIM), jnp.float32),
                 jax.ShapeDtypeStruct((B, classnum), jnp.float32))

    if nk == 1:
        # Fully fused: one grid step per batch tile, no accumulator scratch.
        grid = (B // tb,)
        in_specs = [
            pl.BlockSpec((tb, flat_k), lambda i: (i, 0)),
            pl.BlockSpec((flat_k, PROJ_DIM), lambda i: (0, 0)),   # resident
            pl.BlockSpec((1, PROJ_DIM), lambda i: (0, 0)),
            pl.BlockSpec((PROJ_DIM, PROJ_DIM), lambda i: (0, 0)),
            pl.BlockSpec((1, PROJ_DIM), lambda i: (0, 0)),
            pl.BlockSpec((PROJ_DIM, classnum), lambda i: (0, 0)),
            pl.BlockSpec((1, classnum), lambda i: (0, 0)),
        ]
        out_specs = (pl.BlockSpec((tb, PROJ_DIM), lambda i: (i, 0)),
                     pl.BlockSpec((tb, classnum), lambda i: (i, 0)))
        scratch = []
        kernel = _fused_kernel
        dims = ("parallel",)
    else:
        # Flat C*HW axis k-tiled (multiples of 128); W1_rep streamed per k.
        grid = (B // tb, nk)
        in_specs = [
            pl.BlockSpec((tb, kt), lambda i, k: (i, k)),
            pl.BlockSpec((kt, PROJ_DIM), lambda i, k: (k, 0)),
            pl.BlockSpec((1, PROJ_DIM), lambda i, k: (0, 0)),
            pl.BlockSpec((PROJ_DIM, PROJ_DIM), lambda i, k: (0, 0)),
            pl.BlockSpec((1, PROJ_DIM), lambda i, k: (0, 0)),
            pl.BlockSpec((PROJ_DIM, classnum), lambda i, k: (0, 0)),
            pl.BlockSpec((1, classnum), lambda i, k: (0, 0)),
        ]
        out_specs = (pl.BlockSpec((tb, PROJ_DIM), lambda i, k: (i, 0)),
                     pl.BlockSpec((tb, classnum), lambda i, k: (i, 0)))
        scratch = [pltpu.VMEM((tb, PROJ_DIM), jnp.float32)]
        kernel = _ktiled_kernel
        dims = ("parallel", "arbitrary")

    vmem_limit = int(min(max(int(vmem_est * 1.25), 16 * 1024 * 1024),
                         48 * 1024 * 1024))

    proj_feat, y = pl.pallas_call(
        kernel,
        out_shape=out_shape,
        grid_spec=pltpu.PrefetchScalarGridSpec(
            num_scalar_prefetch=0,
            grid=grid,
            in_specs=in_specs,
            out_specs=out_specs,
            scratch_shapes=scratch),
        compiler_params=pltpu.CompilerParams(
            dimension_semantics=dims,
            vmem_limit_bytes=vmem_limit),
    )(feat, w1r, b1r, w2f, b2r, w3f, b3r)
    return proj_feat, y


def _init_linear(key, fan_in, fan_out):
    """nn.Linear-style uniform(-1/sqrt(in), 1/sqrt(in)); weights as [in, out]."""
    kw, kb = jax.random.split(key)
    bound = 1.0 / jnp.sqrt(fan_in)
    w = jax.random.uniform(kw, (fan_in, fan_out), jnp.float32, -bound, bound)
    b = jax.random.uniform(kb, (fan_out,), jnp.float32, -bound, bound)
    return w, b


if __name__ == "__main__":
    key = jax.random.PRNGKey(0)
    k_x, k1, k2, k3 = jax.random.split(key, 4)

    # Small spatial size; C=1280 is fixed by the module's Linear(1280, 256).
    B, H, W = 2, 4, 4
    x = jax.random.normal(k_x, (B, FEAT_DIM, H, W), jnp.float32)  # NCHW features

    w1, b1 = _init_linear(k1, FEAT_DIM, PROJ_DIM)   # projection_head
    w2, b2 = _init_linear(k2, PROJ_DIM, PROJ_DIM)   # projection_head2
    w3, b3 = _init_linear(k3, PROJ_DIM, CLASSNUM)   # standard_head

    proj_feat, y = effnet_moon_heads(x, w1, b1, w2, b2, w3, b3)
    jax.block_until_ready((proj_feat, y))

    # Pure-JAX reference with the module's exact op order (pool -> linears).
    pooled_ref = jnp.mean(x, axis=(2, 3))
    h_ref = jnp.maximum(pooled_ref @ w1 + b1, 0.0)
    proj_ref = h_ref @ w2 + b2
    y_ref = proj_ref @ w3 + b3
    assert proj_feat.shape == (B, PROJ_DIM) and y.shape == (B, CLASSNUM)
    assert jnp.allclose(proj_feat, proj_ref, atol=1e-3, rtol=1e-3)
    assert jnp.allclose(y, y_ref, atol=1e-3, rtol=1e-3)

    # bf16 feature-map path (fully fused single-step kernel, bf16 MXU datapath).
    proj_bf, y_bf = effnet_moon_heads(x.astype(jnp.bfloat16),
                                      w1, b1, w2, b2, w3, b3)
    jax.block_until_ready((proj_bf, y_bf))
    assert jnp.allclose(proj_bf, proj_ref, atol=5e-2, rtol=5e-2)
    assert jnp.allclose(y_bf, y_ref, atol=5e-2, rtol=5e-2)

    print("KERNEL_OK")
</pallas_src>

<mosaic_0001>
module attributes {stable_mosaic.version = 11 : i64} {
  func.func @_ktiled_kernel(%arg0: i32, %arg1: i32, %arg2: memref<2x10240xf32, #tpu.memory_space<vmem>>, %arg3: memref<10240x256xf32, #tpu.memory_space<vmem>>, %arg4: memref<1x256xf32, #tpu.memory_space<vmem>>, %arg5: memref<256x256xf32, #tpu.memory_space<vmem>>, %arg6: memref<1x256xf32, #tpu.memory_space<vmem>>, %arg7: memref<256x8xf32, #tpu.memory_space<vmem>>, %arg8: memref<1x8xf32, #tpu.memory_space<vmem>>, %arg9: memref<2x256xf32, #tpu.memory_space<vmem>>, %arg10: memref<2x8xf32, #tpu.memory_space<vmem>>, %arg11: memref<2x256xf32, #tpu.memory_space<vmem>>) attributes {dimension_semantics = [#tpu.dimension_semantics<parallel>, #tpu.dimension_semantics<arbitrary>], iteration_bounds = array<i64: 1, 2>, scalar_prefetch = 0 : i64, scratch_operands = 1 : i64, tpu.core_type = #tpu.core_type<tc>, window_params = [{transform_indices = @transform_0, window_bounds = array<i64: 2, 10240>}, {transform_indices = @transform_1, window_bounds = array<i64: 10240, 256>}, {pipeline_mode = #tpu.pipeline_mode<synchronous>, transform_indices = @transform_2, window_bounds = array<i64: 1, 256>}, {pipeline_mode = #tpu.pipeline_mode<synchronous>, transform_indices = @transform_3, window_bounds = array<i64: 256, 256>}, {pipeline_mode = #tpu.pipeline_mode<synchronous>, transform_indices = @transform_4, window_bounds = array<i64: 1, 256>}, {pipeline_mode = #tpu.pipeline_mode<synchronous>, transform_indices = @transform_5, window_bounds = array<i64: 256, 8>}, {pipeline_mode = #tpu.pipeline_mode<synchronous>, transform_indices = @transform_6, window_bounds = array<i64: 1, 8>}, {transform_indices = @transform_7, window_bounds = array<i64: 2, 256>}, {transform_indices = @transform_8, window_bounds = array<i64: 2, 8>}]} {
    %c0_i32 = arith.constant 0 : i32
    %0 = arith.cmpi eq, %arg1, %c0_i32 : i32
    %1 = arith.extui %0 : i1 to i32
    %c0_i32_0 = arith.constant 0 : i32
    %2 = arith.cmpi ne, %1, %c0_i32_0 : i32
    scf.if %2 {
      %cst_9 = arith.constant 0.000000e+00 : f32
      %12 = vector.broadcast %cst_9 : f32 to vector<2x256xf32>
      %c0_10 = arith.constant 0 : index
      %c0_11 = arith.constant 0 : index
      %13 = vector.load %arg11[%c0_10, %c0_11] : memref<2x256xf32, #tpu.memory_space<vmem>>, vector<2x256xf32>
      tpu.vector_store %arg11[%c0_10, %c0_11], %12 {strides = array<i32>} : memref<2x256xf32, #tpu.memory_space<vmem>>, vector<2x256xf32>,
    } else {
    }
    %c0 = arith.constant 0 : index
    %c0_1 = arith.constant 0 : index
    %3 = vector.load %arg11[%c0, %c0_1] : memref<2x256xf32, #tpu.memory_space<vmem>>, vector<2x256xf32>
    %c0_2 = arith.constant 0 : index
    %c0_3 = arith.constant 0 : index
    %4 = vector.load %arg2[%c0_2, %c0_3] : memref<2x10240xf32, #tpu.memory_space<vmem>>, vector<2x10240xf32>
    %c0_4 = arith.constant 0 : index
    %c0_5 = arith.constant 0 : index
    %5 = vector.load %arg3[%c0_4, %c0_5] : memref<10240x256xf32, #tpu.memory_space<vmem>>, vector<10240x256xf32>
    %cst = arith.constant dense<0.000000e+00> : vector<2x256xf32>
    %6 = tpu.matmul %4, %5, %cst {dimension_numbers = #tpu.dot_dimension_numbers<[1], [0], [0], [1], [0, 0, 1, 1], [], []>} : vector<2x10240xf32>, vector<10240x256xf32>, vector<2x256xf32> -> vector<2x256xf32>
    %7 = arith.addf %3, %6 : vector<2x256xf32>
    %c0_6 = arith.constant 0 : index
    %c0_7 = arith.constant 0 : index
    %8 = vector.load %arg11[%c0_6, %c0_7] : memref<2x256xf32, #tpu.memory_space<vmem>>, vector<2x256xf32>
    tpu.vector_store %arg11[%c0_6, %c0_7], %7 {strides = array<i32>} : memref<2x256xf32, #tpu.memory_space<vmem>>, vector<2x256xf32>,
    %c1_i32 = arith.constant 1 : i32
    %9 = arith.cmpi eq, %arg1, %c1_i32 : i32
    %10 = arith.extui %9 : i1 to i32
    %c0_i32_8 = arith.constant 0 : i32
    %11 = arith.cmpi ne, %10, %c0_i32_8 : i32
    scf.if %11 {
      %c0_9 = arith.constant 0 : index
      %c0_10 = arith.constant 0 : index
      %12 = vector.load %arg11[%c0_9, %c0_10] : memref<2x256xf32, #tpu.memory_space<vmem>>, vector<2x256xf32>
      %c0_11 = arith.constant 0 : index
      %c0_12 = arith.constant 0 : index
      %13 = vector.load %arg4[%c0_11, %c0_12] : memref<1x256xf32, #tpu.memory_space<vmem>>, vector<1x256xf32>
      %14 = vector.broadcast %13 : vector<1x256xf32> to vector<2x256xf32>
      %15 = arith.addf %12, %14 : vector<2x256xf32>
      %cst_13 = arith.constant 0.000000e+00 : f32
      %16 = vector.broadcast %cst_13 : f32 to vector<2x256xf32>
      %17 = arith.maximumf %15, %16 : vector<2x256xf32>
      %c0_14 = arith.constant 0 : index
      %c0_15 = arith.constant 0 : index
      %18 = vector.load %arg5[%c0_14, %c0_15] : memref<256x256xf32, #tpu.memory_space<vmem>>, vector<256x256xf32>
      %cst_16 = arith.constant dense<0.000000e+00> : vector<2x256xf32>
      %19 = tpu.matmul %17, %18, %cst_16 {dimension_numbers = #tpu.dot_dimension_numbers<[1], [0], [0], [1], [0, 0, 1, 1], [], []>} : vector<2x256xf32>, vector<256x256xf32>, vector<2x256xf32> -> vector<2x256xf32>
      %c0_17 = arith.constant 0 : index
      %c0_18 = arith.constant 0 : index
      %20 = vector.load %arg6[%c0_17, %c0_18] : memref<1x256xf32, #tpu.memory_space<vmem>>, vector<1x256xf32>
      %21 = vector.broadcast %20 : vector<1x256xf32> to vector<2x256xf32>
      %22 = arith.addf %19, %21 : vector<2x256xf32>
      %c0_19 = arith.constant 0 : index
      %c0_20 = arith.constant 0 : index
      %23 = vector.load %arg9[%c0_19, %c0_20] : memref<2x256xf32, #tpu.memory_space<vmem>>, vector<2x256xf32>
      tpu.vector_store %arg9[%c0_19, %c0_20], %22 {strides = array<i32>} : memref<2x256xf32, #tpu.memory_space<vmem>>, vector<2x256xf32>,
      %c0_21 = arith.constant 0 : index
      %c0_22 = arith.constant 0 : index
      %24 = vector.load %arg7[%c0_21, %c0_22] : memref<256x8xf32, #tpu.memory_space<vmem>>, vector<256x8xf32>
      %cst_23 = arith.constant dense<0.000000e+00> : vector<2x8xf32>
      %25 = tpu.matmul %22, %24, %cst_23 {dimension_numbers = #tpu.dot_dimension_numbers<[1], [0], [0], [1], [0, 0, 1, 1], [], []>} : vector<2x256xf32>, vector<256x8xf32>, vector<2x8xf32> -> vector<2x8xf32>
      %c0_24 = arith.constant 0 : index
      %c0_25 = arith.constant 0 : index
      %26 = vector.load %arg8[%c0_24, %c0_25] : memref<1x8xf32, #tpu.memory_space<vmem>>, vector<1x8xf32>
      %27 = vector.broadcast %26 : vector<1x8xf32> to vector<2x8xf32>
      %28 = arith.addf %25, %27 : vector<2x8xf32>
      %c0_26 = arith.constant 0 : index
      %c0_27 = arith.constant 0 : index
      %29 = vector.load %arg10[%c0_26, %c0_27] : memref<2x8xf32, #tpu.memory_space<vmem>>, vector<2x8xf32>
      tpu.vector_store %arg10[%c0_26, %c0_27], %28 {strides = array<i32>} : memref<2x8xf32, #tpu.memory_space<vmem>>, vector<2x8xf32>,
    } else {
    }
    return
  }
  func.func @transform_0(%arg0: i32, %arg1: i32) -> (i32, i32) {
    %c0_i32 = arith.constant 0 : i32
    return %arg0, %arg1 : i32, i32
  }
  func.func @transform_1(%arg0: i32, %arg1: i32) -> (i32, i32) {
    %c0_i32 = arith.constant 0 : i32
    %c0_i32_0 = arith.constant 0 : i32
    return %arg1, %c0_i32 : i32, i32
  }
  func.func @transform_2(%arg0: i32, %arg1: i32) -> (i32, i32) {
    %c0_i32 = arith.constant 0 : i32
    %c0_i32_0 = arith.constant 0 : i32
    %c0_i32_1 = arith.constant 0 : i32
    return %c0_i32, %c0_i32_0 : i32, i32
  }
  func.func @transform_3(%arg0: i32, %arg1: i32) -> (i32, i32) {
    %c0_i32 = arith.constant 0 : i32
    %c0_i32_0 = arith.constant 0 : i32
    %c0_i32_1 = arith.constant 0 : i32
    return %c0_i32, %c0_i32_0 : i32, i32
  }
  func.func @transform_4(%arg0: i32, %arg1: i32) -> (i32, i32) {
    %c0_i32 = arith.constant 0 : i32
    %c0_i32_0 = arith.constant 0 : i32
    %c0_i32_1 = arith.constant 0 : i32
    return %c0_i32, %c0_i32_0 : i32, i32
  }
  func.func @transform_5(%arg0: i32, %arg1: i32) -> (i32, i32) {
    %c0_i32 = arith.constant 0 : i32
    %c0_i32_0 = arith.constant 0 : i32
    %c0_i32_1 = arith.constant 0 : i32
    return %c0_i32, %c0_i32_0 : i32, i32
  }
  func.func @transform_6(%arg0: i32, %arg1: i32) -> (i32, i32) {
    %c0_i32 = arith.constant 0 : i32
    %c0_i32_0 = arith.constant 0 : i32
    %c0_i32_1 = arith.constant 0 : i32
    return %c0_i32, %c0_i32_0 : i32, i32
  }
  func.func @transform_7(%arg0: i32, %arg1: i32) -> (i32, i32) {
    %c0_i32 = arith.constant 0 : i32
    %c0_i32_0 = arith.constant 0 : i32
    return %arg0, %c0_i32 : i32, i32
  }
  func.func @transform_8(%arg0: i32, %arg1: i32) -> (i32, i32) {
    %c0_i32 = arith.constant 0 : i32
    %c0_i32_0 = arith.constant 0 : i32
    return %arg0, %c0_i32 : i32, i32
  }
}

</mosaic_0001>

<llo_original>
// kernel: effnet_moon_heads.1
$region0: #{effnet_moon_heads.1}
  #allocation0 [shape = 'u32[]', space=smem, size = 0x4, offset = 0x4, fixed_abs, tag = 'smem constant byte address 0x4 - core index']
  #allocation1 [shape = 'u32[72,128]{1,0:T(1,128)}', space=vmem, size = 0x9000, scoped, tag = 'internal scratch']
  #allocation2 [shape = 'f32[2,256]{1,0:T(2,128)}', space=vmem, size = 0x800, scoped, tag = 'scratch operand']
  %s0 = inlined_call_operand.vmem [shape: f32[2,20480], index: 0, kind: input, shape index: {}]
  %s1 = inlined_call_operand.vmem [shape: f32[20480,256], index: 1, kind: input, shape index: {}]
  %s2 = inlined_call_operand.vmem [shape: f32[1,256], index: 2, kind: input, shape index: {}]
  %s3 = inlined_call_operand.vmem [shape: f32[256,256], index: 3, kind: input, shape index: {}]
  %s4 = inlined_call_operand.vmem [shape: f32[1,256], index: 4, kind: input, shape index: {}]
  %s5 = inlined_call_operand.vmem [shape: f32[256,8], index: 5, kind: input, shape index: {}]
  %s6 = inlined_call_operand.vmem [shape: f32[1,8], index: 6, kind: input, shape index: {}]
  %s7 = inlined_call_operand.hbm [shape: f32[2,256], index: 7, kind: output, shape index: {0}]
  %s8 = inlined_call_operand.hbm [shape: f32[2,8], index: 8, kind: output, shape index: {1}]
  %9 = xla_tuple %s7, %s8
  %s10 = sld [smem:[#allocation0]]
  $region77: #{effnet_moon_heads.1} parent=0
    _
  %s12 = ssub.s32 1, %s10
  %s13 = scalar_select 0, %s12, %s10
  $region1: #{effnet_moon_heads.1} parent=0
    #allocation3 [shape = 'u8[2048]{0}', space=vmem, size = 0x800, scoped, tag = 'output window, operand 0, single buffered']
    #allocation4 [shape = 's32[2]{0}', space=sflag, size = 0x8, scoped, tag = 'scoped memory for effnet_moon_heads.1']
    #allocation5 [shape = 'u8[1024]{0}', space=vmem, size = 0x400, scoped, tag = 'output window, operand 1, single buffered']
    #allocation6 [shape = 's32[1]{0}', space=sflag, size = 0x4, scoped, tag = 'scoped memory for effnet_moon_heads.1']
    %14 = vsyncpa [#allocation4], 0
    %15 = vsyncpa [#allocation6], 0
    loop: start=0, step=1, limit=4
    $region2: #{effnet_moon_heads.1} parent=1 // loop_pre_header
      _
    $region3: #{effnet_moon_heads.1} parent=1 // loop_header
      %s17 = sphi 0, %s21
      %p18 = scmp.ge.s32.totalorder %s17, 4
      %s24 = sphi 0, %s36
      %s25 = sphi 0, %s32
      %s26 = sphi 0, %s24
      %s27 = sphi 0, %s25
      %s28 = sphi 0, %s26
      %s29 = sphi 0, %s27
      %s41 = sphi 0, %s43
      %s44 = sphi 0, %s41
      %s45 = sphi 0, %s44
      %s61 = sphi 0, %s45
      %s67 = sphi 0, %s69
      %s70 = sphi 0, %s67
      %s71 = sphi 0, %s70
      %s87 = sphi 0, %s71
      %s91 = sphi 0, %s91
      %s93 = sphi 0, %s91
      %s94 = sphi 0, %s93
      %s108 = sphi 0, %s94
      %s112 = sphi 0, %s112
      %s114 = sphi 0, %s112
      %s115 = sphi 0, %s114
      %s129 = sphi 0, %s115
      %s133 = sphi 0, %s133
      %s135 = sphi 0, %s133
      %s136 = sphi 0, %s135
      %s150 = sphi 0, %s136
      %s154 = sphi 0, %s154
      %s156 = sphi 0, %s154
      %s157 = sphi 0, %s156
      %s171 = sphi 0, %s157
      %s175 = sphi 0, %s175
      %s177 = sphi 0, %s175
      %s178 = sphi 0, %s177
      %s192 = sphi 0, %s178
      %s198 = sphi 0, %s200
      %s201 = sphi 0, %s198
      %s202 = sphi 0, %s201
      %s218 = sphi 0, %s202
      %s224 = sphi 0, %s226
      %s227 = sphi 0, %s224
      %s228 = sphi 0, %s227
      %s244 = sphi 0, %s228
    $region4: #{effnet_moon_heads.1} parent=1 // loop_header_branch
      %20 = sbr.rel (%p18) target = $region8
    $region5: #{effnet_moon_heads.1} parent=1 // loop_body
      %s22 = ssub.s32 %s17, 1
      %s23 = ssub.s32 %s17, 2
      %s30 = sadd.s32 1, %s25
      %p31 = scmp.ge.s32.totalorder %s30, 2
      %s32 = scalar_select %p31, 0, %s30
      %s33 = sadd.s32 1, %s24
      %s34 = scalar_select %p31, %s33, %s24
      %p35 = scmp.ge.s32.totalorder %s34, 1
      %s36 = scalar_select %p35, 0, %s34
      %s37 = ssub.s32 %s24, %s36
      %s38 = ssub.s32 %s25, %s32
      %s39 = sor.u32 %s37, %s38
      %p40 = scmp.eq.s32.totalorder %s39, 0
      %s42 = sadd.s32 %s41, 1
      %s43 = scalar_select %p40, %s41, %s42
      %p46 = pneg %p40
      %p47 = scmp.eq.s32.totalorder %s17, 1
      %p48 = por %p46, %p47
      %p49 = scmp.ne.s32.totalorder %s41, %s44
      %p50 = scmp.eq.s32.totalorder %s17, 0
      %p51 = por %p49, %p50
      %p52 = scmp.ne.s32.totalorder %s41, %s44
      %p53 = scmp.eq.s32.totalorder %s22, 1
      %p54 = por %p52, %p53
      %p55 = scmp.ne.s32.totalorder %s44, %s45
      %p56 = scmp.eq.s32.totalorder %s22, 0
      %p57 = por %p55, %p56
      %p58 = scmp.ne.s32.totalorder %s44, %s45
      %p59 = scmp.eq.s32.totalorder %s23, 1
      %p60 = por %p58, %p59
      %p62 = scmp.ne.s32.totalorder %s45, %s61
      %p63 = scmp.eq.s32.totalorder %s23, 0
      %p64 = por %p62, %p63
      %s65 = ssub.s32 %s25, %s32
      %p66 = scmp.eq.s32.totalorder %s65, 0
      %s68 = sadd.s32 %s67, 1
      %s69 = scalar_select %p66, %s67, %s68
      %p72 = pneg %p66
      %p73 = scmp.eq.s32.totalorder %s17, 1
      %p74 = por %p72, %p73
      %p75 = scmp.ne.s32.totalorder %s67, %s70
      %p76 = scmp.eq.s32.totalorder %s17, 0
      %p77 = por %p75, %p76
      %p78 = scmp.ne.s32.totalorder %s67, %s70
      %p79 = scmp.eq.s32.totalorder %s22, 1
      %p80 = por %p78, %p79
      %p81 = scmp.ne.s32.totalorder %s70, %s71
      %p82 = scmp.eq.s32.totalorder %s22, 0
      %p83 = por %p81, %p82
      %p84 = scmp.ne.s32.totalorder %s70, %s71
      %p85 = scmp.eq.s32.totalorder %s23, 1
      %p86 = por %p84, %p85
      %p88 = scmp.ne.s32.totalorder %s71, %s87
      %p89 = scmp.eq.s32.totalorder %s23, 0
      %p90 = por %p88, %p89
      %s92 = sadd.s32 %s91, 1
      %p95 = scmp.eq.s32.totalorder %s17, 1
      %p96 = scmp.ne.s32.totalorder %s91, %s93
      %p97 = scmp.eq.s32.totalorder %s17, 0
      %p98 = por %p96, %p97
      %p99 = scmp.ne.s32.totalorder %s91, %s93
      %p100 = scmp.eq.s32.totalorder %s22, 1
      %p101 = por %p99, %p100
      %p102 = scmp.ne.s32.totalorder %s93, %s94
      %p103 = scmp.eq.s32.totalorder %s22, 0
      %p104 = por %p102, %p103
      %p105 = scmp.ne.s32.totalorder %s93, %s94
      %p106 = scmp.eq.s32.totalorder %s23, 1
      %p107 = por %p105, %p106
      %p109 = scmp.ne.s32.totalorder %s94, %s108
      %p110 = scmp.eq.s32.totalorder %s23, 0
      %p111 = por %p109, %p110
      %s113 = sadd.s32 %s112, 1
      %p116 = scmp.eq.s32.totalorder %s17, 1
      %p117 = scmp.ne.s32.totalorder %s112, %s114
      %p118 = scmp.eq.s32.totalorder %s17, 0
      %p119 = por %p117, %p118
      %p120 = scmp.ne.s32.totalorder %s112, %s114
      %p121 = scmp.eq.s32.totalorder %s22, 1
      %p122 = por %p120, %p121
      %p123 = scmp.ne.s32.totalorder %s114, %s115
      %p124 = scmp.eq.s32.totalorder %s22, 0
      %p125 = por %p123, %p124
      %p126 = scmp.ne.s32.totalorder %s114, %s115
      %p127 = scmp.eq.s32.totalorder %s23, 1
      %p128 = por %p126, %p127
      %p130 = scmp.ne.s32.totalorder %s115, %s129
      %p131 = scmp.eq.s32.totalorder %s23, 0
      %p132 = por %p130, %p131
      %s134 = sadd.s32 %s133, 1
      %p137 = scmp.eq.s32.totalorder %s17, 1
      %p138 = scmp.ne.s32.totalorder %s133, %s135
      %p139 = scmp.eq.s32.totalorder %s17, 0
      %p140 = por %p138, %p139
      %p141 = scmp.ne.s32.totalorder %s133, %s135
      %p142 = scmp.eq.s32.totalorder %s22, 1
      %p143 = por %p141, %p142
      %p144 = scmp.ne.s32.totalorder %s135, %s136
      %p145 = scmp.eq.s32.totalorder %s22, 0
      %p146 = por %p144, %p145
      %p147 = scmp.ne.s32.totalorder %s135, %s136
      %p148 = scmp.eq.s32.totalorder %s23, 1
      %p149 = por %p147, %p148
      %p151 = scmp.ne.s32.totalorder %s136, %s150
      %p152 = scmp.eq.s32.totalorder %s23, 0
      %p153 = por %p151, %p152
      %s155 = sadd.s32 %s154, 1
      %p158 = scmp.eq.s32.totalorder %s17, 1
      %p159 = scmp.ne.s32.totalorder %s154, %s156
      %p160 = scmp.eq.s32.totalorder %s17, 0
      %p161 = por %p159, %p160
      %p162 = scmp.ne.s32.totalorder %s154, %s156
      %p163 = scmp.eq.s32.totalorder %s22, 1
      %p164 = por %p162, %p163
      %p165 = scmp.ne.s32.totalorder %s156, %s157
      %p166 = scmp.eq.s32.totalorder %s22, 0
      %p167 = por %p165, %p166
      %p168 = scmp.ne.s32.totalorder %s156, %s157
      %p169 = scmp.eq.s32.totalorder %s23, 1
      %p170 = por %p168, %p169
      %p172 = scmp.ne.s32.totalorder %s157, %s171
      %p173 = scmp.eq.s32.totalorder %s23, 0
      %p174 = por %p172, %p173
      %s176 = sadd.s32 %s175, 1
      %p179 = scmp.eq.s32.totalorder %s17, 1
      %p180 = scmp.ne.s32.totalorder %s175, %s177
      %p181 = scmp.eq.s32.totalorder %s17, 0
      %p182 = por %p180, %p181
      %p183 = scmp.ne.s32.totalorder %s175, %s177
      %p184 = scmp.eq.s32.totalorder %s22, 1
      %p185 = por %p183, %p184
      %p186 = scmp.ne.s32.totalorder %s177, %s178
      %p187 = scmp.eq.s32.totalorder %s22, 0
      %p188 = por %p186, %p187
      %p189 = scmp.ne.s32.totalorder %s177, %s178
      %p190 = scmp.eq.s32.totalorder %s23, 1
      %p191 = por %p189, %p190
      %p193 = scmp.ne.s32.totalorder %s178, %s192
      %p194 = scmp.eq.s32.totalorder %s23, 0
      %p195 = por %p193, %p194
      %s196 = ssub.s32 %s24, %s36
      %p197 = scmp.eq.s32.totalorder %s196, 0
      %s199 = sadd.s32 %s198, 1
      %s200 = scalar_select %p197, %s198, %s199
      %p203 = pneg %p197
      %p204 = scmp.eq.s32.totalorder %s17, 1
      %p205 = por %p203, %p204
      %p206 = scmp.ne.s32.totalorder %s198, %s201
      %p207 = scmp.eq.s32.totalorder %s17, 0
      %p208 = por %p206, %p207
      %p209 = scmp.ne.s32.totalorder %s198, %s201
      %p210 = scmp.eq.s32.totalorder %s22, 1
      %p211 = por %p209, %p210
      %p212 = scmp.ne.s32.totalorder %s201, %s202
      %p213 = scmp.eq.s32.totalorder %s22, 0
      %p214 = por %p212, %p213
      %p215 = scmp.ne.s32.totalorder %s201, %s202
      %p216 = scmp.eq.s32.totalorder %s23, 1
      %p217 = por %p215, %p216
      %p219 = scmp.ne.s32.totalorder %s202, %s218
      %p220 = scmp.eq.s32.totalorder %s23, 0
      %p221 = por %p219, %p220
      %s222 = ssub.s32 %s24, %s36
      %p223 = scmp.eq.s32.totalorder %s222, 0
      %s225 = sadd.s32 %s224, 1
      %s226 = scalar_select %p223, %s224, %s225
      %p229 = pneg %p223
      %p230 = scmp.eq.s32.totalorder %s17, 1
      %p231 = por %p229, %p230
      %p232 = scmp.ne.s32.totalorder %s224, %s227
      %p233 = scmp.eq.s32.totalorder %s17, 0
      %p234 = por %p232, %p233
      %p235 = scmp.ne.s32.totalorder %s224, %s227
      %p236 = scmp.eq.s32.totalorder %s22, 1
      %p237 = por %p235, %p236
      %p238 = scmp.ne.s32.totalorder %s227, %s228
      %p239 = scmp.eq.s32.totalorder %s22, 0
      %p240 = por %p238, %p239
      %p241 = scmp.ne.s32.totalorder %s227, %s228
      %p242 = scmp.eq.s32.totalorder %s23, 1
      %p243 = por %p241, %p242
      %p245 = scmp.ne.s32.totalorder %s228, %s244
      %p246 = scmp.eq.s32.totalorder %s23, 0
      %p247 = por %p245, %p246
      %p248 = scmp.le.s32.totalorder 1, %s17
      %p249 = scmp.lt.s32.totalorder %s17, 3
      %p250 = pnand %p248, %p249
      %p251 = pneg %p250
      // Predicated region
      $region9: #{effnet_moon_heads.1} parent=5 // pred_check
        _
      $region10: #{effnet_moon_heads.1} parent=5 // pred_check_branch
        %253 = sbr.rel (%p250) target = $region12
      $region11: #{effnet_moon_heads.1} parent=5 // pred_region
        %s254 = ssub.s32 %s17, 1
        // Predicated region
        $region13: #{effnet_moon_heads.1} parent=11 // pred_check
          %p255 = pneg %p104
        $region14: #{effnet_moon_heads.1} parent=11 // pred_check_branch
          %257 = sbr.rel (%p255) target = $region16
        $region15: #{effnet_moon_heads.1} parent=11 // pred_region
          _
        $region16: #{effnet_moon_heads.1} parent=11 // pred_fallthru
          _
        // Predicated region
        $region17: #{effnet_moon_heads.1} parent=11 // pred_check
          %p258 = pneg %p125
        $region18: #{effnet_moon_heads.1} parent=11 // pred_check_branch
          %260 = sbr.rel (%p258) target = $region20
        $region19: #{effnet_moon_heads.1} parent=11 // pred_region
          _
        $region20: #{effnet_moon_heads.1} parent=11 // pred_fallthru
          _
        // Predicated region
        $region21: #{effnet_moon_heads.1} parent=11 // pred_check
          %p261 = pneg %p146
        $region22: #{effnet_moon_heads.1} parent=11 // pred_check_branch
          %263 = sbr.rel (%p261) target = $region24
        $region23: #{effnet_moon_heads.1} parent=11 // pred_region
          _
        $region24: #{effnet_moon_heads.1} parent=11 // pred_fallthru
          _
        // Predicated region
        $region25: #{effnet_moon_heads.1} parent=11 // pred_check
          %p264 = pneg %p167
        $region26: #{effnet_moon_heads.1} parent=11 // pred_check_branch
          %266 = sbr.rel (%p264) target = $region28
        $region27: #{effnet_moon_heads.1} parent=11 // pred_region
          _
        $region28: #{effnet_moon_heads.1} parent=11 // pred_fallthru
          _
        // Predicated region
        $region29: #{effnet_moon_heads.1} parent=11 // pred_check
          %p267 = pneg %p188
        $region30: #{effnet_moon_heads.1} parent=11 // pred_check_branch
          %269 = sbr.rel (%p267) target = $region32
        $region31: #{effnet_moon_heads.1} parent=11 // pred_region
          _
        $region32: #{effnet_moon_heads.1} parent=11 // pred_fallthru
          _
      $region12: #{effnet_moon_heads.1} parent=5 // pred_fallthru
        _
      %p270 = scmp.lt.s32.totalorder %s17, 2
      // Predicated region
      $region33: #{effnet_moon_heads.1} parent=5 // pred_check
        %p271 = pneg %p270
      $region34: #{effnet_moon_heads.1} parent=5 // pred_check_branch
        %273 = sbr.rel (%p271) target = $region36
      $region35: #{effnet_moon_heads.1} parent=5 // pred_region
        // Predicated region
        $region37: #{effnet_moon_heads.1} parent=35 // pred_check
          %p274 = pneg %p51
        $region38: #{effnet_moon_heads.1} parent=35 // pred_check_branch
          %276 = sbr.rel (%p274) target = $region40
        $region39: #{effnet_moon_heads.1} parent=35 // pred_region
          %s277 = smul.u32 80, %s25
          %p278 = scmp.lt.s32.totalorder %s24, 0
          %s279 = scalar_select %p278, %s24, 0
          %p280 = scmp.lt.s32.totalorder %s277, 159
          %s281 = scalar_select %p280, %s277, 159
          %s282 = smul.addr %s279, 160
          %s283 = sadd.s32 %s281, %s282
          %s284 = smul.addr %s283, 2
          %s285 = scalar_lea.vmem %s0, %s284
          %s286 = smul.u32 80, %s25
        $region40: #{effnet_moon_heads.1} parent=35 // pred_fallthru
          _
        // Predicated region
        $region41: #{effnet_moon_heads.1} parent=35 // pred_check
          %p287 = pneg %p77
        $region42: #{effnet_moon_heads.1} parent=35 // pred_check_branch
          %289 = sbr.rel (%p287) target = $region44
        $region43: #{effnet_moon_heads.1} parent=35 // pred_region
          %s290 = smul.u32 1280, %s25
          %p291 = scmp.lt.s32.totalorder %s290, 2559
          %s292 = scalar_select %p291, %s290, 2559
          %s293 = smul.addr %s292, 2
          %s294 = smul.addr %s293, 8
          %s295 = scalar_lea.vmem %s1, %s294
          %s296 = smul.u32 1280, %s25
        $region44: #{effnet_moon_heads.1} parent=35 // pred_fallthru
          _
      $region36: #{effnet_moon_heads.1} parent=5 // pred_fallthru
        _
      %p297 = scmp.le.s32.totalorder 1, %s17
      %p298 = scmp.lt.s32.totalorder %s17, 3
      %p299 = pnand %p297, %p298
      %p300 = pneg %p299
      // Predicated region
      $region45: #{effnet_moon_heads.1} parent=5 // pred_check
        _
      $region46: #{effnet_moon_heads.1} parent=5 // pred_check_branch
        %302 = sbr.rel (%p299) target = $region48
      $region47: #{effnet_moon_heads.1} parent=5 // pred_region
        %s303 = ssub.s32 %s17, 1
        %s304 = smul.u32 80, %s27
        %p305 = scmp.lt.s32.totalorder %s26, 0
        %s306 = scalar_select %p305, %s26, 0
        %p307 = scmp.lt.s32.totalorder %s304, 159
        %s308 = scalar_select %p307, %s304, 159
        %s309 = smul.addr %s306, 160
        %s310 = sadd.s32 %s308, %s309
        %s311 = smul.addr %s310, 2
        %s312 = scalar_lea.vmem %s0, %s311
        %p313 = pneg %p57
        %p314 = pneg %p54
        %s315 = smul.u32 1280, %s27
        %p316 = scmp.lt.s32.totalorder %s315, 2559
        %s317 = scalar_select %p316, %s315, 2559
        %s318 = smul.addr %s317, 2
        %s319 = smul.addr %s318, 8
        %s320 = scalar_lea.vmem %s1, %s319
        %p321 = pneg %p83
        %p322 = pneg %p80
        %p323 = pneg %p104
        %p324 = pneg %p101
        %p325 = pneg %p125
        %p326 = pneg %p122
        %p327 = pneg %p146
        %p328 = pneg %p143
        %p329 = pneg %p167
        %p330 = pneg %p164
        %p331 = pneg %p188
        %p332 = pneg %p185
        %p333 = pneg %p214
        %p334 = pneg %p211
        %p335 = pneg %p240
        %p336 = pneg %p237
        %s337 = smul.u32 80, %s27
        %p338 = scmp.lt.s32.totalorder %s26, 0
        %s339 = scalar_select %p338, %s26, 0
        %p340 = scmp.lt.s32.totalorder %s337, 159
        %s341 = scalar_select %p340, %s337, 159
        %s342 = smul.addr %s339, 160
        %s343 = sadd.s32 %s341, %s342
        %s344 = smul.addr %s343, 2
        %s345 = scalar_lea.vmem %s0, %s344
        %s346 = smul.u32 80, %s27
        %s347 = smul.u32 1280, %s27
        %p348 = scmp.lt.s32.totalorder %s347, 2559
        %s349 = scalar_select %p348, %s347, 2559
        %s350 = smul.addr %s349, 2
        %s351 = smul.addr %s350, 8
        %s352 = scalar_lea.vmem %s1, %s351
        %s353 = smul.u32 1280, %s27
        %p354 = scmp.eq.s32.totalorder %s27, 0
        // Predicated region
        $region49: #{effnet_moon_heads.1} parent=47 // pred_check
          %p355 = pneg %p354
        $region50: #{effnet_moon_heads.1} parent=47 // pred_check_branch
          %357 = sbr.rel (%p355) target = $region52
        $region51: #{effnet_moon_heads.1} parent=47 // pred_region
          %358 = vst [vmem:[#allocation2] sm:$0xf] 0.0
        $region52: #{effnet_moon_heads.1} parent=47 // pred_fallthru
          _
        %v359 = vld [vmem:[#allocation2] sm:$0xf]
        %v360 = vld [vmem:[%s345] sm:$0xff]
        %v361 = vld [vmem:[%s345 + $0x8] sm:$0xff]
        %v362 = vld [vmem:[%s345 + $0x10] sm:$0xff]
        %v363 = vld [vmem:[%s345 + $0x18] sm:$0xff]
        %v364 = vld [vmem:[%s345 + $0x20] sm:$0xff]
        %v365 = vld [vmem:[%s345 + $0x28] sm:$0xff]
        %v366 = vld [vmem:[%s345 + $0x30] sm:$0xff]
        %v367 = vld [vmem:[%s345 + $0x38] sm:$0xff]
        %v368 = vld [vmem:[%s345 + $0x40] sm:$0xff]
        %v369 = vld [vmem:[%s345 + $0x48] sm:$0xff]
        %v370 = vld [vmem:[%s345 + $0x50] sm:$0xff]
        %v371 = vld [vmem:[%s345 + $0x58] sm:$0xff]
        %v372 = vld [vmem:[%s345 + $0x60] sm:$0xff]
        %v373 = vld [vmem:[%s345 + $0x68] sm:$0xff]
        %v374 = vld [vmem:[%s345 + $0x70] sm:$0xff]
        %v375 = vld [vmem:[%s345 + $0x78] sm:$0xff]
        %v376 = vld [vmem:[%s345 + $0x80] sm:$0xff]
        %v377 = vld [vmem:[%s345 + $0x88] sm:$0xff]
        %v378 = vld [vmem:[%s345 + $0x90] sm:$0xff]
        %v379 = vld [vmem:[%s345 + $0x98] sm:$0xff]
        %v380 = vld [vmem:[%s352] sm:$0xff]
        %v381 = vld [vmem:[%s352 + $0x8] sm:$0xff]
        %v382 = vld [vmem:[%s352 + $0x10] sm:$0xff]
        %v383 = vld [vmem:[%s352 + $0x18] sm:$0xff]
        %v384 = vld [vmem:[%s352 + $0x20] sm:$0xff]
        %v385 = vld [vmem:[%s352 + $0x28] sm:$0xff]
        %v386 = vld [vmem:[%s352 + $0x30] sm:$0xff]
        %v387 = vld [vmem:[%s352 + $0x38] sm:$0xff]
        %v388 = vld [vmem:[%s352 + $0x40] sm:$0xff]
        %v389 = vld [vmem:[%s352 + $0x48] sm:$0xff]
        %v390 = vld [vmem:[%s352 + $0x50] sm:$0xff]
        %v391 = vld [vmem:[%s352 + $0x58] sm:$0xff]
        %v392 = vld [vmem:[%s352 + $0x60] sm:$0xff]
        %v393 = vld [vmem:[%s352 + $0x68] sm:$0xff]
        %v394 = vld [vmem:[%s352 + $0x70] sm:$0xff]
        %v395 = vld [vmem:[%s352 + $0x78] sm:$0xff]
        %v396 = vld [vmem:[%s352 + $0x80] sm:$0xff]
        %v397 = vld [vmem:[%s352 + $0x88] sm:$0xff]
        %v398 = vld [vmem:[%s352 + $0x90] sm:$0xff]
        %v399 = vld [vmem:[%s352 + $0x98] sm:$0xff]
        %v400 = vld [vmem:[%s352 + $0xa0] sm:$0xff]
        %v401 = vld [vmem:[%s352 + $0xa8] sm:$0xff]
        %v402 = vld [vmem:[%s352 + $0xb0] sm:$0xff]
        %v403 = vld [vmem:[%s352 + $0xb8] sm:$0xff]
        %v404 = vld [vmem:[%s352 + $0xc0] sm:$0xff]
        %v405 = vld [vmem:[%s352 + $0xc8] sm:$0xff]
        %v406 = vld [vmem:[%s352 + $0xd0] sm:$0xff]
        %v407 = vld [vmem:[%s352 + $0xd8] sm:$0xff]
        %v408 = vld [vmem:[%s352 + $0xe0] sm:$0xff]
        %v409 = vld [vmem:[%s352 + $0xe8] sm:$0xff]
        %v410 = vld [vmem:[%s352 + $0xf0] sm:$0xff]
        %v411 = vld [vmem:[%s352 + $0xf8] sm:$0xff]
        %v412 = vld [vmem:[%s352 + $0x100] sm:$0xff]
        %v413 = vld [vmem:[%s352 + $0x108] sm:$0xff]
        %v414 = vld [vmem:[%s352 + $0x110] sm:$0xff]
        %v415 = vld [vmem:[%s352 + $0x118] sm:$0xff]
        %v416 = vld [vmem:[%s352 + $0x120] sm:$0xff]
        %v417 = vld [vmem:[%s352 + $0x128] sm:$0xff]
        %v418 = vld [vmem:[%s352 + $0x130] sm:$0xff]
        %v419 = vld [vmem:[%s352 + $0x138] sm:$0xff]
        %v420 = vld [vmem:[%s352 + $0x140] sm:$0xff]
        %v421 = vld [vmem:[%s352 + $0x148] sm:$0xff]
        %v422 = vld [vmem:[%s352 + $0x150] sm:$0xff]
        %v423 = vld [vmem:[%s352 + $0x158] sm:$0xff]
        %v424 = vld [vmem:[%s352 + $0x160] sm:$0xff]
        %v425 = vld [vmem:[%s352 + $0x168] sm:$0xff]
        %v426 = vld [vmem:[%s352 + $0x170] sm:$0xff]
        %v427 = vld [vmem:[%s352 + $0x178] sm:$0xff]
        %v428 = vld [vmem:[%s352 + $0x180] sm:$0xff]
        %v429 = vld [vmem:[%s352 + $0x188] sm:$0xff]
        %v430 = vld [vmem:[%s352 + $0x190] sm:$0xff]
        %v431 = vld [vmem:[%s352 + $0x198] sm:$0xff]
        %v432 = vld [vmem:[%s352 + $0x1a0] sm:$0xff]
        %v433 = vld [vmem:[%s352 + $0x1a8] sm:$0xff]
        %v434 = vld [vmem:[%s352 + $0x1b0] sm:$0xff]
        %v435 = vld [vmem:[%s352 + $0x1b8] sm:$0xff]
        %v436 = vld [vmem:[%s352 + $0x1c0] sm:$0xff]
        %v437 = vld [vmem:[%s352 + $0x1c8] sm:$0xff]
        %v438 = vld [vmem:[%s352 + $0x1d0] sm:$0xff]
        %v439 = vld [vmem:[%s352 + $0x1d8] sm:$0xff]
        %v440 = vld [vmem:[%s352 + $0x1e0] sm:$0xff]
        %v441 = vld [vmem:[%s352 + $0x1e8] sm:$0xff]
        %v442 = vld [vmem:[%s352 + $0x1f0] sm:$0xff]
        %v443 = vld [vmem:[%s352 + $0x1f8] sm:$0xff]
        %v444 = vld [vmem:[%s352 + $0x200] sm:$0xff]
        %v445 = vld [vmem:[%s352 + $0x208] sm:$0xff]
        %v446 = vld [vmem:[%s352 + $0x210] sm:$0xff]
        %v447 = vld [vmem:[%s352 + $0x218] sm:$0xff]
        %v448 = vld [vmem:[%s352 + $0x220] sm:$0xff]
        %v449 = vld [vmem:[%s352 + $0x228] sm:$0xff]
        %v450 = vld [vmem:[%s352 + $0x230] sm:$0xff]
        %v451 = vld [vmem:[%s352 + $0x238] sm:$0xff]
        %v452 = vld [vmem:[%s352 + $0x240] sm:$0xff]
        %v453 = vld [vmem:[%s352 + $0x248] sm:$0xff]
        %v454 = vld [vmem:[%s352 + $0x250] sm:$0xff]
        %v455 = vld [vmem:[%s352 + $0x258] sm:$0xff]
        %v456 = vld [vmem:[%s352 + $0x260] sm:$0xff]
        %v457 = vld [vmem:[%s352 + $0x268] sm:$0xff]
        %v458 = vld [vmem:[%s352 + $0x270] sm:$0xff]
        %v459 = vld [vmem:[%s352 + $0x278] sm:$0xff]
        %v460 = vld [vmem:[%s352 + $0x280] sm:$0xff]
        %v461 = vld [vmem:[%s352 + $0x288] sm:$0xff]
        %v462 = vld [vmem:[%s352 + $0x290] sm:$0xff]
        %v463 = vld [vmem:[%s352 + $0x298] sm:$0xff]
        %v464 = vld [vmem:[%s352 + $0x2a0] sm:$0xff]
        %v465 = vld [vmem:[%s352 + $0x2a8] sm:$0xff]
        %v466 = vld [vmem:[%s352 + $0x2b0] sm:$0xff]
        %v467 = vld [vmem:[%s352 + $0x2b8] sm:$0xff]
        %v468 = vld [vmem:[%s352 + $0x2c0] sm:$0xff]
        %v469 = vld [vmem:[%s352 + $0x2c8] sm:$0xff]
        %v470 = vld [vmem:[%s352 + $0x2d0] sm:$0xff]
        %v471 = vld [vmem:[%s352 + $0x2d8] sm:$0xff]
        %v472 = vld [vmem:[%s352 + $0x2e0] sm:$0xff]
        %v473 = vld [vmem:[%s352 + $0x2e8] sm:$0xff]
        %v474 = vld [vmem:[%s352 + $0x2f0] sm:$0xff]
        %v475 = vld [vmem:[%s352 + $0x2f8] sm:$0xff]
        %v476 = vld [vmem:[%s352 + $0x300] sm:$0xff]
        %v477 = vld [vmem:[%s352 + $0x308] sm:$0xff]
        %v478 = vld [vmem:[%s352 + $0x310] sm:$0xff]
        %v479 = vld [vmem:[%s352 + $0x318] sm:$0xff]
        %v480 = vld [vmem:[%s352 + $0x320] sm:$0xff]
        %v481 = vld [vmem:[%s352 + $0x328] sm:$0xff]
        %v482 = vld [vmem:[%s352 + $0x330] sm:$0xff]
        %v483 = vld [vmem:[%s352 + $0x338] sm:$0xff]
        %v484 = vld [vmem:[%s352 + $0x340] sm:$0xff]
        %v485 = vld [vmem:[%s352 + $0x348] sm:$0xff]
        %v486 = vld [vmem:[%s352 + $0x350] sm:$0xff]
        %v487 = vld [vmem:[%s352 + $0x358] sm:$0xff]
        %v488 = vld [vmem:[%s352 + $0x360] sm:$0xff]
        %v489 = vld [vmem:[%s352 + $0x368] sm:$0xff]
        %v490 = vld [vmem:[%s352 + $0x370] sm:$0xff]
        %v491 = vld [vmem:[%s352 + $0x378] sm:$0xff]
        %v492 = vld [vmem:[%s352 + $0x380] sm:$0xff]
        %v493 = vld [vmem:[%s352 + $0x388] sm:$0xff]
        %v494 = vld [vmem:[%s352 + $0x390] sm:$0xff]
        %v495 = vld [vmem:[%s352 + $0x398] sm:$0xff]
        %v496 = vld [vmem:[%s352 + $0x3a0] sm:$0xff]
        %v497 = vld [vmem:[%s352 + $0x3a8] sm:$0xff]
        %v498 = vld [vmem:[%s352 + $0x3b0] sm:$0xff]
        %v499 = vld [vmem:[%s352 + $0x3b8] sm:$0xff]
        %v500 = vld [vmem:[%s352 + $0x3c0] sm:$0xff]
        %v501 = vld [vmem:[%s352 + $0x3c8] sm:$0xff]
        %v502 = vld [vmem:[%s352 + $0x3d0] sm:$0xff]
        %v503 = vld [vmem:[%s352 + $0x3d8] sm:$0xff]
        %v504 = vld [vmem:[%s352 + $0x3e0] sm:$0xff]
        %v505 = vld [vmem:[%s352 + $0x3e8] sm:$0xff]
        %v506 = vld [vmem:[%s352 + $0x3f0] sm:$0xff]
        %v507 = vld [vmem:[%s352 + $0x3f8] sm:$0xff]
        %v508 = vld [vmem:[%s352 + $0x400] sm:$0xff]
        %v509 = vld [vmem:[%s352 + $0x408] sm:$0xff]
        %v510 = vld [vmem:[%s352 + $0x410] sm:$0xff]
        %v511 = vld [vmem:[%s352 + $0x418] sm:$0xff]
        %v512 = vld [vmem:[%s352 + $0x420] sm:$0xff]
        %v513 = vld [vmem:[%s352 + $0x428] sm:$0xff]
        %v514 = vld [vmem:[%s352 + $0x430] sm:$0xff]
        %v515 = vld [vmem:[%s352 + $0x438] sm:$0xff]
        %v516 = vld [vmem:[%s352 + $0x440] sm:$0xff]
        %v517 = vld [vmem:[%s352 + $0x448] sm:$0xff]
        %v518 = vld [vmem:[%s352 + $0x450] sm:$0xff]
        %v519 = vld [vmem:[%s352 + $0x458] sm:$0xff]
        %v520 = vld [vmem:[%s352 + $0x460] sm:$0xff]
        %v521 = vld [vmem:[%s352 + $0x468] sm:$0xff]
        %v522 = vld [vmem:[%s352 + $0x470] sm:$0xff]
        %v523 = vld [vmem:[%s352 + $0x478] sm:$0xff]
        %v524 = vld [vmem:[%s352 + $0x480] sm:$0xff]
        %v525 = vld [vmem:[%s352 + $0x488] sm:$0xff]
        %v526 = vld [vmem:[%s352 + $0x490] sm:$0xff]
        %v527 = vld [vmem:[%s352 + $0x498] sm:$0xff]
        %v528 = vld [vmem:[%s352 + $0x4a0] sm:$0xff]
        %v529 = vld [vmem:[%s352 + $0x4a8] sm:$0xff]
        %v530 = vld [vmem:[%s352 + $0x4b0] sm:$0xff]
        %v531 = vld [vmem:[%s352 + $0x4b8] sm:$0xff]
        %v532 = vld [vmem:[%s352 + $0x4c0] sm:$0xff]
        %v533 = vld [vmem:[%s352 + $0x4c8] sm:$0xff]
        %v534 = vld [vmem:[%s352 + $0x4d0] sm:$0xff]
        %v535 = vld [vmem:[%s352 + $0x4d8] sm:$0xff]
        %v536 = vld [vmem:[%s352 + $0x4e0] sm:$0xff]
        %v537 = vld [vmem:[%s352 + $0x4e8] sm:$0xff]
        %v538 = vld [vmem:[%s352 + $0x4f0] sm:$0xff]
        %v539 = vld [vmem:[%s352 + $0x4f8] sm:$0xff]
        %v540 = vld [vmem:[%s352 + $0x500] sm:$0xff]
        %v541 = vld [vmem:[%s352 + $0x508] sm:$0xff]
        %v542 = vld [vmem:[%s352 + $0x510] sm:$0xff]
        %v543 = vld [vmem:[%s352 + $0x518] sm:$0xff]
        %v544 = vld [vmem:[%s352 + $0x520] sm:$0xff]
        %v545 = vld [vmem:[%s352 + $0x528] sm:$0xff]
        %v546 = vld [vmem:[%s352 + $0x530] sm:$0xff]
        %v547 = vld [vmem:[%s352 + $0x538] sm:$0xff]
        %v548 = vld [vmem:[%s352 + $0x540] sm:$0xff]
        %v549 = vld [vmem:[%s352 + $0x548] sm:$0xff]
        %v550 = vld [vmem:[%s352 + $0x550] sm:$0xff]
        %v551 = vld [vmem:[%s352 + $0x558] sm:$0xff]
        %v552 = vld [vmem:[%s352 + $0x560] sm:$0xff]
        %v553 = vld [vmem:[%s352 + $0x568] sm:$0xff]
        %v554 = vld [vmem:[%s352 + $0x570] sm:$0xff]
        %v555 = vld [vmem:[%s352 + $0x578] sm:$0xff]
        %v556 = vld [vmem:[%s352 + $0x580] sm:$0xff]
        %v557 = vld [vmem:[%s352 + $0x588] sm:$0xff]
        %v558 = vld [vmem:[%s352 + $0x590] sm:$0xff]
        %v559 = vld [vmem:[%s352 + $0x598] sm:$0xff]
        %v560 = vld [vmem:[%s352 + $0x5a0] sm:$0xff]
        %v561 = vld [vmem:[%s352 + $0x5a8] sm:$0xff]
        %v562 = vld [vmem:[%s352 + $0x5b0] sm:$0xff]
        %v563 = vld [vmem:[%s352 + $0x5b8] sm:$0xff]
        %v564 = vld [vmem:[%s352 + $0x5c0] sm:$0xff]
        %v565 = vld [vmem:[%s352 + $0x5c8] sm:$0xff]
        %v566 = vld [vmem:[%s352 + $0x5d0] sm:$0xff]
        %v567 = vld [vmem:[%s352 + $0x5d8] sm:$0xff]
        %v568 = vld [vmem:[%s352 + $0x5e0] sm:$0xff]
        %v569 = vld [vmem:[%s352 + $0x5e8] sm:$0xff]
        %v570 = vld [vmem:[%s352 + $0x5f0] sm:$0xff]
        %v571 = vld [vmem:[%s352 + $0x5f8] sm:$0xff]
        %v572 = vld [vmem:[%s352 + $0x600] sm:$0xff]
        %v573 = vld [vmem:[%s352 + $0x608] sm:$0xff]
        %v574 = vld [vmem:[%s352 + $0x610] sm:$0xff]
        %v575 = vld [vmem:[%s352 + $0x618] sm:$0xff]
        %v576 = vld [vmem:[%s352 + $0x620] sm:$0xff]
        %v577 = vld [vmem:[%s352 + $0x628] sm:$0xff]
        %v578 = vld [vmem:[%s352 + $0x630] sm:$0xff]
        %v579 = vld [vmem:[%s352 + $0x638] sm:$0xff]
        %v580 = vld [vmem:[%s352 + $0x640] sm:$0xff]
        %v581 = vld [vmem:[%s352 + $0x648] sm:$0xff]
        %v582 = vld [vmem:[%s352 + $0x650] sm:$0xff]
        %v583 = vld [vmem:[%s352 + $0x658] sm:$0xff]
        %v584 = vld [vmem:[%s352 + $0x660] sm:$0xff]
        %v585 = vld [vmem:[%s352 + $0x668] sm:$0xff]
        %v586 = vld [vmem:[%s352 + $0x670] sm:$0xff]
        %v587 = vld [vmem:[%s352 + $0x678] sm:$0xff]
        %v588 = vld [vmem:[%s352 + $0x680] sm:$0xff]
        %v589 = vld [vmem:[%s352 + $0x688] sm:$0xff]
        %v590 = vld [vmem:[%s352 + $0x690] sm:$0xff]
        %v591 = vld [vmem:[%s352 + $0x698] sm:$0xff]
        %v592 = vld [vmem:[%s352 + $0x6a0] sm:$0xff]
        %v593 = vld [vmem:[%s352 + $0x6a8] sm:$0xff]
        %v594 = vld [vmem:[%s352 + $0x6b0] sm:$0xff]
        %v595 = vld [vmem:[%s352 + $0x6b8] sm:$0xff]
        %v596 = vld [vmem:[%s352 + $0x6c0] sm:$0xff]
        %v597 = vld [vmem:[%s352 + $0x6c8] sm:$0xff]
        %v598 = vld [vmem:[%s352 + $0x6d0] sm:$0xff]
        %v599 = vld [vmem:[%s352 + $0x6d8] sm:$0xff]
        %v600 = vld [vmem:[%s352 + $0x6e0] sm:$0xff]
        %v601 = vld [vmem:[%s352 + $0x6e8] sm:$0xff]
        %v602 = vld [vmem:[%s352 + $0x6f0] sm:$0xff]
        %v603 = vld [vmem:[%s352 + $0x6f8] sm:$0xff]
        %v604 = vld [vmem:[%s352 + $0x700] sm:$0xff]
        %v605 = vld [vmem:[%s352 + $0x708] sm:$0xff]
        %v606 = vld [vmem:[%s352 + $0x710] sm:$0xff]
        %v607 = vld [vmem:[%s352 + $0x718] sm:$0xff]
        %v608 = vld [vmem:[%s352 + $0x720] sm:$0xff]
        %v609 = vld [vmem:[%s352 + $0x728] sm:$0xff]
        %v610 = vld [vmem:[%s352 + $0x730] sm:$0xff]
        %v611 = vld [vmem:[%s352 + $0x738] sm:$0xff]
        %v612 = vld [vmem:[%s352 + $0x740] sm:$0xff]
        %v613 = vld [vmem:[%s352 + $0x748] sm:$0xff]
        %v614 = vld [vmem:[%s352 + $0x750] sm:$0xff]
        %v615 = vld [vmem:[%s352 + $0x758] sm:$0xff]
        %v616 = vld [vmem:[%s352 + $0x760] sm:$0xff]
        %v617 = vld [vmem:[%s352 + $0x768] sm:$0xff]
        %v618 = vld [vmem:[%s352 + $0x770] sm:$0xff]
        %v619 = vld [vmem:[%s352 + $0x778] sm:$0xff]
        %v620 = vld [vmem:[%s352 + $0x780] sm:$0xff]
        %v621 = vld [vmem:[%s352 + $0x788] sm:$0xff]
        %v622 = vld [vmem:[%s352 + $0x790] sm:$0xff]
        %v623 = vld [vmem:[%s352 + $0x798] sm:$0xff]
        %v624 = vld [vmem:[%s352 + $0x7a0] sm:$0xff]
        %v625 = vld [vmem:[%s352 + $0x7a8] sm:$0xff]
        %v626 = vld [vmem:[%s352 + $0x7b0] sm:$0xff]
        %v627 = vld [vmem:[%s352 + $0x7b8] sm:$0xff]
        %v628 = vld [vmem:[%s352 + $0x7c0] sm:$0xff]
        %v629 = vld [vmem:[%s352 + $0x7c8] sm:$0xff]
        %v630 = vld [vmem:[%s352 + $0x7d0] sm:$0xff]
        %v631 = vld [vmem:[%s352 + $0x7d8] sm:$0xff]
        %v632 = vld [vmem:[%s352 + $0x7e0] sm:$0xff]
        %v633 = vld [vmem:[%s352 + $0x7e8] sm:$0xff]
        %v634 = vld [vmem:[%s352 + $0x7f0] sm:$0xff]
        %v635 = vld [vmem:[%s352 + $0x7f8] sm:$0xff]
        %v636 = vld [vmem:[%s352 + $0x800] sm:$0xff]
        %v637 = vld [vmem:[%s352 + $0x808] sm:$0xff]
        %v638 = vld [vmem:[%s352 + $0x810] sm:$0xff]
        %v639 = vld [vmem:[%s352 + $0x818] sm:$0xff]
        %v640 = vld [vmem:[%s352 + $0x820] sm:$0xff]
        %v641 = vld [vmem:[%s352 + $0x828] sm:$0xff]
        %v642 = vld [vmem:[%s352 + $0x830] sm:$0xff]
        %v643 = vld [vmem:[%s352 + $0x838] sm:$0xff]
        %v644 = vld [vmem:[%s352 + $0x840] sm:$0xff]
        %v645 = vld [vmem:[%s352 + $0x848] sm:$0xff]
        %v646 = vld [vmem:[%s352 + $0x850] sm:$0xff]
        %v647 = vld [vmem:[%s352 + $0x858] sm:$0xff]
        %v648 = vld [vmem:[%s352 + $0x860] sm:$0xff]
        %v649 = vld [vmem:[%s352 + $0x868] sm:$0xff]
        %v650 = vld [vmem:[%s352 + $0x870] sm:$0xff]
        %v651 = vld [vmem:[%s352 + $0x878] sm:$0xff]
        %v652 = vld [vmem:[%s352 + $0x880] sm:$0xff]
        %v653 = vld [vmem:[%s352 + $0x888] sm:$0xff]
        %v654 = vld [vmem:[%s352 + $0x890] sm:$0xff]
        %v655 = vld [vmem:[%s352 + $0x898] sm:$0xff]
        %v656 = vld [vmem:[%s352 + $0x8a0] sm:$0xff]
        %v657 = vld [vmem:[%s352 + $0x8a8] sm:$0xff]
        %v658 = vld [vmem:[%s352 + $0x8b0] sm:$0xff]
        %v659 = vld [vmem:[%s352 + $0x8b8] sm:$0xff]
        %v660 = vld [vmem:[%s352 + $0x8c0] sm:$0xff]
        %v661 = vld [vmem:[%s352 + $0x8c8] sm:$0xff]
        %v662 = vld [vmem:[%s352 + $0x8d0] sm:$0xff]
        %v663 = vld [vmem:[%s352 + $0x8d8] sm:$0xff]
        %v664 = vld [vmem:[%s352 + $0x8e0] sm:$0xff]
        %v665 = vld [vmem:[%s352 + $0x8e8] sm:$0xff]
        %v666 = vld [vmem:[%s352 + $0x8f0] sm:$0xff]
        %v667 = vld [vmem:[%s352 + $0x8f8] sm:$0xff]
        %v668 = vld [vmem:[%s352 + $0x900] sm:$0xff]
        %v669 = vld [vmem:[%s352 + $0x908] sm:$0xff]
        %v670 = vld [vmem:[%s352 + $0x910] sm:$0xff]
        %v671 = vld [vmem:[%s352 + $0x918] sm:$0xff]
        %v672 = vld [vmem:[%s352 + $0x920] sm:$0xff]
        %v673 = vld [vmem:[%s352 + $0x928] sm:$0xff]
        %v674 = vld [vmem:[%s352 + $0x930] sm:$0xff]
        %v675 = vld [vmem:[%s352 + $0x938] sm:$0xff]
        %v676 = vld [vmem:[%s352 + $0x940] sm:$0xff]
        %v677 = vld [vmem:[%s352 + $0x948] sm:$0xff]
        %v678 = vld [vmem:[%s352 + $0x950] sm:$0xff]
        %v679 = vld [vmem:[%s352 + $0x958] sm:$0xff]
        %v680 = vld [vmem:[%s352 + $0x960] sm:$0xff]
        %v681 = vld [vmem:[%s352 + $0x968] sm:$0xff]
        %v682 = vld [vmem:[%s352 + $0x970] sm:$0xff]
        %v683 = vld [vmem:[%s352 + $0x978] sm:$0xff]
        %v684 = vld [vmem:[%s352 + $0x980] sm:$0xff]
        %v685 = vld [vmem:[%s352 + $0x988] sm:$0xff]
        %v686 = vld [vmem:[%s352 + $0x990] sm:$0xff]
        %v687 = vld [vmem:[%s352 + $0x998] sm:$0xff]
        %v688 = vld [vmem:[%s352 + $0x9a0] sm:$0xff]
        %v689 = vld [vmem:[%s352 + $0x9a8] sm:$0xff]
        %v690 = vld [vmem:[%s352 + $0x9b0] sm:$0xff]
        %v691 = vld [vmem:[%s352 + $0x9b8] sm:$0xff]
        %v692 = vld [vmem:[%s352 + $0x9c0] sm:$0xff]
        %v693 = vld [vmem:[%s352 + $0x9c8] sm:$0xff]
        %v694 = vld [vmem:[%s352 + $0x9d0] sm:$0xff]
        %v695 = vld [vmem:[%s352 + $0x9d8] sm:$0xff]
        %v696 = vld [vmem:[%s352 + $0x9e0] sm:$0xff]
        %v697 = vld [vmem:[%s352 + $0x9e8] sm:$0xff]
        %v698 = vld [vmem:[%s352 + $0x9f0] sm:$0xff]
        %v699 = vld [vmem:[%s352 + $0x9f8] sm:$0xff]
        %v700 = vld [vmem:[%s352 + $0xa00] sm:$0xff]
        %v701 = vld [vmem:[%s352 + $0xa08] sm:$0xff]
        %v702 = vld [vmem:[%s352 + $0xa10] sm:$0xff]
        %v703 = vld [vmem:[%s352 + $0xa18] sm:$0xff]
        %v704 = vld [vmem:[%s352 + $0xa20] sm:$0xff]
        %v705 = vld [vmem:[%s352 + $0xa28] sm:$0xff]
        %v706 = vld [vmem:[%s352 + $0xa30] sm:$0xff]
        %v707 = vld [vmem:[%s352 + $0xa38] sm:$0xff]
        %v708 = vld [vmem:[%s352 + $0xa40] sm:$0xff]
        %v709 = vld [vmem:[%s352 + $0xa48] sm:$0xff]
        %v710 = vld [vmem:[%s352 + $0xa50] sm:$0xff]
        %v711 = vld [vmem:[%s352 + $0xa58] sm:$0xff]
        %v712 = vld [vmem:[%s352 + $0xa60] sm:$0xff]
        %v713 = vld [vmem:[%s352 + $0xa68] sm:$0xff]
        %v714 = vld [vmem:[%s352 + $0xa70] sm:$0xff]
        %v715 = vld [vmem:[%s352 + $0xa78] sm:$0xff]
        %v716 = vld [vmem:[%s352 + $0xa80] sm:$0xff]
        %v717 = vld [vmem:[%s352 + $0xa88] sm:$0xff]
        %v718 = vld [vmem:[%s352 + $0xa90] sm:$0xff]
        %v719 = vld [vmem:[%s352 + $0xa98] sm:$0xff]
        %v720 = vld [vmem:[%s352 + $0xaa0] sm:$0xff]
        %v721 = vld [vmem:[%s352 + $0xaa8] sm:$0xff]
        %v722 = vld [vmem:[%s352 + $0xab0] sm:$0xff]
        %v723 = vld [vmem:[%s352 + $0xab8] sm:$0xff]
        %v724 = vld [vmem:[%s352 + $0xac0] sm:$0xff]
        %v725 = vld [vmem:[%s352 + $0xac8] sm:$0xff]
        %v726 = vld [vmem:[%s352 + $0xad0] sm:$0xff]
        %v727 = vld [vmem:[%s352 + $0xad8] sm:$0xff]
        %v728 = vld [vmem:[%s352 + $0xae0] sm:$0xff]
        %v729 = vld [vmem:[%s352 + $0xae8] sm:$0xff]
        %v730 = vld [vmem:[%s352 + $0xaf0] sm:$0xff]
        %v731 = vld [vmem:[%s352 + $0xaf8] sm:$0xff]
        %v732 = vld [vmem:[%s352 + $0xb00] sm:$0xff]
        %v733 = vld [vmem:[%s352 + $0xb08] sm:$0xff]
        %v734 = vld [vmem:[%s352 + $0xb10] sm:$0xff]
        %v735 = vld [vmem:[%s352 + $0xb18] sm:$0xff]
        %v736 = vld [vmem:[%s352 + $0xb20] sm:$0xff]
        %v737 = vld [vmem:[%s352 + $0xb28] sm:$0xff]
        %v738 = vld [vmem:[%s352 + $0xb30] sm:$0xff]
        %v739 = vld [vmem:[%s352 + $0xb38] sm:$0xff]
        %v740 = vld [vmem:[%s352 + $0xb40] sm:$0xff]
        %v741 = vld [vmem:[%s352 + $0xb48] sm:$0xff]
        %v742 = vld [vmem:[%s352 + $0xb50] sm:$0xff]
        %v743 = vld [vmem:[%s352 + $0xb58] sm:$0xff]
        %v744 = vld [vmem:[%s352 + $0xb60] sm:$0xff]
        %v745 = vld [vmem:[%s352 + $0xb68] sm:$0xff]
        %v746 = vld [vmem:[%s352 + $0xb70] sm:$0xff]
        %v747 = vld [vmem:[%s352 + $0xb78] sm:$0xff]
        %v748 = vld [vmem:[%s352 + $0xb80] sm:$0xff]
        %v749 = vld [vmem:[%s352 + $0xb88] sm:$0xff]
        %v750 = vld [vmem:[%s352 + $0xb90] sm:$0xff]
        %v751 = vld [vmem:[%s352 + $0xb98] sm:$0xff]
        %v752 = vld [vmem:[%s352 + $0xba0] sm:$0xff]
        %v753 = vld [vmem:[%s352 + $0xba8] sm:$0xff]
        %v754 = vld [vmem:[%s352 + $0xbb0] sm:$0xff]
        %v755 = vld [vmem:[%s352 + $0xbb8] sm:$0xff]
        %v756 = vld [vmem:[%s352 + $0xbc0] sm:$0xff]
        %v757 = vld [vmem:[%s352 + $0xbc8] sm:$0xff]
        %v758 = vld [vmem:[%s352 + $0xbd0] sm:$0xff]
        %v759 = vld [vmem:[%s352 + $0xbd8] sm:$0xff]
        %v760 = vld [vmem:[%s352 + $0xbe0] sm:$0xff]
        %v761 = vld [vmem:[%s352 + $0xbe8] sm:$0xff]
        %v762 = vld [vmem:[%s352 + $0xbf0] sm:$0xff]
        %v763 = vld [vmem:[%s352 + $0xbf8] sm:$0xff]
        %v764 = vld [vmem:[%s352 + $0xc00] sm:$0xff]
        %v765 = vld [vmem:[%s352 + $0xc08] sm:$0xff]
        %v766 = vld [vmem:[%s352 + $0xc10] sm:$0xff]
        %v767 = vld [vmem:[%s352 + $0xc18] sm:$0xff]
        %v768 = vld [vmem:[%s352 + $0xc20] sm:$0xff]
        %v769 = vld [vmem:[%s352 + $0xc28] sm:$0xff]
        %v770 = vld [vmem:[%s352 + $0xc30] sm:$0xff]
        %v771 = vld [vmem:[%s352 + $0xc38] sm:$0xff]
        %v772 = vld [vmem:[%s352 + $0xc40] sm:$0xff]
        %v773 = vld [vmem:[%s352 + $0xc48] sm:$0xff]
        %v774 = vld [vmem:[%s352 + $0xc50] sm:$0xff]
        %v775 = vld [vmem:[%s352 + $0xc58] sm:$0xff]
        %v776 = vld [vmem:[%s352 + $0xc60] sm:$0xff]
        %v777 = vld [vmem:[%s352 + $0xc68] sm:$0xff]
        %v778 = vld [vmem:[%s352 + $0xc70] sm:$0xff]
        %v779 = vld [vmem:[%s352 + $0xc78] sm:$0xff]
        %v780 = vld [vmem:[%s352 + $0xc80] sm:$0xff]
        %v781 = vld [vmem:[%s352 + $0xc88] sm:$0xff]
        %v782 = vld [vmem:[%s352 + $0xc90] sm:$0xff]
        %v783 = vld [vmem:[%s352 + $0xc98] sm:$0xff]
        %v784 = vld [vmem:[%s352 + $0xca0] sm:$0xff]
        %v785 = vld [vmem:[%s352 + $0xca8] sm:$0xff]
        %v786 = vld [vmem:[%s352 + $0xcb0] sm:$0xff]
        %v787 = vld [vmem:[%s352 + $0xcb8] sm:$0xff]
        %v788 = vld [vmem:[%s352 + $0xcc0] sm:$0xff]
        %v789 = vld [vmem:[%s352 + $0xcc8] sm:$0xff]
        %v790 = vld [vmem:[%s352 + $0xcd0] sm:$0xff]
        %v791 = vld [vmem:[%s352 + $0xcd8] sm:$0xff]
        %v792 = vld [vmem:[%s352 + $0xce0] sm:$0xff]
        %v793 = vld [vmem:[%s352 + $0xce8] sm:$0xff]
        %v794 = vld [vmem:[%s352 + $0xcf0] sm:$0xff]
        %v795 = vld [vmem:[%s352 + $0xcf8] sm:$0xff]
        %v796 = vld [vmem:[%s352 + $0xd00] sm:$0xff]
        %v797 = vld [vmem:[%s352 + $0xd08] sm:$0xff]
        %v798 = vld [vmem:[%s352 + $0xd10] sm:$0xff]
        %v799 = vld [vmem:[%s352 + $0xd18] sm:$0xff]
        %v800 = vld [vmem:[%s352 + $0xd20] sm:$0xff]
        %v801 = vld [vmem:[%s352 + $0xd28] sm:$0xff]
        %v802 = vld [vmem:[%s352 + $0xd30] sm:$0xff]
        %v803 = vld [vmem:[%s352 + $0xd38] sm:$0xff]
        %v804 = vld [vmem:[%s352 + $0xd40] sm:$0xff]
        %v805 = vld [vmem:[%s352 + $0xd48] sm:$0xff]
        %v806 = vld [vmem:[%s352 + $0xd50] sm:$0xff]
        %v807 = vld [vmem:[%s352 + $0xd58] sm:$0xff]
        %v808 = vld [vmem:[%s352 + $0xd60] sm:$0xff]
        %v809 = vld [vmem:[%s352 + $0xd68] sm:$0xff]
        %v810 = vld [vmem:[%s352 + $0xd70] sm:$0xff]
        %v811 = vld [vmem:[%s352 + $0xd78] sm:$0xff]
        %v812 = vld [vmem:[%s352 + $0xd80] sm:$0xff]
        %v813 = vld [vmem:[%s352 + $0xd88] sm:$0xff]
        %v814 = vld [vmem:[%s352 + $0xd90] sm:$0xff]
        %v815 = vld [vmem:[%s352 + $0xd98] sm:$0xff]
        %v816 = vld [vmem:[%s352 + $0xda0] sm:$0xff]
        %v817 = vld [vmem:[%s352 + $0xda8] sm:$0xff]
        %v818 = vld [vmem:[%s352 + $0xdb0] sm:$0xff]
        %v819 = vld [vmem:[%s352 + $0xdb8] sm:$0xff]
        %v820 = vld [vmem:[%s352 + $0xdc0] sm:$0xff]
        %v821 = vld [vmem:[%s352 + $0xdc8] sm:$0xff]
        %v822 = vld [vmem:[%s352 + $0xdd0] sm:$0xff]
        %v823 = vld [vmem:[%s352 + $0xdd8] sm:$0xff]
        %v824 = vld [vmem:[%s352 + $0xde0] sm:$0xff]
        %v825 = vld [vmem:[%s352 + $0xde8] sm:$0xff]
        %v826 = vld [vmem:[%s352 + $0xdf0] sm:$0xff]
        %v827 = vld [vmem:[%s352 + $0xdf8] sm:$0xff]
        %v828 = vld [vmem:[%s352 + $0xe00] sm:$0xff]
        %v829 = vld [vmem:[%s352 + $0xe08] sm:$0xff]
        %v830 = vld [vmem:[%s352 + $0xe10] sm:$0xff]
        %v831 = vld [vmem:[%s352 + $0xe18] sm:$0xff]
        %v832 = vld [vmem:[%s352 + $0xe20] sm:$0xff]
        %v833 = vld [vmem:[%s352 + $0xe28] sm:$0xff]
        %v834 = vld [vmem:[%s352 + $0xe30] sm:$0xff]
        %v835 = vld [vmem:[%s352 + $0xe38] sm:$0xff]
        %v836 = vld [vmem:[%s352 + $0xe40] sm:$0xff]
        %v837 = vld [vmem:[%s352 + $0xe48] sm:$0xff]
        %v838 = vld [vmem:[%s352 + $0xe50] sm:$0xff]
        %v839 = vld [vmem:[%s352 + $0xe58] sm:$0xff]
        %v840 = vld [vmem:[%s352 + $0xe60] sm:$0xff]
        %v841 = vld [vmem:[%s352 + $0xe68] sm:$0xff]
        %v842 = vld [vmem:[%s352 + $0xe70] sm:$0xff]
        %v843 = vld [vmem:[%s352 + $0xe78] sm:$0xff]
        %v844 = vld [vmem:[%s352 + $0xe80] sm:$0xff]
        %v845 = vld [vmem:[%s352 + $0xe88] sm:$0xff]
        %v846 = vld [vmem:[%s352 + $0xe90] sm:$0xff]
        %v847 = vld [vmem:[%s352 + $0xe98] sm:$0xff]
        %v848 = vld [vmem:[%s352 + $0xea0] sm:$0xff]
        %v849 = vld [vmem:[%s352 + $0xea8] sm:$0xff]
        %v850 = vld [vmem:[%s352 + $0xeb0] sm:$0xff]
        %v851 = vld [vmem:[%s352 + $0xeb8] sm:$0xff]
        %v852 = vld [vmem:[%s352 + $0xec0] sm:$0xff]
        %v853 = vld [vmem:[%s352 + $0xec8] sm:$0xff]
        %v854 = vld [vmem:[%s352 + $0xed0] sm:$0xff]
        %v855 = vld [vmem:[%s352 + $0xed8] sm:$0xff]
        %v856 = vld [vmem:[%s352 + $0xee0] sm:$0xff]
        %v857 = vld [vmem:[%s352 + $0xee8] sm:$0xff]
        %v858 = vld [vmem:[%s352 + $0xef0] sm:$0xff]
        %v859 = vld [vmem:[%s352 + $0xef8] sm:$0xff]
        %v860 = vld [vmem:[%s352 + $0xf00] sm:$0xff]
        %v861 = vld [vmem:[%s352 + $0xf08] sm:$0xff]
        %v862 = vld [vmem:[%s352 + $0xf10] sm:$0xff]
        %v863 = vld [vmem:[%s352 + $0xf18] sm:$0xff]
        %v864 = vld [vmem:[%s352 + $0xf20] sm:$0xff]
        %v865 = vld [vmem:[%s352 + $0xf28] sm:$0xff]
        %v866 = vld [vmem:[%s352 + $0xf30] sm:$0xff]
        %v867 = vld [vmem:[%s352 + $0xf38] sm:$0xff]
        %v868 = vld [vmem:[%s352 + $0xf40] sm:$0xff]
        %v869 = vld [vmem:[%s352 + $0xf48] sm:$0xff]
        %v870 = vld [vmem:[%s352 + $0xf50] sm:$0xff]
        %v871 = vld [vmem:[%s352 + $0xf58] sm:$0xff]
        %v872 = vld [vmem:[%s352 + $0xf60] sm:$0xff]
        %v873 = vld [vmem:[%s352 + $0xf68] sm:$0xff]
        %v874 = vld [vmem:[%s352 + $0xf70] sm:$0xff]
        %v875 = vld [vmem:[%s352 + $0xf78] sm:$0xff]
        %v876 = vld [vmem:[%s352 + $0xf80] sm:$0xff]
        %v877 = vld [vmem:[%s352 + $0xf88] sm:$0xff]
        %v878 = vld [vmem:[%s352 + $0xf90] sm:$0xff]
        %v879 = vld [vmem:[%s352 + $0xf98] sm:$0xff]
        %v880 = vld [vmem:[%s352 + $0xfa0] sm:$0xff]
        %v881 = vld [vmem:[%s352 + $0xfa8] sm:$0xff]
        %v882 = vld [vmem:[%s352 + $0xfb0] sm:$0xff]
        %v883 = vld [vmem:[%s352 + $0xfb8] sm:$0xff]
        %v884 = vld [vmem:[%s352 + $0xfc0] sm:$0xff]
        %v885 = vld [vmem:[%s352 + $0xfc8] sm:$0xff]
        %v886 = vld [vmem:[%s352 + $0xfd0] sm:$0xff]
        %v887 = vld [vmem:[%s352 + $0xfd8] sm:$0xff]
        %v888 = vld [vmem:[%s352 + $0xfe0] sm:$0xff]
        %v889 = vld [vmem:[%s352 + $0xfe8] sm:$0xff]
        %v890 = vld [vmem:[%s352 + $0xff0] sm:$0xff]
        %v891 = vld [vmem:[%s352 + $0xff8] sm:$0xff]
        %v892 = vld [vmem:[%s352 + $0x1000] sm:$0xff]
        %v893 = vld [vmem:[%s352 + $0x1008] sm:$0xff]
        %v894 = vld [vmem:[%s352 + $0x1010] sm:$0xff]
        %v895 = vld [vmem:[%s352 + $0x1018] sm:$0xff]
        %v896 = vld [vmem:[%s352 + $0x1020] sm:$0xff]
        %v897 = vld [vmem:[%s352 + $0x1028] sm:$0xff]
        %v898 = vld [vmem:[%s352 + $0x1030] sm:$0xff]
        %v899 = vld [vmem:[%s352 + $0x1038] sm:$0xff]
        %v900 = vld [vmem:[%s352 + $0x1040] sm:$0xff]
        %v901 = vld [vmem:[%s352 + $0x1048] sm:$0xff]
        %v902 = vld [vmem:[%s352 + $0x1050] sm:$0xff]
        %v903 = vld [vmem:[%s352 + $0x1058] sm:$0xff]
        %v904 = vld [vmem:[%s352 + $0x1060] sm:$0xff]
        %v905 = vld [vmem:[%s352 + $0x1068] sm:$0xff]
        %v906 = vld [vmem:[%s352 + $0x1070] sm:$0xff]
        %v907 = vld [vmem:[%s352 + $0x1078] sm:$0xff]
        %v908 = vld [vmem:[%s352 + $0x1080] sm:$0xff]
        %v909 = vld [vmem:[%s352 + $0x1088] sm:$0xff]
        %v910 = vld [vmem:[%s352 + $0x1090] sm:$0xff]
        %v911 = vld [vmem:[%s352 + $0x1098] sm:$0xff]
        %v912 = vld [vmem:[%s352 + $0x10a0] sm:$0xff]
        %v913 = vld [vmem:[%s352 + $0x10a8] sm:$0xff]
        %v914 = vld [vmem:[%s352 + $0x10b0] sm:$0xff]
        %v915 = vld [vmem:[%s352 + $0x10b8] sm:$0xff]
        %v916 = vld [vmem:[%s352 + $0x10c0] sm:$0xff]
        %v917 = vld [vmem:[%s352 + $0x10c8] sm:$0xff]
        %v918 = vld [vmem:[%s352 + $0x10d0] sm:$0xff]
        %v919 = vld [vmem:[%s352 + $0x10d8] sm:$0xff]
        %v920 = vld [vmem:[%s352 + $0x10e0] sm:$0xff]
        %v921 = vld [vmem:[%s352 + $0x10e8] sm:$0xff]
        %v922 = vld [vmem:[%s352 + $0x10f0] sm:$0xff]
        %v923 = vld [vmem:[%s352 + $0x10f8] sm:$0xff]
        %v924 = vld [vmem:[%s352 + $0x1100] sm:$0xff]
        %v925 = vld [vmem:[%s352 + $0x1108] sm:$0xff]
        %v926 = vld [vmem:[%s352 + $0x1110] sm:$0xff]
        %v927 = vld [vmem:[%s352 + $0x1118] sm:$0xff]
        %v928 = vld [vmem:[%s352 + $0x1120] sm:$0xff]
        %v929 = vld [vmem:[%s352 + $0x1128] sm:$0xff]
        %v930 = vld [vmem:[%s352 + $0x1130] sm:$0xff]
        %v931 = vld [vmem:[%s352 + $0x1138] sm:$0xff]
        %v932 = vld [vmem:[%s352 + $0x1140] sm:$0xff]
        %v933 = vld [vmem:[%s352 + $0x1148] sm:$0xff]
        %v934 = vld [vmem:[%s352 + $0x1150] sm:$0xff]
        %v935 = vld [vmem:[%s352 + $0x1158] sm:$0xff]
        %v936 = vld [vmem:[%s352 + $0x1160] sm:$0xff]
        %v937 = vld [vmem:[%s352 + $0x1168] sm:$0xff]
        %v938 = vld [vmem:[%s352 + $0x1170] sm:$0xff]
        %v939 = vld [vmem:[%s352 + $0x1178] sm:$0xff]
        %v940 = vld [vmem:[%s352 + $0x1180] sm:$0xff]
        %v941 = vld [vmem:[%s352 + $0x1188] sm:$0xff]
        %v942 = vld [vmem:[%s352 + $0x1190] sm:$0xff]
        %v943 = vld [vmem:[%s352 + $0x1198] sm:$0xff]
        %v944 = vld [vmem:[%s352 + $0x11a0] sm:$0xff]
        %v945 = vld [vmem:[%s352 + $0x11a8] sm:$0xff]
        %v946 = vld [vmem:[%s352 + $0x11b0] sm:$0xff]
        %v947 = vld [vmem:[%s352 + $0x11b8] sm:$0xff]
        %v948 = vld [vmem:[%s352 + $0x11c0] sm:$0xff]
        %v949 = vld [vmem:[%s352 + $0x11c8] sm:$0xff]
        %v950 = vld [vmem:[%s352 + $0x11d0] sm:$0xff]
        %v951 = vld [vmem:[%s352 + $0x11d8] sm:$0xff]
        %v952 = vld [vmem:[%s352 + $0x11e0] sm:$0xff]
        %v953 = vld [vmem:[%s352 + $0x11e8] sm:$0xff]
        %v954 = vld [vmem:[%s352 + $0x11f0] sm:$0xff]
        %v955 = vld [vmem:[%s352 + $0x11f8] sm:$0xff]
        %v956 = vld [vmem:[%s352 + $0x1200] sm:$0xff]
        %v957 = vld [vmem:[%s352 + $0x1208] sm:$0xff]
        %v958 = vld [vmem:[%s352 + $0x1210] sm:$0xff]
        %v959 = vld [vmem:[%s352 + $0x1218] sm:$0xff]
        %v960 = vld [vmem:[%s352 + $0x1220] sm:$0xff]
        %v961 = vld [vmem:[%s352 + $0x1228] sm:$0xff]
        %v962 = vld [vmem:[%s352 + $0x1230] sm:$0xff]
        %v963 = vld [vmem:[%s352 + $0x1238] sm:$0xff]
        %v964 = vld [vmem:[%s352 + $0x1240] sm:$0xff]
        %v965 = vld [vmem:[%s352 + $0x1248] sm:$0xff]
        %v966 = vld [vmem:[%s352 + $0x1250] sm:$0xff]
        %v967 = vld [vmem:[%s352 + $0x1258] sm:$0xff]
        %v968 = vld [vmem:[%s352 + $0x1260] sm:$0xff]
        %v969 = vld [vmem:[%s352 + $0x1268] sm:$0xff]
        %v970 = vld [vmem:[%s352 + $0x1270] sm:$0xff]
        %v971 = vld [vmem:[%s352 + $0x1278] sm:$0xff]
        %v972 = vld [vmem:[%s352 + $0x1280] sm:$0xff]
        %v973 = vld [vmem:[%s352 + $0x1288] sm:$0xff]
        %v974 = vld [vmem:[%s352 + $0x1290] sm:$0xff]
        %v975 = vld [vmem:[%s352 + $0x1298] sm:$0xff]
        %v976 = vld [vmem:[%s352 + $0x12a0] sm:$0xff]
        %v977 = vld [vmem:[%s352 + $0x12a8] sm:$0xff]
        %v978 = vld [vmem:[%s352 + $0x12b0] sm:$0xff]
        %v979 = vld [vmem:[%s352 + $0x12b8] sm:$0xff]
        %v980 = vld [vmem:[%s352 + $0x12c0] sm:$0xff]
        %v981 = vld [vmem:[%s352 + $0x12c8] sm:$0xff]
        %v982 = vld [vmem:[%s352 + $0x12d0] sm:$0xff]
        %v983 = vld [vmem:[%s352 + $0x12d8] sm:$0xff]
        %v984 = vld [vmem:[%s352 + $0x12e0] sm:$0xff]
        %v985 = vld [vmem:[%s352 + $0x12e8] sm:$0xff]
        %v986 = vld [vmem:[%s352 + $0x12f0] sm:$0xff]
        %v987 = vld [vmem:[%s352 + $0x12f8] sm:$0xff]
        %v988 = vld [vmem:[%s352 + $0x1300] sm:$0xff]
        %v989 = vld [vmem:[%s352 + $0x1308] sm:$0xff]
        %v990 = vld [vmem:[%s352 + $0x1310] sm:$0xff]
        %v991 = vld [vmem:[%s352 + $0x1318] sm:$0xff]
        %v992 = vld [vmem:[%s352 + $0x1320] sm:$0xff]
        %v993 = vld [vmem:[%s352 + $0x1328] sm:$0xff]
        %v994 = vld [vmem:[%s352 + $0x1330] sm:$0xff]
        %v995 = vld [vmem:[%s352 + $0x1338] sm:$0xff]
        %v996 = vld [vmem:[%s352 + $0x1340] sm:$0xff]
        %v997 = vld [vmem:[%s352 + $0x1348] sm:$0xff]
        %v998 = vld [vmem:[%s352 + $0x1350] sm:$0xff]
        %v999 = vld [vmem:[%s352 + $0x1358] sm:$0xff]
        %v1000 = vld [vmem:[%s352 + $0x1360] sm:$0xff]
        %v1001 = vld [vmem:[%s352 + $0x1368] sm:$0xff]
        %v1002 = vld [vmem:[%s352 + $0x1370] sm:$0xff]
        %v1003 = vld [vmem:[%s352 + $0x1378] sm:$0xff]
        %v1004 = vld [vmem:[%s352 + $0x1380] sm:$0xff]
        %v1005 = vld [vmem:[%s352 + $0x1388] sm:$0xff]
        %v1006 = vld [vmem:[%s352 + $0x1390] sm:$0xff]
        %v1007 = vld [vmem:[%s352 + $0x1398] sm:$0xff]
        %v1008 = vld [vmem:[%s352 + $0x13a0] sm:$0xff]
        %v1009 = vld [vmem:[%s352 + $0x13a8] sm:$0xff]
        %v1010 = vld [vmem:[%s352 + $0x13b0] sm:$0xff]
        %v1011 = vld [vmem:[%s352 + $0x13b8] sm:$0xff]
        %v1012 = vld [vmem:[%s352 + $0x13c0] sm:$0xff]
        %v1013 = vld [vmem:[%s352 + $0x13c8] sm:$0xff]
        %v1014 = vld [vmem:[%s352 + $0x13d0] sm:$0xff]
        %v1015 = vld [vmem:[%s352 + $0x13d8] sm:$0xff]
        %v1016 = vld [vmem:[%s352 + $0x13e0] sm:$0xff]
        %v1017 = vld [vmem:[%s352 + $0x13e8] sm:$0xff]
        %v1018 = vld [vmem:[%s352 + $0x13f0] sm:$0xff]
        %v1019 = vld [vmem:[%s352 + $0x13f8] sm:$0xff]
        %v1020 = vld [vmem:[%s352 + $0x1400] sm:$0xff]
        %v1021 = vld [vmem:[%s352 + $0x1408] sm:$0xff]
        %v1022 = vld [vmem:[%s352 + $0x1410] sm:$0xff]
        %v1023 = vld [vmem:[%s352 + $0x1418] sm:$0xff]
        %v1024 = vld [vmem:[%s352 + $0x1420] sm:$0xff]
        %v1025 = vld [vmem:[%s352 + $0x1428] sm:$0xff]
        %v1026 = vld [vmem:[%s352 + $0x1430] sm:$0xff]
        %v1027 = vld [vmem:[%s352 + $0x1438] sm:$0xff]
        %v1028 = vld [vmem:[%s352 + $0x1440] sm:$0xff]
        %v1029 = vld [vmem:[%s352 + $0x1448] sm:$0xff]
        %v1030 = vld [vmem:[%s352 + $0x1450] sm:$0xff]
        %v1031 = vld [vmem:[%s352 + $0x1458] sm:$0xff]
        %v1032 = vld [vmem:[%s352 + $0x1460] sm:$0xff]
        %v1033 = vld [vmem:[%s352 + $0x1468] sm:$0xff]
        %v1034 = vld [vmem:[%s352 + $0x1470] sm:$0xff]
        %v1035 = vld [vmem:[%s352 + $0x1478] sm:$0xff]
        %v1036 = vld [vmem:[%s352 + $0x1480] sm:$0xff]
        %v1037 = vld [vmem:[%s352 + $0x1488] sm:$0xff]
        %v1038 = vld [vmem:[%s352 + $0x1490] sm:$0xff]
        %v1039 = vld [vmem:[%s352 + $0x1498] sm:$0xff]
        %v1040 = vld [vmem:[%s352 + $0x14a0] sm:$0xff]
        %v1041 = vld [vmem:[%s352 + $0x14a8] sm:$0xff]
        %v1042 = vld [vmem:[%s352 + $0x14b0] sm:$0xff]
        %v1043 = vld [vmem:[%s352 + $0x14b8] sm:$0xff]
        %v1044 = vld [vmem:[%s352 + $0x14c0] sm:$0xff]
        %v1045 = vld [vmem:[%s352 + $0x14c8] sm:$0xff]
        %v1046 = vld [vmem:[%s352 + $0x14d0] sm:$0xff]
        %v1047 = vld [vmem:[%s352 + $0x14d8] sm:$0xff]
        %v1048 = vld [vmem:[%s352 + $0x14e0] sm:$0xff]
        %v1049 = vld [vmem:[%s352 + $0x14e8] sm:$0xff]
        %v1050 = vld [vmem:[%s352 + $0x14f0] sm:$0xff]
        %v1051 = vld [vmem:[%s352 + $0x14f8] sm:$0xff]
        %v1052 = vld [vmem:[%s352 + $0x1500] sm:$0xff]
        %v1053 = vld [vmem:[%s352 + $0x1508] sm:$0xff]
        %v1054 = vld [vmem:[%s352 + $0x1510] sm:$0xff]
        %v1055 = vld [vmem:[%s352 + $0x1518] sm:$0xff]
        %v1056 = vld [vmem:[%s352 + $0x1520] sm:$0xff]
        %v1057 = vld [vmem:[%s352 + $0x1528] sm:$0xff]
        %v1058 = vld [vmem:[%s352 + $0x1530] sm:$0xff]
        %v1059 = vld [vmem:[%s352 + $0x1538] sm:$0xff]
        %v1060 = vld [vmem:[%s352 + $0x1540] sm:$0xff]
        %v1061 = vld [vmem:[%s352 + $0x1548] sm:$0xff]
        %v1062 = vld [vmem:[%s352 + $0x1550] sm:$0xff]
        %v1063 = vld [vmem:[%s352 + $0x1558] sm:$0xff]
        %v1064 = vld [vmem:[%s352 + $0x1560] sm:$0xff]
        %v1065 = vld [vmem:[%s352 + $0x1568] sm:$0xff]
        %v1066 = vld [vmem:[%s352 + $0x1570] sm:$0xff]
        %v1067 = vld [vmem:[%s352 + $0x1578] sm:$0xff]
        %v1068 = vld [vmem:[%s352 + $0x1580] sm:$0xff]
        %v1069 = vld [vmem:[%s352 + $0x1588] sm:$0xff]
        %v1070 = vld [vmem:[%s352 + $0x1590] sm:$0xff]
        %v1071 = vld [vmem:[%s352 + $0x1598] sm:$0xff]
        %v1072 = vld [vmem:[%s352 + $0x15a0] sm:$0xff]
        %v1073 = vld [vmem:[%s352 + $0x15a8] sm:$0xff]
        %v1074 = vld [vmem:[%s352 + $0x15b0] sm:$0xff]
        %v1075 = vld [vmem:[%s352 + $0x15b8] sm:$0xff]
        %v1076 = vld [vmem:[%s352 + $0x15c0] sm:$0xff]
        %v1077 = vld [vmem:[%s352 + $0x15c8] sm:$0xff]
        %v1078 = vld [vmem:[%s352 + $0x15d0] sm:$0xff]
        %v1079 = vld [vmem:[%s352 + $0x15d8] sm:$0xff]
        %v1080 = vld [vmem:[%s352 + $0x15e0] sm:$0xff]
        %v1081 = vld [vmem:[%s352 + $0x15e8] sm:$0xff]
        %v1082 = vld [vmem:[%s352 + $0x15f0] sm:$0xff]
        %v1083 = vld [vmem:[%s352 + $0x15f8] sm:$0xff]
        %v1084 = vld [vmem:[%s352 + $0x1600] sm:$0xff]
        %v1085 = vld [vmem:[%s352 + $0x1608] sm:$0xff]
        %v1086 = vld [vmem:[%s352 + $0x1610] sm:$0xff]
        %v1087 = vld [vmem:[%s352 + $0x1618] sm:$0xff]
        %v1088 = vld [vmem:[%s352 + $0x1620] sm:$0xff]
        %v1089 = vld [vmem:[%s352 + $0x1628] sm:$0xff]
        %v1090 = vld [vmem:[%s352 + $0x1630] sm:$0xff]
        %v1091 = vld [vmem:[%s352 + $0x1638] sm:$0xff]
        %v1092 = vld [vmem:[%s352 + $0x1640] sm:$0xff]
        %v1093 = vld [vmem:[%s352 + $0x1648] sm:$0xff]
        %v1094 = vld [vmem:[%s352 + $0x1650] sm:$0xff]
        %v1095 = vld [vmem:[%s352 + $0x1658] sm:$0xff]
        %v1096 = vld [vmem:[%s352 + $0x1660] sm:$0xff]
        %v1097 = vld [vmem:[%s352 + $0x1668] sm:$0xff]
        %v1098 = vld [vmem:[%s352 + $0x1670] sm:$0xff]
        %v1099 = vld [vmem:[%s352 + $0x1678] sm:$0xff]
        %v1100 = vld [vmem:[%s352 + $0x1680] sm:$0xff]
        %v1101 = vld [vmem:[%s352 + $0x1688] sm:$0xff]
        %v1102 = vld [vmem:[%s352 + $0x1690] sm:$0xff]
        %v1103 = vld [vmem:[%s352 + $0x1698] sm:$0xff]
        %v1104 = vld [vmem:[%s352 + $0x16a0] sm:$0xff]
        %v1105 = vld [vmem:[%s352 + $0x16a8] sm:$0xff]
        %v1106 = vld [vmem:[%s352 + $0x16b0] sm:$0xff]
        %v1107 = vld [vmem:[%s352 + $0x16b8] sm:$0xff]
        %v1108 = vld [vmem:[%s352 + $0x16c0] sm:$0xff]
        %v1109 = vld [vmem:[%s352 + $0x16c8] sm:$0xff]
        %v1110 = vld [vmem:[%s352 + $0x16d0] sm:$0xff]
        %v1111 = vld [vmem:[%s352 + $0x16d8] sm:$0xff]
        %v1112 = vld [vmem:[%s352 + $0x16e0] sm:$0xff]
        %v1113 = vld [vmem:[%s352 + $0x16e8] sm:$0xff]
        %v1114 = vld [vmem:[%s352 + $0x16f0] sm:$0xff]
        %v1115 = vld [vmem:[%s352 + $0x16f8] sm:$0xff]
        %v1116 = vld [vmem:[%s352 + $0x1700] sm:$0xff]
        %v1117 = vld [vmem:[%s352 + $0x1708] sm:$0xff]
        %v1118 = vld [vmem:[%s352 + $0x1710] sm:$0xff]
        %v1119 = vld [vmem:[%s352 + $0x1718] sm:$0xff]
        %v1120 = vld [vmem:[%s352 + $0x1720] sm:$0xff]
        %v1121 = vld [vmem:[%s352 + $0x1728] sm:$0xff]
        %v1122 = vld [vmem:[%s352 + $0x1730] sm:$0xff]
        %v1123 = vld [vmem:[%s352 + $0x1738] sm:$0xff]
        %v1124 = vld [vmem:[%s352 + $0x1740] sm:$0xff]
        %v1125 = vld [vmem:[%s352 + $0x1748] sm:$0xff]
        %v1126 = vld [vmem:[%s352 + $0x1750] sm:$0xff]
        %v1127 = vld [vmem:[%s352 + $0x1758] sm:$0xff]
        %v1128 = vld [vmem:[%s352 + $0x1760] sm:$0xff]
        %v1129 = vld [vmem:[%s352 + $0x1768] sm:$0xff]
        %v1130 = vld [vmem:[%s352 + $0x1770] sm:$0xff]
        %v1131 = vld [vmem:[%s352 + $0x1778] sm:$0xff]
        %v1132 = vld [vmem:[%s352 + $0x1780] sm:$0xff]
        %v1133 = vld [vmem:[%s352 + $0x1788] sm:$0xff]
        %v1134 = vld [vmem:[%s352 + $0x1790] sm:$0xff]
        %v1135 = vld [vmem:[%s352 + $0x1798] sm:$0xff]
        %v1136 = vld [vmem:[%s352 + $0x17a0] sm:$0xff]
        %v1137 = vld [vmem:[%s352 + $0x17a8] sm:$0xff]
        %v1138 = vld [vmem:[%s352 + $0x17b0] sm:$0xff]
        %v1139 = vld [vmem:[%s352 + $0x17b8] sm:$0xff]
        %v1140 = vld [vmem:[%s352 + $0x17c0] sm:$0xff]
        %v1141 = vld [vmem:[%s352 + $0x17c8] sm:$0xff]
        %v1142 = vld [vmem:[%s352 + $0x17d0] sm:$0xff]
        %v1143 = vld [vmem:[%s352 + $0x17d8] sm:$0xff]
        %v1144 = vld [vmem:[%s352 + $0x17e0] sm:$0xff]
        %v1145 = vld [vmem:[%s352 + $0x17e8] sm:$0xff]
        %v1146 = vld [vmem:[%s352 + $0x17f0] sm:$0xff]
        %v1147 = vld [vmem:[%s352 + $0x17f8] sm:$0xff]
        %v1148 = vld [vmem:[%s352 + $0x1800] sm:$0xff]
        %v1149 = vld [vmem:[%s352 + $0x1808] sm:$0xff]
        %v1150 = vld [vmem:[%s352 + $0x1810] sm:$0xff]
        %v1151 = vld [vmem:[%s352 + $0x1818] sm:$0xff]
        %v1152 = vld [vmem:[%s352 + $0x1820] sm:$0xff]
        %v1153 = vld [vmem:[%s352 + $0x1828] sm:$0xff]
        %v1154 = vld [vmem:[%s352 + $0x1830] sm:$0xff]
        %v1155 = vld [vmem:[%s352 + $0x1838] sm:$0xff]
        %v1156 = vld [vmem:[%s352 + $0x1840] sm:$0xff]
        %v1157 = vld [vmem:[%s352 + $0x1848] sm:$0xff]
        %v1158 = vld [vmem:[%s352 + $0x1850] sm:$0xff]
        %v1159 = vld [vmem:[%s352 + $0x1858] sm:$0xff]
        %v1160 = vld [vmem:[%s352 + $0x1860] sm:$0xff]
        %v1161 = vld [vmem:[%s352 + $0x1868] sm:$0xff]
        %v1162 = vld [vmem:[%s352 + $0x1870] sm:$0xff]
        %v1163 = vld [vmem:[%s352 + $0x1878] sm:$0xff]
        %v1164 = vld [vmem:[%s352 + $0x1880] sm:$0xff]
        %v1165 = vld [vmem:[%s352 + $0x1888] sm:$0xff]
        %v1166 = vld [vmem:[%s352 + $0x1890] sm:$0xff]
        %v1167 = vld [vmem:[%s352 + $0x1898] sm:$0xff]
        %v1168 = vld [vmem:[%s352 + $0x18a0] sm:$0xff]
        %v1169 = vld [vmem:[%s352 + $0x18a8] sm:$0xff]
        %v1170 = vld [vmem:[%s352 + $0x18b0] sm:$0xff]
        %v1171 = vld [vmem:[%s352 + $0x18b8] sm:$0xff]
        %v1172 = vld [vmem:[%s352 + $0x18c0] sm:$0xff]
        %v1173 = vld [vmem:[%s352 + $0x18c8] sm:$0xff]
        %v1174 = vld [vmem:[%s352 + $0x18d0] sm:$0xff]
        %v1175 = vld [vmem:[%s352 + $0x18d8] sm:$0xff]
        %v1176 = vld [vmem:[%s352 + $0x18e0] sm:$0xff]
        %v1177 = vld [vmem:[%s352 + $0x18e8] sm:$0xff]
        %v1178 = vld [vmem:[%s352 + $0x18f0] sm:$0xff]
        %v1179 = vld [vmem:[%s352 + $0x18f8] sm:$0xff]
        %v1180 = vld [vmem:[%s352 + $0x1900] sm:$0xff]
        %v1181 = vld [vmem:[%s352 + $0x1908] sm:$0xff]
        %v1182 = vld [vmem:[%s352 + $0x1910] sm:$0xff]
        %v1183 = vld [vmem:[%s352 + $0x1918] sm:$0xff]
        %v1184 = vld [vmem:[%s352 + $0x1920] sm:$0xff]
        %v1185 = vld [vmem:[%s352 + $0x1928] sm:$0xff]
        %v1186 = vld [vmem:[%s352 + $0x1930] sm:$0xff]
        %v1187 = vld [vmem:[%s352 + $0x1938] sm:$0xff]
        %v1188 = vld [vmem:[%s352 + $0x1940] sm:$0xff]
        %v1189 = vld [vmem:[%s352 + $0x1948] sm:$0xff]
        %v1190 = vld [vmem:[%s352 + $0x1950] sm:$0xff]
        %v1191 = vld [vmem:[%s352 + $0x1958] sm:$0xff]
        %v1192 = vld [vmem:[%s352 + $0x1960] sm:$0xff]
        %v1193 = vld [vmem:[%s352 + $0x1968] sm:$0xff]
        %v1194 = vld [vmem:[%s352 + $0x1970] sm:$0xff]
        %v1195 = vld [vmem:[%s352 + $0x1978] sm:$0xff]
        %v1196 = vld [vmem:[%s352 + $0x1980] sm:$0xff]
        %v1197 = vld [vmem:[%s352 + $0x1988] sm:$0xff]
        %v1198 = vld [vmem:[%s352 + $0x1990] sm:$0xff]
        %v1199 = vld [vmem:[%s352 + $0x1998] sm:$0xff]
        %v1200 = vld [vmem:[%s352 + $0x19a0] sm:$0xff]
        %v1201 = vld [vmem:[%s352 + $0x19a8] sm:$0xff]
        %v1202 = vld [vmem:[%s352 + $0x19b0] sm:$0xff]
        %v1203 = vld [vmem:[%s352 + $0x19b8] sm:$0xff]
        %v1204 = vld [vmem:[%s352 + $0x19c0] sm:$0xff]
        %v1205 = vld [vmem:[%s352 + $0x19c8] sm:$0xff]
        %v1206 = vld [vmem:[%s352 + $0x19d0] sm:$0xff]
        %v1207 = vld [vmem:[%s352 + $0x19d8] sm:$0xff]
        %v1208 = vld [vmem:[%s352 + $0x19e0] sm:$0xff]
        %v1209 = vld [vmem:[%s352 + $0x19e8] sm:$0xff]
        %v1210 = vld [vmem:[%s352 + $0x19f0] sm:$0xff]
        %v1211 = vld [vmem:[%s352 + $0x19f8] sm:$0xff]
        %v1212 = vld [vmem:[%s352 + $0x1a00] sm:$0xff]
        %v1213 = vld [vmem:[%s352 + $0x1a08] sm:$0xff]
        %v1214 = vld [vmem:[%s352 + $0x1a10] sm:$0xff]
        %v1215 = vld [vmem:[%s352 + $0x1a18] sm:$0xff]
        %v1216 = vld [vmem:[%s352 + $0x1a20] sm:$0xff]
        %v1217 = vld [vmem:[%s352 + $0x1a28] sm:$0xff]
        %v1218 = vld [vmem:[%s352 + $0x1a30] sm:$0xff]
        %v1219 = vld [vmem:[%s352 + $0x1a38] sm:$0xff]
        %v1220 = vld [vmem:[%s352 + $0x1a40] sm:$0xff]
        %v1221 = vld [vmem:[%s352 + $0x1a48] sm:$0xff]
        %v1222 = vld [vmem:[%s352 + $0x1a50] sm:$0xff]
        %v1223 = vld [vmem:[%s352 + $0x1a58] sm:$0xff]
        %v1224 = vld [vmem:[%s352 + $0x1a60] sm:$0xff]
        %v1225 = vld [vmem:[%s352 + $0x1a68] sm:$0xff]
        %v1226 = vld [vmem:[%s352 + $0x1a70] sm:$0xff]
        %v1227 = vld [vmem:[%s352 + $0x1a78] sm:$0xff]
        %v1228 = vld [vmem:[%s352 + $0x1a80] sm:$0xff]
        %v1229 = vld [vmem:[%s352 + $0x1a88] sm:$0xff]
        %v1230 = vld [vmem:[%s352 + $0x1a90] sm:$0xff]
        %v1231 = vld [vmem:[%s352 + $0x1a98] sm:$0xff]
        %v1232 = vld [vmem:[%s352 + $0x1aa0] sm:$0xff]
        %v1233 = vld [vmem:[%s352 + $0x1aa8] sm:$0xff]
        %v1234 = vld [vmem:[%s352 + $0x1ab0] sm:$0xff]
        %v1235 = vld [vmem:[%s352 + $0x1ab8] sm:$0xff]
        %v1236 = vld [vmem:[%s352 + $0x1ac0] sm:$0xff]
        %v1237 = vld [vmem:[%s352 + $0x1ac8] sm:$0xff]
        %v1238 = vld [vmem:[%s352 + $0x1ad0] sm:$0xff]
        %v1239 = vld [vmem:[%s352 + $0x1ad8] sm:$0xff]
        %v1240 = vld [vmem:[%s352 + $0x1ae0] sm:$0xff]
        %v1241 = vld [vmem:[%s352 + $0x1ae8] sm:$0xff]
        %v1242 = vld [vmem:[%s352 + $0x1af0] sm:$0xff]
        %v1243 = vld [vmem:[%s352 + $0x1af8] sm:$0xff]
        %v1244 = vld [vmem:[%s352 + $0x1b00] sm:$0xff]
        %v1245 = vld [vmem:[%s352 + $0x1b08] sm:$0xff]
        %v1246 = vld [vmem:[%s352 + $0x1b10] sm:$0xff]
        %v1247 = vld [vmem:[%s352 + $0x1b18] sm:$0xff]
        %v1248 = vld [vmem:[%s352 + $0x1b20] sm:$0xff]
        %v1249 = vld [vmem:[%s352 + $0x1b28] sm:$0xff]
        %v1250 = vld [vmem:[%s352 + $0x1b30] sm:$0xff]
        %v1251 = vld [vmem:[%s352 + $0x1b38] sm:$0xff]
        %v1252 = vld [vmem:[%s352 + $0x1b40] sm:$0xff]
        %v1253 = vld [vmem:[%s352 + $0x1b48] sm:$0xff]
        %v1254 = vld [vmem:[%s352 + $0x1b50] sm:$0xff]
        %v1255 = vld [vmem:[%s352 + $0x1b58] sm:$0xff]
        %v1256 = vld [vmem:[%s352 + $0x1b60] sm:$0xff]
        %v1257 = vld [vmem:[%s352 + $0x1b68] sm:$0xff]
        %v1258 = vld [vmem:[%s352 + $0x1b70] sm:$0xff]
        %v1259 = vld [vmem:[%s352 + $0x1b78] sm:$0xff]
        %v1260 = vld [vmem:[%s352 + $0x1b80] sm:$0xff]
        %v1261 = vld [vmem:[%s352 + $0x1b88] sm:$0xff]
        %v1262 = vld [vmem:[%s352 + $0x1b90] sm:$0xff]
        %v1263 = vld [vmem:[%s352 + $0x1b98] sm:$0xff]
        %v1264 = vld [vmem:[%s352 + $0x1ba0] sm:$0xff]
        %v1265 = vld [vmem:[%s352 + $0x1ba8] sm:$0xff]
        %v1266 = vld [vmem:[%s352 + $0x1bb0] sm:$0xff]
        %v1267 = vld [vmem:[%s352 + $0x1bb8] sm:$0xff]
        %v1268 = vld [vmem:[%s352 + $0x1bc0] sm:$0xff]
        %v1269 = vld [vmem:[%s352 + $0x1bc8] sm:$0xff]
        %v1270 = vld [vmem:[%s352 + $0x1bd0] sm:$0xff]
        %v1271 = vld [vmem:[%s352 + $0x1bd8] sm:$0xff]
        %v1272 = vld [vmem:[%s352 + $0x1be0] sm:$0xff]
        %v1273 = vld [vmem:[%s352 + $0x1be8] sm:$0xff]
        %v1274 = vld [vmem:[%s352 + $0x1bf0] sm:$0xff]
        %v1275 = vld [vmem:[%s352 + $0x1bf8] sm:$0xff]
        %v1276 = vld [vmem:[%s352 + $0x1c00] sm:$0xff]
        %v1277 = vld [vmem:[%s352 + $0x1c08] sm:$0xff]
        %v1278 = vld [vmem:[%s352 + $0x1c10] sm:$0xff]
        %v1279 = vld [vmem:[%s352 + $0x1c18] sm:$0xff]
        %v1280 = vld [vmem:[%s352 + $0x1c20] sm:$0xff]
        %v1281 = vld [vmem:[%s352 + $0x1c28] sm:$0xff]
        %v1282 = vld [vmem:[%s352 + $0x1c30] sm:$0xff]
        %v1283 = vld [vmem:[%s352 + $0x1c38] sm:$0xff]
        %v1284 = vld [vmem:[%s352 + $0x1c40] sm:$0xff]
        %v1285 = vld [vmem:[%s352 + $0x1c48] sm:$0xff]
        %v1286 = vld [vmem:[%s352 + $0x1c50] sm:$0xff]
        %v1287 = vld [vmem:[%s352 + $0x1c58] sm:$0xff]
        %v1288 = vld [vmem:[%s352 + $0x1c60] sm:$0xff]
        %v1289 = vld [vmem:[%s352 + $0x1c68] sm:$0xff]
        %v1290 = vld [vmem:[%s352 + $0x1c70] sm:$0xff]
        %v1291 = vld [vmem:[%s352 + $0x1c78] sm:$0xff]
        %v1292 = vld [vmem:[%s352 + $0x1c80] sm:$0xff]
        %v1293 = vld [vmem:[%s352 + $0x1c88] sm:$0xff]
        %v1294 = vld [vmem:[%s352 + $0x1c90] sm:$0xff]
        %v1295 = vld [vmem:[%s352 + $0x1c98] sm:$0xff]
        %v1296 = vld [vmem:[%s352 + $0x1ca0] sm:$0xff]
        %v1297 = vld [vmem:[%s352 + $0x1ca8] sm:$0xff]
        %v1298 = vld [vmem:[%s352 + $0x1cb0] sm:$0xff]
        %v1299 = vld [vmem:[%s352 + $0x1cb8] sm:$0xff]
        %v1300 = vld [vmem:[%s352 + $0x1cc0] sm:$0xff]
        %v1301 = vld [vmem:[%s352 + $0x1cc8] sm:$0xff]
        %v1302 = vld [vmem:[%s352 + $0x1cd0] sm:$0xff]
        %v1303 = vld [vmem:[%s352 + $0x1cd8] sm:$0xff]
        %v1304 = vld [vmem:[%s352 + $0x1ce0] sm:$0xff]
        %v1305 = vld [vmem:[%s352 + $0x1ce8] sm:$0xff]
        %v1306 = vld [vmem:[%s352 + $0x1cf0] sm:$0xff]
        %v1307 = vld [vmem:[%s352 + $0x1cf8] sm:$0xff]
        %v1308 = vld [vmem:[%s352 + $0x1d00] sm:$0xff]
        %v1309 = vld [vmem:[%s352 + $0x1d08] sm:$0xff]
        %v1310 = vld [vmem:[%s352 + $0x1d10] sm:$0xff]
        %v1311 = vld [vmem:[%s352 + $0x1d18] sm:$0xff]
        %v1312 = vld [vmem:[%s352 + $0x1d20] sm:$0xff]
        %v1313 = vld [vmem:[%s352 + $0x1d28] sm:$0xff]
        %v1314 = vld [vmem:[%s352 + $0x1d30] sm:$0xff]
        %v1315 = vld [vmem:[%s352 + $0x1d38] sm:$0xff]
        %v1316 = vld [vmem:[%s352 + $0x1d40] sm:$0xff]
        %v1317 = vld [vmem:[%s352 + $0x1d48] sm:$0xff]
        %v1318 = vld [vmem:[%s352 + $0x1d50] sm:$0xff]
        %v1319 = vld [vmem:[%s352 + $0x1d58] sm:$0xff]
        %v1320 = vld [vmem:[%s352 + $0x1d60] sm:$0xff]
        %v1321 = vld [vmem:[%s352 + $0x1d68] sm:$0xff]
        %v1322 = vld [vmem:[%s352 + $0x1d70] sm:$0xff]
        %v1323 = vld [vmem:[%s352 + $0x1d78] sm:$0xff]
        %v1324 = vld [vmem:[%s352 + $0x1d80] sm:$0xff]
        %v1325 = vld [vmem:[%s352 + $0x1d88] sm:$0xff]
        %v1326 = vld [vmem:[%s352 + $0x1d90] sm:$0xff]
        %v1327 = vld [vmem:[%s352 + $0x1d98] sm:$0xff]
        %v1328 = vld [vmem:[%s352 + $0x1da0] sm:$0xff]
        %v1329 = vld [vmem:[%s352 + $0x1da8] sm:$0xff]
        %v1330 = vld [vmem:[%s352 + $0x1db0] sm:$0xff]
        %v1331 = vld [vmem:[%s352 + $0x1db8] sm:$0xff]
        %v1332 = vld [vmem:[%s352 + $0x1dc0] sm:$0xff]
        %v1333 = vld [vmem:[%s352 + $0x1dc8] sm:$0xff]
        %v1334 = vld [vmem:[%s352 + $0x1dd0] sm:$0xff]
        %v1335 = vld [vmem:[%s352 + $0x1dd8] sm:$0xff]
        %v1336 = vld [vmem:[%s352 + $0x1de0] sm:$0xff]
        %v1337 = vld [vmem:[%s352 + $0x1de8] sm:$0xff]
        %v1338 = vld [vmem:[%s352 + $0x1df0] sm:$0xff]
        %v1339 = vld [vmem:[%s352 + $0x1df8] sm:$0xff]
        %v1340 = vld [vmem:[%s352 + $0x1e00] sm:$0xff]
        %v1341 = vld [vmem:[%s352 + $0x1e08] sm:$0xff]
        %v1342 = vld [vmem:[%s352 + $0x1e10] sm:$0xff]
        %v1343 = vld [vmem:[%s352 + $0x1e18] sm:$0xff]
        %v1344 = vld [vmem:[%s352 + $0x1e20] sm:$0xff]
        %v1345 = vld [vmem:[%s352 + $0x1e28] sm:$0xff]
        %v1346 = vld [vmem:[%s352 + $0x1e30] sm:$0xff]
        %v1347 = vld [vmem:[%s352 + $0x1e38] sm:$0xff]
        %v1348 = vld [vmem:[%s352 + $0x1e40] sm:$0xff]
        %v1349 = vld [vmem:[%s352 + $0x1e48] sm:$0xff]
        %v1350 = vld [vmem:[%s352 + $0x1e50] sm:$0xff]
        %v1351 = vld [vmem:[%s352 + $0x1e58] sm:$0xff]
        %v1352 = vld [vmem:[%s352 + $0x1e60] sm:$0xff]
        %v1353 = vld [vmem:[%s352 + $0x1e68] sm:$0xff]
        %v1354 = vld [vmem:[%s352 + $0x1e70] sm:$0xff]
        %v1355 = vld [vmem:[%s352 + $0x1e78] sm:$0xff]
        %v1356 = vld [vmem:[%s352 + $0x1e80] sm:$0xff]
        %v1357 = vld [vmem:[%s352 + $0x1e88] sm:$0xff]
        %v1358 = vld [vmem:[%s352 + $0x1e90] sm:$0xff]
        %v1359 = vld [vmem:[%s352 + $0x1e98] sm:$0xff]
        %v1360 = vld [vmem:[%s352 + $0x1ea0] sm:$0xff]
        %v1361 = vld [vmem:[%s352 + $0x1ea8] sm:$0xff]
        %v1362 = vld [vmem:[%s352 + $0x1eb0] sm:$0xff]
        %v1363 = vld [vmem:[%s352 + $0x1eb8] sm:$0xff]
        %v1364 = vld [vmem:[%s352 + $0x1ec0] sm:$0xff]
        %v1365 = vld [vmem:[%s352 + $0x1ec8] sm:$0xff]
        %v1366 = vld [vmem:[%s352 + $0x1ed0] sm:$0xff]
        %v1367 = vld [vmem:[%s352 + $0x1ed8] sm:$0xff]
        %v1368 = vld [vmem:[%s352 + $0x1ee0] sm:$0xff]
        %v1369 = vld [vmem:[%s352 + $0x1ee8] sm:$0xff]
        %v1370 = vld [vmem:[%s352 + $0x1ef0] sm:$0xff]
        %v1371 = vld [vmem:[%s352 + $0x1ef8] sm:$0xff]
        %v1372 = vld [vmem:[%s352 + $0x1f00] sm:$0xff]
        %v1373 = vld [vmem:[%s352 + $0x1f08] sm:$0xff]
        %v1374 = vld [vmem:[%s352 + $0x1f10] sm:$0xff]
        %v1375 = vld [vmem:[%s352 + $0x1f18] sm:$0xff]
        %v1376 = vld [vmem:[%s352 + $0x1f20] sm:$0xff]
        %v1377 = vld [vmem:[%s352 + $0x1f28] sm:$0xff]
        %v1378 = vld [vmem:[%s352 + $0x1f30] sm:$0xff]
        %v1379 = vld [vmem:[%s352 + $0x1f38] sm:$0xff]
        %v1380 = vld [vmem:[%s352 + $0x1f40] sm:$0xff]
        %v1381 = vld [vmem:[%s352 + $0x1f48] sm:$0xff]
        %v1382 = vld [vmem:[%s352 + $0x1f50] sm:$0xff]
        %v1383 = vld [vmem:[%s352 + $0x1f58] sm:$0xff]
        %v1384 = vld [vmem:[%s352 + $0x1f60] sm:$0xff]
        %v1385 = vld [vmem:[%s352 + $0x1f68] sm:$0xff]
        %v1386 = vld [vmem:[%s352 + $0x1f70] sm:$0xff]
        %v1387 = vld [vmem:[%s352 + $0x1f78] sm:$0xff]
        %v1388 = vld [vmem:[%s352 + $0x1f80] sm:$0xff]
        %v1389 = vld [vmem:[%s352 + $0x1f88] sm:$0xff]
        %v1390 = vld [vmem:[%s352 + $0x1f90] sm:$0xff]
        %v1391 = vld [vmem:[%s352 + $0x1f98] sm:$0xff]
        %v1392 = vld [vmem:[%s352 + $0x1fa0] sm:$0xff]
        %v1393 = vld [vmem:[%s352 + $0x1fa8] sm:$0xff]
        %v1394 = vld [vmem:[%s352 + $0x1fb0] sm:$0xff]
        %v1395 = vld [vmem:[%s352 + $0x1fb8] sm:$0xff]
        %v1396 = vld [vmem:[%s352 + $0x1fc0] sm:$0xff]
        %v1397 = vld [vmem:[%s352 + $0x1fc8] sm:$0xff]
        %v1398 = vld [vmem:[%s352 + $0x1fd0] sm:$0xff]
        %v1399 = vld [vmem:[%s352 + $0x1fd8] sm:$0xff]
        %v1400 = vld [vmem:[%s352 + $0x1fe0] sm:$0xff]
        %v1401 = vld [vmem:[%s352 + $0x1fe8] sm:$0xff]
        %v1402 = vld [vmem:[%s352 + $0x1ff0] sm:$0xff]
        %v1403 = vld [vmem:[%s352 + $0x1ff8] sm:$0xff]
        %v1404 = vld [vmem:[%s352 + $0x2000] sm:$0xff]
        %v1405 = vld [vmem:[%s352 + $0x2008] sm:$0xff]
        %v1406 = vld [vmem:[%s352 + $0x2010] sm:$0xff]
        %v1407 = vld [vmem:[%s352 + $0x2018] sm:$0xff]
        %v1408 = vld [vmem:[%s352 + $0x2020] sm:$0xff]
        %v1409 = vld [vmem:[%s352 + $0x2028] sm:$0xff]
        %v1410 = vld [vmem:[%s352 + $0x2030] sm:$0xff]
        %v1411 = vld [vmem:[%s352 + $0x2038] sm:$0xff]
        %v1412 = vld [vmem:[%s352 + $0x2040] sm:$0xff]
        %v1413 = vld [vmem:[%s352 + $0x2048] sm:$0xff]
        %v1414 = vld [vmem:[%s352 + $0x2050] sm:$0xff]
        %v1415 = vld [vmem:[%s352 + $0x2058] sm:$0xff]
        %v1416 = vld [vmem:[%s352 + $0x2060] sm:$0xff]
        %v1417 = vld [vmem:[%s352 + $0x2068] sm:$0xff]
        %v1418 = vld [vmem:[%s352 + $0x2070] sm:$0xff]
        %v1419 = vld [vmem:[%s352 + $0x2078] sm:$0xff]
        %v1420 = vld [vmem:[%s352 + $0x2080] sm:$0xff]
        %v1421 = vld [vmem:[%s352 + $0x2088] sm:$0xff]
        %v1422 = vld [vmem:[%s352 + $0x2090] sm:$0xff]
        %v1423 = vld [vmem:[%s352 + $0x2098] sm:$0xff]
        %v1424 = vld [vmem:[%s352 + $0x20a0] sm:$0xff]
        %v1425 = vld [vmem:[%s352 + $0x20a8] sm:$0xff]
        %v1426 = vld [vmem:[%s352 + $0x20b0] sm:$0xff]
        %v1427 = vld [vmem:[%s352 + $0x20b8] sm:$0xff]
        %v1428 = vld [vmem:[%s352 + $0x20c0] sm:$0xff]
        %v1429 = vld [vmem:[%s352 + $0x20c8] sm:$0xff]
        %v1430 = vld [vmem:[%s352 + $0x20d0] sm:$0xff]
        %v1431 = vld [vmem:[%s352 + $0x20d8] sm:$0xff]
        %v1432 = vld [vmem:[%s352 + $0x20e0] sm:$0xff]
        %v1433 = vld [vmem:[%s352 + $0x20e8] sm:$0xff]
        %v1434 = vld [vmem:[%s352 + $0x20f0] sm:$0xff]
        %v1435 = vld [vmem:[%s352 + $0x20f8] sm:$0xff]
        %v1436 = vld [vmem:[%s352 + $0x2100] sm:$0xff]
        %v1437 = vld [vmem:[%s352 + $0x2108] sm:$0xff]
        %v1438 = vld [vmem:[%s352 + $0x2110] sm:$0xff]
        %v1439 = vld [vmem:[%s352 + $0x2118] sm:$0xff]
        %v1440 = vld [vmem:[%s352 + $0x2120] sm:$0xff]
        %v1441 = vld [vmem:[%s352 + $0x2128] sm:$0xff]
        %v1442 = vld [vmem:[%s352 + $0x2130] sm:$0xff]
        %v1443 = vld [vmem:[%s352 + $0x2138] sm:$0xff]
        %v1444 = vld [vmem:[%s352 + $0x2140] sm:$0xff]
        %v1445 = vld [vmem:[%s352 + $0x2148] sm:$0xff]
        %v1446 = vld [vmem:[%s352 + $0x2150] sm:$0xff]
        %v1447 = vld [vmem:[%s352 + $0x2158] sm:$0xff]
        %v1448 = vld [vmem:[%s352 + $0x2160] sm:$0xff]
        %v1449 = vld [vmem:[%s352 + $0x2168] sm:$0xff]
        %v1450 = vld [vmem:[%s352 + $0x2170] sm:$0xff]
        %v1451 = vld [vmem:[%s352 + $0x2178] sm:$0xff]
        %v1452 = vld [vmem:[%s352 + $0x2180] sm:$0xff]
        %v1453 = vld [vmem:[%s352 + $0x2188] sm:$0xff]
        %v1454 = vld [vmem:[%s352 + $0x2190] sm:$0xff]
        %v1455 = vld [vmem:[%s352 + $0x2198] sm:$0xff]
        %v1456 = vld [vmem:[%s352 + $0x21a0] sm:$0xff]
        %v1457 = vld [vmem:[%s352 + $0x21a8] sm:$0xff]
        %v1458 = vld [vmem:[%s352 + $0x21b0] sm:$0xff]
        %v1459 = vld [vmem:[%s352 + $0x21b8] sm:$0xff]
        %v1460 = vld [vmem:[%s352 + $0x21c0] sm:$0xff]
        %v1461 = vld [vmem:[%s352 + $0x21c8] sm:$0xff]
        %v1462 = vld [vmem:[%s352 + $0x21d0] sm:$0xff]
        %v1463 = vld [vmem:[%s352 + $0x21d8] sm:$0xff]
        %v1464 = vld [vmem:[%s352 + $0x21e0] sm:$0xff]
        %v1465 = vld [vmem:[%s352 + $0x21e8] sm:$0xff]
        %v1466 = vld [vmem:[%s352 + $0x21f0] sm:$0xff]
        %v1467 = vld [vmem:[%s352 + $0x21f8] sm:$0xff]
        %v1468 = vld [vmem:[%s352 + $0x2200] sm:$0xff]
        %v1469 = vld [vmem:[%s352 + $0x2208] sm:$0xff]
        %v1470 = vld [vmem:[%s352 + $0x2210] sm:$0xff]
        %v1471 = vld [vmem:[%s352 + $0x2218] sm:$0xff]
        %v1472 = vld [vmem:[%s352 + $0x2220] sm:$0xff]
        %v1473 = vld [vmem:[%s352 + $0x2228] sm:$0xff]
        %v1474 = vld [vmem:[%s352 + $0x2230] sm:$0xff]
        %v1475 = vld [vmem:[%s352 + $0x2238] sm:$0xff]
        %v1476 = vld [vmem:[%s352 + $0x2240] sm:$0xff]
        %v1477 = vld [vmem:[%s352 + $0x2248] sm:$0xff]
        %v1478 = vld [vmem:[%s352 + $0x2250] sm:$0xff]
        %v1479 = vld [vmem:[%s352 + $0x2258] sm:$0xff]
        %v1480 = vld [vmem:[%s352 + $0x2260] sm:$0xff]
        %v1481 = vld [vmem:[%s352 + $0x2268] sm:$0xff]
        %v1482 = vld [vmem:[%s352 + $0x2270] sm:$0xff]
        %v1483 = vld [vmem:[%s352 + $0x2278] sm:$0xff]
        %v1484 = vld [vmem:[%s352 + $0x2280] sm:$0xff]
        %v1485 = vld [vmem:[%s352 + $0x2288] sm:$0xff]
        %v1486 = vld [vmem:[%s352 + $0x2290] sm:$0xff]
        %v1487 = vld [vmem:[%s352 + $0x2298] sm:$0xff]
        %v1488 = vld [vmem:[%s352 + $0x22a0] sm:$0xff]
        %v1489 = vld [vmem:[%s352 + $0x22a8] sm:$0xff]
        %v1490 = vld [vmem:[%s352 + $0x22b0] sm:$0xff]
        %v1491 = vld [vmem:[%s352 + $0x22b8] sm:$0xff]
        %v1492 = vld [vmem:[%s352 + $0x22c0] sm:$0xff]
        %v1493 = vld [vmem:[%s352 + $0x22c8] sm:$0xff]
        %v1494 = vld [vmem:[%s352 + $0x22d0] sm:$0xff]
        %v1495 = vld [vmem:[%s352 + $0x22d8] sm:$0xff]
        %v1496 = vld [vmem:[%s352 + $0x22e0] sm:$0xff]
        %v1497 = vld [vmem:[%s352 + $0x22e8] sm:$0xff]
        %v1498 = vld [vmem:[%s352 + $0x22f0] sm:$0xff]
        %v1499 = vld [vmem:[%s352 + $0x22f8] sm:$0xff]
        %v1500 = vld [vmem:[%s352 + $0x2300] sm:$0xff]
        %v1501 = vld [vmem:[%s352 + $0x2308] sm:$0xff]
        %v1502 = vld [vmem:[%s352 + $0x2310] sm:$0xff]
        %v1503 = vld [vmem:[%s352 + $0x2318] sm:$0xff]
        %v1504 = vld [vmem:[%s352 + $0x2320] sm:$0xff]
        %v1505 = vld [vmem:[%s352 + $0x2328] sm:$0xff]
        %v1506 = vld [vmem:[%s352 + $0x2330] sm:$0xff]
        %v1507 = vld [vmem:[%s352 + $0x2338] sm:$0xff]
        %v1508 = vld [vmem:[%s352 + $0x2340] sm:$0xff]
        %v1509 = vld [vmem:[%s352 + $0x2348] sm:$0xff]
        %v1510 = vld [vmem:[%s352 + $0x2350] sm:$0xff]
        %v1511 = vld [vmem:[%s352 + $0x2358] sm:$0xff]
        %v1512 = vld [vmem:[%s352 + $0x2360] sm:$0xff]
        %v1513 = vld [vmem:[%s352 + $0x2368] sm:$0xff]
        %v1514 = vld [vmem:[%s352 + $0x2370] sm:$0xff]
        %v1515 = vld [vmem:[%s352 + $0x2378] sm:$0xff]
        %v1516 = vld [vmem:[%s352 + $0x2380] sm:$0xff]
        %v1517 = vld [vmem:[%s352 + $0x2388] sm:$0xff]
        %v1518 = vld [vmem:[%s352 + $0x2390] sm:$0xff]
        %v1519 = vld [vmem:[%s352 + $0x2398] sm:$0xff]
        %v1520 = vld [vmem:[%s352 + $0x23a0] sm:$0xff]
        %v1521 = vld [vmem:[%s352 + $0x23a8] sm:$0xff]
        %v1522 = vld [vmem:[%s352 + $0x23b0] sm:$0xff]
        %v1523 = vld [vmem:[%s352 + $0x23b8] sm:$0xff]
        %v1524 = vld [vmem:[%s352 + $0x23c0] sm:$0xff]
        %v1525 = vld [vmem:[%s352 + $0x23c8] sm:$0xff]
        %v1526 = vld [vmem:[%s352 + $0x23d0] sm:$0xff]
        %v1527 = vld [vmem:[%s352 + $0x23d8] sm:$0xff]
        %v1528 = vld [vmem:[%s352 + $0x23e0] sm:$0xff]
        %v1529 = vld [vmem:[%s352 + $0x23e8] sm:$0xff]
        %v1530 = vld [vmem:[%s352 + $0x23f0] sm:$0xff]
        %v1531 = vld [vmem:[%s352 + $0x23f8] sm:$0xff]
        %v1532 = vld [vmem:[%s352 + $0x2400] sm:$0xff]
        %v1533 = vld [vmem:[%s352 + $0x2408] sm:$0xff]
        %v1534 = vld [vmem:[%s352 + $0x2410] sm:$0xff]
        %v1535 = vld [vmem:[%s352 + $0x2418] sm:$0xff]
        %v1536 = vld [vmem:[%s352 + $0x2420] sm:$0xff]
        %v1537 = vld [vmem:[%s352 + $0x2428] sm:$0xff]
        %v1538 = vld [vmem:[%s352 + $0x2430] sm:$0xff]
        %v1539 = vld [vmem:[%s352 + $0x2438] sm:$0xff]
        %v1540 = vld [vmem:[%s352 + $0x2440] sm:$0xff]
        %v1541 = vld [vmem:[%s352 + $0x2448] sm:$0xff]
        %v1542 = vld [vmem:[%s352 + $0x2450] sm:$0xff]
        %v1543 = vld [vmem:[%s352 + $0x2458] sm:$0xff]
        %v1544 = vld [vmem:[%s352 + $0x2460] sm:$0xff]
        %v1545 = vld [vmem:[%s352 + $0x2468] sm:$0xff]
        %v1546 = vld [vmem:[%s352 + $0x2470] sm:$0xff]
        %v1547 = vld [vmem:[%s352 + $0x2478] sm:$0xff]
        %v1548 = vld [vmem:[%s352 + $0x2480] sm:$0xff]
        %v1549 = vld [vmem:[%s352 + $0x2488] sm:$0xff]
        %v1550 = vld [vmem:[%s352 + $0x2490] sm:$0xff]
        %v1551 = vld [vmem:[%s352 + $0x2498] sm:$0xff]
        %v1552 = vld [vmem:[%s352 + $0x24a0] sm:$0xff]
        %v1553 = vld [vmem:[%s352 + $0x24a8] sm:$0xff]
        %v1554 = vld [vmem:[%s352 + $0x24b0] sm:$0xff]
        %v1555 = vld [vmem:[%s352 + $0x24b8] sm:$0xff]
        %v1556 = vld [vmem:[%s352 + $0x24c0] sm:$0xff]
        %v1557 = vld [vmem:[%s352 + $0x24c8] sm:$0xff]
        %v1558 = vld [vmem:[%s352 + $0x24d0] sm:$0xff]
        %v1559 = vld [vmem:[%s352 + $0x24d8] sm:$0xff]
        %v1560 = vld [vmem:[%s352 + $0x24e0] sm:$0xff]
        %v1561 = vld [vmem:[%s352 + $0x24e8] sm:$0xff]
        %v1562 = vld [vmem:[%s352 + $0x24f0] sm:$0xff]
        %v1563 = vld [vmem:[%s352 + $0x24f8] sm:$0xff]
        %v1564 = vld [vmem:[%s352 + $0x2500] sm:$0xff]
        %v1565 = vld [vmem:[%s352 + $0x2508] sm:$0xff]
        %v1566 = vld [vmem:[%s352 + $0x2510] sm:$0xff]
        %v1567 = vld [vmem:[%s352 + $0x2518] sm:$0xff]
        %v1568 = vld [vmem:[%s352 + $0x2520] sm:$0xff]
        %v1569 = vld [vmem:[%s352 + $0x2528] sm:$0xff]
        %v1570 = vld [vmem:[%s352 + $0x2530] sm:$0xff]
        %v1571 = vld [vmem:[%s352 + $0x2538] sm:$0xff]
        %v1572 = vld [vmem:[%s352 + $0x2540] sm:$0xff]
        %v1573 = vld [vmem:[%s352 + $0x2548] sm:$0xff]
        %v1574 = vld [vmem:[%s352 + $0x2550] sm:$0xff]
        %v1575 = vld [vmem:[%s352 + $0x2558] sm:$0xff]
        %v1576 = vld [vmem:[%s352 + $0x2560] sm:$0xff]
        %v1577 = vld [vmem:[%s352 + $0x2568] sm:$0xff]
        %v1578 = vld [vmem:[%s352 + $0x2570] sm:$0xff]
        %v1579 = vld [vmem:[%s352 + $0x2578] sm:$0xff]
        %v1580 = vld [vmem:[%s352 + $0x2580] sm:$0xff]
        %v1581 = vld [vmem:[%s352 + $0x2588] sm:$0xff]
        %v1582 = vld [vmem:[%s352 + $0x2590] sm:$0xff]
        %v1583 = vld [vmem:[%s352 + $0x2598] sm:$0xff]
        %v1584 = vld [vmem:[%s352 + $0x25a0] sm:$0xff]
        %v1585 = vld [vmem:[%s352 + $0x25a8] sm:$0xff]
        %v1586 = vld [vmem:[%s352 + $0x25b0] sm:$0xff]
        %v1587 = vld [vmem:[%s352 + $0x25b8] sm:$0xff]
        %v1588 = vld [vmem:[%s352 + $0x25c0] sm:$0xff]
        %v1589 = vld [vmem:[%s352 + $0x25c8] sm:$0xff]
        %v1590 = vld [vmem:[%s352 + $0x25d0] sm:$0xff]
        %v1591 = vld [vmem:[%s352 + $0x25d8] sm:$0xff]
        %v1592 = vld [vmem:[%s352 + $0x25e0] sm:$0xff]
        %v1593 = vld [vmem:[%s352 + $0x25e8] sm:$0xff]
        %v1594 = vld [vmem:[%s352 + $0x25f0] sm:$0xff]
        %v1595 = vld [vmem:[%s352 + $0x25f8] sm:$0xff]
        %v1596 = vld [vmem:[%s352 + $0x2600] sm:$0xff]
        %v1597 = vld [vmem:[%s352 + $0x2608] sm:$0xff]
        %v1598 = vld [vmem:[%s352 + $0x2610] sm:$0xff]
        %v1599 = vld [vmem:[%s352 + $0x2618] sm:$0xff]
        %v1600 = vld [vmem:[%s352 + $0x2620] sm:$0xff]
        %v1601 = vld [vmem:[%s352 + $0x2628] sm:$0xff]
        %v1602 = vld [vmem:[%s352 + $0x2630] sm:$0xff]
        %v1603 = vld [vmem:[%s352 + $0x2638] sm:$0xff]
        %v1604 = vld [vmem:[%s352 + $0x2640] sm:$0xff]
        %v1605 = vld [vmem:[%s352 + $0x2648] sm:$0xff]
        %v1606 = vld [vmem:[%s352 + $0x2650] sm:$0xff]
        %v1607 = vld [vmem:[%s352 + $0x2658] sm:$0xff]
        %v1608 = vld [vmem:[%s352 + $0x2660] sm:$0xff]
        %v1609 = vld [vmem:[%s352 + $0x2668] sm:$0xff]
        %v1610 = vld [vmem:[%s352 + $0x2670] sm:$0xff]
        %v1611 = vld [vmem:[%s352 + $0x2678] sm:$0xff]
        %v1612 = vld [vmem:[%s352 + $0x2680] sm:$0xff]
        %v1613 = vld [vmem:[%s352 + $0x2688] sm:$0xff]
        %v1614 = vld [vmem:[%s352 + $0x2690] sm:$0xff]
        %v1615 = vld [vmem:[%s352 + $0x2698] sm:$0xff]
        %v1616 = vld [vmem:[%s352 + $0x26a0] sm:$0xff]
        %v1617 = vld [vmem:[%s352 + $0x26a8] sm:$0xff]
        %v1618 = vld [vmem:[%s352 + $0x26b0] sm:$0xff]
        %v1619 = vld [vmem:[%s352 + $0x26b8] sm:$0xff]
        %v1620 = vld [vmem:[%s352 + $0x26c0] sm:$0xff]
        %v1621 = vld [vmem:[%s352 + $0x26c8] sm:$0xff]
        %v1622 = vld [vmem:[%s352 + $0x26d0] sm:$0xff]
        %v1623 = vld [vmem:[%s352 + $0x26d8] sm:$0xff]
        %v1624 = vld [vmem:[%s352 + $0x26e0] sm:$0xff]
        %v1625 = vld [vmem:[%s352 + $0x26e8] sm:$0xff]
        %v1626 = vld [vmem:[%s352 + $0x26f0] sm:$0xff]
        %v1627 = vld [vmem:[%s352 + $0x26f8] sm:$0xff]
        %v1628 = vld [vmem:[%s352 + $0x2700] sm:$0xff]
        %v1629 = vld [vmem:[%s352 + $0x2708] sm:$0xff]
        %v1630 = vld [vmem:[%s352 + $0x2710] sm:$0xff]
        %v1631 = vld [vmem:[%s352 + $0x2718] sm:$0xff]
        %v1632 = vld [vmem:[%s352 + $0x2720] sm:$0xff]
        %v1633 = vld [vmem:[%s352 + $0x2728] sm:$0xff]
        %v1634 = vld [vmem:[%s352 + $0x2730] sm:$0xff]
        %v1635 = vld [vmem:[%s352 + $0x2738] sm:$0xff]
        %v1636 = vld [vmem:[%s352 + $0x2740] sm:$0xff]
        %v1637 = vld [vmem:[%s352 + $0x2748] sm:$0xff]
        %v1638 = vld [vmem:[%s352 + $0x2750] sm:$0xff]
        %v1639 = vld [vmem:[%s352 + $0x2758] sm:$0xff]
        %v1640 = vld [vmem:[%s352 + $0x2760] sm:$0xff]
        %v1641 = vld [vmem:[%s352 + $0x2768] sm:$0xff]
        %v1642 = vld [vmem:[%s352 + $0x2770] sm:$0xff]
        %v1643 = vld [vmem:[%s352 + $0x2778] sm:$0xff]
        %v1644 = vld [vmem:[%s352 + $0x2780] sm:$0xff]
        %v1645 = vld [vmem:[%s352 + $0x2788] sm:$0xff]
        %v1646 = vld [vmem:[%s352 + $0x2790] sm:$0xff]
        %v1647 = vld [vmem:[%s352 + $0x2798] sm:$0xff]
        %v1648 = vld [vmem:[%s352 + $0x27a0] sm:$0xff]
        %v1649 = vld [vmem:[%s352 + $0x27a8] sm:$0xff]
        %v1650 = vld [vmem:[%s352 + $0x27b0] sm:$0xff]
        %v1651 = vld [vmem:[%s352 + $0x27b8] sm:$0xff]
        %v1652 = vld [vmem:[%s352 + $0x27c0] sm:$0xff]
        %v1653 = vld [vmem:[%s352 + $0x27c8] sm:$0xff]
        %v1654 = vld [vmem:[%s352 + $0x27d0] sm:$0xff]
        %v1655 = vld [vmem:[%s352 + $0x27d8] sm:$0xff]
        %v1656 = vld [vmem:[%s352 + $0x27e0] sm:$0xff]
        %v1657 = vld [vmem:[%s352 + $0x27e8] sm:$0xff]
        %v1658 = vld [vmem:[%s352 + $0x27f0] sm:$0xff]
        %v1659 = vld [vmem:[%s352 + $0x27f8] sm:$0xff]
        %v1660 = vld [vmem:[%s352 + $0x2800] sm:$0xff]
        %v1661 = vld [vmem:[%s352 + $0x2808] sm:$0xff]
        %v1662 = vld [vmem:[%s352 + $0x2810] sm:$0xff]
        %v1663 = vld [vmem:[%s352 + $0x2818] sm:$0xff]
        %v1664 = vld [vmem:[%s352 + $0x2820] sm:$0xff]
        %v1665 = vld [vmem:[%s352 + $0x2828] sm:$0xff]
        %v1666 = vld [vmem:[%s352 + $0x2830] sm:$0xff]
        %v1667 = vld [vmem:[%s352 + $0x2838] sm:$0xff]
        %v1668 = vld [vmem:[%s352 + $0x2840] sm:$0xff]
        %v1669 = vld [vmem:[%s352 + $0x2848] sm:$0xff]
        %v1670 = vld [vmem:[%s352 + $0x2850] sm:$0xff]
        %v1671 = vld [vmem:[%s352 + $0x2858] sm:$0xff]
        %v1672 = vld [vmem:[%s352 + $0x2860] sm:$0xff]
        %v1673 = vld [vmem:[%s352 + $0x2868] sm:$0xff]
        %v1674 = vld [vmem:[%s352 + $0x2870] sm:$0xff]
        %v1675 = vld [vmem:[%s352 + $0x2878] sm:$0xff]
        %v1676 = vld [vmem:[%s352 + $0x2880] sm:$0xff]
        %v1677 = vld [vmem:[%s352 + $0x2888] sm:$0xff]
        %v1678 = vld [vmem:[%s352 + $0x2890] sm:$0xff]
        %v1679 = vld [vmem:[%s352 + $0x2898] sm:$0xff]
        %v1680 = vld [vmem:[%s352 + $0x28a0] sm:$0xff]
        %v1681 = vld [vmem:[%s352 + $0x28a8] sm:$0xff]
        %v1682 = vld [vmem:[%s352 + $0x28b0] sm:$0xff]
        %v1683 = vld [vmem:[%s352 + $0x28b8] sm:$0xff]
        %v1684 = vld [vmem:[%s352 + $0x28c0] sm:$0xff]
        %v1685 = vld [vmem:[%s352 + $0x28c8] sm:$0xff]
        %v1686 = vld [vmem:[%s352 + $0x28d0] sm:$0xff]
        %v1687 = vld [vmem:[%s352 + $0x28d8] sm:$0xff]
        %v1688 = vld [vmem:[%s352 + $0x28e0] sm:$0xff]
        %v1689 = vld [vmem:[%s352 + $0x28e8] sm:$0xff]
        %v1690 = vld [vmem:[%s352 + $0x28f0] sm:$0xff]
        %v1691 = vld [vmem:[%s352 + $0x28f8] sm:$0xff]
        %v1692 = vld [vmem:[%s352 + $0x2900] sm:$0xff]
        %v1693 = vld [vmem:[%s352 + $0x2908] sm:$0xff]
        %v1694 = vld [vmem:[%s352 + $0x2910] sm:$0xff]
        %v1695 = vld [vmem:[%s352 + $0x2918] sm:$0xff]
        %v1696 = vld [vmem:[%s352 + $0x2920] sm:$0xff]
        %v1697 = vld [vmem:[%s352 + $0x2928] sm:$0xff]
        %v1698 = vld [vmem:[%s352 + $0x2930] sm:$0xff]
        %v1699 = vld [vmem:[%s352 + $0x2938] sm:$0xff]
        %v1700 = vld [vmem:[%s352 + $0x2940] sm:$0xff]
        %v1701 = vld [vmem:[%s352 + $0x2948] sm:$0xff]
        %v1702 = vld [vmem:[%s352 + $0x2950] sm:$0xff]
        %v1703 = vld [vmem:[%s352 + $0x2958] sm:$0xff]
        %v1704 = vld [vmem:[%s352 + $0x2960] sm:$0xff]
        %v1705 = vld [vmem:[%s352 + $0x2968] sm:$0xff]
        %v1706 = vld [vmem:[%s352 + $0x2970] sm:$0xff]
        %v1707 = vld [vmem:[%s352 + $0x2978] sm:$0xff]
        %v1708 = vld [vmem:[%s352 + $0x2980] sm:$0xff]
        %v1709 = vld [vmem:[%s352 + $0x2988] sm:$0xff]
        %v1710 = vld [vmem:[%s352 + $0x2990] sm:$0xff]
        %v1711 = vld [vmem:[%s352 + $0x2998] sm:$0xff]
        %v1712 = vld [vmem:[%s352 + $0x29a0] sm:$0xff]
        %v1713 = vld [vmem:[%s352 + $0x29a8] sm:$0xff]
        %v1714 = vld [vmem:[%s352 + $0x29b0] sm:$0xff]
        %v1715 = vld [vmem:[%s352 + $0x29b8] sm:$0xff]
        %v1716 = vld [vmem:[%s352 + $0x29c0] sm:$0xff]
        %v1717 = vld [vmem:[%s352 + $0x29c8] sm:$0xff]
        %v1718 = vld [vmem:[%s352 + $0x29d0] sm:$0xff]
        %v1719 = vld [vmem:[%s352 + $0x29d8] sm:$0xff]
        %v1720 = vld [vmem:[%s352 + $0x29e0] sm:$0xff]
        %v1721 = vld [vmem:[%s352 + $0x29e8] sm:$0xff]
        %v1722 = vld [vmem:[%s352 + $0x29f0] sm:$0xff]
        %v1723 = vld [vmem:[%s352 + $0x29f8] sm:$0xff]
        %v1724 = vld [vmem:[%s352 + $0x2a00] sm:$0xff]
        %v1725 = vld [vmem:[%s352 + $0x2a08] sm:$0xff]
        %v1726 = vld [vmem:[%s352 + $0x2a10] sm:$0xff]
        %v1727 = vld [vmem:[%s352 + $0x2a18] sm:$0xff]
        %v1728 = vld [vmem:[%s352 + $0x2a20] sm:$0xff]
        %v1729 = vld [vmem:[%s352 + $0x2a28] sm:$0xff]
        %v1730 = vld [vmem:[%s352 + $0x2a30] sm:$0xff]
        %v1731 = vld [vmem:[%s352 + $0x2a38] sm:$0xff]
        %v1732 = vld [vmem:[%s352 + $0x2a40] sm:$0xff]
        %v1733 = vld [vmem:[%s352 + $0x2a48] sm:$0xff]
        %v1734 = vld [vmem:[%s352 + $0x2a50] sm:$0xff]
        %v1735 = vld [vmem:[%s352 + $0x2a58] sm:$0xff]
        %v1736 = vld [vmem:[%s352 + $0x2a60] sm:$0xff]
        %v1737 = vld [vmem:[%s352 + $0x2a68] sm:$0xff]
        %v1738 = vld [vmem:[%s352 + $0x2a70] sm:$0xff]
        %v1739 = vld [vmem:[%s352 + $0x2a78] sm:$0xff]
        %v1740 = vld [vmem:[%s352 + $0x2a80] sm:$0xff]
        %v1741 = vld [vmem:[%s352 + $0x2a88] sm:$0xff]
        %v1742 = vld [vmem:[%s352 + $0x2a90] sm:$0xff]
        %v1743 = vld [vmem:[%s352 + $0x2a98] sm:$0xff]
        %v1744 = vld [vmem:[%s352 + $0x2aa0] sm:$0xff]
        %v1745 = vld [vmem:[%s352 + $0x2aa8] sm:$0xff]
        %v1746 = vld [vmem:[%s352 + $0x2ab0] sm:$0xff]
        %v1747 = vld [vmem:[%s352 + $0x2ab8] sm:$0xff]
        %v1748 = vld [vmem:[%s352 + $0x2ac0] sm:$0xff]
        %v1749 = vld [vmem:[%s352 + $0x2ac8] sm:$0xff]
        %v1750 = vld [vmem:[%s352 + $0x2ad0] sm:$0xff]
        %v1751 = vld [vmem:[%s352 + $0x2ad8] sm:$0xff]
        %v1752 = vld [vmem:[%s352 + $0x2ae0] sm:$0xff]
        %v1753 = vld [vmem:[%s352 + $0x2ae8] sm:$0xff]
        %v1754 = vld [vmem:[%s352 + $0x2af0] sm:$0xff]
        %v1755 = vld [vmem:[%s352 + $0x2af8] sm:$0xff]
        %v1756 = vld [vmem:[%s352 + $0x2b00] sm:$0xff]
        %v1757 = vld [vmem:[%s352 + $0x2b08] sm:$0xff]
        %v1758 = vld [vmem:[%s352 + $0x2b10] sm:$0xff]
        %v1759 = vld [vmem:[%s352 + $0x2b18] sm:$0xff]
        %v1760 = vld [vmem:[%s352 + $0x2b20] sm:$0xff]
        %v1761 = vld [vmem:[%s352 + $0x2b28] sm:$0xff]
        %v1762 = vld [vmem:[%s352 + $0x2b30] sm:$0xff]
        %v1763 = vld [vmem:[%s352 + $0x2b38] sm:$0xff]
        %v1764 = vld [vmem:[%s352 + $0x2b40] sm:$0xff]
        %v1765 = vld [vmem:[%s352 + $0x2b48] sm:$0xff]
        %v1766 = vld [vmem:[%s352 + $0x2b50] sm:$0xff]
        %v1767 = vld [vmem:[%s352 + $0x2b58] sm:$0xff]
        %v1768 = vld [vmem:[%s352 + $0x2b60] sm:$0xff]
        %v1769 = vld [vmem:[%s352 + $0x2b68] sm:$0xff]
        %v1770 = vld [vmem:[%s352 + $0x2b70] sm:$0xff]
        %v1771 = vld [vmem:[%s352 + $0x2b78] sm:$0xff]
        %v1772 = vld [vmem:[%s352 + $0x2b80] sm:$0xff]
        %v1773 = vld [vmem:[%s352 + $0x2b88] sm:$0xff]
        %v1774 = vld [vmem:[%s352 + $0x2b90] sm:$0xff]
        %v1775 = vld [vmem:[%s352 + $0x2b98] sm:$0xff]
        %v1776 = vld [vmem:[%s352 + $0x2ba0] sm:$0xff]
        %v1777 = vld [vmem:[%s352 + $0x2ba8] sm:$0xff]
        %v1778 = vld [vmem:[%s352 + $0x2bb0] sm:$0xff]
        %v1779 = vld [vmem:[%s352 + $0x2bb8] sm:$0xff]
        %v1780 = vld [vmem:[%s352 + $0x2bc0] sm:$0xff]
        %v1781 = vld [vmem:[%s352 + $0x2bc8] sm:$0xff]
        %v1782 = vld [vmem:[%s352 + $0x2bd0] sm:$0xff]
        %v1783 = vld [vmem:[%s352 + $0x2bd8] sm:$0xff]
        %v1784 = vld [vmem:[%s352 + $0x2be0] sm:$0xff]
        %v1785 = vld [vmem:[%s352 + $0x2be8] sm:$0xff]
        %v1786 = vld [vmem:[%s352 + $0x2bf0] sm:$0xff]
        %v1787 = vld [vmem:[%s352 + $0x2bf8] sm:$0xff]
        %v1788 = vld [vmem:[%s352 + $0x2c00] sm:$0xff]
        %v1789 = vld [vmem:[%s352 + $0x2c08] sm:$0xff]
        %v1790 = vld [vmem:[%s352 + $0x2c10] sm:$0xff]
        %v1791 = vld [vmem:[%s352 + $0x2c18] sm:$0xff]
        %v1792 = vld [vmem:[%s352 + $0x2c20] sm:$0xff]
        %v1793 = vld [vmem:[%s352 + $0x2c28] sm:$0xff]
        %v1794 = vld [vmem:[%s352 + $0x2c30] sm:$0xff]
        %v1795 = vld [vmem:[%s352 + $0x2c38] sm:$0xff]
        %v1796 = vld [vmem:[%s352 + $0x2c40] sm:$0xff]
        %v1797 = vld [vmem:[%s352 + $0x2c48] sm:$0xff]
        %v1798 = vld [vmem:[%s352 + $0x2c50] sm:$0xff]
        %v1799 = vld [vmem:[%s352 + $0x2c58] sm:$0xff]
        %v1800 = vld [vmem:[%s352 + $0x2c60] sm:$0xff]
        %v1801 = vld [vmem:[%s352 + $0x2c68] sm:$0xff]
        %v1802 = vld [vmem:[%s352 + $0x2c70] sm:$0xff]
        %v1803 = vld [vmem:[%s352 + $0x2c78] sm:$0xff]
        %v1804 = vld [vmem:[%s352 + $0x2c80] sm:$0xff]
        %v1805 = vld [vmem:[%s352 + $0x2c88] sm:$0xff]
        %v1806 = vld [vmem:[%s352 + $0x2c90] sm:$0xff]
        %v1807 = vld [vmem:[%s352 + $0x2c98] sm:$0xff]
        %v1808 = vld [vmem:[%s352 + $0x2ca0] sm:$0xff]
        %v1809 = vld [vmem:[%s352 + $0x2ca8] sm:$0xff]
        %v1810 = vld [vmem:[%s352 + $0x2cb0] sm:$0xff]
        %v1811 = vld [vmem:[%s352 + $0x2cb8] sm:$0xff]
        %v1812 = vld [vmem:[%s352 + $0x2cc0] sm:$0xff]
        %v1813 = vld [vmem:[%s352 + $0x2cc8] sm:$0xff]
        %v1814 = vld [vmem:[%s352 + $0x2cd0] sm:$0xff]
        %v1815 = vld [vmem:[%s352 + $0x2cd8] sm:$0xff]
        %v1816 = vld [vmem:[%s352 + $0x2ce0] sm:$0xff]
        %v1817 = vld [vmem:[%s352 + $0x2ce8] sm:$0xff]
        %v1818 = vld [vmem:[%s352 + $0x2cf0] sm:$0xff]
        %v1819 = vld [vmem:[%s352 + $0x2cf8] sm:$0xff]
        %v1820 = vld [vmem:[%s352 + $0x2d00] sm:$0xff]
        %v1821 = vld [vmem:[%s352 + $0x2d08] sm:$0xff]
        %v1822 = vld [vmem:[%s352 + $0x2d10] sm:$0xff]
        %v1823 = vld [vmem:[%s352 + $0x2d18] sm:$0xff]
        %v1824 = vld [vmem:[%s352 + $0x2d20] sm:$0xff]
        %v1825 = vld [vmem:[%s352 + $0x2d28] sm:$0xff]
        %v1826 = vld [vmem:[%s352 + $0x2d30] sm:$0xff]
        %v1827 = vld [vmem:[%s352 + $0x2d38] sm:$0xff]
        %v1828 = vld [vmem:[%s352 + $0x2d40] sm:$0xff]
        %v1829 = vld [vmem:[%s352 + $0x2d48] sm:$0xff]
        %v1830 = vld [vmem:[%s352 + $0x2d50] sm:$0xff]
        %v1831 = vld [vmem:[%s352 + $0x2d58] sm:$0xff]
        %v1832 = vld [vmem:[%s352 + $0x2d60] sm:$0xff]
        %v1833 = vld [vmem:[%s352 + $0x2d68] sm:$0xff]
        %v1834 = vld [vmem:[%s352 + $0x2d70] sm:$0xff]
        %v1835 = vld [vmem:[%s352 + $0x2d78] sm:$0xff]
        %v1836 = vld [vmem:[%s352 + $0x2d80] sm:$0xff]
        %v1837 = vld [vmem:[%s352 + $0x2d88] sm:$0xff]
        %v1838 = vld [vmem:[%s352 + $0x2d90] sm:$0xff]
        %v1839 = vld [vmem:[%s352 + $0x2d98] sm:$0xff]
        %v1840 = vld [vmem:[%s352 + $0x2da0] sm:$0xff]
        %v1841 = vld [vmem:[%s352 + $0x2da8] sm:$0xff]
        %v1842 = vld [vmem:[%s352 + $0x2db0] sm:$0xff]
        %v1843 = vld [vmem:[%s352 + $0x2db8] sm:$0xff]
        %v1844 = vld [vmem:[%s352 + $0x2dc0] sm:$0xff]
        %v1845 = vld [vmem:[%s352 + $0x2dc8] sm:$0xff]
        %v1846 = vld [vmem:[%s352 + $0x2dd0] sm:$0xff]
        %v1847 = vld [vmem:[%s352 + $0x2dd8] sm:$0xff]
        %v1848 = vld [vmem:[%s352 + $0x2de0] sm:$0xff]
        %v1849 = vld [vmem:[%s352 + $0x2de8] sm:$0xff]
        %v1850 = vld [vmem:[%s352 + $0x2df0] sm:$0xff]
        %v1851 = vld [vmem:[%s352 + $0x2df8] sm:$0xff]
        %v1852 = vld [vmem:[%s352 + $0x2e00] sm:$0xff]
        %v1853 = vld [vmem:[%s352 + $0x2e08] sm:$0xff]
        %v1854 = vld [vmem:[%s352 + $0x2e10] sm:$0xff]
        %v1855 = vld [vmem:[%s352 + $0x2e18] sm:$0xff]
        %v1856 = vld [vmem:[%s352 + $0x2e20] sm:$0xff]
        %v1857 = vld [vmem:[%s352 + $0x2e28] sm:$0xff]
        %v1858 = vld [vmem:[%s352 + $0x2e30] sm:$0xff]
        %v1859 = vld [vmem:[%s352 + $0x2e38] sm:$0xff]
        %v1860 = vld [vmem:[%s352 + $0x2e40] sm:$0xff]
        %v1861 = vld [vmem:[%s352 + $0x2e48] sm:$0xff]
        %v1862 = vld [vmem:[%s352 + $0x2e50] sm:$0xff]
        %v1863 = vld [vmem:[%s352 + $0x2e58] sm:$0xff]
        %v1864 = vld [vmem:[%s352 + $0x2e60] sm:$0xff]
        %v1865 = vld [vmem:[%s352 + $0x2e68] sm:$0xff]
        %v1866 = vld [vmem:[%s352 + $0x2e70] sm:$0xff]
        %v1867 = vld [vmem:[%s352 + $0x2e78] sm:$0xff]
        %v1868 = vld [vmem:[%s352 + $0x2e80] sm:$0xff]
        %v1869 = vld [vmem:[%s352 + $0x2e88] sm:$0xff]
        %v1870 = vld [vmem:[%s352 + $0x2e90] sm:$0xff]
        %v1871 = vld [vmem:[%s352 + $0x2e98] sm:$0xff]
        %v1872 = vld [vmem:[%s352 + $0x2ea0] sm:$0xff]
        %v1873 = vld [vmem:[%s352 + $0x2ea8] sm:$0xff]
        %v1874 = vld [vmem:[%s352 + $0x2eb0] sm:$0xff]
        %v1875 = vld [vmem:[%s352 + $0x2eb8] sm:$0xff]
        %v1876 = vld [vmem:[%s352 + $0x2ec0] sm:$0xff]
        %v1877 = vld [vmem:[%s352 + $0x2ec8] sm:$0xff]
        %v1878 = vld [vmem:[%s352 + $0x2ed0] sm:$0xff]
        %v1879 = vld [vmem:[%s352 + $0x2ed8] sm:$0xff]
        %v1880 = vld [vmem:[%s352 + $0x2ee0] sm:$0xff]
        %v1881 = vld [vmem:[%s352 + $0x2ee8] sm:$0xff]
        %v1882 = vld [vmem:[%s352 + $0x2ef0] sm:$0xff]
        %v1883 = vld [vmem:[%s352 + $0x2ef8] sm:$0xff]
        %v1884 = vld [vmem:[%s352 + $0x2f00] sm:$0xff]
        %v1885 = vld [vmem:[%s352 + $0x2f08] sm:$0xff]
        %v1886 = vld [vmem:[%s352 + $0x2f10] sm:$0xff]
        %v1887 = vld [vmem:[%s352 + $0x2f18] sm:$0xff]
        %v1888 = vld [vmem:[%s352 + $0x2f20] sm:$0xff]
        %v1889 = vld [vmem:[%s352 + $0x2f28] sm:$0xff]
        %v1890 = vld [vmem:[%s352 + $0x2f30] sm:$0xff]
        %v1891 = vld [vmem:[%s352 + $0x2f38] sm:$0xff]
        %v1892 = vld [vmem:[%s352 + $0x2f40] sm:$0xff]
        %v1893 = vld [vmem:[%s352 + $0x2f48] sm:$0xff]
        %v1894 = vld [vmem:[%s352 + $0x2f50] sm:$0xff]
        %v1895 = vld [vmem:[%s352 + $0x2f58] sm:$0xff]
        %v1896 = vld [vmem:[%s352 + $0x2f60] sm:$0xff]
        %v1897 = vld [vmem:[%s352 + $0x2f68] sm:$0xff]
        %v1898 = vld [vmem:[%s352 + $0x2f70] sm:$0xff]
        %v1899 = vld [vmem:[%s352 + $0x2f78] sm:$0xff]
        %v1900 = vld [vmem:[%s352 + $0x2f80] sm:$0xff]
        %v1901 = vld [vmem:[%s352 + $0x2f88] sm:$0xff]
        %v1902 = vld [vmem:[%s352 + $0x2f90] sm:$0xff]
        %v1903 = vld [vmem:[%s352 + $0x2f98] sm:$0xff]
        %v1904 = vld [vmem:[%s352 + $0x2fa0] sm:$0xff]
        %v1905 = vld [vmem:[%s352 + $0x2fa8] sm:$0xff]
        %v1906 = vld [vmem:[%s352 + $0x2fb0] sm:$0xff]
        %v1907 = vld [vmem:[%s352 + $0x2fb8] sm:$0xff]
        %v1908 = vld [vmem:[%s352 + $0x2fc0] sm:$0xff]
        %v1909 = vld [vmem:[%s352 + $0x2fc8] sm:$0xff]
        %v1910 = vld [vmem:[%s352 + $0x2fd0] sm:$0xff]
        %v1911 = vld [vmem:[%s352 + $0x2fd8] sm:$0xff]
        %v1912 = vld [vmem:[%s352 + $0x2fe0] sm:$0xff]
        %v1913 = vld [vmem:[%s352 + $0x2fe8] sm:$0xff]
        %v1914 = vld [vmem:[%s352 + $0x2ff0] sm:$0xff]
        %v1915 = vld [vmem:[%s352 + $0x2ff8] sm:$0xff]
        %v1916 = vld [vmem:[%s352 + $0x3000] sm:$0xff]
        %v1917 = vld [vmem:[%s352 + $0x3008] sm:$0xff]
        %v1918 = vld [vmem:[%s352 + $0x3010] sm:$0xff]
        %v1919 = vld [vmem:[%s352 + $0x3018] sm:$0xff]
        %v1920 = vld [vmem:[%s352 + $0x3020] sm:$0xff]
        %v1921 = vld [vmem:[%s352 + $0x3028] sm:$0xff]
        %v1922 = vld [vmem:[%s352 + $0x3030] sm:$0xff]
        %v1923 = vld [vmem:[%s352 + $0x3038] sm:$0xff]
        %v1924 = vld [vmem:[%s352 + $0x3040] sm:$0xff]
        %v1925 = vld [vmem:[%s352 + $0x3048] sm:$0xff]
        %v1926 = vld [vmem:[%s352 + $0x3050] sm:$0xff]
        %v1927 = vld [vmem:[%s352 + $0x3058] sm:$0xff]
        %v1928 = vld [vmem:[%s352 + $0x3060] sm:$0xff]
        %v1929 = vld [vmem:[%s352 + $0x3068] sm:$0xff]
        %v1930 = vld [vmem:[%s352 + $0x3070] sm:$0xff]
        %v1931 = vld [vmem:[%s352 + $0x3078] sm:$0xff]
        %v1932 = vld [vmem:[%s352 + $0x3080] sm:$0xff]
        %v1933 = vld [vmem:[%s352 + $0x3088] sm:$0xff]
        %v1934 = vld [vmem:[%s352 + $0x3090] sm:$0xff]
        %v1935 = vld [vmem:[%s352 + $0x3098] sm:$0xff]
        %v1936 = vld [vmem:[%s352 + $0x30a0] sm:$0xff]
        %v1937 = vld [vmem:[%s352 + $0x30a8] sm:$0xff]
        %v1938 = vld [vmem:[%s352 + $0x30b0] sm:$0xff]
        %v1939 = vld [vmem:[%s352 + $0x30b8] sm:$0xff]
        %v1940 = vld [vmem:[%s352 + $0x30c0] sm:$0xff]
        %v1941 = vld [vmem:[%s352 + $0x30c8] sm:$0xff]
        %v1942 = vld [vmem:[%s352 + $0x30d0] sm:$0xff]
        %v1943 = vld [vmem:[%s352 + $0x30d8] sm:$0xff]
        %v1944 = vld [vmem:[%s352 + $0x30e0] sm:$0xff]
        %v1945 = vld [vmem:[%s352 + $0x30e8] sm:$0xff]
        %v1946 = vld [vmem:[%s352 + $0x30f0] sm:$0xff]
        %v1947 = vld [vmem:[%s352 + $0x30f8] sm:$0xff]
        %v1948 = vld [vmem:[%s352 + $0x3100] sm:$0xff]
        %v1949 = vld [vmem:[%s352 + $0x3108] sm:$0xff]
        %v1950 = vld [vmem:[%s352 + $0x3110] sm:$0xff]
        %v1951 = vld [vmem:[%s352 + $0x3118] sm:$0xff]
        %v1952 = vld [vmem:[%s352 + $0x3120] sm:$0xff]
        %v1953 = vld [vmem:[%s352 + $0x3128] sm:$0xff]
        %v1954 = vld [vmem:[%s352 + $0x3130] sm:$0xff]
        %v1955 = vld [vmem:[%s352 + $0x3138] sm:$0xff]
        %v1956 = vld [vmem:[%s352 + $0x3140] sm:$0xff]
        %v1957 = vld [vmem:[%s352 + $0x3148] sm:$0xff]
        %v1958 = vld [vmem:[%s352 + $0x3150] sm:$0xff]
        %v1959 = vld [vmem:[%s352 + $0x3158] sm:$0xff]
        %v1960 = vld [vmem:[%s352 + $0x3160] sm:$0xff]
        %v1961 = vld [vmem:[%s352 + $0x3168] sm:$0xff]
        %v1962 = vld [vmem:[%s352 + $0x3170] sm:$0xff]
        %v1963 = vld [vmem:[%s352 + $0x3178] sm:$0xff]
        %v1964 = vld [vmem:[%s352 + $0x3180] sm:$0xff]
        %v1965 = vld [vmem:[%s352 + $0x3188] sm:$0xff]
        %v1966 = vld [vmem:[%s352 + $0x3190] sm:$0xff]
        %v1967 = vld [vmem:[%s352 + $0x3198] sm:$0xff]
        %v1968 = vld [vmem:[%s352 + $0x31a0] sm:$0xff]
        %v1969 = vld [vmem:[%s352 + $0x31a8] sm:$0xff]
        %v1970 = vld [vmem:[%s352 + $0x31b0] sm:$0xff]
        %v1971 = vld [vmem:[%s352 + $0x31b8] sm:$0xff]
        %v1972 = vld [vmem:[%s352 + $0x31c0] sm:$0xff]
        %v1973 = vld [vmem:[%s352 + $0x31c8] sm:$0xff]
        %v1974 = vld [vmem:[%s352 + $0x31d0] sm:$0xff]
        %v1975 = vld [vmem:[%s352 + $0x31d8] sm:$0xff]
        %v1976 = vld [vmem:[%s352 + $0x31e0] sm:$0xff]
        %v1977 = vld [vmem:[%s352 + $0x31e8] sm:$0xff]
        %v1978 = vld [vmem:[%s352 + $0x31f0] sm:$0xff]
        %v1979 = vld [vmem:[%s352 + $0x31f8] sm:$0xff]
        %v1980 = vld [vmem:[%s352 + $0x3200] sm:$0xff]
        %v1981 = vld [vmem:[%s352 + $0x3208] sm:$0xff]
        %v1982 = vld [vmem:[%s352 + $0x3210] sm:$0xff]
        %v1983 = vld [vmem:[%s352 + $0x3218] sm:$0xff]
        %v1984 = vld [vmem:[%s352 + $0x3220] sm:$0xff]
        %v1985 = vld [vmem:[%s352 + $0x3228] sm:$0xff]
        %v1986 = vld [vmem:[%s352 + $0x3230] sm:$0xff]
        %v1987 = vld [vmem:[%s352 + $0x3238] sm:$0xff]
        %v1988 = vld [vmem:[%s352 + $0x3240] sm:$0xff]
        %v1989 = vld [vmem:[%s352 + $0x3248] sm:$0xff]
        %v1990 = vld [vmem:[%s352 + $0x3250] sm:$0xff]
        %v1991 = vld [vmem:[%s352 + $0x3258] sm:$0xff]
        %v1992 = vld [vmem:[%s352 + $0x3260] sm:$0xff]
        %v1993 = vld [vmem:[%s352 + $0x3268] sm:$0xff]
        %v1994 = vld [vmem:[%s352 + $0x3270] sm:$0xff]
        %v1995 = vld [vmem:[%s352 + $0x3278] sm:$0xff]
        %v1996 = vld [vmem:[%s352 + $0x3280] sm:$0xff]
        %v1997 = vld [vmem:[%s352 + $0x3288] sm:$0xff]
        %v1998 = vld [vmem:[%s352 + $0x3290] sm:$0xff]
        %v1999 = vld [vmem:[%s352 + $0x3298] sm:$0xff]
        %v2000 = vld [vmem:[%s352 + $0x32a0] sm:$0xff]
        %v2001 = vld [vmem:[%s352 + $0x32a8] sm:$0xff]
        %v2002 = vld [vmem:[%s352 + $0x32b0] sm:$0xff]
        %v2003 = vld [vmem:[%s352 + $0x32b8] sm:$0xff]
        %v2004 = vld [vmem:[%s352 + $0x32c0] sm:$0xff]
        %v2005 = vld [vmem:[%s352 + $0x32c8] sm:$0xff]
        %v2006 = vld [vmem:[%s352 + $0x32d0] sm:$0xff]
        %v2007 = vld [vmem:[%s352 + $0x32d8] sm:$0xff]
        %v2008 = vld [vmem:[%s352 + $0x32e0] sm:$0xff]
        %v2009 = vld [vmem:[%s352 + $0x32e8] sm:$0xff]
        %v2010 = vld [vmem:[%s352 + $0x32f0] sm:$0xff]
        %v2011 = vld [vmem:[%s352 + $0x32f8] sm:$0xff]
        %v2012 = vld [vmem:[%s352 + $0x3300] sm:$0xff]
        %v2013 = vld [vmem:[%s352 + $0x3308] sm:$0xff]
        %v2014 = vld [vmem:[%s352 + $0x3310] sm:$0xff]
        %v2015 = vld [vmem:[%s352 + $0x3318] sm:$0xff]
        %v2016 = vld [vmem:[%s352 + $0x3320] sm:$0xff]
        %v2017 = vld [vmem:[%s352 + $0x3328] sm:$0xff]
        %v2018 = vld [vmem:[%s352 + $0x3330] sm:$0xff]
        %v2019 = vld [vmem:[%s352 + $0x3338] sm:$0xff]
        %v2020 = vld [vmem:[%s352 + $0x3340] sm:$0xff]
        %v2021 = vld [vmem:[%s352 + $0x3348] sm:$0xff]
        %v2022 = vld [vmem:[%s352 + $0x3350] sm:$0xff]
        %v2023 = vld [vmem:[%s352 + $0x3358] sm:$0xff]
        %v2024 = vld [vmem:[%s352 + $0x3360] sm:$0xff]
        %v2025 = vld [vmem:[%s352 + $0x3368] sm:$0xff]
        %v2026 = vld [vmem:[%s352 + $0x3370] sm:$0xff]
        %v2027 = vld [vmem:[%s352 + $0x3378] sm:$0xff]
        %v2028 = vld [vmem:[%s352 + $0x3380] sm:$0xff]
        %v2029 = vld [vmem:[%s352 + $0x3388] sm:$0xff]
        %v2030 = vld [vmem:[%s352 + $0x3390] sm:$0xff]
        %v2031 = vld [vmem:[%s352 + $0x3398] sm:$0xff]
        %v2032 = vld [vmem:[%s352 + $0x33a0] sm:$0xff]
        %v2033 = vld [vmem:[%s352 + $0x33a8] sm:$0xff]
        %v2034 = vld [vmem:[%s352 + $0x33b0] sm:$0xff]
        %v2035 = vld [vmem:[%s352 + $0x33b8] sm:$0xff]
        %v2036 = vld [vmem:[%s352 + $0x33c0] sm:$0xff]
        %v2037 = vld [vmem:[%s352 + $0x33c8] sm:$0xff]
        %v2038 = vld [vmem:[%s352 + $0x33d0] sm:$0xff]
        %v2039 = vld [vmem:[%s352 + $0x33d8] sm:$0xff]
        %v2040 = vld [vmem:[%s352 + $0x33e0] sm:$0xff]
        %v2041 = vld [vmem:[%s352 + $0x33e8] sm:$0xff]
        %v2042 = vld [vmem:[%s352 + $0x33f0] sm:$0xff]
        %v2043 = vld [vmem:[%s352 + $0x33f8] sm:$0xff]
        %v2044 = vld [vmem:[%s352 + $0x3400] sm:$0xff]
        %v2045 = vld [vmem:[%s352 + $0x3408] sm:$0xff]
        %v2046 = vld [vmem:[%s352 + $0x3410] sm:$0xff]
        %v2047 = vld [vmem:[%s352 + $0x3418] sm:$0xff]
        %v2048 = vld [vmem:[%s352 + $0x3420] sm:$0xff]
        %v2049 = vld [vmem:[%s352 + $0x3428] sm:$0xff]
        %v2050 = vld [vmem:[%s352 + $0x3430] sm:$0xff]
        %v2051 = vld [vmem:[%s352 + $0x3438] sm:$0xff]
        %v2052 = vld [vmem:[%s352 + $0x3440] sm:$0xff]
        %v2053 = vld [vmem:[%s352 + $0x3448] sm:$0xff]
        %v2054 = vld [vmem:[%s352 + $0x3450] sm:$0xff]
        %v2055 = vld [vmem:[%s352 + $0x3458] sm:$0xff]
        %v2056 = vld [vmem:[%s352 + $0x3460] sm:$0xff]
        %v2057 = vld [vmem:[%s352 + $0x3468] sm:$0xff]
        %v2058 = vld [vmem:[%s352 + $0x3470] sm:$0xff]
        %v2059 = vld [vmem:[%s352 + $0x3478] sm:$0xff]
        %v2060 = vld [vmem:[%s352 + $0x3480] sm:$0xff]
        %v2061 = vld [vmem:[%s352 + $0x3488] sm:$0xff]
        %v2062 = vld [vmem:[%s352 + $0x3490] sm:$0xff]
        %v2063 = vld [vmem:[%s352 + $0x3498] sm:$0xff]
        %v2064 = vld [vmem:[%s352 + $0x34a0] sm:$0xff]
        %v2065 = vld [vmem:[%s352 + $0x34a8] sm:$0xff]
        %v2066 = vld [vmem:[%s352 + $0x34b0] sm:$0xff]
        %v2067 = vld [vmem:[%s352 + $0x34b8] sm:$0xff]
        %v2068 = vld [vmem:[%s352 + $0x34c0] sm:$0xff]
        %v2069 = vld [vmem:[%s352 + $0x34c8] sm:$0xff]
        %v2070 = vld [vmem:[%s352 + $0x34d0] sm:$0xff]
        %v2071 = vld [vmem:[%s352 + $0x34d8] sm:$0xff]
        %v2072 = vld [vmem:[%s352 + $0x34e0] sm:$0xff]
        %v2073 = vld [vmem:[%s352 + $0x34e8] sm:$0xff]
        %v2074 = vld [vmem:[%s352 + $0x34f0] sm:$0xff]
        %v2075 = vld [vmem:[%s352 + $0x34f8] sm:$0xff]
        %v2076 = vld [vmem:[%s352 + $0x3500] sm:$0xff]
        %v2077 = vld [vmem:[%s352 + $0x3508] sm:$0xff]
        %v2078 = vld [vmem:[%s352 + $0x3510] sm:$0xff]
        %v2079 = vld [vmem:[%s352 + $0x3518] sm:$0xff]
        %v2080 = vld [vmem:[%s352 + $0x3520] sm:$0xff]
        %v2081 = vld [vmem:[%s352 + $0x3528] sm:$0xff]
        %v2082 = vld [vmem:[%s352 + $0x3530] sm:$0xff]
        %v2083 = vld [vmem:[%s352 + $0x3538] sm:$0xff]
        %v2084 = vld [vmem:[%s352 + $0x3540] sm:$0xff]
        %v2085 = vld [vmem:[%s352 + $0x3548] sm:$0xff]
        %v2086 = vld [vmem:[%s352 + $0x3550] sm:$0xff]
        %v2087 = vld [vmem:[%s352 + $0x3558] sm:$0xff]
        %v2088 = vld [vmem:[%s352 + $0x3560] sm:$0xff]
        %v2089 = vld [vmem:[%s352 + $0x3568] sm:$0xff]
        %v2090 = vld [vmem:[%s352 + $0x3570] sm:$0xff]
        %v2091 = vld [vmem:[%s352 + $0x3578] sm:$0xff]
        %v2092 = vld [vmem:[%s352 + $0x3580] sm:$0xff]
        %v2093 = vld [vmem:[%s352 + $0x3588] sm:$0xff]
        %v2094 = vld [vmem:[%s352 + $0x3590] sm:$0xff]
        %v2095 = vld [vmem:[%s352 + $0x3598] sm:$0xff]
        %v2096 = vld [vmem:[%s352 + $0x35a0] sm:$0xff]
        %v2097 = vld [vmem:[%s352 + $0x35a8] sm:$0xff]
        %v2098 = vld [vmem:[%s352 + $0x35b0] sm:$0xff]
        %v2099 = vld [vmem:[%s352 + $0x35b8] sm:$0xff]
        %v2100 = vld [vmem:[%s352 + $0x35c0] sm:$0xff]
        %v2101 = vld [vmem:[%s352 + $0x35c8] sm:$0xff]
        %v2102 = vld [vmem:[%s352 + $0x35d0] sm:$0xff]
        %v2103 = vld [vmem:[%s352 + $0x35d8] sm:$0xff]
        %v2104 = vld [vmem:[%s352 + $0x35e0] sm:$0xff]
        %v2105 = vld [vmem:[%s352 + $0x35e8] sm:$0xff]
        %v2106 = vld [vmem:[%s352 + $0x35f0] sm:$0xff]
        %v2107 = vld [vmem:[%s352 + $0x35f8] sm:$0xff]
        %v2108 = vld [vmem:[%s352 + $0x3600] sm:$0xff]
        %v2109 = vld [vmem:[%s352 + $0x3608] sm:$0xff]
        %v2110 = vld [vmem:[%s352 + $0x3610] sm:$0xff]
        %v2111 = vld [vmem:[%s352 + $0x3618] sm:$0xff]
        %v2112 = vld [vmem:[%s352 + $0x3620] sm:$0xff]
        %v2113 = vld [vmem:[%s352 + $0x3628] sm:$0xff]
        %v2114 = vld [vmem:[%s352 + $0x3630] sm:$0xff]
        %v2115 = vld [vmem:[%s352 + $0x3638] sm:$0xff]
        %v2116 = vld [vmem:[%s352 + $0x3640] sm:$0xff]
        %v2117 = vld [vmem:[%s352 + $0x3648] sm:$0xff]
        %v2118 = vld [vmem:[%s352 + $0x3650] sm:$0xff]
        %v2119 = vld [vmem:[%s352 + $0x3658] sm:$0xff]
        %v2120 = vld [vmem:[%s352 + $0x3660] sm:$0xff]
        %v2121 = vld [vmem:[%s352 + $0x3668] sm:$0xff]
        %v2122 = vld [vmem:[%s352 + $0x3670] sm:$0xff]
        %v2123 = vld [vmem:[%s352 + $0x3678] sm:$0xff]
        %v2124 = vld [vmem:[%s352 + $0x3680] sm:$0xff]
        %v2125 = vld [vmem:[%s352 + $0x3688] sm:$0xff]
        %v2126 = vld [vmem:[%s352 + $0x3690] sm:$0xff]
        %v2127 = vld [vmem:[%s352 + $0x3698] sm:$0xff]
        %v2128 = vld [vmem:[%s352 + $0x36a0] sm:$0xff]
        %v2129 = vld [vmem:[%s352 + $0x36a8] sm:$0xff]
        %v2130 = vld [vmem:[%s352 + $0x36b0] sm:$0xff]
        %v2131 = vld [vmem:[%s352 + $0x36b8] sm:$0xff]
        %v2132 = vld [vmem:[%s352 + $0x36c0] sm:$0xff]
        %v2133 = vld [vmem:[%s352 + $0x36c8] sm:$0xff]
        %v2134 = vld [vmem:[%s352 + $0x36d0] sm:$0xff]
        %v2135 = vld [vmem:[%s352 + $0x36d8] sm:$0xff]
        %v2136 = vld [vmem:[%s352 + $0x36e0] sm:$0xff]
        %v2137 = vld [vmem:[%s352 + $0x36e8] sm:$0xff]
        %v2138 = vld [vmem:[%s352 + $0x36f0] sm:$0xff]
        %v2139 = vld [vmem:[%s352 + $0x36f8] sm:$0xff]
        %v2140 = vld [vmem:[%s352 + $0x3700] sm:$0xff]
        %v2141 = vld [vmem:[%s352 + $0x3708] sm:$0xff]
        %v2142 = vld [vmem:[%s352 + $0x3710] sm:$0xff]
        %v2143 = vld [vmem:[%s352 + $0x3718] sm:$0xff]
        %v2144 = vld [vmem:[%s352 + $0x3720] sm:$0xff]
        %v2145 = vld [vmem:[%s352 + $0x3728] sm:$0xff]
        %v2146 = vld [vmem:[%s352 + $0x3730] sm:$0xff]
        %v2147 = vld [vmem:[%s352 + $0x3738] sm:$0xff]
        %v2148 = vld [vmem:[%s352 + $0x3740] sm:$0xff]
        %v2149 = vld [vmem:[%s352 + $0x3748] sm:$0xff]
        %v2150 = vld [vmem:[%s352 + $0x3750] sm:$0xff]
        %v2151 = vld [vmem:[%s352 + $0x3758] sm:$0xff]
        %v2152 = vld [vmem:[%s352 + $0x3760] sm:$0xff]
        %v2153 = vld [vmem:[%s352 + $0x3768] sm:$0xff]
        %v2154 = vld [vmem:[%s352 + $0x3770] sm:$0xff]
        %v2155 = vld [vmem:[%s352 + $0x3778] sm:$0xff]
        %v2156 = vld [vmem:[%s352 + $0x3780] sm:$0xff]
        %v2157 = vld [vmem:[%s352 + $0x3788] sm:$0xff]
        %v2158 = vld [vmem:[%s352 + $0x3790] sm:$0xff]
        %v2159 = vld [vmem:[%s352 + $0x3798] sm:$0xff]
        %v2160 = vld [vmem:[%s352 + $0x37a0] sm:$0xff]
        %v2161 = vld [vmem:[%s352 + $0x37a8] sm:$0xff]
        %v2162 = vld [vmem:[%s352 + $0x37b0] sm:$0xff]
        %v2163 = vld [vmem:[%s352 + $0x37b8] sm:$0xff]
        %v2164 = vld [vmem:[%s352 + $0x37c0] sm:$0xff]
        %v2165 = vld [vmem:[%s352 + $0x37c8] sm:$0xff]
        %v2166 = vld [vmem:[%s352 + $0x37d0] sm:$0xff]
        %v2167 = vld [vmem:[%s352 + $0x37d8] sm:$0xff]
        %v2168 = vld [vmem:[%s352 + $0x37e0] sm:$0xff]
        %v2169 = vld [vmem:[%s352 + $0x37e8] sm:$0xff]
        %v2170 = vld [vmem:[%s352 + $0x37f0] sm:$0xff]
        %v2171 = vld [vmem:[%s352 + $0x37f8] sm:$0xff]
        %v2172 = vld [vmem:[%s352 + $0x3800] sm:$0xff]
        %v2173 = vld [vmem:[%s352 + $0x3808] sm:$0xff]
        %v2174 = vld [vmem:[%s352 + $0x3810] sm:$0xff]
        %v2175 = vld [vmem:[%s352 + $0x3818] sm:$0xff]
        %v2176 = vld [vmem:[%s352 + $0x3820] sm:$0xff]
        %v2177 = vld [vmem:[%s352 + $0x3828] sm:$0xff]
        %v2178 = vld [vmem:[%s352 + $0x3830] sm:$0xff]
        %v2179 = vld [vmem:[%s352 + $0x3838] sm:$0xff]
        %v2180 = vld [vmem:[%s352 + $0x3840] sm:$0xff]
        %v2181 = vld [vmem:[%s352 + $0x3848] sm:$0xff]
        %v2182 = vld [vmem:[%s352 + $0x3850] sm:$0xff]
        %v2183 = vld [vmem:[%s352 + $0x3858] sm:$0xff]
        %v2184 = vld [vmem:[%s352 + $0x3860] sm:$0xff]
        %v2185 = vld [vmem:[%s352 + $0x3868] sm:$0xff]
        %v2186 = vld [vmem:[%s352 + $0x3870] sm:$0xff]
        %v2187 = vld [vmem:[%s352 + $0x3878] sm:$0xff]
        %v2188 = vld [vmem:[%s352 + $0x3880] sm:$0xff]
        %v2189 = vld [vmem:[%s352 + $0x3888] sm:$0xff]
        %v2190 = vld [vmem:[%s352 + $0x3890] sm:$0xff]
        %v2191 = vld [vmem:[%s352 + $0x3898] sm:$0xff]
        %v2192 = vld [vmem:[%s352 + $0x38a0] sm:$0xff]
        %v2193 = vld [vmem:[%s352 + $0x38a8] sm:$0xff]
        %v2194 = vld [vmem:[%s352 + $0x38b0] sm:$0xff]
        %v2195 = vld [vmem:[%s352 + $0x38b8] sm:$0xff]
        %v2196 = vld [vmem:[%s352 + $0x38c0] sm:$0xff]
        %v2197 = vld [vmem:[%s352 + $0x38c8] sm:$0xff]
        %v2198 = vld [vmem:[%s352 + $0x38d0] sm:$0xff]
        %v2199 = vld [vmem:[%s352 + $0x38d8] sm:$0xff]
        %v2200 = vld [vmem:[%s352 + $0x38e0] sm:$0xff]
        %v2201 = vld [vmem:[%s352 + $0x38e8] sm:$0xff]
        %v2202 = vld [vmem:[%s352 + $0x38f0] sm:$0xff]
        %v2203 = vld [vmem:[%s352 + $0x38f8] sm:$0xff]
        %v2204 = vld [vmem:[%s352 + $0x3900] sm:$0xff]
        %v2205 = vld [vmem:[%s352 + $0x3908] sm:$0xff]
        %v2206 = vld [vmem:[%s352 + $0x3910] sm:$0xff]
        %v2207 = vld [vmem:[%s352 + $0x3918] sm:$0xff]
        %v2208 = vld [vmem:[%s352 + $0x3920] sm:$0xff]
        %v2209 = vld [vmem:[%s352 + $0x3928] sm:$0xff]
        %v2210 = vld [vmem:[%s352 + $0x3930] sm:$0xff]
        %v2211 = vld [vmem:[%s352 + $0x3938] sm:$0xff]
        %v2212 = vld [vmem:[%s352 + $0x3940] sm:$0xff]
        %v2213 = vld [vmem:[%s352 + $0x3948] sm:$0xff]
        %v2214 = vld [vmem:[%s352 + $0x3950] sm:$0xff]
        %v2215 = vld [vmem:[%s352 + $0x3958] sm:$0xff]
        %v2216 = vld [vmem:[%s352 + $0x3960] sm:$0xff]
        %v2217 = vld [vmem:[%s352 + $0x3968] sm:$0xff]
        %v2218 = vld [vmem:[%s352 + $0x3970] sm:$0xff]
        %v2219 = vld [vmem:[%s352 + $0x3978] sm:$0xff]
        %v2220 = vld [vmem:[%s352 + $0x3980] sm:$0xff]
        %v2221 = vld [vmem:[%s352 + $0x3988] sm:$0xff]
        %v2222 = vld [vmem:[%s352 + $0x3990] sm:$0xff]
        %v2223 = vld [vmem:[%s352 + $0x3998] sm:$0xff]
        %v2224 = vld [vmem:[%s352 + $0x39a0] sm:$0xff]
        %v2225 = vld [vmem:[%s352 + $0x39a8] sm:$0xff]
        %v2226 = vld [vmem:[%s352 + $0x39b0] sm:$0xff]
        %v2227 = vld [vmem:[%s352 + $0x39b8] sm:$0xff]
        %v2228 = vld [vmem:[%s352 + $0x39c0] sm:$0xff]
        %v2229 = vld [vmem:[%s352 + $0x39c8] sm:$0xff]
        %v2230 = vld [vmem:[%s352 + $0x39d0] sm:$0xff]
        %v2231 = vld [vmem:[%s352 + $0x39d8] sm:$0xff]
        %v2232 = vld [vmem:[%s352 + $0x39e0] sm:$0xff]
        %v2233 = vld [vmem:[%s352 + $0x39e8] sm:$0xff]
        %v2234 = vld [vmem:[%s352 + $0x39f0] sm:$0xff]
        %v2235 = vld [vmem:[%s352 + $0x39f8] sm:$0xff]
        %v2236 = vld [vmem:[%s352 + $0x3a00] sm:$0xff]
        %v2237 = vld [vmem:[%s352 + $0x3a08] sm:$0xff]
        %v2238 = vld [vmem:[%s352 + $0x3a10] sm:$0xff]
        %v2239 = vld [vmem:[%s352 + $0x3a18] sm:$0xff]
        %v2240 = vld [vmem:[%s352 + $0x3a20] sm:$0xff]
        %v2241 = vld [vmem:[%s352 + $0x3a28] sm:$0xff]
        %v2242 = vld [vmem:[%s352 + $0x3a30] sm:$0xff]
        %v2243 = vld [vmem:[%s352 + $0x3a38] sm:$0xff]
        %v2244 = vld [vmem:[%s352 + $0x3a40] sm:$0xff]
        %v2245 = vld [vmem:[%s352 + $0x3a48] sm:$0xff]
        %v2246 = vld [vmem:[%s352 + $0x3a50] sm:$0xff]
        %v2247 = vld [vmem:[%s352 + $0x3a58] sm:$0xff]
        %v2248 = vld [vmem:[%s352 + $0x3a60] sm:$0xff]
        %v2249 = vld [vmem:[%s352 + $0x3a68] sm:$0xff]
        %v2250 = vld [vmem:[%s352 + $0x3a70] sm:$0xff]
        %v2251 = vld [vmem:[%s352 + $0x3a78] sm:$0xff]
        %v2252 = vld [vmem:[%s352 + $0x3a80] sm:$0xff]
        %v2253 = vld [vmem:[%s352 + $0x3a88] sm:$0xff]
        %v2254 = vld [vmem:[%s352 + $0x3a90] sm:$0xff]
        %v2255 = vld [vmem:[%s352 + $0x3a98] sm:$0xff]
        %v2256 = vld [vmem:[%s352 + $0x3aa0] sm:$0xff]
        %v2257 = vld [vmem:[%s352 + $0x3aa8] sm:$0xff]
        %v2258 = vld [vmem:[%s352 + $0x3ab0] sm:$0xff]
        %v2259 = vld [vmem:[%s352 + $0x3ab8] sm:$0xff]
        %v2260 = vld [vmem:[%s352 + $0x3ac0] sm:$0xff]
        %v2261 = vld [vmem:[%s352 + $0x3ac8] sm:$0xff]
        %v2262 = vld [vmem:[%s352 + $0x3ad0] sm:$0xff]
        %v2263 = vld [vmem:[%s352 + $0x3ad8] sm:$0xff]
        %v2264 = vld [vmem:[%s352 + $0x3ae0] sm:$0xff]
        %v2265 = vld [vmem:[%s352 + $0x3ae8] sm:$0xff]
        %v2266 = vld [vmem:[%s352 + $0x3af0] sm:$0xff]
        %v2267 = vld [vmem:[%s352 + $0x3af8] sm:$0xff]
        %v2268 = vld [vmem:[%s352 + $0x3b00] sm:$0xff]
        %v2269 = vld [vmem:[%s352 + $0x3b08] sm:$0xff]
        %v2270 = vld [vmem:[%s352 + $0x3b10] sm:$0xff]
        %v2271 = vld [vmem:[%s352 + $0x3b18] sm:$0xff]
        %v2272 = vld [vmem:[%s352 + $0x3b20] sm:$0xff]
        %v2273 = vld [vmem:[%s352 + $0x3b28] sm:$0xff]
        %v2274 = vld [vmem:[%s352 + $0x3b30] sm:$0xff]
        %v2275 = vld [vmem:[%s352 + $0x3b38] sm:$0xff]
        %v2276 = vld [vmem:[%s352 + $0x3b40] sm:$0xff]
        %v2277 = vld [vmem:[%s352 + $0x3b48] sm:$0xff]
        %v2278 = vld [vmem:[%s352 + $0x3b50] sm:$0xff]
        %v2279 = vld [vmem:[%s352 + $0x3b58] sm:$0xff]
        %v2280 = vld [vmem:[%s352 + $0x3b60] sm:$0xff]
        %v2281 = vld [vmem:[%s352 + $0x3b68] sm:$0xff]
        %v2282 = vld [vmem:[%s352 + $0x3b70] sm:$0xff]
        %v2283 = vld [vmem:[%s352 + $0x3b78] sm:$0xff]
        %v2284 = vld [vmem:[%s352 + $0x3b80] sm:$0xff]
        %v2285 = vld [vmem:[%s352 + $0x3b88] sm:$0xff]
        %v2286 = vld [vmem:[%s352 + $0x3b90] sm:$0xff]
        %v2287 = vld [vmem:[%s352 + $0x3b98] sm:$0xff]
        %v2288 = vld [vmem:[%s352 + $0x3ba0] sm:$0xff]
        %v2289 = vld [vmem:[%s352 + $0x3ba8] sm:$0xff]
        %v2290 = vld [vmem:[%s352 + $0x3bb0] sm:$0xff]
        %v2291 = vld [vmem:[%s352 + $0x3bb8] sm:$0xff]
        %v2292 = vld [vmem:[%s352 + $0x3bc0] sm:$0xff]
        %v2293 = vld [vmem:[%s352 + $0x3bc8] sm:$0xff]
        %v2294 = vld [vmem:[%s352 + $0x3bd0] sm:$0xff]
        %v2295 = vld [vmem:[%s352 + $0x3bd8] sm:$0xff]
        %v2296 = vld [vmem:[%s352 + $0x3be0] sm:$0xff]
        %v2297 = vld [vmem:[%s352 + $0x3be8] sm:$0xff]
        %v2298 = vld [vmem:[%s352 + $0x3bf0] sm:$0xff]
        %v2299 = vld [vmem:[%s352 + $0x3bf8] sm:$0xff]
        %v2300 = vld [vmem:[%s352 + $0x3c00] sm:$0xff]
        %v2301 = vld [vmem:[%s352 + $0x3c08] sm:$0xff]
        %v2302 = vld [vmem:[%s352 + $0x3c10] sm:$0xff]
        %v2303 = vld [vmem:[%s352 + $0x3c18] sm:$0xff]
        %v2304 = vld [vmem:[%s352 + $0x3c20] sm:$0xff]
        %v2305 = vld [vmem:[%s352 + $0x3c28] sm:$0xff]
        %v2306 = vld [vmem:[%s352 + $0x3c30] sm:$0xff]
        %v2307 = vld [vmem:[%s352 + $0x3c38] sm:$0xff]
        %v2308 = vld [vmem:[%s352 + $0x3c40] sm:$0xff]
        %v2309 = vld [vmem:[%s352 + $0x3c48] sm:$0xff]
        %v2310 = vld [vmem:[%s352 + $0x3c50] sm:$0xff]
        %v2311 = vld [vmem:[%s352 + $0x3c58] sm:$0xff]
        %v2312 = vld [vmem:[%s352 + $0x3c60] sm:$0xff]
        %v2313 = vld [vmem:[%s352 + $0x3c68] sm:$0xff]
        %v2314 = vld [vmem:[%s352 + $0x3c70] sm:$0xff]
        %v2315 = vld [vmem:[%s352 + $0x3c78] sm:$0xff]
        %v2316 = vld [vmem:[%s352 + $0x3c80] sm:$0xff]
        %v2317 = vld [vmem:[%s352 + $0x3c88] sm:$0xff]
        %v2318 = vld [vmem:[%s352 + $0x3c90] sm:$0xff]
        %v2319 = vld [vmem:[%s352 + $0x3c98] sm:$0xff]
        %v2320 = vld [vmem:[%s352 + $0x3ca0] sm:$0xff]
        %v2321 = vld [vmem:[%s352 + $0x3ca8] sm:$0xff]
        %v2322 = vld [vmem:[%s352 + $0x3cb0] sm:$0xff]
        %v2323 = vld [vmem:[%s352 + $0x3cb8] sm:$0xff]
        %v2324 = vld [vmem:[%s352 + $0x3cc0] sm:$0xff]
        %v2325 = vld [vmem:[%s352 + $0x3cc8] sm:$0xff]
        %v2326 = vld [vmem:[%s352 + $0x3cd0] sm:$0xff]
        %v2327 = vld [vmem:[%s352 + $0x3cd8] sm:$0xff]
        %v2328 = vld [vmem:[%s352 + $0x3ce0] sm:$0xff]
        %v2329 = vld [vmem:[%s352 + $0x3ce8] sm:$0xff]
        %v2330 = vld [vmem:[%s352 + $0x3cf0] sm:$0xff]
        %v2331 = vld [vmem:[%s352 + $0x3cf8] sm:$0xff]
        %v2332 = vld [vmem:[%s352 + $0x3d00] sm:$0xff]
        %v2333 = vld [vmem:[%s352 + $0x3d08] sm:$0xff]
        %v2334 = vld [vmem:[%s352 + $0x3d10] sm:$0xff]
        %v2335 = vld [vmem:[%s352 + $0x3d18] sm:$0xff]
        %v2336 = vld [vmem:[%s352 + $0x3d20] sm:$0xff]
        %v2337 = vld [vmem:[%s352 + $0x3d28] sm:$0xff]
        %v2338 = vld [vmem:[%s352 + $0x3d30] sm:$0xff]
        %v2339 = vld [vmem:[%s352 + $0x3d38] sm:$0xff]
        %v2340 = vld [vmem:[%s352 + $0x3d40] sm:$0xff]
        %v2341 = vld [vmem:[%s352 + $0x3d48] sm:$0xff]
        %v2342 = vld [vmem:[%s352 + $0x3d50] sm:$0xff]
        %v2343 = vld [vmem:[%s352 + $0x3d58] sm:$0xff]
        %v2344 = vld [vmem:[%s352 + $0x3d60] sm:$0xff]
        %v2345 = vld [vmem:[%s352 + $0x3d68] sm:$0xff]
        %v2346 = vld [vmem:[%s352 + $0x3d70] sm:$0xff]
        %v2347 = vld [vmem:[%s352 + $0x3d78] sm:$0xff]
        %v2348 = vld [vmem:[%s352 + $0x3d80] sm:$0xff]
        %v2349 = vld [vmem:[%s352 + $0x3d88] sm:$0xff]
        %v2350 = vld [vmem:[%s352 + $0x3d90] sm:$0xff]
        %v2351 = vld [vmem:[%s352 + $0x3d98] sm:$0xff]
        %v2352 = vld [vmem:[%s352 + $0x3da0] sm:$0xff]
        %v2353 = vld [vmem:[%s352 + $0x3da8] sm:$0xff]
        %v2354 = vld [vmem:[%s352 + $0x3db0] sm:$0xff]
        %v2355 = vld [vmem:[%s352 + $0x3db8] sm:$0xff]
        %v2356 = vld [vmem:[%s352 + $0x3dc0] sm:$0xff]
        %v2357 = vld [vmem:[%s352 + $0x3dc8] sm:$0xff]
        %v2358 = vld [vmem:[%s352 + $0x3dd0] sm:$0xff]
        %v2359 = vld [vmem:[%s352 + $0x3dd8] sm:$0xff]
        %v2360 = vld [vmem:[%s352 + $0x3de0] sm:$0xff]
        %v2361 = vld [vmem:[%s352 + $0x3de8] sm:$0xff]
        %v2362 = vld [vmem:[%s352 + $0x3df0] sm:$0xff]
        %v2363 = vld [vmem:[%s352 + $0x3df8] sm:$0xff]
        %v2364 = vld [vmem:[%s352 + $0x3e00] sm:$0xff]
        %v2365 = vld [vmem:[%s352 + $0x3e08] sm:$0xff]
        %v2366 = vld [vmem:[%s352 + $0x3e10] sm:$0xff]
        %v2367 = vld [vmem:[%s352 + $0x3e18] sm:$0xff]
        %v2368 = vld [vmem:[%s352 + $0x3e20] sm:$0xff]
        %v2369 = vld [vmem:[%s352 + $0x3e28] sm:$0xff]
        %v2370 = vld [vmem:[%s352 + $0x3e30] sm:$0xff]
        %v2371 = vld [vmem:[%s352 + $0x3e38] sm:$0xff]
        %v2372 = vld [vmem:[%s352 + $0x3e40] sm:$0xff]
        %v2373 = vld [vmem:[%s352 + $0x3e48] sm:$0xff]
        %v2374 = vld [vmem:[%s352 + $0x3e50] sm:$0xff]
        %v2375 = vld [vmem:[%s352 + $0x3e58] sm:$0xff]
        %v2376 = vld [vmem:[%s352 + $0x3e60] sm:$0xff]
        %v2377 = vld [vmem:[%s352 + $0x3e68] sm:$0xff]
        %v2378 = vld [vmem:[%s352 + $0x3e70] sm:$0xff]
        %v2379 = vld [vmem:[%s352 + $0x3e78] sm:$0xff]
        %v2380 = vld [vmem:[%s352 + $0x3e80] sm:$0xff]
        %v2381 = vld [vmem:[%s352 + $0x3e88] sm:$0xff]
        %v2382 = vld [vmem:[%s352 + $0x3e90] sm:$0xff]
        %v2383 = vld [vmem:[%s352 + $0x3e98] sm:$0xff]
        %v2384 = vld [vmem:[%s352 + $0x3ea0] sm:$0xff]
        %v2385 = vld [vmem:[%s352 + $0x3ea8] sm:$0xff]
        %v2386 = vld [vmem:[%s352 + $0x3eb0] sm:$0xff]
        %v2387 = vld [vmem:[%s352 + $0x3eb8] sm:$0xff]
        %v2388 = vld [vmem:[%s352 + $0x3ec0] sm:$0xff]
        %v2389 = vld [vmem:[%s352 + $0x3ec8] sm:$0xff]
        %v2390 = vld [vmem:[%s352 + $0x3ed0] sm:$0xff]
        %v2391 = vld [vmem:[%s352 + $0x3ed8] sm:$0xff]
        %v2392 = vld [vmem:[%s352 + $0x3ee0] sm:$0xff]
        %v2393 = vld [vmem:[%s352 + $0x3ee8] sm:$0xff]
        %v2394 = vld [vmem:[%s352 + $0x3ef0] sm:$0xff]
        %v2395 = vld [vmem:[%s352 + $0x3ef8] sm:$0xff]
        %v2396 = vld [vmem:[%s352 + $0x3f00] sm:$0xff]
        %v2397 = vld [vmem:[%s352 + $0x3f08] sm:$0xff]
        %v2398 = vld [vmem:[%s352 + $0x3f10] sm:$0xff]
        %v2399 = vld [vmem:[%s352 + $0x3f18] sm:$0xff]
        %v2400 = vld [vmem:[%s352 + $0x3f20] sm:$0xff]
        %v2401 = vld [vmem:[%s352 + $0x3f28] sm:$0xff]
        %v2402 = vld [vmem:[%s352 + $0x3f30] sm:$0xff]
        %v2403 = vld [vmem:[%s352 + $0x3f38] sm:$0xff]
        %v2404 = vld [vmem:[%s352 + $0x3f40] sm:$0xff]
        %v2405 = vld [vmem:[%s352 + $0x3f48] sm:$0xff]
        %v2406 = vld [vmem:[%s352 + $0x3f50] sm:$0xff]
        %v2407 = vld [vmem:[%s352 + $0x3f58] sm:$0xff]
        %v2408 = vld [vmem:[%s352 + $0x3f60] sm:$0xff]
        %v2409 = vld [vmem:[%s352 + $0x3f68] sm:$0xff]
        %v2410 = vld [vmem:[%s352 + $0x3f70] sm:$0xff]
        %v2411 = vld [vmem:[%s352 + $0x3f78] sm:$0xff]
        %v2412 = vld [vmem:[%s352 + $0x3f80] sm:$0xff]
        %v2413 = vld [vmem:[%s352 + $0x3f88] sm:$0xff]
        %v2414 = vld [vmem:[%s352 + $0x3f90] sm:$0xff]
        %v2415 = vld [vmem:[%s352 + $0x3f98] sm:$0xff]
        %v2416 = vld [vmem:[%s352 + $0x3fa0] sm:$0xff]
        %v2417 = vld [vmem:[%s352 + $0x3fa8] sm:$0xff]
        %v2418 = vld [vmem:[%s352 + $0x3fb0] sm:$0xff]
        %v2419 = vld [vmem:[%s352 + $0x3fb8] sm:$0xff]
        %v2420 = vld [vmem:[%s352 + $0x3fc0] sm:$0xff]
        %v2421 = vld [vmem:[%s352 + $0x3fc8] sm:$0xff]
        %v2422 = vld [vmem:[%s352 + $0x3fd0] sm:$0xff]
        %v2423 = vld [vmem:[%s352 + $0x3fd8] sm:$0xff]
        %v2424 = vld [vmem:[%s352 + $0x3fe0] sm:$0xff]
        %v2425 = vld [vmem:[%s352 + $0x3fe8] sm:$0xff]
        %v2426 = vld [vmem:[%s352 + $0x3ff0] sm:$0xff]
        %v2427 = vld [vmem:[%s352 + $0x3ff8] sm:$0xff]
        %v2428 = vld [vmem:[%s352 + $0x4000] sm:$0xff]
        %v2429 = vld [vmem:[%s352 + $0x4008] sm:$0xff]
        %v2430 = vld [vmem:[%s352 + $0x4010] sm:$0xff]
        %v2431 = vld [vmem:[%s352 + $0x4018] sm:$0xff]
        %v2432 = vld [vmem:[%s352 + $0x4020] sm:$0xff]
        %v2433 = vld [vmem:[%s352 + $0x4028] sm:$0xff]
        %v2434 = vld [vmem:[%s352 + $0x4030] sm:$0xff]
        %v2435 = vld [vmem:[%s352 + $0x4038] sm:$0xff]
        %v2436 = vld [vmem:[%s352 + $0x4040] sm:$0xff]
        %v2437 = vld [vmem:[%s352 + $0x4048] sm:$0xff]
        %v2438 = vld [vmem:[%s352 + $0x4050] sm:$0xff]
        %v2439 = vld [vmem:[%s352 + $0x4058] sm:$0xff]
        %v2440 = vld [vmem:[%s352 + $0x4060] sm:$0xff]
        %v2441 = vld [vmem:[%s352 + $0x4068] sm:$0xff]
        %v2442 = vld [vmem:[%s352 + $0x4070] sm:$0xff]
        %v2443 = vld [vmem:[%s352 + $0x4078] sm:$0xff]
        %v2444 = vld [vmem:[%s352 + $0x4080] sm:$0xff]
        %v2445 = vld [vmem:[%s352 + $0x4088] sm:$0xff]
        %v2446 = vld [vmem:[%s352 + $0x4090] sm:$0xff]
        %v2447 = vld [vmem:[%s352 + $0x4098] sm:$0xff]
        %v2448 = vld [vmem:[%s352 + $0x40a0] sm:$0xff]
        %v2449 = vld [vmem:[%s352 + $0x40a8] sm:$0xff]
        %v2450 = vld [vmem:[%s352 + $0x40b0] sm:$0xff]
        %v2451 = vld [vmem:[%s352 + $0x40b8] sm:$0xff]
        %v2452 = vld [vmem:[%s352 + $0x40c0] sm:$0xff]
        %v2453 = vld [vmem:[%s352 + $0x40c8] sm:$0xff]
        %v2454 = vld [vmem:[%s352 + $0x40d0] sm:$0xff]
        %v2455 = vld [vmem:[%s352 + $0x40d8] sm:$0xff]
        %v2456 = vld [vmem:[%s352 + $0x40e0] sm:$0xff]
        %v2457 = vld [vmem:[%s352 + $0x40e8] sm:$0xff]
        %v2458 = vld [vmem:[%s352 + $0x40f0] sm:$0xff]
        %v2459 = vld [vmem:[%s352 + $0x40f8] sm:$0xff]
        %v2460 = vld [vmem:[%s352 + $0x4100] sm:$0xff]
        %v2461 = vld [vmem:[%s352 + $0x4108] sm:$0xff]
        %v2462 = vld [vmem:[%s352 + $0x4110] sm:$0xff]
        %v2463 = vld [vmem:[%s352 + $0x4118] sm:$0xff]
        %v2464 = vld [vmem:[%s352 + $0x4120] sm:$0xff]
        %v2465 = vld [vmem:[%s352 + $0x4128] sm:$0xff]
        %v2466 = vld [vmem:[%s352 + $0x4130] sm:$0xff]
        %v2467 = vld [vmem:[%s352 + $0x4138] sm:$0xff]
        %v2468 = vld [vmem:[%s352 + $0x4140] sm:$0xff]
        %v2469 = vld [vmem:[%s352 + $0x4148] sm:$0xff]
        %v2470 = vld [vmem:[%s352 + $0x4150] sm:$0xff]
        %v2471 = vld [vmem:[%s352 + $0x4158] sm:$0xff]
        %v2472 = vld [vmem:[%s352 + $0x4160] sm:$0xff]
        %v2473 = vld [vmem:[%s352 + $0x4168] sm:$0xff]
        %v2474 = vld [vmem:[%s352 + $0x4170] sm:$0xff]
        %v2475 = vld [vmem:[%s352 + $0x4178] sm:$0xff]
        %v2476 = vld [vmem:[%s352 + $0x4180] sm:$0xff]
        %v2477 = vld [vmem:[%s352 + $0x4188] sm:$0xff]
        %v2478 = vld [vmem:[%s352 + $0x4190] sm:$0xff]
        %v2479 = vld [vmem:[%s352 + $0x4198] sm:$0xff]
        %v2480 = vld [vmem:[%s352 + $0x41a0] sm:$0xff]
        %v2481 = vld [vmem:[%s352 + $0x41a8] sm:$0xff]
        %v2482 = vld [vmem:[%s352 + $0x41b0] sm:$0xff]
        %v2483 = vld [vmem:[%s352 + $0x41b8] sm:$0xff]
        %v2484 = vld [vmem:[%s352 + $0x41c0] sm:$0xff]
        %v2485 = vld [vmem:[%s352 + $0x41c8] sm:$0xff]
        %v2486 = vld [vmem:[%s352 + $0x41d0] sm:$0xff]
        %v2487 = vld [vmem:[%s352 + $0x41d8] sm:$0xff]
        %v2488 = vld [vmem:[%s352 + $0x41e0] sm:$0xff]
        %v2489 = vld [vmem:[%s352 + $0x41e8] sm:$0xff]
        %v2490 = vld [vmem:[%s352 + $0x41f0] sm:$0xff]
        %v2491 = vld [vmem:[%s352 + $0x41f8] sm:$0xff]
        %v2492 = vld [vmem:[%s352 + $0x4200] sm:$0xff]
        %v2493 = vld [vmem:[%s352 + $0x4208] sm:$0xff]
        %v2494 = vld [vmem:[%s352 + $0x4210] sm:$0xff]
        %v2495 = vld [vmem:[%s352 + $0x4218] sm:$0xff]
        %v2496 = vld [vmem:[%s352 + $0x4220] sm:$0xff]
        %v2497 = vld [vmem:[%s352 + $0x4228] sm:$0xff]
        %v2498 = vld [vmem:[%s352 + $0x4230] sm:$0xff]
        %v2499 = vld [vmem:[%s352 + $0x4238] sm:$0xff]
        %v2500 = vld [vmem:[%s352 + $0x4240] sm:$0xff]
        %v2501 = vld [vmem:[%s352 + $0x4248] sm:$0xff]
        %v2502 = vld [vmem:[%s352 + $0x4250] sm:$0xff]
        %v2503 = vld [vmem:[%s352 + $0x4258] sm:$0xff]
        %v2504 = vld [vmem:[%s352 + $0x4260] sm:$0xff]
        %v2505 = vld [vmem:[%s352 + $0x4268] sm:$0xff]
        %v2506 = vld [vmem:[%s352 + $0x4270] sm:$0xff]
        %v2507 = vld [vmem:[%s352 + $0x4278] sm:$0xff]
        %v2508 = vld [vmem:[%s352 + $0x4280] sm:$0xff]
        %v2509 = vld [vmem:[%s352 + $0x4288] sm:$0xff]
        %v2510 = vld [vmem:[%s352 + $0x4290] sm:$0xff]
        %v2511 = vld [vmem:[%s352 + $0x4298] sm:$0xff]
        %v2512 = vld [vmem:[%s352 + $0x42a0] sm:$0xff]
        %v2513 = vld [vmem:[%s352 + $0x42a8] sm:$0xff]
        %v2514 = vld [vmem:[%s352 + $0x42b0] sm:$0xff]
        %v2515 = vld [vmem:[%s352 + $0x42b8] sm:$0xff]
        %v2516 = vld [vmem:[%s352 + $0x42c0] sm:$0xff]
        %v2517 = vld [vmem:[%s352 + $0x42c8] sm:$0xff]
        %v2518 = vld [vmem:[%s352 + $0x42d0] sm:$0xff]
        %v2519 = vld [vmem:[%s352 + $0x42d8] sm:$0xff]
        %v2520 = vld [vmem:[%s352 + $0x42e0] sm:$0xff]
        %v2521 = vld [vmem:[%s352 + $0x42e8] sm:$0xff]
        %v2522 = vld [vmem:[%s352 + $0x42f0] sm:$0xff]
        %v2523 = vld [vmem:[%s352 + $0x42f8] sm:$0xff]
        %v2524 = vld [vmem:[%s352 + $0x4300] sm:$0xff]
        %v2525 = vld [vmem:[%s352 + $0x4308] sm:$0xff]
        %v2526 = vld [vmem:[%s352 + $0x4310] sm:$0xff]
        %v2527 = vld [vmem:[%s352 + $0x4318] sm:$0xff]
        %v2528 = vld [vmem:[%s352 + $0x4320] sm:$0xff]
        %v2529 = vld [vmem:[%s352 + $0x4328] sm:$0xff]
        %v2530 = vld [vmem:[%s352 + $0x4330] sm:$0xff]
        %v2531 = vld [vmem:[%s352 + $0x4338] sm:$0xff]
        %v2532 = vld [vmem:[%s352 + $0x4340] sm:$0xff]
        %v2533 = vld [vmem:[%s352 + $0x4348] sm:$0xff]
        %v2534 = vld [vmem:[%s352 + $0x4350] sm:$0xff]
        %v2535 = vld [vmem:[%s352 + $0x4358] sm:$0xff]
        %v2536 = vld [vmem:[%s352 + $0x4360] sm:$0xff]
        %v2537 = vld [vmem:[%s352 + $0x4368] sm:$0xff]
        %v2538 = vld [vmem:[%s352 + $0x4370] sm:$0xff]
        %v2539 = vld [vmem:[%s352 + $0x4378] sm:$0xff]
        %v2540 = vld [vmem:[%s352 + $0x4380] sm:$0xff]
        %v2541 = vld [vmem:[%s352 + $0x4388] sm:$0xff]
        %v2542 = vld [vmem:[%s352 + $0x4390] sm:$0xff]
        %v2543 = vld [vmem:[%s352 + $0x4398] sm:$0xff]
        %v2544 = vld [vmem:[%s352 + $0x43a0] sm:$0xff]
        %v2545 = vld [vmem:[%s352 + $0x43a8] sm:$0xff]
        %v2546 = vld [vmem:[%s352 + $0x43b0] sm:$0xff]
        %v2547 = vld [vmem:[%s352 + $0x43b8] sm:$0xff]
        %v2548 = vld [vmem:[%s352 + $0x43c0] sm:$0xff]
        %v2549 = vld [vmem:[%s352 + $0x43c8] sm:$0xff]
        %v2550 = vld [vmem:[%s352 + $0x43d0] sm:$0xff]
        %v2551 = vld [vmem:[%s352 + $0x43d8] sm:$0xff]
        %v2552 = vld [vmem:[%s352 + $0x43e0] sm:$0xff]
        %v2553 = vld [vmem:[%s352 + $0x43e8] sm:$0xff]
        %v2554 = vld [vmem:[%s352 + $0x43f0] sm:$0xff]
        %v2555 = vld [vmem:[%s352 + $0x43f8] sm:$0xff]
        %v2556 = vld [vmem:[%s352 + $0x4400] sm:$0xff]
        %v2557 = vld [vmem:[%s352 + $0x4408] sm:$0xff]
        %v2558 = vld [vmem:[%s352 + $0x4410] sm:$0xff]
        %v2559 = vld [vmem:[%s352 + $0x4418] sm:$0xff]
        %v2560 = vld [vmem:[%s352 + $0x4420] sm:$0xff]
        %v2561 = vld [vmem:[%s352 + $0x4428] sm:$0xff]
        %v2562 = vld [vmem:[%s352 + $0x4430] sm:$0xff]
        %v2563 = vld [vmem:[%s352 + $0x4438] sm:$0xff]
        %v2564 = vld [vmem:[%s352 + $0x4440] sm:$0xff]
        %v2565 = vld [vmem:[%s352 + $0x4448] sm:$0xff]
        %v2566 = vld [vmem:[%s352 + $0x4450] sm:$0xff]
        %v2567 = vld [vmem:[%s352 + $0x4458] sm:$0xff]
        %v2568 = vld [vmem:[%s352 + $0x4460] sm:$0xff]
        %v2569 = vld [vmem:[%s352 + $0x4468] sm:$0xff]
        %v2570 = vld [vmem:[%s352 + $0x4470] sm:$0xff]
        %v2571 = vld [vmem:[%s352 + $0x4478] sm:$0xff]
        %v2572 = vld [vmem:[%s352 + $0x4480] sm:$0xff]
        %v2573 = vld [vmem:[%s352 + $0x4488] sm:$0xff]
        %v2574 = vld [vmem:[%s352 + $0x4490] sm:$0xff]
        %v2575 = vld [vmem:[%s352 + $0x4498] sm:$0xff]
        %v2576 = vld [vmem:[%s352 + $0x44a0] sm:$0xff]
        %v2577 = vld [vmem:[%s352 + $0x44a8] sm:$0xff]
        %v2578 = vld [vmem:[%s352 + $0x44b0] sm:$0xff]
        %v2579 = vld [vmem:[%s352 + $0x44b8] sm:$0xff]
        %v2580 = vld [vmem:[%s352 + $0x44c0] sm:$0xff]
        %v2581 = vld [vmem:[%s352 + $0x44c8] sm:$0xff]
        %v2582 = vld [vmem:[%s352 + $0x44d0] sm:$0xff]
        %v2583 = vld [vmem:[%s352 + $0x44d8] sm:$0xff]
        %v2584 = vld [vmem:[%s352 + $0x44e0] sm:$0xff]
        %v2585 = vld [vmem:[%s352 + $0x44e8] sm:$0xff]
        %v2586 = vld [vmem:[%s352 + $0x44f0] sm:$0xff]
        %v2587 = vld [vmem:[%s352 + $0x44f8] sm:$0xff]
        %v2588 = vld [vmem:[%s352 + $0x4500] sm:$0xff]
        %v2589 = vld [vmem:[%s352 + $0x4508] sm:$0xff]
        %v2590 = vld [vmem:[%s352 + $0x4510] sm:$0xff]
        %v2591 = vld [vmem:[%s352 + $0x4518] sm:$0xff]
        %v2592 = vld [vmem:[%s352 + $0x4520] sm:$0xff]
        %v2593 = vld [vmem:[%s352 + $0x4528] sm:$0xff]
        %v2594 = vld [vmem:[%s352 + $0x4530] sm:$0xff]
        %v2595 = vld [vmem:[%s352 + $0x4538] sm:$0xff]
        %v2596 = vld [vmem:[%s352 + $0x4540] sm:$0xff]
        %v2597 = vld [vmem:[%s352 + $0x4548] sm:$0xff]
        %v2598 = vld [vmem:[%s352 + $0x4550] sm:$0xff]
        %v2599 = vld [vmem:[%s352 + $0x4558] sm:$0xff]
        %v2600 = vld [vmem:[%s352 + $0x4560] sm:$0xff]
        %v2601 = vld [vmem:[%s352 + $0x4568] sm:$0xff]
        %v2602 = vld [vmem:[%s352 + $0x4570] sm:$0xff]
        %v2603 = vld [vmem:[%s352 + $0x4578] sm:$0xff]
        %v2604 = vld [vmem:[%s352 + $0x4580] sm:$0xff]
        %v2605 = vld [vmem:[%s352 + $0x4588] sm:$0xff]
        %v2606 = vld [vmem:[%s352 + $0x4590] sm:$0xff]
        %v2607 = vld [vmem:[%s352 + $0x4598] sm:$0xff]
        %v2608 = vld [vmem:[%s352 + $0x45a0] sm:$0xff]
        %v2609 = vld [vmem:[%s352 + $0x45a8] sm:$0xff]
        %v2610 = vld [vmem:[%s352 + $0x45b0] sm:$0xff]
        %v2611 = vld [vmem:[%s352 + $0x45b8] sm:$0xff]
        %v2612 = vld [vmem:[%s352 + $0x45c0] sm:$0xff]
        %v2613 = vld [vmem:[%s352 + $0x45c8] sm:$0xff]
        %v2614 = vld [vmem:[%s352 + $0x45d0] sm:$0xff]
        %v2615 = vld [vmem:[%s352 + $0x45d8] sm:$0xff]
        %v2616 = vld [vmem:[%s352 + $0x45e0] sm:$0xff]
        %v2617 = vld [vmem:[%s352 + $0x45e8] sm:$0xff]
        %v2618 = vld [vmem:[%s352 + $0x45f0] sm:$0xff]
        %v2619 = vld [vmem:[%s352 + $0x45f8] sm:$0xff]
        %v2620 = vld [vmem:[%s352 + $0x4600] sm:$0xff]
        %v2621 = vld [vmem:[%s352 + $0x4608] sm:$0xff]
        %v2622 = vld [vmem:[%s352 + $0x4610] sm:$0xff]
        %v2623 = vld [vmem:[%s352 + $0x4618] sm:$0xff]
        %v2624 = vld [vmem:[%s352 + $0x4620] sm:$0xff]
        %v2625 = vld [vmem:[%s352 + $0x4628] sm:$0xff]
        %v2626 = vld [vmem:[%s352 + $0x4630] sm:$0xff]
        %v2627 = vld [vmem:[%s352 + $0x4638] sm:$0xff]
        %v2628 = vld [vmem:[%s352 + $0x4640] sm:$0xff]
        %v2629 = vld [vmem:[%s352 + $0x4648] sm:$0xff]
        %v2630 = vld [vmem:[%s352 + $0x4650] sm:$0xff]
        %v2631 = vld [vmem:[%s352 + $0x4658] sm:$0xff]
        %v2632 = vld [vmem:[%s352 + $0x4660] sm:$0xff]
        %v2633 = vld [vmem:[%s352 + $0x4668] sm:$0xff]
        %v2634 = vld [vmem:[%s352 + $0x4670] sm:$0xff]
        %v2635 = vld [vmem:[%s352 + $0x4678] sm:$0xff]
        %v2636 = vld [vmem:[%s352 + $0x4680] sm:$0xff]
        %v2637 = vld [vmem:[%s352 + $0x4688] sm:$0xff]
        %v2638 = vld [vmem:[%s352 + $0x4690] sm:$0xff]
        %v2639 = vld [vmem:[%s352 + $0x4698] sm:$0xff]
        %v2640 = vld [vmem:[%s352 + $0x46a0] sm:$0xff]
        %v2641 = vld [vmem:[%s352 + $0x46a8] sm:$0xff]
        %v2642 = vld [vmem:[%s352 + $0x46b0] sm:$0xff]
        %v2643 = vld [vmem:[%s352 + $0x46b8] sm:$0xff]
        %v2644 = vld [vmem:[%s352 + $0x46c0] sm:$0xff]
        %v2645 = vld [vmem:[%s352 + $0x46c8] sm:$0xff]
        %v2646 = vld [vmem:[%s352 + $0x46d0] sm:$0xff]
        %v2647 = vld [vmem:[%s352 + $0x46d8] sm:$0xff]
        %v2648 = vld [vmem:[%s352 + $0x46e0] sm:$0xff]
        %v2649 = vld [vmem:[%s352 + $0x46e8] sm:$0xff]
        %v2650 = vld [vmem:[%s352 + $0x46f0] sm:$0xff]
        %v2651 = vld [vmem:[%s352 + $0x46f8] sm:$0xff]
        %v2652 = vld [vmem:[%s352 + $0x4700] sm:$0xff]
        %v2653 = vld [vmem:[%s352 + $0x4708] sm:$0xff]
        %v2654 = vld [vmem:[%s352 + $0x4710] sm:$0xff]
        %v2655 = vld [vmem:[%s352 + $0x4718] sm:$0xff]
        %v2656 = vld [vmem:[%s352 + $0x4720] sm:$0xff]
        %v2657 = vld [vmem:[%s352 + $0x4728] sm:$0xff]
        %v2658 = vld [vmem:[%s352 + $0x4730] sm:$0xff]
        %v2659 = vld [vmem:[%s352 + $0x4738] sm:$0xff]
        %v2660 = vld [vmem:[%s352 + $0x4740] sm:$0xff]
        %v2661 = vld [vmem:[%s352 + $0x4748] sm:$0xff]
        %v2662 = vld [vmem:[%s352 + $0x4750] sm:$0xff]
        %v2663 = vld [vmem:[%s352 + $0x4758] sm:$0xff]
        %v2664 = vld [vmem:[%s352 + $0x4760] sm:$0xff]
        %v2665 = vld [vmem:[%s352 + $0x4768] sm:$0xff]
        %v2666 = vld [vmem:[%s352 + $0x4770] sm:$0xff]
        %v2667 = vld [vmem:[%s352 + $0x4778] sm:$0xff]
        %v2668 = vld [vmem:[%s352 + $0x4780] sm:$0xff]
        %v2669 = vld [vmem:[%s352 + $0x4788] sm:$0xff]
        %v2670 = vld [vmem:[%s352 + $0x4790] sm:$0xff]
        %v2671 = vld [vmem:[%s352 + $0x4798] sm:$0xff]
        %v2672 = vld [vmem:[%s352 + $0x47a0] sm:$0xff]
        %v2673 = vld [vmem:[%s352 + $0x47a8] sm:$0xff]
        %v2674 = vld [vmem:[%s352 + $0x47b0] sm:$0xff]
        %v2675 = vld [vmem:[%s352 + $0x47b8] sm:$0xff]
        %v2676 = vld [vmem:[%s352 + $0x47c0] sm:$0xff]
        %v2677 = vld [vmem:[%s352 + $0x47c8] sm:$0xff]
        %v2678 = vld [vmem:[%s352 + $0x47d0] sm:$0xff]
        %v2679 = vld [vmem:[%s352 + $0x47d8] sm:$0xff]
        %v2680 = vld [vmem:[%s352 + $0x47e0] sm:$0xff]
        %v2681 = vld [vmem:[%s352 + $0x47e8] sm:$0xff]
        %v2682 = vld [vmem:[%s352 + $0x47f0] sm:$0xff]
        %v2683 = vld [vmem:[%s352 + $0x47f8] sm:$0xff]
        %v2684 = vld [vmem:[%s352 + $0x4800] sm:$0xff]
        %v2685 = vld [vmem:[%s352 + $0x4808] sm:$0xff]
        %v2686 = vld [vmem:[%s352 + $0x4810] sm:$0xff]
        %v2687 = vld [vmem:[%s352 + $0x4818] sm:$0xff]
        %v2688 = vld [vmem:[%s352 + $0x4820] sm:$0xff]
        %v2689 = vld [vmem:[%s352 + $0x4828] sm:$0xff]
        %v2690 = vld [vmem:[%s352 + $0x4830] sm:$0xff]
        %v2691 = vld [vmem:[%s352 + $0x4838] sm:$0xff]
        %v2692 = vld [vmem:[%s352 + $0x4840] sm:$0xff]
        %v2693 = vld [vmem:[%s352 + $0x4848] sm:$0xff]
        %v2694 = vld [vmem:[%s352 + $0x4850] sm:$0xff]
        %v2695 = vld [vmem:[%s352 + $0x4858] sm:$0xff]
        %v2696 = vld [vmem:[%s352 + $0x4860] sm:$0xff]
        %v2697 = vld [vmem:[%s352 + $0x4868] sm:$0xff]
        %v2698 = vld [vmem:[%s352 + $0x4870] sm:$0xff]
        %v2699 = vld [vmem:[%s352 + $0x4878] sm:$0xff]
        %v2700 = vld [vmem:[%s352 + $0x4880] sm:$0xff]
        %v2701 = vld [vmem:[%s352 + $0x4888] sm:$0xff]
        %v2702 = vld [vmem:[%s352 + $0x4890] sm:$0xff]
        %v2703 = vld [vmem:[%s352 + $0x4898] sm:$0xff]
        %v2704 = vld [vmem:[%s352 + $0x48a0] sm:$0xff]
        %v2705 = vld [vmem:[%s352 + $0x48a8] sm:$0xff]
        %v2706 = vld [vmem:[%s352 + $0x48b0] sm:$0xff]
        %v2707 = vld [vmem:[%s352 + $0x48b8] sm:$0xff]
        %v2708 = vld [vmem:[%s352 + $0x48c0] sm:$0xff]
        %v2709 = vld [vmem:[%s352 + $0x48c8] sm:$0xff]
        %v2710 = vld [vmem:[%s352 + $0x48d0] sm:$0xff]
        %v2711 = vld [vmem:[%s352 + $0x48d8] sm:$0xff]
        %v2712 = vld [vmem:[%s352 + $0x48e0] sm:$0xff]
        %v2713 = vld [vmem:[%s352 + $0x48e8] sm:$0xff]
        %v2714 = vld [vmem:[%s352 + $0x48f0] sm:$0xff]
        %v2715 = vld [vmem:[%s352 + $0x48f8] sm:$0xff]
        %v2716 = vld [vmem:[%s352 + $0x4900] sm:$0xff]
        %v2717 = vld [vmem:[%s352 + $0x4908] sm:$0xff]
        %v2718 = vld [vmem:[%s352 + $0x4910] sm:$0xff]
        %v2719 = vld [vmem:[%s352 + $0x4918] sm:$0xff]
        %v2720 = vld [vmem:[%s352 + $0x4920] sm:$0xff]
        %v2721 = vld [vmem:[%s352 + $0x4928] sm:$0xff]
        %v2722 = vld [vmem:[%s352 + $0x4930] sm:$0xff]
        %v2723 = vld [vmem:[%s352 + $0x4938] sm:$0xff]
        %v2724 = vld [vmem:[%s352 + $0x4940] sm:$0xff]
        %v2725 = vld [vmem:[%s352 + $0x4948] sm:$0xff]
        %v2726 = vld [vmem:[%s352 + $0x4950] sm:$0xff]
        %v2727 = vld [vmem:[%s352 + $0x4958] sm:$0xff]
        %v2728 = vld [vmem:[%s352 + $0x4960] sm:$0xff]
        %v2729 = vld [vmem:[%s352 + $0x4968] sm:$0xff]
        %v2730 = vld [vmem:[%s352 + $0x4970] sm:$0xff]
        %v2731 = vld [vmem:[%s352 + $0x4978] sm:$0xff]
        %v2732 = vld [vmem:[%s352 + $0x4980] sm:$0xff]
        %v2733 = vld [vmem:[%s352 + $0x4988] sm:$0xff]
        %v2734 = vld [vmem:[%s352 + $0x4990] sm:$0xff]
        %v2735 = vld [vmem:[%s352 + $0x4998] sm:$0xff]
        %v2736 = vld [vmem:[%s352 + $0x49a0] sm:$0xff]
        %v2737 = vld [vmem:[%s352 + $0x49a8] sm:$0xff]
        %v2738 = vld [vmem:[%s352 + $0x49b0] sm:$0xff]
        %v2739 = vld [vmem:[%s352 + $0x49b8] sm:$0xff]
        %v2740 = vld [vmem:[%s352 + $0x49c0] sm:$0xff]
        %v2741 = vld [vmem:[%s352 + $0x49c8] sm:$0xff]
        %v2742 = vld [vmem:[%s352 + $0x49d0] sm:$0xff]
        %v2743 = vld [vmem:[%s352 + $0x49d8] sm:$0xff]
        %v2744 = vld [vmem:[%s352 + $0x49e0] sm:$0xff]
        %v2745 = vld [vmem:[%s352 + $0x49e8] sm:$0xff]
        %v2746 = vld [vmem:[%s352 + $0x49f0] sm:$0xff]
        %v2747 = vld [vmem:[%s352 + $0x49f8] sm:$0xff]
        %v2748 = vld [vmem:[%s352 + $0x4a00] sm:$0xff]
        %v2749 = vld [vmem:[%s352 + $0x4a08] sm:$0xff]
        %v2750 = vld [vmem:[%s352 + $0x4a10] sm:$0xff]
        %v2751 = vld [vmem:[%s352 + $0x4a18] sm:$0xff]
        %v2752 = vld [vmem:[%s352 + $0x4a20] sm:$0xff]
        %v2753 = vld [vmem:[%s352 + $0x4a28] sm:$0xff]
        %v2754 = vld [vmem:[%s352 + $0x4a30] sm:$0xff]
        %v2755 = vld [vmem:[%s352 + $0x4a38] sm:$0xff]
        %v2756 = vld [vmem:[%s352 + $0x4a40] sm:$0xff]
        %v2757 = vld [vmem:[%s352 + $0x4a48] sm:$0xff]
        %v2758 = vld [vmem:[%s352 + $0x4a50] sm:$0xff]
        %v2759 = vld [vmem:[%s352 + $0x4a58] sm:$0xff]
        %v2760 = vld [vmem:[%s352 + $0x4a60] sm:$0xff]
        %v2761 = vld [vmem:[%s352 + $0x4a68] sm:$0xff]
        %v2762 = vld [vmem:[%s352 + $0x4a70] sm:$0xff]
        %v2763 = vld [vmem:[%s352 + $0x4a78] sm:$0xff]
        %v2764 = vld [vmem:[%s352 + $0x4a80] sm:$0xff]
        %v2765 = vld [vmem:[%s352 + $0x4a88] sm:$0xff]
        %v2766 = vld [vmem:[%s352 + $0x4a90] sm:$0xff]
        %v2767 = vld [vmem:[%s352 + $0x4a98] sm:$0xff]
        %v2768 = vld [vmem:[%s352 + $0x4aa0] sm:$0xff]
        %v2769 = vld [vmem:[%s352 + $0x4aa8] sm:$0xff]
        %v2770 = vld [vmem:[%s352 + $0x4ab0] sm:$0xff]
        %v2771 = vld [vmem:[%s352 + $0x4ab8] sm:$0xff]
        %v2772 = vld [vmem:[%s352 + $0x4ac0] sm:$0xff]
        %v2773 = vld [vmem:[%s352 + $0x4ac8] sm:$0xff]
        %v2774 = vld [vmem:[%s352 + $0x4ad0] sm:$0xff]
        %v2775 = vld [vmem:[%s352 + $0x4ad8] sm:$0xff]
        %v2776 = vld [vmem:[%s352 + $0x4ae0] sm:$0xff]
        %v2777 = vld [vmem:[%s352 + $0x4ae8] sm:$0xff]
        %v2778 = vld [vmem:[%s352 + $0x4af0] sm:$0xff]
        %v2779 = vld [vmem:[%s352 + $0x4af8] sm:$0xff]
        %v2780 = vld [vmem:[%s352 + $0x4b00] sm:$0xff]
        %v2781 = vld [vmem:[%s352 + $0x4b08] sm:$0xff]
        %v2782 = vld [vmem:[%s352 + $0x4b10] sm:$0xff]
        %v2783 = vld [vmem:[%s352 + $0x4b18] sm:$0xff]
        %v2784 = vld [vmem:[%s352 + $0x4b20] sm:$0xff]
        %v2785 = vld [vmem:[%s352 + $0x4b28] sm:$0xff]
        %v2786 = vld [vmem:[%s352 + $0x4b30] sm:$0xff]
        %v2787 = vld [vmem:[%s352 + $0x4b38] sm:$0xff]
        %v2788 = vld [vmem:[%s352 + $0x4b40] sm:$0xff]
        %v2789 = vld [vmem:[%s352 + $0x4b48] sm:$0xff]
        %v2790 = vld [vmem:[%s352 + $0x4b50] sm:$0xff]
        %v2791 = vld [vmem:[%s352 + $0x4b58] sm:$0xff]
        %v2792 = vld [vmem:[%s352 + $0x4b60] sm:$0xff]
        %v2793 = vld [vmem:[%s352 + $0x4b68] sm:$0xff]
        %v2794 = vld [vmem:[%s352 + $0x4b70] sm:$0xff]
        %v2795 = vld [vmem:[%s352 + $0x4b78] sm:$0xff]
        %v2796 = vld [vmem:[%s352 + $0x4b80] sm:$0xff]
        %v2797 = vld [vmem:[%s352 + $0x4b88] sm:$0xff]
        %v2798 = vld [vmem:[%s352 + $0x4b90] sm:$0xff]
        %v2799 = vld [vmem:[%s352 + $0x4b98] sm:$0xff]
        %v2800 = vld [vmem:[%s352 + $0x4ba0] sm:$0xff]
        %v2801 = vld [vmem:[%s352 + $0x4ba8] sm:$0xff]
        %v2802 = vld [vmem:[%s352 + $0x4bb0] sm:$0xff]
        %v2803 = vld [vmem:[%s352 + $0x4bb8] sm:$0xff]
        %v2804 = vld [vmem:[%s352 + $0x4bc0] sm:$0xff]
        %v2805 = vld [vmem:[%s352 + $0x4bc8] sm:$0xff]
        %v2806 = vld [vmem:[%s352 + $0x4bd0] sm:$0xff]
        %v2807 = vld [vmem:[%s352 + $0x4bd8] sm:$0xff]
        %v2808 = vld [vmem:[%s352 + $0x4be0] sm:$0xff]
        %v2809 = vld [vmem:[%s352 + $0x4be8] sm:$0xff]
        %v2810 = vld [vmem:[%s352 + $0x4bf0] sm:$0xff]
        %v2811 = vld [vmem:[%s352 + $0x4bf8] sm:$0xff]
        %v2812 = vld [vmem:[%s352 + $0x4c00] sm:$0xff]
        %v2813 = vld [vmem:[%s352 + $0x4c08] sm:$0xff]
        %v2814 = vld [vmem:[%s352 + $0x4c10] sm:$0xff]
        %v2815 = vld [vmem:[%s352 + $0x4c18] sm:$0xff]
        %v2816 = vld [vmem:[%s352 + $0x4c20] sm:$0xff]
        %v2817 = vld [vmem:[%s352 + $0x4c28] sm:$0xff]
        %v2818 = vld [vmem:[%s352 + $0x4c30] sm:$0xff]
        %v2819 = vld [vmem:[%s352 + $0x4c38] sm:$0xff]
        %v2820 = vld [vmem:[%s352 + $0x4c40] sm:$0xff]
        %v2821 = vld [vmem:[%s352 + $0x4c48] sm:$0xff]
        %v2822 = vld [vmem:[%s352 + $0x4c50] sm:$0xff]
        %v2823 = vld [vmem:[%s352 + $0x4c58] sm:$0xff]
        %v2824 = vld [vmem:[%s352 + $0x4c60] sm:$0xff]
        %v2825 = vld [vmem:[%s352 + $0x4c68] sm:$0xff]
        %v2826 = vld [vmem:[%s352 + $0x4c70] sm:$0xff]
        %v2827 = vld [vmem:[%s352 + $0x4c78] sm:$0xff]
        %v2828 = vld [vmem:[%s352 + $0x4c80] sm:$0xff]
        %v2829 = vld [vmem:[%s352 + $0x4c88] sm:$0xff]
        %v2830 = vld [vmem:[%s352 + $0x4c90] sm:$0xff]
        %v2831 = vld [vmem:[%s352 + $0x4c98] sm:$0xff]
        %v2832 = vld [vmem:[%s352 + $0x4ca0] sm:$0xff]
        %v2833 = vld [vmem:[%s352 + $0x4ca8] sm:$0xff]
        %v2834 = vld [vmem:[%s352 + $0x4cb0] sm:$0xff]
        %v2835 = vld [vmem:[%s352 + $0x4cb8] sm:$0xff]
        %v2836 = vld [vmem:[%s352 + $0x4cc0] sm:$0xff]
        %v2837 = vld [vmem:[%s352 + $0x4cc8] sm:$0xff]
        %v2838 = vld [vmem:[%s352 + $0x4cd0] sm:$0xff]
        %v2839 = vld [vmem:[%s352 + $0x4cd8] sm:$0xff]
        %v2840 = vld [vmem:[%s352 + $0x4ce0] sm:$0xff]
        %v2841 = vld [vmem:[%s352 + $0x4ce8] sm:$0xff]
        %v2842 = vld [vmem:[%s352 + $0x4cf0] sm:$0xff]
        %v2843 = vld [vmem:[%s352 + $0x4cf8] sm:$0xff]
        %v2844 = vld [vmem:[%s352 + $0x4d00] sm:$0xff]
        %v2845 = vld [vmem:[%s352 + $0x4d08] sm:$0xff]
        %v2846 = vld [vmem:[%s352 + $0x4d10] sm:$0xff]
        %v2847 = vld [vmem:[%s352 + $0x4d18] sm:$0xff]
        %v2848 = vld [vmem:[%s352 + $0x4d20] sm:$0xff]
        %v2849 = vld [vmem:[%s352 + $0x4d28] sm:$0xff]
        %v2850 = vld [vmem:[%s352 + $0x4d30] sm:$0xff]
        %v2851 = vld [vmem:[%s352 + $0x4d38] sm:$0xff]
        %v2852 = vld [vmem:[%s352 + $0x4d40] sm:$0xff]
        %v2853 = vld [vmem:[%s352 + $0x4d48] sm:$0xff]
        %v2854 = vld [vmem:[%s352 + $0x4d50] sm:$0xff]
        %v2855 = vld [vmem:[%s352 + $0x4d58] sm:$0xff]
        %v2856 = vld [vmem:[%s352 + $0x4d60] sm:$0xff]
        %v2857 = vld [vmem:[%s352 + $0x4d68] sm:$0xff]
        %v2858 = vld [vmem:[%s352 + $0x4d70] sm:$0xff]
        %v2859 = vld [vmem:[%s352 + $0x4d78] sm:$0xff]
        %v2860 = vld [vmem:[%s352 + $0x4d80] sm:$0xff]
        %v2861 = vld [vmem:[%s352 + $0x4d88] sm:$0xff]
        %v2862 = vld [vmem:[%s352 + $0x4d90] sm:$0xff]
        %v2863 = vld [vmem:[%s352 + $0x4d98] sm:$0xff]
        %v2864 = vld [vmem:[%s352 + $0x4da0] sm:$0xff]
        %v2865 = vld [vmem:[%s352 + $0x4da8] sm:$0xff]
        %v2866 = vld [vmem:[%s352 + $0x4db0] sm:$0xff]
        %v2867 = vld [vmem:[%s352 + $0x4db8] sm:$0xff]
        %v2868 = vld [vmem:[%s352 + $0x4dc0] sm:$0xff]
        %v2869 = vld [vmem:[%s352 + $0x4dc8] sm:$0xff]
        %v2870 = vld [vmem:[%s352 + $0x4dd0] sm:$0xff]
        %v2871 = vld [vmem:[%s352 + $0x4dd8] sm:$0xff]
        %v2872 = vld [vmem:[%s352 + $0x4de0] sm:$0xff]
        %v2873 = vld [vmem:[%s352 + $0x4de8] sm:$0xff]
        %v2874 = vld [vmem:[%s352 + $0x4df0] sm:$0xff]
        %v2875 = vld [vmem:[%s352 + $0x4df8] sm:$0xff]
        %v2876 = vld [vmem:[%s352 + $0x4e00] sm:$0xff]
        %v2877 = vld [vmem:[%s352 + $0x4e08] sm:$0xff]
        %v2878 = vld [vmem:[%s352 + $0x4e10] sm:$0xff]
        %v2879 = vld [vmem:[%s352 + $0x4e18] sm:$0xff]
        %v2880 = vld [vmem:[%s352 + $0x4e20] sm:$0xff]
        %v2881 = vld [vmem:[%s352 + $0x4e28] sm:$0xff]
        %v2882 = vld [vmem:[%s352 + $0x4e30] sm:$0xff]
        %v2883 = vld [vmem:[%s352 + $0x4e38] sm:$0xff]
        %v2884 = vld [vmem:[%s352 + $0x4e40] sm:$0xff]
        %v2885 = vld [vmem:[%s352 + $0x4e48] sm:$0xff]
        %v2886 = vld [vmem:[%s352 + $0x4e50] sm:$0xff]
        %v2887 = vld [vmem:[%s352 + $0x4e58] sm:$0xff]
        %v2888 = vld [vmem:[%s352 + $0x4e60] sm:$0xff]
        %v2889 = vld [vmem:[%s352 + $0x4e68] sm:$0xff]
        %v2890 = vld [vmem:[%s352 + $0x4e70] sm:$0xff]
        %v2891 = vld [vmem:[%s352 + $0x4e78] sm:$0xff]
        %v2892 = vld [vmem:[%s352 + $0x4e80] sm:$0xff]
        %v2893 = vld [vmem:[%s352 + $0x4e88] sm:$0xff]
        %v2894 = vld [vmem:[%s352 + $0x4e90] sm:$0xff]
        %v2895 = vld [vmem:[%s352 + $0x4e98] sm:$0xff]
        %v2896 = vld [vmem:[%s352 + $0x4ea0] sm:$0xff]
        %v2897 = vld [vmem:[%s352 + $0x4ea8] sm:$0xff]
        %v2898 = vld [vmem:[%s352 + $0x4eb0] sm:$0xff]
        %v2899 = vld [vmem:[%s352 + $0x4eb8] sm:$0xff]
        %v2900 = vld [vmem:[%s352 + $0x4ec0] sm:$0xff]
        %v2901 = vld [vmem:[%s352 + $0x4ec8] sm:$0xff]
        %v2902 = vld [vmem:[%s352 + $0x4ed0] sm:$0xff]
        %v2903 = vld [vmem:[%s352 + $0x4ed8] sm:$0xff]
        %v2904 = vld [vmem:[%s352 + $0x4ee0] sm:$0xff]
        %v2905 = vld [vmem:[%s352 + $0x4ee8] sm:$0xff]
        %v2906 = vld [vmem:[%s352 + $0x4ef0] sm:$0xff]
        %v2907 = vld [vmem:[%s352 + $0x4ef8] sm:$0xff]
        %v2908 = vld [vmem:[%s352 + $0x4f00] sm:$0xff]
        %v2909 = vld [vmem:[%s352 + $0x4f08] sm:$0xff]
        %v2910 = vld [vmem:[%s352 + $0x4f10] sm:$0xff]
        %v2911 = vld [vmem:[%s352 + $0x4f18] sm:$0xff]
        %v2912 = vld [vmem:[%s352 + $0x4f20] sm:$0xff]
        %v2913 = vld [vmem:[%s352 + $0x4f28] sm:$0xff]
        %v2914 = vld [vmem:[%s352 + $0x4f30] sm:$0xff]
        %v2915 = vld [vmem:[%s352 + $0x4f38] sm:$0xff]
        %v2916 = vld [vmem:[%s352 + $0x4f40] sm:$0xff]
        %v2917 = vld [vmem:[%s352 + $0x4f48] sm:$0xff]
        %v2918 = vld [vmem:[%s352 + $0x4f50] sm:$0xff]
        %v2919 = vld [vmem:[%s352 + $0x4f58] sm:$0xff]
        %v2920 = vld [vmem:[%s352 + $0x4f60] sm:$0xff]
        %v2921 = vld [vmem:[%s352 + $0x4f68] sm:$0xff]
        %v2922 = vld [vmem:[%s352 + $0x4f70] sm:$0xff]
        %v2923 = vld [vmem:[%s352 + $0x4f78] sm:$0xff]
        %v2924 = vld [vmem:[%s352 + $0x4f80] sm:$0xff]
        %v2925 = vld [vmem:[%s352 + $0x4f88] sm:$0xff]
        %v2926 = vld [vmem:[%s352 + $0x4f90] sm:$0xff]
        %v2927 = vld [vmem:[%s352 + $0x4f98] sm:$0xff]
        %v2928 = vld [vmem:[%s352 + $0x4fa0] sm:$0xff]
        %v2929 = vld [vmem:[%s352 + $0x4fa8] sm:$0xff]
        %v2930 = vld [vmem:[%s352 + $0x4fb0] sm:$0xff]
        %v2931 = vld [vmem:[%s352 + $0x4fb8] sm:$0xff]
        %v2932 = vld [vmem:[%s352 + $0x4fc0] sm:$0xff]
        %v2933 = vld [vmem:[%s352 + $0x4fc8] sm:$0xff]
        %v2934 = vld [vmem:[%s352 + $0x4fd0] sm:$0xff]
        %v2935 = vld [vmem:[%s352 + $0x4fd8] sm:$0xff]
        %v2936 = vld [vmem:[%s352 + $0x4fe0] sm:$0xff]
        %v2937 = vld [vmem:[%s352 + $0x4fe8] sm:$0xff]
        %v2938 = vld [vmem:[%s352 + $0x4ff0] sm:$0xff]
        %v2939 = vld [vmem:[%s352 + $0x4ff8] sm:$0xff]
        %2960 = vst [vmem:[#allocation1] ss:$4 sm:$0xff] %v360
        %s2961 = scalar_lea.vmem [#allocation1], 32
        %2962 = vst [vmem:[%s2961] ss:$4 sm:$0xff] %v361
        %v2963 = vld.sshfl [vmem:[#allocation1] sm:$0xff pattern:$0x73625140]
        %v2964 = vld.sshfl [vmem:[#allocation1 + $0x8] sm:$0xff pattern:$0x73625140]
        %v2965 = vld.sshfl [vmem:[#allocation1 + $0x10] sm:$0xff pattern:$0x73625140]
        %v2966 = vld.sshfl [vmem:[#allocation1 + $0x18] sm:$0xff pattern:$0x73625140]
        %v2967 = vld.sshfl [vmem:[#allocation1 + $0x20] sm:$0xff pattern:$0x73625140]
        %v2968 = vld.sshfl [vmem:[#allocation1 + $0x28] sm:$0xff pattern:$0x73625140]
        %v2969 = vld.sshfl [vmem:[#allocation1 + $0x30] sm:$0xff pattern:$0x73625140]
        %v2970 = vld.sshfl [vmem:[#allocation1 + $0x38] sm:$0xff pattern:$0x73625140]
        %2971 = vst [vmem:[#allocation1] ss:$4 sm:$0xff] %v362
        %2972 = vst [vmem:[%s2961] ss:$4 sm:$0xff] %v363
        %v2973 = vld.sshfl [vmem:[#allocation1] sm:$0xff pattern:$0x73625140]
        %v2974 = vld.sshfl [vmem:[#allocation1 + $0x8] sm:$0xff pattern:$0x73625140]
        %v2975 = vld.sshfl [vmem:[#allocation1 + $0x10] sm:$0xff pattern:$0x73625140]
        %v2976 = vld.sshfl [vmem:[#allocation1 + $0x18] sm:$0xff pattern:$0x73625140]
        %v2977 = vld.sshfl [vmem:[#allocation1 + $0x20] sm:$0xff pattern:$0x73625140]
        %v2978 = vld.sshfl [vmem:[#allocation1 + $0x28] sm:$0xff pattern:$0x73625140]
        %v2979 = vld.sshfl [vmem:[#allocation1 + $0x30] sm:$0xff pattern:$0x73625140]
        %v2980 = vld.sshfl [vmem:[#allocation1 + $0x38] sm:$0xff pattern:$0x73625140]
        %2981 = vst [vmem:[#allocation1] ss:$4 sm:$0xff] %v364
        %2982 = vst [vmem:[%s2961] ss:$4 sm:$0xff] %v365
        %v2983 = vld.sshfl [vmem:[#allocation1] sm:$0xff pattern:$0x73625140]
        %v2984 = vld.sshfl [vmem:[#allocation1 + $0x8] sm:$0xff pattern:$0x73625140]
        %v2985 = vld.sshfl [vmem:[#allocation1 + $0x10] sm:$0xff pattern:$0x73625140]
        %v2986 = vld.sshfl [vmem:[#allocation1 + $0x18] sm:$0xff pattern:$0x73625140]
        %v2987 = vld.sshfl [vmem:[#allocation1 + $0x20] sm:$0xff pattern:$0x73625140]
        %v2988 = vld.sshfl [vmem:[#allocation1 + $0x28] sm:$0xff pattern:$0x73625140]
        %v2989 = vld.sshfl [vmem:[#allocation1 + $0x30] sm:$0xff pattern:$0x73625140]
        %v2990 = vld.sshfl [vmem:[#allocation1 + $0x38] sm:$0xff pattern:$0x73625140]
        %2991 = vst [vmem:[#allocation1] ss:$4 sm:$0xff] %v366
        %2992 = vst [vmem:[%s2961] ss:$4 sm:$0xff] %v367
        %v2993 = vld.sshfl [vmem:[#allocation1] sm:$0xff pattern:$0x73625140]
        %v2994 = vld.sshfl [vmem:[#allocation1 + $0x8] sm:$0xff pattern:$0x73625140]
        %v2995 = vld.sshfl [vmem:[#allocation1 + $0x10] sm:$0xff pattern:$0x73625140]
        %v2996 = vld.sshfl [vmem:[#allocation1 + $0x18] sm:$0xff pattern:$0x73625140]
        %v2997 = vld.sshfl [vmem:[#allocation1 + $0x20] sm:$0xff pattern:$0x73625140]
        %v2998 = vld.sshfl [vmem:[#allocation1 + $0x28] sm:$0xff pattern:$0x73625140]
        %v2999 = vld.sshfl [vmem:[#allocation1 + $0x30] sm:$0xff pattern:$0x73625140]
        %v3000 = vld.sshfl [vmem:[#allocation1 + $0x38] sm:$0xff pattern:$0x73625140]
        %3001 = vst [vmem:[#allocation1] ss:$4 sm:$0xff] %v368
        %3002 = vst [vmem:[%s2961] ss:$4 sm:$0xff] %v369
        %v3003 = vld.sshfl [vmem:[#allocation1] sm:$0xff pattern:$0x73625140]
        %v3004 = vld.sshfl [vmem:[#allocation1 + $0x8] sm:$0xff pattern:$0x73625140]
        %v3005 = vld.sshfl [vmem:[#allocation1 + $0x10] sm:$0xff pattern:$0x73625140]
        %v3006 = vld.sshfl [vmem:[#allocation1 + $0x18] sm:$0xff pattern:$0x73625140]
        %v3007 = vld.sshfl [vmem:[#allocation1 + $0x20] sm:$0xff pattern:$0x73625140]
        %v3008 = vld.sshfl [vmem:[#allocation1 + $0x28] sm:$0xff pattern:$0x73625140]
        %v3009 = vld.sshfl [vmem:[#allocation1 + $0x30] sm:$0xff pattern:$0x73625140]
        %v3010 = vld.sshfl [vmem:[#allocation1 + $0x38] sm:$0xff pattern:$0x73625140]
        %3011 = vst [vmem:[#allocation1] ss:$4 sm:$0xff] %v370
        %3012 = vst [vmem:[%s2961] ss:$4 sm:$0xff] %v371
        %v3013 = vld.sshfl [vmem:[#allocation1] sm:$0xff pattern:$0x73625140]
        %v3014 = vld.sshfl [vmem:[#allocation1 + $0x8] sm:$0xff pattern:$0x73625140]
        %v3015 = vld.sshfl [vmem:[#allocation1 + $0x10] sm:$0xff pattern:$0x73625140]
        %v3016 = vld.sshfl [vmem:[#allocation1 + $0x18] sm:$0xff pattern:$0x73625140]
        %v3017 = vld.sshfl [vmem:[#allocation1 + $0x20] sm:$0xff pattern:$0x73625140]
        %v3018 = vld.sshfl [vmem:[#allocation1 + $0x28] sm:$0xff pattern:$0x73625140]
        %v3019 = vld.sshfl [vmem:[#allocation1 + $0x30] sm:$0xff pattern:$0x73625140]
        %v3020 = vld.sshfl [vmem:[#allocation1 + $0x38] sm:$0xff pattern:$0x73625140]
        %3021 = vst [vmem:[#allocation1] ss:$4 sm:$0xff] %v372
        %3022 = vst [vmem:[%s2961] ss:$4 sm:$0xff] %v373
        %v3023 = vld.sshfl [vmem:[#allocation1] sm:$0xff pattern:$0x73625140]
        %v3024 = vld.sshfl [vmem:[#allocation1 + $0x8] sm:$0xff pattern:$0x73625140]
        %v3025 = vld.sshfl [vmem:[#allocation1 + $0x10] sm:$0xff pattern:$0x73625140]
        %v3026 = vld.sshfl [vmem:[#allocation1 + $0x18] sm:$0xff pattern:$0x73625140]
        %v3027 = vld.sshfl [vmem:[#allocation1 + $0x20] sm:$0xff pattern:$0x73625140]
        %v3028 = vld.sshfl [vmem:[#allocation1 + $0x28] sm:$0xff pattern:$0x73625140]
        %v3029 = vld.sshfl [vmem:[#allocation1 + $0x30] sm:$0xff pattern:$0x73625140]
        %v3030 = vld.sshfl [vmem:[#allocation1 + $0x38] sm:$0xff pattern:$0x73625140]
        %3031 = vst [vmem:[#allocation1] ss:$4 sm:$0xff] %v374
        %3032 = vst [vmem:[%s2961] ss:$4 sm:$0xff] %v375
        %v3033 = vld.sshfl [vmem:[#allocation1] sm:$0xff pattern:$0x73625140]
        %v3034 = vld.sshfl [vmem:[#allocation1 + $0x8] sm:$0xff pattern:$0x73625140]
        %v3035 = vld.sshfl [vmem:[#allocation1 + $0x10] sm:$0xff pattern:$0x73625140]
        %v3036 = vld.sshfl [vmem:[#allocation1 + $0x18] sm:$0xff pattern:$0x73625140]
        %v3037 = vld.sshfl [vmem:[#allocation1 + $0x20] sm:$0xff pattern:$0x73625140]
        %v3038 = vld.sshfl [vmem:[#allocation1 + $0x28] sm:$0xff pattern:$0x73625140]
        %v3039 = vld.sshfl [vmem:[#allocation1 + $0x30] sm:$0xff pattern:$0x73625140]
        %v3040 = vld.sshfl [vmem:[#allocation1 + $0x38] sm:$0xff pattern:$0x73625140]
        %3041 = vst [vmem:[#allocation1] ss:$4 sm:$0xff] %v376
        %3042 = vst [vmem:[%s2961] ss:$4 sm:$0xff] %v377
        %v3043 = vld.sshfl [vmem:[#allocation1] sm:$0xff pattern:$0x73625140]
        %v3044 = vld.sshfl [vmem:[#allocation1 + $0x8] sm:$0xff pattern:$0x73625140]
        %v3045 = vld.sshfl [vmem:[#allocation1 + $0x10] sm:$0xff pattern:$0x73625140]
        %v3046 = vld.sshfl [vmem:[#allocation1 + $0x18] sm:$0xff pattern:$0x73625140]
        %v3047 = vld.sshfl [vmem:[#allocation1 + $0x20] sm:$0xff pattern:$0x73625140]
        %v3048 = vld.sshfl [vmem:[#allocation1 + $0x28] sm:$0xff pattern:$0x73625140]
        %v3049 = vld.sshfl [vmem:[#allocation1 + $0x30] sm:$0xff pattern:$0x73625140]
        %v3050 = vld.sshfl [vmem:[#allocation1 + $0x38] sm:$0xff pattern:$0x73625140]
        %3051 = vst [vmem:[#allocation1] ss:$4 sm:$0xff] %v378
        %3052 = vst [vmem:[%s2961] ss:$4 sm:$0xff] %v379
        %v3053 = vld.sshfl [vmem:[#allocation1] sm:$0xff pattern:$0x73625140]
        %v3054 = vld.sshfl [vmem:[#allocation1 + $0x8] sm:$0xff pattern:$0x73625140]
        %v3055 = vld.sshfl [vmem:[#allocation1 + $0x10] sm:$0xff pattern:$0x73625140]
        %v3056 = vld.sshfl [vmem:[#allocation1 + $0x18] sm:$0xff pattern:$0x73625140]
        %v3057 = vld.sshfl [vmem:[#allocation1 + $0x20] sm:$0xff pattern:$0x73625140]
        %v3058 = vld.sshfl [vmem:[#allocation1 + $0x28] sm:$0xff pattern:$0x73625140]
        %v3059 = vld.sshfl [vmem:[#allocation1 + $0x30] sm:$0xff pattern:$0x73625140]
        %v3060 = vld.sshfl [vmem:[#allocation1 + $0x38] sm:$0xff pattern:$0x73625140]
        %3141 = vmatpush.msra.mxu0 %v410
        %3142 = vmatpush.msra.mxu0 %v408
        %3143 = vmatpush.msra.mxu0 %v406
        %3144 = vmatpush.msra.mxu0 %v404
        %3145 = vmatpush.msra.mxu0 %v402
        %3146 = vmatpush.msra.mxu0 %v400
        %3147 = vmatpush.msra.mxu0 %v398
        %3148 = vmatpush.msra.mxu0 %v396
        %3149 = vmatpush.msra.mxu0 %v394
        %3150 = vmatpush.msra.mxu0 %v392
        %3151 = vmatpush.msra.mxu0 %v390
        %3152 = vmatpush.msra.mxu0 %v388
        %3153 = vmatpush.msra.mxu0 %v386
        %3154 = vmatpush.msra.mxu0 %v384
        %3155 = vmatpush.msra.mxu0 %v382
        %3156 = vmatpush.msra.mxu0 %v380
        %3157 = vmatmul.f32.gmra.mxu0 %v2963
        %v3158 = vpop.f32.mrf.mxu0
        %v3159 = vadd.f32 0.0, %v3158
        %3160 = vdwg.mxu0
        %3161 = vmatpush.msra.mxu0 %v442
        %3162 = vmatpush.msra.mxu0 %v440
        %3163 = vmatpush.msra.mxu0 %v438
        %3164 = vmatpush.msra.mxu0 %v436
        %3165 = vmatpush.msra.mxu0 %v434
        %3166 = vmatpush.msra.mxu0 %v432
        %3167 = vmatpush.msra.mxu0 %v430
        %3168 = vmatpush.msra.mxu0 %v428
        %3169 = vmatpush.msra.mxu0 %v426
        %3170 = vmatpush.msra.mxu0 %v424
        %3171 = vmatpush.msra.mxu0 %v422
        %3172 = vmatpush.msra.mxu0 %v420
        %3173 = vmatpush.msra.mxu0 %v418
        %3174 = vmatpush.msra.mxu0 %v416
        %3175 = vmatpush.msra.mxu0 %v414
        %3176 = vmatpush.msra.mxu0 %v412
        %3177 = vmatmul.f32.gmra.mxu0 %v2964
        %v3178 = vpop.f32.mrf.mxu0
        %v3179 = vadd.f32 %v3159, %v3178
        %3180 = vdwg.mxu0
        %3181 = vmatpush.msra.mxu0 %v474
        %3182 = vmatpush.msra.mxu0 %v472
        %3183 = vmatpush.msra.mxu0 %v470
        %3184 = vmatpush.msra.mxu0 %v468
        %3185 = vmatpush.msra.mxu0 %v466
        %3186 = vmatpush.msra.mxu0 %v464
        %3187 = vmatpush.msra.mxu0 %v462
        %3188 = vmatpush.msra.mxu0 %v460
        %3189 = vmatpush.msra.mxu0 %v458
        %3190 = vmatpush.msra.mxu0 %v456
        %3191 = vmatpush.msra.mxu0 %v454
        %3192 = vmatpush.msra.mxu0 %v452
        %3193 = vmatpush.msra.mxu0 %v450
        %3194 = vmatpush.msra.mxu0 %v448
        %3195 = vmatpush.msra.mxu0 %v446
        %3196 = vmatpush.msra.mxu0 %v444
        %3197 = vmatmul.f32.gmra.mxu0 %v2965
        %v3198 = vpop.f32.mrf.mxu0
        %v3199 = vadd.f32 %v3179, %v3198
        %3200 = vdwg.mxu0
        %3201 = vmatpush.msra.mxu0 %v506
        %3202 = vmatpush.msra.mxu0 %v504
        %3203 = vmatpush.msra.mxu0 %v502
        %3204 = vmatpush.msra.mxu0 %v500
        %3205 = vmatpush.msra.mxu0 %v498
        %3206 = vmatpush.msra.mxu0 %v496
        %3207 = vmatpush.msra.mxu0 %v494
        %3208 = vmatpush.msra.mxu0 %v492
        %3209 = vmatpush.msra.mxu0 %v490
        %3210 = vmatpush.msra.mxu0 %v488
        %3211 = vmatpush.msra.mxu0 %v486
        %3212 = vmatpush.msra.mxu0 %v484
        %3213 = vmatpush.msra.mxu0 %v482
        %3214 = vmatpush.msra.mxu0 %v480
        %3215 = vmatpush.msra.mxu0 %v478
        %3216 = vmatpush.msra.mxu0 %v476
        %3217 = vmatmul.f32.gmra.mxu0 %v2966
        %v3218 = vpop.f32.mrf.mxu0
        %v3219 = vadd.f32 %v3199, %v3218
        %3220 = vdwg.mxu0
        %3221 = vmatpush.msra.mxu0 %v538
        %3222 = vmatpush.msra.mxu0 %v536
        %3223 = vmatpush.msra.mxu0 %v534
        %3224 = vmatpush.msra.mxu0 %v532
        %3225 = vmatpush.msra.mxu0 %v530
        %3226 = vmatpush.msra.mxu0 %v528
        %3227 = vmatpush.msra.mxu0 %v526
        %3228 = vmatpush.msra.mxu0 %v524
        %3229 = vmatpush.msra.mxu0 %v522
        %3230 = vmatpush.msra.mxu0 %v520
        %3231 = vmatpush.msra.mxu0 %v518
        %3232 = vmatpush.msra.mxu0 %v516
        %3233 = vmatpush.msra.mxu0 %v514
        %3234 = vmatpush.msra.mxu0 %v512
        %3235 = vmatpush.msra.mxu0 %v510
        %3236 = vmatpush.msra.mxu0 %v508
        %3237 = vmatmul.f32.gmra.mxu0 %v2967
        %v3238 = vpop.f32.mrf.mxu0
        %v3239 = vadd.f32 %v3219, %v3238
        %3240 = vdwg.mxu0
        %3241 = vmatpush.msra.mxu0 %v570
        %3242 = vmatpush.msra.mxu0 %v568
        %3243 = vmatpush.msra.mxu0 %v566
        %3244 = vmatpush.msra.mxu0 %v564
        %3245 = vmatpush.msra.mxu0 %v562
        %3246 = vmatpush.msra.mxu0 %v560
        %3247 = vmatpush.msra.mxu0 %v558
        %3248 = vmatpush.msra.mxu0 %v556
        %3249 = vmatpush.msra.mxu0 %v554
        %3250 = vmatpush.msra.mxu0 %v552
        %3251 = vmatpush.msra.mxu0 %v550
        %3252 = vmatpush.msra.mxu0 %v548
        %3253 = vmatpush.msra.mxu0 %v546
        %3254 = vmatpush.msra.mxu0 %v544
        %3255 = vmatpush.msra.mxu0 %v542
        %3256 = vmatpush.msra.mxu0 %v540
        %3257 = vmatmul.f32.gmra.mxu0 %v2968
        %v3258 = vpop.f32.mrf.mxu0
        %v3259 = vadd.f32 %v3239, %v3258
        %3260 = vdwg.mxu0
        %3261 = vmatpush.msra.mxu0 %v602
        %3262 = vmatpush.msra.mxu0 %v600
        %3263 = vmatpush.msra.mxu0 %v598
        %3264 = vmatpush.msra.mxu0 %v596
        %3265 = vmatpush.msra.mxu0 %v594
        %3266 = vmatpush.msra.mxu0 %v592
        %3267 = vmatpush.msra.mxu0 %v590
        %3268 = vmatpush.msra.mxu0 %v588
        %3269 = vmatpush.msra.mxu0 %v586
        %3270 = vmatpush.msra.mxu0 %v584
        %3271 = vmatpush.msra.mxu0 %v582
        %3272 = vmatpush.msra.mxu0 %v580
        %3273 = vmatpush.msra.mxu0 %v578
        %3274 = vmatpush.msra.mxu0 %v576
        %3275 = vmatpush.msra.mxu0 %v574
        %3276 = vmatpush.msra.mxu0 %v572
        %3277 = vmatmul.f32.gmra.mxu0 %v2969
        %v3278 = vpop.f32.mrf.mxu0
        %v3279 = vadd.f32 %v3259, %v3278
        %3280 = vdwg.mxu0
        %3281 = vmatpush.msra.mxu0 %v634
        %3282 = vmatpush.msra.mxu0 %v632
        %3283 = vmatpush.msra.mxu0 %v630
        %3284 = vmatpush.msra.mxu0 %v628
        %3285 = vmatpush.msra.mxu0 %v626
        %3286 = vmatpush.msra.mxu0 %v624
        %3287 = vmatpush.msra.mxu0 %v622
        %3288 = vmatpush.msra.mxu0 %v620
        %3289 = vmatpush.msra.mxu0 %v618
        %3290 = vmatpush.msra.mxu0 %v616
        %3291 = vmatpush.msra.mxu0 %v614
        %3292 = vmatpush.msra.mxu0 %v612
        %3293 = vmatpush.msra.mxu0 %v610
        %3294 = vmatpush.msra.mxu0 %v608
        %3295 = vmatpush.msra.mxu0 %v606
        %3296 = vmatpush.msra.mxu0 %v604
        %3297 = vmatmul.f32.gmra.mxu0 %v2970
        %v3298 = vpop.f32.mrf.mxu0
        %v3299 = vadd.f32 %v3279, %v3298
        %3300 = vdwg.mxu0
        %3301 = vmatpush.msra.mxu0 %v666
        %3302 = vmatpush.msra.mxu0 %v664
        %3303 = vmatpush.msra.mxu0 %v662
        %3304 = vmatpush.msra.mxu0 %v660
        %3305 = vmatpush.msra.mxu0 %v658
        %3306 = vmatpush.msra.mxu0 %v656
        %3307 = vmatpush.msra.mxu0 %v654
        %3308 = vmatpush.msra.mxu0 %v652
        %3309 = vmatpush.msra.mxu0 %v650
        %3310 = vmatpush.msra.mxu0 %v648
        %3311 = vmatpush.msra.mxu0 %v646
        %3312 = vmatpush.msra.mxu0 %v644
        %3313 = vmatpush.msra.mxu0 %v642
        %3314 = vmatpush.msra.mxu0 %v640
        %3315 = vmatpush.msra.mxu0 %v638
        %3316 = vmatpush.msra.mxu0 %v636
        %3317 = vmatmul.f32.gmra.mxu0 %v2973
        %v3318 = vpop.f32.mrf.mxu0
        %v3319 = vadd.f32 %v3299, %v3318
        %3320 = vdwg.mxu0
        %3321 = vmatpush.msra.mxu0 %v698
        %3322 = vmatpush.msra.mxu0 %v696
        %3323 = vmatpush.msra.mxu0 %v694
        %3324 = vmatpush.msra.mxu0 %v692
        %3325 = vmatpush.msra.mxu0 %v690
        %3326 = vmatpush.msra.mxu0 %v688
        %3327 = vmatpush.msra.mxu0 %v686
        %3328 = vmatpush.msra.mxu0 %v684
        %3329 = vmatpush.msra.mxu0 %v682
        %3330 = vmatpush.msra.mxu0 %v680
        %3331 = vmatpush.msra.mxu0 %v678
        %3332 = vmatpush.msra.mxu0 %v676
        %3333 = vmatpush.msra.mxu0 %v674
        %3334 = vmatpush.msra.mxu0 %v672
        %3335 = vmatpush.msra.mxu0 %v670
        %3336 = vmatpush.msra.mxu0 %v668
        %3337 = vmatmul.f32.gmra.mxu0 %v2974
        %v3338 = vpop.f32.mrf.mxu0
        %v3339 = vadd.f32 %v3319, %v3338
        %3340 = vdwg.mxu0
        %3341 = vmatpush.msra.mxu0 %v730
        %3342 = vmatpush.msra.mxu0 %v728
        %3343 = vmatpush.msra.mxu0 %v726
        %3344 = vmatpush.msra.mxu0 %v724
        %3345 = vmatpush.msra.mxu0 %v722
        %3346 = vmatpush.msra.mxu0 %v720
        %3347 = vmatpush.msra.mxu0 %v718
        %3348 = vmatpush.msra.mxu0 %v716
        %3349 = vmatpush.msra.mxu0 %v714
        %3350 = vmatpush.msra.mxu0 %v712
        %3351 = vmatpush.msra.mxu0 %v710
        %3352 = vmatpush.msra.mxu0 %v708
        %3353 = vmatpush.msra.mxu0 %v706
        %3354 = vmatpush.msra.mxu0 %v704
        %3355 = vmatpush.msra.mxu0 %v702
        %3356 = vmatpush.msra.mxu0 %v700
        %3357 = vmatmul.f32.gmra.mxu0 %v2975
        %v3358 = vpop.f32.mrf.mxu0
        %v3359 = vadd.f32 %v3339, %v3358
        %3360 = vdwg.mxu0
        %3361 = vmatpush.msra.mxu0 %v762
        %3362 = vmatpush.msra.mxu0 %v760
        %3363 = vmatpush.msra.mxu0 %v758
        %3364 = vmatpush.msra.mxu0 %v756
        %3365 = vmatpush.msra.mxu0 %v754
        %3366 = vmatpush.msra.mxu0 %v752
        %3367 = vmatpush.msra.mxu0 %v750
        %3368 = vmatpush.msra.mxu0 %v748
        %3369 = vmatpush.msra.mxu0 %v746
        %3370 = vmatpush.msra.mxu0 %v744
        %3371 = vmatpush.msra.mxu0 %v742
        %3372 = vmatpush.msra.mxu0 %v740
        %3373 = vmatpush.msra.mxu0 %v738
        %3374 = vmatpush.msra.mxu0 %v736
        %3375 = vmatpush.msra.mxu0 %v734
        %3376 = vmatpush.msra.mxu0 %v732
        %3377 = vmatmul.f32.gmra.mxu0 %v2976
        %v3378 = vpop.f32.mrf.mxu0
        %v3379 = vadd.f32 %v3359, %v3378
        %3380 = vdwg.mxu0
        %3381 = vmatpush.msra.mxu0 %v794
        %3382 = vmatpush.msra.mxu0 %v792
        %3383 = vmatpush.msra.mxu0 %v790
        %3384 = vmatpush.msra.mxu0 %v788
        %3385 = vmatpush.msra.mxu0 %v786
        %3386 = vmatpush.msra.mxu0 %v784
        %3387 = vmatpush.msra.mxu0 %v782
        %3388 = vmatpush.msra.mxu0 %v780
        %3389 = vmatpush.msra.mxu0 %v778
        %3390 = vmatpush.msra.mxu0 %v776
        %3391 = vmatpush.msra.mxu0 %v774
        %3392 = vmatpush.msra.mxu0 %v772
        %3393 = vmatpush.msra.mxu0 %v770
        %3394 = vmatpush.msra.mxu0 %v768
        %3395 = vmatpush.msra.mxu0 %v766
        %3396 = vmatpush.msra.mxu0 %v764
        %3397 = vmatmul.f32.gmra.mxu0 %v2977
        %v3398 = vpop.f32.mrf.mxu0
        %v3399 = vadd.f32 %v3379, %v3398
        %3400 = vdwg.mxu0
        %3401 = vmatpush.msra.mxu0 %v826
        %3402 = vmatpush.msra.mxu0 %v824
        %3403 = vmatpush.msra.mxu0 %v822
        %3404 = vmatpush.msra.mxu0 %v820
        %3405 = vmatpush.msra.mxu0 %v818
        %3406 = vmatpush.msra.mxu0 %v816
        %3407 = vmatpush.msra.mxu0 %v814
        %3408 = vmatpush.msra.mxu0 %v812
        %3409 = vmatpush.msra.mxu0 %v810
        %3410 = vmatpush.msra.mxu0 %v808
        %3411 = vmatpush.msra.mxu0 %v806
        %3412 = vmatpush.msra.mxu0 %v804
        %3413 = vmatpush.msra.mxu0 %v802
        %3414 = vmatpush.msra.mxu0 %v800
        %3415 = vmatpush.msra.mxu0 %v798
        %3416 = vmatpush.msra.mxu0 %v796
        %3417 = vmatmul.f32.gmra.mxu0 %v2978
        %v3418 = vpop.f32.mrf.mxu0
        %v3419 = vadd.f32 %v3399, %v3418
        %3420 = vdwg.mxu0
        %3421 = vmatpush.msra.mxu0 %v858
        %3422 = vmatpush.msra.mxu0 %v856
        %3423 = vmatpush.msra.mxu0 %v854
        %3424 = vmatpush.msra.mxu0 %v852
        %3425 = vmatpush.msra.mxu0 %v850
        %3426 = vmatpush.msra.mxu0 %v848
        %3427 = vmatpush.msra.mxu0 %v846
        %3428 = vmatpush.msra.mxu0 %v844
        %3429 = vmatpush.msra.mxu0 %v842
        %3430 = vmatpush.msra.mxu0 %v840
        %3431 = vmatpush.msra.mxu0 %v838
        %3432 = vmatpush.msra.mxu0 %v836
        %3433 = vmatpush.msra.mxu0 %v834
        %3434 = vmatpush.msra.mxu0 %v832
        %3435 = vmatpush.msra.mxu0 %v830
        %3436 = vmatpush.msra.mxu0 %v828
        %3437 = vmatmul.f32.gmra.mxu0 %v2979
        %v3438 = vpop.f32.mrf.mxu0
        %v3439 = vadd.f32 %v3419, %v3438
        %3440 = vdwg.mxu0
        %3441 = vmatpush.msra.mxu0 %v890
        %3442 = vmatpush.msra.mxu0 %v888
        %3443 = vmatpush.msra.mxu0 %v886
        %3444 = vmatpush.msra.mxu0 %v884
        %3445 = vmatpush.msra.mxu0 %v882
        %3446 = vmatpush.msra.mxu0 %v880
        %3447 = vmatpush.msra.mxu0 %v878
        %3448 = vmatpush.msra.mxu0 %v876
        %3449 = vmatpush.msra.mxu0 %v874
        %3450 = vmatpush.msra.mxu0 %v872
        %3451 = vmatpush.msra.mxu0 %v870
        %3452 = vmatpush.msra.mxu0 %v868
        %3453 = vmatpush.msra.mxu0 %v866
        %3454 = vmatpush.msra.mxu0 %v864
        %3455 = vmatpush.msra.mxu0 %v862
        %3456 = vmatpush.msra.mxu0 %v860
        %3457 = vmatmul.f32.gmra.mxu0 %v2980
        %v3458 = vpop.f32.mrf.mxu0
        %v3459 = vadd.f32 %v3439, %v3458
        %3460 = vdwg.mxu0
        %3461 = vmatpush.msra.mxu0 %v922
        %3462 = vmatpush.msra.mxu0 %v920
        %3463 = vmatpush.msra.mxu0 %v918
        %3464 = vmatpush.msra.mxu0 %v916
        %3465 = vmatpush.msra.mxu0 %v914
        %3466 = vmatpush.msra.mxu0 %v912
        %3467 = vmatpush.msra.mxu0 %v910
        %3468 = vmatpush.msra.mxu0 %v908
        %3469 = vmatpush.msra.mxu0 %v906
        %3470 = vmatpush.msra.mxu0 %v904
        %3471 = vmatpush.msra.mxu0 %v902
        %3472 = vmatpush.msra.mxu0 %v900
        %3473 = vmatpush.msra.mxu0 %v898
        %3474 = vmatpush.msra.mxu0 %v896
        %3475 = vmatpush.msra.mxu0 %v894
        %3476 = vmatpush.msra.mxu0 %v892
        %3477 = vmatmul.f32.gmra.mxu0 %v2983
        %v3478 = vpop.f32.mrf.mxu0
        %v3479 = vadd.f32 %v3459, %v3478
        %3480 = vdwg.mxu0
        %3481 = vmatpush.msra.mxu0 %v954
        %3482 = vmatpush.msra.mxu0 %v952
        %3483 = vmatpush.msra.mxu0 %v950
        %3484 = vmatpush.msra.mxu0 %v948
        %3485 = vmatpush.msra.mxu0 %v946
        %3486 = vmatpush.msra.mxu0 %v944
        %3487 = vmatpush.msra.mxu0 %v942
        %3488 = vmatpush.msra.mxu0 %v940
        %3489 = vmatpush.msra.mxu0 %v938
        %3490 = vmatpush.msra.mxu0 %v936
        %3491 = vmatpush.msra.mxu0 %v934
        %3492 = vmatpush.msra.mxu0 %v932
        %3493 = vmatpush.msra.mxu0 %v930
        %3494 = vmatpush.msra.mxu0 %v928
        %3495 = vmatpush.msra.mxu0 %v926
        %3496 = vmatpush.msra.mxu0 %v924
        %3497 = vmatmul.f32.gmra.mxu0 %v2984
        %v3498 = vpop.f32.mrf.mxu0
        %v3499 = vadd.f32 %v3479, %v3498
        %3500 = vdwg.mxu0
        %3501 = vmatpush.msra.mxu0 %v986
        %3502 = vmatpush.msra.mxu0 %v984
        %3503 = vmatpush.msra.mxu0 %v982
        %3504 = vmatpush.msra.mxu0 %v980
        %3505 = vmatpush.msra.mxu0 %v978
        %3506 = vmatpush.msra.mxu0 %v976
        %3507 = vmatpush.msra.mxu0 %v974
        %3508 = vmatpush.msra.mxu0 %v972
        %3509 = vmatpush.msra.mxu0 %v970
        %3510 = vmatpush.msra.mxu0 %v968
        %3511 = vmatpush.msra.mxu0 %v966
        %3512 = vmatpush.msra.mxu0 %v964
        %3513 = vmatpush.msra.mxu0 %v962
        %3514 = vmatpush.msra.mxu0 %v960
        %3515 = vmatpush.msra.mxu0 %v958
        %3516 = vmatpush.msra.mxu0 %v956
        %3517 = vmatmul.f32.gmra.mxu0 %v2985
        %v3518 = vpop.f32.mrf.mxu0
        %v3519 = vadd.f32 %v3499, %v3518
        %3520 = vdwg.mxu0
        %3521 = vmatpush.msra.mxu0 %v1018
        %3522 = vmatpush.msra.mxu0 %v1016
        %3523 = vmatpush.msra.mxu0 %v1014
        %3524 = vmatpush.msra.mxu0 %v1012
        %3525 = vmatpush.msra.mxu0 %v1010
        %3526 = vmatpush.msra.mxu0 %v1008
        %3527 = vmatpush.msra.mxu0 %v1006
        %3528 = vmatpush.msra.mxu0 %v1004
        %3529 = vmatpush.msra.mxu0 %v1002
        %3530 = vmatpush.msra.mxu0 %v1000
        %3531 = vmatpush.msra.mxu0 %v998
        %3532 = vmatpush.msra.mxu0 %v996
        %3533 = vmatpush.msra.mxu0 %v994
        %3534 = vmatpush.msra.mxu0 %v992
        %3535 = vmatpush.msra.mxu0 %v990
        %3536 = vmatpush.msra.mxu0 %v988
        %3537 = vmatmul.f32.gmra.mxu0 %v2986
        %v3538 = vpop.f32.mrf.mxu0
        %v3539 = vadd.f32 %v3519, %v3538
        %3540 = vdwg.mxu0
        %3541 = vmatpush.msra.mxu0 %v1050
        %3542 = vmatpush.msra.mxu0 %v1048
        %3543 = vmatpush.msra.mxu0 %v1046
        %3544 = vmatpush.msra.mxu0 %v1044
        %3545 = vmatpush.msra.mxu0 %v1042
        %3546 = vmatpush.msra.mxu0 %v1040
        %3547 = vmatpush.msra.mxu0 %v1038
        %3548 = vmatpush.msra.mxu0 %v1036
        %3549 = vmatpush.msra.mxu0 %v1034
        %3550 = vmatpush.msra.mxu0 %v1032
        %3551 = vmatpush.msra.mxu0 %v1030
        %3552 = vmatpush.msra.mxu0 %v1028
        %3553 = vmatpush.msra.mxu0 %v1026
        %3554 = vmatpush.msra.mxu0 %v1024
        %3555 = vmatpush.msra.mxu0 %v1022
        %3556 = vmatpush.msra.mxu0 %v1020
        %3557 = vmatmul.f32.gmra.mxu0 %v2987
        %v3558 = vpop.f32.mrf.mxu0
        %v3559 = vadd.f32 %v3539, %v3558
        %3560 = vdwg.mxu0
        %3561 = vmatpush.msra.mxu0 %v1082
        %3562 = vmatpush.msra.mxu0 %v1080
        %3563 = vmatpush.msra.mxu0 %v1078
        %3564 = vmatpush.msra.mxu0 %v1076
        %3565 = vmatpush.msra.mxu0 %v1074
        %3566 = vmatpush.msra.mxu0 %v1072
        %3567 = vmatpush.msra.mxu0 %v1070
        %3568 = vmatpush.msra.mxu0 %v1068
        %3569 = vmatpush.msra.mxu0 %v1066
        %3570 = vmatpush.msra.mxu0 %v1064
        %3571 = vmatpush.msra.mxu0 %v1062
        %3572 = vmatpush.msra.mxu0 %v1060
        %3573 = vmatpush.msra.mxu0 %v1058
        %3574 = vmatpush.msra.mxu0 %v1056
        %3575 = vmatpush.msra.mxu0 %v1054
        %3576 = vmatpush.msra.mxu0 %v1052
        %3577 = vmatmul.f32.gmra.mxu0 %v2988
        %v3578 = vpop.f32.mrf.mxu0
        %v3579 = vadd.f32 %v3559, %v3578
        %3580 = vdwg.mxu0
        %3581 = vmatpush.msra.mxu0 %v1114
        %3582 = vmatpush.msra.mxu0 %v1112
        %3583 = vmatpush.msra.mxu0 %v1110
        %3584 = vmatpush.msra.mxu0 %v1108
        %3585 = vmatpush.msra.mxu0 %v1106
        %3586 = vmatpush.msra.mxu0 %v1104
        %3587 = vmatpush.msra.mxu0 %v1102
        %3588 = vmatpush.msra.mxu0 %v1100
        %3589 = vmatpush.msra.mxu0 %v1098
        %3590 = vmatpush.msra.mxu0 %v1096
        %3591 = vmatpush.msra.mxu0 %v1094
        %3592 = vmatpush.msra.mxu0 %v1092
        %3593 = vmatpush.msra.mxu0 %v1090
        %3594 = vmatpush.msra.mxu0 %v1088
        %3595 = vmatpush.msra.mxu0 %v1086
        %3596 = vmatpush.msra.mxu0 %v1084
        %3597 = vmatmul.f32.gmra.mxu0 %v2989
        %v3598 = vpop.f32.mrf.mxu0
        %v3599 = vadd.f32 %v3579, %v3598
        %3600 = vdwg.mxu0
        %3601 = vmatpush.msra.mxu0 %v1146
        %3602 = vmatpush.msra.mxu0 %v1144
        %3603 = vmatpush.msra.mxu0 %v1142
        %3604 = vmatpush.msra.mxu0 %v1140
        %3605 = vmatpush.msra.mxu0 %v1138
        %3606 = vmatpush.msra.mxu0 %v1136
        %3607 = vmatpush.msra.mxu0 %v1134
        %3608 = vmatpush.msra.mxu0 %v1132
        %3609 = vmatpush.msra.mxu0 %v1130
        %3610 = vmatpush.msra.mxu0 %v1128
        %3611 = vmatpush.msra.mxu0 %v1126
        %3612 = vmatpush.msra.mxu0 %v1124
        %3613 = vmatpush.msra.mxu0 %v1122
        %3614 = vmatpush.msra.mxu0 %v1120
        %3615 = vmatpush.msra.mxu0 %v1118
        %3616 = vmatpush.msra.mxu0 %v1116
        %3617 = vmatmul.f32.gmra.mxu0 %v2990
        %v3618 = vpop.f32.mrf.mxu0
        %v3619 = vadd.f32 %v3599, %v3618
        %3620 = vdwg.mxu0
        %3621 = vmatpush.msra.mxu0 %v1178
        %3622 = vmatpush.msra.mxu0 %v1176
        %3623 = vmatpush.msra.mxu0 %v1174
        %3624 = vmatpush.msra.mxu0 %v1172
        %3625 = vmatpush.msra.mxu0 %v1170
        %3626 = vmatpush.msra.mxu0 %v1168
        %3627 = vmatpush.msra.mxu0 %v1166
        %3628 = vmatpush.msra.mxu0 %v1164
        %3629 = vmatpush.msra.mxu0 %v1162
        %3630 = vmatpush.msra.mxu0 %v1160
        %3631 = vmatpush.msra.mxu0 %v1158
        %3632 = vmatpush.msra.mxu0 %v1156
        %3633 = vmatpush.msra.mxu0 %v1154
        %3634 = vmatpush.msra.mxu0 %v1152
        %3635 = vmatpush.msra.mxu0 %v1150
        %3636 = vmatpush.msra.mxu0 %v1148
        %3637 = vmatmul.f32.gmra.mxu0 %v2993
        %v3638 = vpop.f32.mrf.mxu0
        %v3639 = vadd.f32 %v3619, %v3638
        %3640 = vdwg.mxu0
        %3641 = vmatpush.msra.mxu0 %v1210
        %3642 = vmatpush.msra.mxu0 %v1208
        %3643 = vmatpush.msra.mxu0 %v1206
        %3644 = vmatpush.msra.mxu0 %v1204
        %3645 = vmatpush.msra.mxu0 %v1202
        %3646 = vmatpush.msra.mxu0 %v1200
        %3647 = vmatpush.msra.mxu0 %v1198
        %3648 = vmatpush.msra.mxu0 %v1196
        %3649 = vmatpush.msra.mxu0 %v1194
        %3650 = vmatpush.msra.mxu0 %v1192
        %3651 = vmatpush.msra.mxu0 %v1190
        %3652 = vmatpush.msra.mxu0 %v1188
        %3653 = vmatpush.msra.mxu0 %v1186
        %3654 = vmatpush.msra.mxu0 %v1184
        %3655 = vmatpush.msra.mxu0 %v1182
        %3656 = vmatpush.msra.mxu0 %v1180
        %3657 = vmatmul.f32.gmra.mxu0 %v2994
        %v3658 = vpop.f32.mrf.mxu0
        %v3659 = vadd.f32 %v3639, %v3658
        %3660 = vdwg.mxu0
        %3661 = vmatpush.msra.mxu0 %v1242
        %3662 = vmatpush.msra.mxu0 %v1240
        %3663 = vmatpush.msra.mxu0 %v1238
        %3664 = vmatpush.msra.mxu0 %v1236
        %3665 = vmatpush.msra.mxu0 %v1234
        %3666 = vmatpush.msra.mxu0 %v1232
        %3667 = vmatpush.msra.mxu0 %v1230
        %3668 = vmatpush.msra.mxu0 %v1228
        %3669 = vmatpush.msra.mxu0 %v1226
        %3670 = vmatpush.msra.mxu0 %v1224
        %3671 = vmatpush.msra.mxu0 %v1222
        %3672 = vmatpush.msra.mxu0 %v1220
        %3673 = vmatpush.msra.mxu0 %v1218
        %3674 = vmatpush.msra.mxu0 %v1216
        %3675 = vmatpush.msra.mxu0 %v1214
        %3676 = vmatpush.msra.mxu0 %v1212
        %3677 = vmatmul.f32.gmra.mxu0 %v2995
        %v3678 = vpop.f32.mrf.mxu0
        %v3679 = vadd.f32 %v3659, %v3678
        %3680 = vdwg.mxu0
        %3681 = vmatpush.msra.mxu0 %v1274
        %3682 = vmatpush.msra.mxu0 %v1272
        %3683 = vmatpush.msra.mxu0 %v1270
        %3684 = vmatpush.msra.mxu0 %v1268
        %3685 = vmatpush.msra.mxu0 %v1266
        %3686 = vmatpush.msra.mxu0 %v1264
        %3687 = vmatpush.msra.mxu0 %v1262
        %3688 = vmatpush.msra.mxu0 %v1260
        %3689 = vmatpush.msra.mxu0 %v1258
        %3690 = vmatpush.msra.mxu0 %v1256
        %3691 = vmatpush.msra.mxu0 %v1254
        %3692 = vmatpush.msra.mxu0 %v1252
        %3693 = vmatpush.msra.mxu0 %v1250
        %3694 = vmatpush.msra.mxu0 %v1248
        %3695 = vmatpush.msra.mxu0 %v1246
        %3696 = vmatpush.msra.mxu0 %v1244
        %3697 = vmatmul.f32.gmra.mxu0 %v2996
        %v3698 = vpop.f32.mrf.mxu0
        %v3699 = vadd.f32 %v3679, %v3698
        %3700 = vdwg.mxu0
        %3701 = vmatpush.msra.mxu0 %v1306
        %3702 = vmatpush.msra.mxu0 %v1304
        %3703 = vmatpush.msra.mxu0 %v1302
        %3704 = vmatpush.msra.mxu0 %v1300
        %3705 = vmatpush.msra.mxu0 %v1298
        %3706 = vmatpush.msra.mxu0 %v1296
        %3707 = vmatpush.msra.mxu0 %v1294
        %3708 = vmatpush.msra.mxu0 %v1292
        %3709 = vmatpush.msra.mxu0 %v1290
        %3710 = vmatpush.msra.mxu0 %v1288
        %3711 = vmatpush.msra.mxu0 %v1286
        %3712 = vmatpush.msra.mxu0 %v1284
        %3713 = vmatpush.msra.mxu0 %v1282
        %3714 = vmatpush.msra.mxu0 %v1280
        %3715 = vmatpush.msra.mxu0 %v1278
        %3716 = vmatpush.msra.mxu0 %v1276
        %3717 = vmatmul.f32.gmra.mxu0 %v2997
        %v3718 = vpop.f32.mrf.mxu0
        %v3719 = vadd.f32 %v3699, %v3718
        %3720 = vdwg.mxu0
        %3721 = vmatpush.msra.mxu0 %v1338
        %3722 = vmatpush.msra.mxu0 %v1336
        %3723 = vmatpush.msra.mxu0 %v1334
        %3724 = vmatpush.msra.mxu0 %v1332
        %3725 = vmatpush.msra.mxu0 %v1330
        %3726 = vmatpush.msra.mxu0 %v1328
        %3727 = vmatpush.msra.mxu0 %v1326
        %3728 = vmatpush.msra.mxu0 %v1324
        %3729 = vmatpush.msra.mxu0 %v1322
        %3730 = vmatpush.msra.mxu0 %v1320
        %3731 = vmatpush.msra.mxu0 %v1318
        %3732 = vmatpush.msra.mxu0 %v1316
        %3733 = vmatpush.msra.mxu0 %v1314
        %3734 = vmatpush.msra.mxu0 %v1312
        %3735 = vmatpush.msra.mxu0 %v1310
        %3736 = vmatpush.msra.mxu0 %v1308
        %3737 = vmatmul.f32.gmra.mxu0 %v2998
        %v3738 = vpop.f32.mrf.mxu0
        %v3739 = vadd.f32 %v3719, %v3738
        %3740 = vdwg.mxu0
        %3741 = vmatpush.msra.mxu0 %v1370
        %3742 = vmatpush.msra.mxu0 %v1368
        %3743 = vmatpush.msra.mxu0 %v1366
        %3744 = vmatpush.msra.mxu0 %v1364
        %3745 = vmatpush.msra.mxu0 %v1362
        %3746 = vmatpush.msra.mxu0 %v1360
        %3747 = vmatpush.msra.mxu0 %v1358
        %3748 = vmatpush.msra.mxu0 %v1356
        %3749 = vmatpush.msra.mxu0 %v1354
        %3750 = vmatpush.msra.mxu0 %v1352
        %3751 = vmatpush.msra.mxu0 %v1350
        %3752 = vmatpush.msra.mxu0 %v1348
        %3753 = vmatpush.msra.mxu0 %v1346
        %3754 = vmatpush.msra.mxu0 %v1344
        %3755 = vmatpush.msra.mxu0 %v1342
        %3756 = vmatpush.msra.mxu0 %v1340
        %3757 = vmatmul.f32.gmra.mxu0 %v2999
        %v3758 = vpop.f32.mrf.mxu0
        %v3759 = vadd.f32 %v3739, %v3758
        %3760 = vdwg.mxu0
        %3761 = vmatpush.msra.mxu0 %v1402
        %3762 = vmatpush.msra.mxu0 %v1400
        %3763 = vmatpush.msra.mxu0 %v1398
        %3764 = vmatpush.msra.mxu0 %v1396
        %3765 = vmatpush.msra.mxu0 %v1394
        %3766 = vmatpush.msra.mxu0 %v1392
        %3767 = vmatpush.msra.mxu0 %v1390
        %3768 = vmatpush.msra.mxu0 %v1388
        %3769 = vmatpush.msra.mxu0 %v1386
        %3770 = vmatpush.msra.mxu0 %v1384
        %3771 = vmatpush.msra.mxu0 %v1382
        %3772 = vmatpush.msra.mxu0 %v1380
        %3773 = vmatpush.msra.mxu0 %v1378
        %3774 = vmatpush.msra.mxu0 %v1376
        %3775 = vmatpush.msra.mxu0 %v1374
        %3776 = vmatpush.msra.mxu0 %v1372
        %3777 = vmatmul.f32.gmra.mxu0 %v3000
        %v3778 = vpop.f32.mrf.mxu0
        %v3779 = vadd.f32 %v3759, %v3778
        %3780 = vdwg.mxu0
        %3781 = vmatpush.msra.mxu0 %v1434
        %3782 = vmatpush.msra.mxu0 %v1432
        %3783 = vmatpush.msra.mxu0 %v1430
        %3784 = vmatpush.msra.mxu0 %v1428
        %3785 = vmatpush.msra.mxu0 %v1426
        %3786 = vmatpush.msra.mxu0 %v1424
        %3787 = vmatpush.msra.mxu0 %v1422
        %3788 = vmatpush.msra.mxu0 %v1420
        %3789 = vmatpush.msra.mxu0 %v1418
        %3790 = vmatpush.msra.mxu0 %v1416
        %3791 = vmatpush.msra.mxu0 %v1414
        %3792 = vmatpush.msra.mxu0 %v1412
        %3793 = vmatpush.msra.mxu0 %v1410
        %3794 = vmatpush.msra.mxu0 %v1408
        %3795 = vmatpush.msra.mxu0 %v1406
        %3796 = vmatpush.msra.mxu0 %v1404
        %3797 = vmatmul.f32.gmra.mxu0 %v3003
        %v3798 = vpop.f32.mrf.mxu0
        %v3799 = vadd.f32 %v3779, %v3798
        %3800 = vdwg.mxu0
        %3801 = vmatpush.msra.mxu0 %v1466
        %3802 = vmatpush.msra.mxu0 %v1464
        %3803 = vmatpush.msra.mxu0 %v1462
        %3804 = vmatpush.msra.mxu0 %v1460
        %3805 = vmatpush.msra.mxu0 %v1458
        %3806 = vmatpush.msra.mxu0 %v1456
        %3807 = vmatpush.msra.mxu0 %v1454
        %3808 = vmatpush.msra.mxu0 %v1452
        %3809 = vmatpush.msra.mxu0 %v1450
        %3810 = vmatpush.msra.mxu0 %v1448
        %3811 = vmatpush.msra.mxu0 %v1446
        %3812 = vmatpush.msra.mxu0 %v1444
        %3813 = vmatpush.msra.mxu0 %v1442
        %3814 = vmatpush.msra.mxu0 %v1440
        %3815 = vmatpush.msra.mxu0 %v1438
        %3816 = vmatpush.msra.mxu0 %v1436
        %3817 = vmatmul.f32.gmra.mxu0 %v3004
        %v3818 = vpop.f32.mrf.mxu0
        %v3819 = vadd.f32 %v3799, %v3818
        %3820 = vdwg.mxu0
        %3821 = vmatpush.msra.mxu0 %v1498
        %3822 = vmatpush.msra.mxu0 %v1496
        %3823 = vmatpush.msra.mxu0 %v1494
        %3824 = vmatpush.msra.mxu0 %v1492
        %3825 = vmatpush.msra.mxu0 %v1490
        %3826 = vmatpush.msra.mxu0 %v1488
        %3827 = vmatpush.msra.mxu0 %v1486
        %3828 = vmatpush.msra.mxu0 %v1484
        %3829 = vmatpush.msra.mxu0 %v1482
        %3830 = vmatpush.msra.mxu0 %v1480
        %3831 = vmatpush.msra.mxu0 %v1478
        %3832 = vmatpush.msra.mxu0 %v1476
        %3833 = vmatpush.msra.mxu0 %v1474
        %3834 = vmatpush.msra.mxu0 %v1472
        %3835 = vmatpush.msra.mxu0 %v1470
        %3836 = vmatpush.msra.mxu0 %v1468
        %3837 = vmatmul.f32.gmra.mxu0 %v3005
        %v3838 = vpop.f32.mrf.mxu0
        %v3839 = vadd.f32 %v3819, %v3838
        %3840 = vdwg.mxu0
        %3841 = vmatpush.msra.mxu0 %v1530
        %3842 = vmatpush.msra.mxu0 %v1528
        %3843 = vmatpush.msra.mxu0 %v1526
        %3844 = vmatpush.msra.mxu0 %v1524
        %3845 = vmatpush.msra.mxu0 %v1522
        %3846 = vmatpush.msra.mxu0 %v1520
        %3847 = vmatpush.msra.mxu0 %v1518
        %3848 = vmatpush.msra.mxu0 %v1516
        %3849 = vmatpush.msra.mxu0 %v1514
        %3850 = vmatpush.msra.mxu0 %v1512
        %3851 = vmatpush.msra.mxu0 %v1510
        %3852 = vmatpush.msra.mxu0 %v1508
        %3853 = vmatpush.msra.mxu0 %v1506
        %3854 = vmatpush.msra.mxu0 %v1504
        %3855 = vmatpush.msra.mxu0 %v1502
        %3856 = vmatpush.msra.mxu0 %v1500
        %3857 = vmatmul.f32.gmra.mxu0 %v3006
        %v3858 = vpop.f32.mrf.mxu0
        %v3859 = vadd.f32 %v3839, %v3858
        %3860 = vdwg.mxu0
        %3861 = vmatpush.msra.mxu0 %v1562
        %3862 = vmatpush.msra.mxu0 %v1560
        %3863 = vmatpush.msra.mxu0 %v1558
        %3864 = vmatpush.msra.mxu0 %v1556
        %3865 = vmatpush.msra.mxu0 %v1554
        %3866 = vmatpush.msra.mxu0 %v1552
        %3867 = vmatpush.msra.mxu0 %v1550
        %3868 = vmatpush.msra.mxu0 %v1548
        %3869 = vmatpush.msra.mxu0 %v1546
        %3870 = vmatpush.msra.mxu0 %v1544
        %3871 = vmatpush.msra.mxu0 %v1542
        %3872 = vmatpush.msra.mxu0 %v1540
        %3873 = vmatpush.msra.mxu0 %v1538
        %3874 = vmatpush.msra.mxu0 %v1536
        %3875 = vmatpush.msra.mxu0 %v1534
        %3876 = vmatpush.msra.mxu0 %v1532
        %3877 = vmatmul.f32.gmra.mxu0 %v3007
        %v3878 = vpop.f32.mrf.mxu0
        %v3879 = vadd.f32 %v3859, %v3878
        %3880 = vdwg.mxu0
        %3881 = vmatpush.msra.mxu0 %v1594
        %3882 = vmatpush.msra.mxu0 %v1592
        %3883 = vmatpush.msra.mxu0 %v1590
        %3884 = vmatpush.msra.mxu0 %v1588
        %3885 = vmatpush.msra.mxu0 %v1586
        %3886 = vmatpush.msra.mxu0 %v1584
        %3887 = vmatpush.msra.mxu0 %v1582
        %3888 = vmatpush.msra.mxu0 %v1580
        %3889 = vmatpush.msra.mxu0 %v1578
        %3890 = vmatpush.msra.mxu0 %v1576
        %3891 = vmatpush.msra.mxu0 %v1574
        %3892 = vmatpush.msra.mxu0 %v1572
        %3893 = vmatpush.msra.mxu0 %v1570
        %3894 = vmatpush.msra.mxu0 %v1568
        %3895 = vmatpush.msra.mxu0 %v1566
        %3896 = vmatpush.msra.mxu0 %v1564
        %3897 = vmatmul.f32.gmra.mxu0 %v3008
        %v3898 = vpop.f32.mrf.mxu0
        %v3899 = vadd.f32 %v3879, %v3898
        %3900 = vdwg.mxu0
        %3901 = vmatpush.msra.mxu0 %v1626
        %3902 = vmatpush.msra.mxu0 %v1624
        %3903 = vmatpush.msra.mxu0 %v1622
        %3904 = vmatpush.msra.mxu0 %v1620
        %3905 = vmatpush.msra.mxu0 %v1618
        %3906 = vmatpush.msra.mxu0 %v1616
        %3907 = vmatpush.msra.mxu0 %v1614
        %3908 = vmatpush.msra.mxu0 %v1612
        %3909 = vmatpush.msra.mxu0 %v1610
        %3910 = vmatpush.msra.mxu0 %v1608
        %3911 = vmatpush.msra.mxu0 %v1606
        %3912 = vmatpush.msra.mxu0 %v1604
        %3913 = vmatpush.msra.mxu0 %v1602
        %3914 = vmatpush.msra.mxu0 %v1600
        %3915 = vmatpush.msra.mxu0 %v1598
        %3916 = vmatpush.msra.mxu0 %v1596
        %3917 = vmatmul.f32.gmra.mxu0 %v3009
        %v3918 = vpop.f32.mrf.mxu0
        %v3919 = vadd.f32 %v3899, %v3918
        %3920 = vdwg.mxu0
        %3921 = vmatpush.msra.mxu0 %v1658
        %3922 = vmatpush.msra.mxu0 %v1656
        %3923 = vmatpush.msra.mxu0 %v1654
        %3924 = vmatpush.msra.mxu0 %v1652
        %3925 = vmatpush.msra.mxu0 %v1650
        %3926 = vmatpush.msra.mxu0 %v1648
        %3927 = vmatpush.msra.mxu0 %v1646
        %3928 = vmatpush.msra.mxu0 %v1644
        %3929 = vmatpush.msra.mxu0 %v1642
        %3930 = vmatpush.msra.mxu0 %v1640
        %3931 = vmatpush.msra.mxu0 %v1638
        %3932 = vmatpush.msra.mxu0 %v1636
        %3933 = vmatpush.msra.mxu0 %v1634
        %3934 = vmatpush.msra.mxu0 %v1632
        %3935 = vmatpush.msra.mxu0 %v1630
        %3936 = vmatpush.msra.mxu0 %v1628
        %3937 = vmatmul.f32.gmra.mxu0 %v3010
        %v3938 = vpop.f32.mrf.mxu0
        %v3939 = vadd.f32 %v3919, %v3938
        %3940 = vdwg.mxu0
        %3941 = vmatpush.msra.mxu0 %v1690
        %3942 = vmatpush.msra.mxu0 %v1688
        %3943 = vmatpush.msra.mxu0 %v1686
        %3944 = vmatpush.msra.mxu0 %v1684
        %3945 = vmatpush.msra.mxu0 %v1682
        %3946 = vmatpush.msra.mxu0 %v1680
        %3947 = vmatpush.msra.mxu0 %v1678
        %3948 = vmatpush.msra.mxu0 %v1676
        %3949 = vmatpush.msra.mxu0 %v1674
        %3950 = vmatpush.msra.mxu0 %v1672
        %3951 = vmatpush.msra.mxu0 %v1670
        %3952 = vmatpush.msra.mxu0 %v1668
        %3953 = vmatpush.msra.mxu0 %v1666
        %3954 = vmatpush.msra.mxu0 %v1664
        %3955 = vmatpush.msra.mxu0 %v1662
        %3956 = vmatpush.msra.mxu0 %v1660
        %3957 = vmatmul.f32.gmra.mxu0 %v3013
        %v3958 = vpop.f32.mrf.mxu0
        %v3959 = vadd.f32 %v3939, %v3958
        %3960 = vdwg.mxu0
        %3961 = vmatpush.msra.mxu0 %v1722
        %3962 = vmatpush.msra.mxu0 %v1720
        %3963 = vmatpush.msra.mxu0 %v1718
        %3964 = vmatpush.msra.mxu0 %v1716
        %3965 = vmatpush.msra.mxu0 %v1714
        %3966 = vmatpush.msra.mxu0 %v1712
        %3967 = vmatpush.msra.mxu0 %v1710
        %3968 = vmatpush.msra.mxu0 %v1708
        %3969 = vmatpush.msra.mxu0 %v1706
        %3970 = vmatpush.msra.mxu0 %v1704
        %3971 = vmatpush.msra.mxu0 %v1702
        %3972 = vmatpush.msra.mxu0 %v1700
        %3973 = vmatpush.msra.mxu0 %v1698
        %3974 = vmatpush.msra.mxu0 %v1696
        %3975 = vmatpush.msra.mxu0 %v1694
        %3976 = vmatpush.msra.mxu0 %v1692
        %3977 = vmatmul.f32.gmra.mxu0 %v3014
        %v3978 = vpop.f32.mrf.mxu0
        %v3979 = vadd.f32 %v3959, %v3978
        %3980 = vdwg.mxu0
        %3981 = vmatpush.msra.mxu0 %v1754
        %3982 = vmatpush.msra.mxu0 %v1752
        %3983 = vmatpush.msra.mxu0 %v1750
        %3984 = vmatpush.msra.mxu0 %v1748
        %3985 = vmatpush.msra.mxu0 %v1746
        %3986 = vmatpush.msra.mxu0 %v1744
        %3987 = vmatpush.msra.mxu0 %v1742
        %3988 = vmatpush.msra.mxu0 %v1740
        %3989 = vmatpush.msra.mxu0 %v1738
        %3990 = vmatpush.msra.mxu0 %v1736
        %3991 = vmatpush.msra.mxu0 %v1734
        %3992 = vmatpush.msra.mxu0 %v1732
        %3993 = vmatpush.msra.mxu0 %v1730
        %3994 = vmatpush.msra.mxu0 %v1728
        %3995 = vmatpush.msra.mxu0 %v1726
        %3996 = vmatpush.msra.mxu0 %v1724
        %3997 = vmatmul.f32.gmra.mxu0 %v3015
        %v3998 = vpop.f32.mrf.mxu0
        %v3999 = vadd.f32 %v3979, %v3998
        %4000 = vdwg.mxu0
        %4001 = vmatpush.msra.mxu0 %v1786
        %4002 = vmatpush.msra.mxu0 %v1784
        %4003 = vmatpush.msra.mxu0 %v1782
        %4004 = vmatpush.msra.mxu0 %v1780
        %4005 = vmatpush.msra.mxu0 %v1778
        %4006 = vmatpush.msra.mxu0 %v1776
        %4007 = vmatpush.msra.mxu0 %v1774
        %4008 = vmatpush.msra.mxu0 %v1772
        %4009 = vmatpush.msra.mxu0 %v1770
        %4010 = vmatpush.msra.mxu0 %v1768
        %4011 = vmatpush.msra.mxu0 %v1766
        %4012 = vmatpush.msra.mxu0 %v1764
        %4013 = vmatpush.msra.mxu0 %v1762
        %4014 = vmatpush.msra.mxu0 %v1760
        %4015 = vmatpush.msra.mxu0 %v1758
        %4016 = vmatpush.msra.mxu0 %v1756
        %4017 = vmatmul.f32.gmra.mxu0 %v3016
        %v4018 = vpop.f32.mrf.mxu0
        %v4019 = vadd.f32 %v3999, %v4018
        %4020 = vdwg.mxu0
        %4021 = vmatpush.msra.mxu0 %v1818
        %4022 = vmatpush.msra.mxu0 %v1816
        %4023 = vmatpush.msra.mxu0 %v1814
        %4024 = vmatpush.msra.mxu0 %v1812
        %4025 = vmatpush.msra.mxu0 %v1810
        %4026 = vmatpush.msra.mxu0 %v1808
        %4027 = vmatpush.msra.mxu0 %v1806
        %4028 = vmatpush.msra.mxu0 %v1804
        %4029 = vmatpush.msra.mxu0 %v1802
        %4030 = vmatpush.msra.mxu0 %v1800
        %4031 = vmatpush.msra.mxu0 %v1798
        %4032 = vmatpush.msra.mxu0 %v1796
        %4033 = vmatpush.msra.mxu0 %v1794
        %4034 = vmatpush.msra.mxu0 %v1792
        %4035 = vmatpush.msra.mxu0 %v1790
        %4036 = vmatpush.msra.mxu0 %v1788
        %4037 = vmatmul.f32.gmra.mxu0 %v3017
        %v4038 = vpop.f32.mrf.mxu0
        %v4039 = vadd.f32 %v4019, %v4038
        %4040 = vdwg.mxu0
        %4041 = vmatpush.msra.mxu0 %v1850
        %4042 = vmatpush.msra.mxu0 %v1848
        %4043 = vmatpush.msra.mxu0 %v1846
        %4044 = vmatpush.msra.mxu0 %v1844
        %4045 = vmatpush.msra.mxu0 %v1842
        %4046 = vmatpush.msra.mxu0 %v1840
        %4047 = vmatpush.msra.mxu0 %v1838
        %4048 = vmatpush.msra.mxu0 %v1836
        %4049 = vmatpush.msra.mxu0 %v1834
        %4050 = vmatpush.msra.mxu0 %v1832
        %4051 = vmatpush.msra.mxu0 %v1830
        %4052 = vmatpush.msra.mxu0 %v1828
        %4053 = vmatpush.msra.mxu0 %v1826
        %4054 = vmatpush.msra.mxu0 %v1824
        %4055 = vmatpush.msra.mxu0 %v1822
        %4056 = vmatpush.msra.mxu0 %v1820
        %4057 = vmatmul.f32.gmra.mxu0 %v3018
        %v4058 = vpop.f32.mrf.mxu0
        %v4059 = vadd.f32 %v4039, %v4058
        %4060 = vdwg.mxu0
        %4061 = vmatpush.msra.mxu0 %v1882
        %4062 = vmatpush.msra.mxu0 %v1880
        %4063 = vmatpush.msra.mxu0 %v1878
        %4064 = vmatpush.msra.mxu0 %v1876
        %4065 = vmatpush.msra.mxu0 %v1874
        %4066 = vmatpush.msra.mxu0 %v1872
        %4067 = vmatpush.msra.mxu0 %v1870
        %4068 = vmatpush.msra.mxu0 %v1868
        %4069 = vmatpush.msra.mxu0 %v1866
        %4070 = vmatpush.msra.mxu0 %v1864
        %4071 = vmatpush.msra.mxu0 %v1862
        %4072 = vmatpush.msra.mxu0 %v1860
        %4073 = vmatpush.msra.mxu0 %v1858
        %4074 = vmatpush.msra.mxu0 %v1856
        %4075 = vmatpush.msra.mxu0 %v1854
        %4076 = vmatpush.msra.mxu0 %v1852
        %4077 = vmatmul.f32.gmra.mxu0 %v3019
        %v4078 = vpop.f32.mrf.mxu0
        %v4079 = vadd.f32 %v4059, %v4078
        %4080 = vdwg.mxu0
        %4081 = vmatpush.msra.mxu0 %v1914
        %4082 = vmatpush.msra.mxu0 %v1912
        %4083 = vmatpush.msra.mxu0 %v1910
        %4084 = vmatpush.msra.mxu0 %v1908
        %4085 = vmatpush.msra.mxu0 %v1906
        %4086 = vmatpush.msra.mxu0 %v1904
        %4087 = vmatpush.msra.mxu0 %v1902
        %4088 = vmatpush.msra.mxu0 %v1900
        %4089 = vmatpush.msra.mxu0 %v1898
        %4090 = vmatpush.msra.mxu0 %v1896
        %4091 = vmatpush.msra.mxu0 %v1894
        %4092 = vmatpush.msra.mxu0 %v1892
        %4093 = vmatpush.msra.mxu0 %v1890
        %4094 = vmatpush.msra.mxu0 %v1888
        %4095 = vmatpush.msra.mxu0 %v1886
        %4096 = vmatpush.msra.mxu0 %v1884
        %4097 = vmatmul.f32.gmra.mxu0 %v3020
        %v4098 = vpop.f32.mrf.mxu0
        %v4099 = vadd.f32 %v4079, %v4098
        %4100 = vdwg.mxu0
        %4101 = vmatpush.msra.mxu0 %v1946
        %4102 = vmatpush.msra.mxu0 %v1944
        %4103 = vmatpush.msra.mxu0 %v1942
        %4104 = vmatpush.msra.mxu0 %v1940
        %4105 = vmatpush.msra.mxu0 %v1938
        %4106 = vmatpush.msra.mxu0 %v1936
        %4107 = vmatpush.msra.mxu0 %v1934
        %4108 = vmatpush.msra.mxu0 %v1932
        %4109 = vmatpush.msra.mxu0 %v1930
        %4110 = vmatpush.msra.mxu0 %v1928
        %4111 = vmatpush.msra.mxu0 %v1926
        %4112 = vmatpush.msra.mxu0 %v1924
        %4113 = vmatpush.msra.mxu0 %v1922
        %4114 = vmatpush.msra.mxu0 %v1920
        %4115 = vmatpush.msra.mxu0 %v1918
        %4116 = vmatpush.msra.mxu0 %v1916
        %4117 = vmatmul.f32.gmra.mxu0 %v3023
        %v4118 = vpop.f32.mrf.mxu0
        %v4119 = vadd.f32 %v4099, %v4118
        %4120 = vdwg.mxu0
        %4121 = vmatpush.msra.mxu0 %v1978
        %4122 = vmatpush.msra.mxu0 %v1976
        %4123 = vmatpush.msra.mxu0 %v1974
        %4124 = vmatpush.msra.mxu0 %v1972
        %4125 = vmatpush.msra.mxu0 %v1970
        %4126 = vmatpush.msra.mxu0 %v1968
        %4127 = vmatpush.msra.mxu0 %v1966
        %4128 = vmatpush.msra.mxu0 %v1964
        %4129 = vmatpush.msra.mxu0 %v1962
        %4130 = vmatpush.msra.mxu0 %v1960
        %4131 = vmatpush.msra.mxu0 %v1958
        %4132 = vmatpush.msra.mxu0 %v1956
        %4133 = vmatpush.msra.mxu0 %v1954
        %4134 = vmatpush.msra.mxu0 %v1952
        %4135 = vmatpush.msra.mxu0 %v1950
        %4136 = vmatpush.msra.mxu0 %v1948
        %4137 = vmatmul.f32.gmra.mxu0 %v3024
        %v4138 = vpop.f32.mrf.mxu0
        %v4139 = vadd.f32 %v4119, %v4138
        %4140 = vdwg.mxu0
        %4141 = vmatpush.msra.mxu0 %v2010
        %4142 = vmatpush.msra.mxu0 %v2008
        %4143 = vmatpush.msra.mxu0 %v2006
        %4144 = vmatpush.msra.mxu0 %v2004
        %4145 = vmatpush.msra.mxu0 %v2002
        %4146 = vmatpush.msra.mxu0 %v2000
        %4147 = vmatpush.msra.mxu0 %v1998
        %4148 = vmatpush.msra.mxu0 %v1996
        %4149 = vmatpush.msra.mxu0 %v1994
        %4150 = vmatpush.msra.mxu0 %v1992
        %4151 = vmatpush.msra.mxu0 %v1990
        %4152 = vmatpush.msra.mxu0 %v1988
        %4153 = vmatpush.msra.mxu0 %v1986
        %4154 = vmatpush.msra.mxu0 %v1984
        %4155 = vmatpush.msra.mxu0 %v1982
        %4156 = vmatpush.msra.mxu0 %v1980
        %4157 = vmatmul.f32.gmra.mxu0 %v3025
        %v4158 = vpop.f32.mrf.mxu0
        %v4159 = vadd.f32 %v4139, %v4158
        %4160 = vdwg.mxu0
        %4161 = vmatpush.msra.mxu0 %v2042
        %4162 = vmatpush.msra.mxu0 %v2040
        %4163 = vmatpush.msra.mxu0 %v2038
        %4164 = vmatpush.msra.mxu0 %v2036
        %4165 = vmatpush.msra.mxu0 %v2034
        %4166 = vmatpush.msra.mxu0 %v2032
        %4167 = vmatpush.msra.mxu0 %v2030
        %4168 = vmatpush.msra.mxu0 %v2028
        %4169 = vmatpush.msra.mxu0 %v2026
        %4170 = vmatpush.msra.mxu0 %v2024
        %4171 = vmatpush.msra.mxu0 %v2022
        %4172 = vmatpush.msra.mxu0 %v2020
        %4173 = vmatpush.msra.mxu0 %v2018
        %4174 = vmatpush.msra.mxu0 %v2016
        %4175 = vmatpush.msra.mxu0 %v2014
        %4176 = vmatpush.msra.mxu0 %v2012
        %4177 = vmatmul.f32.gmra.mxu0 %v3026
        %v4178 = vpop.f32.mrf.mxu0
        %v4179 = vadd.f32 %v4159, %v4178
        %4180 = vdwg.mxu0
        %4181 = vmatpush.msra.mxu0 %v2074
        %4182 = vmatpush.msra.mxu0 %v2072
        %4183 = vmatpush.msra.mxu0 %v2070
        %4184 = vmatpush.msra.mxu0 %v2068
        %4185 = vmatpush.msra.mxu0 %v2066
        %4186 = vmatpush.msra.mxu0 %v2064
        %4187 = vmatpush.msra.mxu0 %v2062
        %4188 = vmatpush.msra.mxu0 %v2060
        %4189 = vmatpush.msra.mxu0 %v2058
        %4190 = vmatpush.msra.mxu0 %v2056
        %4191 = vmatpush.msra.mxu0 %v2054
        %4192 = vmatpush.msra.mxu0 %v2052
        %4193 = vmatpush.msra.mxu0 %v2050
        %4194 = vmatpush.msra.mxu0 %v2048
        %4195 = vmatpush.msra.mxu0 %v2046
        %4196 = vmatpush.msra.mxu0 %v2044
        %4197 = vmatmul.f32.gmra.mxu0 %v3027
        %v4198 = vpop.f32.mrf.mxu0
        %v4199 = vadd.f32 %v4179, %v4198
        %4200 = vdwg.mxu0
        %4201 = vmatpush.msra.mxu0 %v2106
        %4202 = vmatpush.msra.mxu0 %v2104
        %4203 = vmatpush.msra.mxu0 %v2102
        %4204 = vmatpush.msra.mxu0 %v2100
        %4205 = vmatpush.msra.mxu0 %v2098
        %4206 = vmatpush.msra.mxu0 %v2096
        %4207 = vmatpush.msra.mxu0 %v2094
        %4208 = vmatpush.msra.mxu0 %v2092
        %4209 = vmatpush.msra.mxu0 %v2090
        %4210 = vmatpush.msra.mxu0 %v2088
        %4211 = vmatpush.msra.mxu0 %v2086
        %4212 = vmatpush.msra.mxu0 %v2084
        %4213 = vmatpush.msra.mxu0 %v2082
        %4214 = vmatpush.msra.mxu0 %v2080
        %4215 = vmatpush.msra.mxu0 %v2078
        %4216 = vmatpush.msra.mxu0 %v2076
        %4217 = vmatmul.f32.gmra.mxu0 %v3028
        %v4218 = vpop.f32.mrf.mxu0
        %v4219 = vadd.f32 %v4199, %v4218
        %4220 = vdwg.mxu0
        %4221 = vmatpush.msra.mxu0 %v2138
        %4222 = vmatpush.msra.mxu0 %v2136
        %4223 = vmatpush.msra.mxu0 %v2134
        %4224 = vmatpush.msra.mxu0 %v2132
        %4225 = vmatpush.msra.mxu0 %v2130
        %4226 = vmatpush.msra.mxu0 %v2128
        %4227 = vmatpush.msra.mxu0 %v2126
        %4228 = vmatpush.msra.mxu0 %v2124
        %4229 = vmatpush.msra.mxu0 %v2122
        %4230 = vmatpush.msra.mxu0 %v2120
        %4231 = vmatpush.msra.mxu0 %v2118
        %4232 = vmatpush.msra.mxu0 %v2116
        %4233 = vmatpush.msra.mxu0 %v2114
        %4234 = vmatpush.msra.mxu0 %v2112
        %4235 = vmatpush.msra.mxu0 %v2110
        %4236 = vmatpush.msra.mxu0 %v2108
        %4237 = vmatmul.f32.gmra.mxu0 %v3029
        %v4238 = vpop.f32.mrf.mxu0
        %v4239 = vadd.f32 %v4219, %v4238
        %4240 = vdwg.mxu0
        %4241 = vmatpush.msra.mxu0 %v2170
        %4242 = vmatpush.msra.mxu0 %v2168
        %4243 = vmatpush.msra.mxu0 %v2166
        %4244 = vmatpush.msra.mxu0 %v2164
        %4245 = vmatpush.msra.mxu0 %v2162
        %4246 = vmatpush.msra.mxu0 %v2160
        %4247 = vmatpush.msra.mxu0 %v2158
        %4248 = vmatpush.msra.mxu0 %v2156
        %4249 = vmatpush.msra.mxu0 %v2154
        %4250 = vmatpush.msra.mxu0 %v2152
        %4251 = vmatpush.msra.mxu0 %v2150
        %4252 = vmatpush.msra.mxu0 %v2148
        %4253 = vmatpush.msra.mxu0 %v2146
        %4254 = vmatpush.msra.mxu0 %v2144
        %4255 = vmatpush.msra.mxu0 %v2142
        %4256 = vmatpush.msra.mxu0 %v2140
        %4257 = vmatmul.f32.gmra.mxu0 %v3030
        %v4258 = vpop.f32.mrf.mxu0
        %v4259 = vadd.f32 %v4239, %v4258
        %4260 = vdwg.mxu0
        %4261 = vmatpush.msra.mxu0 %v2202
        %4262 = vmatpush.msra.mxu0 %v2200
        %4263 = vmatpush.msra.mxu0 %v2198
        %4264 = vmatpush.msra.mxu0 %v2196
        %4265 = vmatpush.msra.mxu0 %v2194
        %4266 = vmatpush.msra.mxu0 %v2192
        %4267 = vmatpush.msra.mxu0 %v2190
        %4268 = vmatpush.msra.mxu0 %v2188
        %4269 = vmatpush.msra.mxu0 %v2186
        %4270 = vmatpush.msra.mxu0 %v2184
        %4271 = vmatpush.msra.mxu0 %v2182
        %4272 = vmatpush.msra.mxu0 %v2180
        %4273 = vmatpush.msra.mxu0 %v2178
        %4274 = vmatpush.msra.mxu0 %v2176
        %4275 = vmatpush.msra.mxu0 %v2174
        %4276 = vmatpush.msra.mxu0 %v2172
        %4277 = vmatmul.f32.gmra.mxu0 %v3033
        %v4278 = vpop.f32.mrf.mxu0
        %v4279 = vadd.f32 %v4259, %v4278
        %4280 = vdwg.mxu0
        %4281 = vmatpush.msra.mxu0 %v2234
        %4282 = vmatpush.msra.mxu0 %v2232
        %4283 = vmatpush.msra.mxu0 %v2230
        %4284 = vmatpush.msra.mxu0 %v2228
        %4285 = vmatpush.msra.mxu0 %v2226
        %4286 = vmatpush.msra.mxu0 %v2224
        %4287 = vmatpush.msra.mxu0 %v2222
        %4288 = vmatpush.msra.mxu0 %v2220
        %4289 = vmatpush.msra.mxu0 %v2218
        %4290 = vmatpush.msra.mxu0 %v2216
        %4291 = vmatpush.msra.mxu0 %v2214
        %4292 = vmatpush.msra.mxu0 %v2212
        %4293 = vmatpush.msra.mxu0 %v2210
        %4294 = vmatpush.msra.mxu0 %v2208
        %4295 = vmatpush.msra.mxu0 %v2206
        %4296 = vmatpush.msra.mxu0 %v2204
        %4297 = vmatmul.f32.gmra.mxu0 %v3034
        %v4298 = vpop.f32.mrf.mxu0
        %v4299 = vadd.f32 %v4279, %v4298
        %4300 = vdwg.mxu0
        %4301 = vmatpush.msra.mxu0 %v2266
        %4302 = vmatpush.msra.mxu0 %v2264
        %4303 = vmatpush.msra.mxu0 %v2262
        %4304 = vmatpush.msra.mxu0 %v2260
        %4305 = vmatpush.msra.mxu0 %v2258
        %4306 = vmatpush.msra.mxu0 %v2256
        %4307 = vmatpush.msra.mxu0 %v2254
        %4308 = vmatpush.msra.mxu0 %v2252
        %4309 = vmatpush.msra.mxu0 %v2250
        %4310 = vmatpush.msra.mxu0 %v2248
        %4311 = vmatpush.msra.mxu0 %v2246
        %4312 = vmatpush.msra.mxu0 %v2244
        %4313 = vmatpush.msra.mxu0 %v2242
        %4314 = vmatpush.msra.mxu0 %v2240
        %4315 = vmatpush.msra.mxu0 %v2238
        %4316 = vmatpush.msra.mxu0 %v2236
        %4317 = vmatmul.f32.gmra.mxu0 %v3035
        %v4318 = vpop.f32.mrf.mxu0
        %v4319 = vadd.f32 %v4299, %v4318
        %4320 = vdwg.mxu0
        %4321 = vmatpush.msra.mxu0 %v2298
        %4322 = vmatpush.msra.mxu0 %v2296
        %4323 = vmatpush.msra.mxu0 %v2294
        %4324 = vmatpush.msra.mxu0 %v2292
        %4325 = vmatpush.msra.mxu0 %v2290
        %4326 = vmatpush.msra.mxu0 %v2288
        %4327 = vmatpush.msra.mxu0 %v2286
        %4328 = vmatpush.msra.mxu0 %v2284
        %4329 = vmatpush.msra.mxu0 %v2282
        %4330 = vmatpush.msra.mxu0 %v2280
        %4331 = vmatpush.msra.mxu0 %v2278
        %4332 = vmatpush.msra.mxu0 %v2276
        %4333 = vmatpush.msra.mxu0 %v2274
        %4334 = vmatpush.msra.mxu0 %v2272
        %4335 = vmatpush.msra.mxu0 %v2270
        %4336 = vmatpush.msra.mxu0 %v2268
        %4337 = vmatmul.f32.gmra.mxu0 %v3036
        %v4338 = vpop.f32.mrf.mxu0
        %v4339 = vadd.f32 %v4319, %v4338
        %4340 = vdwg.mxu0
        %4341 = vmatpush.msra.mxu0 %v2330
        %4342 = vmatpush.msra.mxu0 %v2328
        %4343 = vmatpush.msra.mxu0 %v2326
        %4344 = vmatpush.msra.mxu0 %v2324
        %4345 = vmatpush.msra.mxu0 %v2322
        %4346 = vmatpush.msra.mxu0 %v2320
        %4347 = vmatpush.msra.mxu0 %v2318
        %4348 = vmatpush.msra.mxu0 %v2316
        %4349 = vmatpush.msra.mxu0 %v2314
        %4350 = vmatpush.msra.mxu0 %v2312
        %4351 = vmatpush.msra.mxu0 %v2310
        %4352 = vmatpush.msra.mxu0 %v2308
        %4353 = vmatpush.msra.mxu0 %v2306
        %4354 = vmatpush.msra.mxu0 %v2304
        %4355 = vmatpush.msra.mxu0 %v2302
        %4356 = vmatpush.msra.mxu0 %v2300
        %4357 = vmatmul.f32.gmra.mxu0 %v3037
        %v4358 = vpop.f32.mrf.mxu0
        %v4359 = vadd.f32 %v4339, %v4358
        %4360 = vdwg.mxu0
        %4361 = vmatpush.msra.mxu0 %v2362
        %4362 = vmatpush.msra.mxu0 %v2360
        %4363 = vmatpush.msra.mxu0 %v2358
        %4364 = vmatpush.msra.mxu0 %v2356
        %4365 = vmatpush.msra.mxu0 %v2354
        %4366 = vmatpush.msra.mxu0 %v2352
        %4367 = vmatpush.msra.mxu0 %v2350
        %4368 = vmatpush.msra.mxu0 %v2348
        %4369 = vmatpush.msra.mxu0 %v2346
        %4370 = vmatpush.msra.mxu0 %v2344
        %4371 = vmatpush.msra.mxu0 %v2342
        %4372 = vmatpush.msra.mxu0 %v2340
        %4373 = vmatpush.msra.mxu0 %v2338
        %4374 = vmatpush.msra.mxu0 %v2336
        %4375 = vmatpush.msra.mxu0 %v2334
        %4376 = vmatpush.msra.mxu0 %v2332
        %4377 = vmatmul.f32.gmra.mxu0 %v3038
        %v4378 = vpop.f32.mrf.mxu0
        %v4379 = vadd.f32 %v4359, %v4378
        %4380 = vdwg.mxu0
        %4381 = vmatpush.msra.mxu0 %v2394
        %4382 = vmatpush.msra.mxu0 %v2392
        %4383 = vmatpush.msra.mxu0 %v2390
        %4384 = vmatpush.msra.mxu0 %v2388
        %4385 = vmatpush.msra.mxu0 %v2386
        %4386 = vmatpush.msra.mxu0 %v2384
        %4387 = vmatpush.msra.mxu0 %v2382
        %4388 = vmatpush.msra.mxu0 %v2380
        %4389 = vmatpush.msra.mxu0 %v2378
        %4390 = vmatpush.msra.mxu0 %v2376
        %4391 = vmatpush.msra.mxu0 %v2374
        %4392 = vmatpush.msra.mxu0 %v2372
        %4393 = vmatpush.msra.mxu0 %v2370
        %4394 = vmatpush.msra.mxu0 %v2368
        %4395 = vmatpush.msra.mxu0 %v2366
        %4396 = vmatpush.msra.mxu0 %v2364
        %4397 = vmatmul.f32.gmra.mxu0 %v3039
        %v4398 = vpop.f32.mrf.mxu0
        %v4399 = vadd.f32 %v4379, %v4398
        %4400 = vdwg.mxu0
        %4401 = vmatpush.msra.mxu0 %v2426
        %4402 = vmatpush.msra.mxu0 %v2424
        %4403 = vmatpush.msra.mxu0 %v2422
        %4404 = vmatpush.msra.mxu0 %v2420
        %4405 = vmatpush.msra.mxu0 %v2418
        %4406 = vmatpush.msra.mxu0 %v2416
        %4407 = vmatpush.msra.mxu0 %v2414
        %4408 = vmatpush.msra.mxu0 %v2412
        %4409 = vmatpush.msra.mxu0 %v2410
        %4410 = vmatpush.msra.mxu0 %v2408
        %4411 = vmatpush.msra.mxu0 %v2406
        %4412 = vmatpush.msra.mxu0 %v2404
        %4413 = vmatpush.msra.mxu0 %v2402
        %4414 = vmatpush.msra.mxu0 %v2400
        %4415 = vmatpush.msra.mxu0 %v2398
        %4416 = vmatpush.msra.mxu0 %v2396
        %4417 = vmatmul.f32.gmra.mxu0 %v3040
        %v4418 = vpop.f32.mrf.mxu0
        %v4419 = vadd.f32 %v4399, %v4418
        %4420 = vdwg.mxu0
        %4421 = vmatpush.msra.mxu0 %v2458
        %4422 = vmatpush.msra.mxu0 %v2456
        %4423 = vmatpush.msra.mxu0 %v2454
        %4424 = vmatpush.msra.mxu0 %v2452
        %4425 = vmatpush.msra.mxu0 %v2450
        %4426 = vmatpush.msra.mxu0 %v2448
        %4427 = vmatpush.msra.mxu0 %v2446
        %4428 = vmatpush.msra.mxu0 %v2444
        %4429 = vmatpush.msra.mxu0 %v2442
        %4430 = vmatpush.msra.mxu0 %v2440
        %4431 = vmatpush.msra.mxu0 %v2438
        %4432 = vmatpush.msra.mxu0 %v2436
        %4433 = vmatpush.msra.mxu0 %v2434
        %4434 = vmatpush.msra.mxu0 %v2432
        %4435 = vmatpush.msra.mxu0 %v2430
        %4436 = vmatpush.msra.mxu0 %v2428
        %4437 = vmatmul.f32.gmra.mxu0 %v3043
        %v4438 = vpop.f32.mrf.mxu0
        %v4439 = vadd.f32 %v4419, %v4438
        %4440 = vdwg.mxu0
        %4441 = vmatpush.msra.mxu0 %v2490
        %4442 = vmatpush.msra.mxu0 %v2488
        %4443 = vmatpush.msra.mxu0 %v2486
        %4444 = vmatpush.msra.mxu0 %v2484
        %4445 = vmatpush.msra.mxu0 %v2482
        %4446 = vmatpush.msra.mxu0 %v2480
        %4447 = vmatpush.msra.mxu0 %v2478
        %4448 = vmatpush.msra.mxu0 %v2476
        %4449 = vmatpush.msra.mxu0 %v2474
        %4450 = vmatpush.msra.mxu0 %v2472
        %4451 = vmatpush.msra.mxu0 %v2470
        %4452 = vmatpush.msra.mxu0 %v2468
        %4453 = vmatpush.msra.mxu0 %v2466
        %4454 = vmatpush.msra.mxu0 %v2464
        %4455 = vmatpush.msra.mxu0 %v2462
        %4456 = vmatpush.msra.mxu0 %v2460
        %4457 = vmatmul.f32.gmra.mxu0 %v3044
        %v4458 = vpop.f32.mrf.mxu0
        %v4459 = vadd.f32 %v4439, %v4458
        %4460 = vdwg.mxu0
        %4461 = vmatpush.msra.mxu0 %v2522
        %4462 = vmatpush.msra.mxu0 %v2520
        %4463 = vmatpush.msra.mxu0 %v2518
        %4464 = vmatpush.msra.mxu0 %v2516
        %4465 = vmatpush.msra.mxu0 %v2514
        %4466 = vmatpush.msra.mxu0 %v2512
        %4467 = vmatpush.msra.mxu0 %v2510
        %4468 = vmatpush.msra.mxu0 %v2508
        %4469 = vmatpush.msra.mxu0 %v2506
        %4470 = vmatpush.msra.mxu0 %v2504
        %4471 = vmatpush.msra.mxu0 %v2502
        %4472 = vmatpush.msra.mxu0 %v2500
        %4473 = vmatpush.msra.mxu0 %v2498
        %4474 = vmatpush.msra.mxu0 %v2496
        %4475 = vmatpush.msra.mxu0 %v2494
        %4476 = vmatpush.msra.mxu0 %v2492
        %4477 = vmatmul.f32.gmra.mxu0 %v3045
        %v4478 = vpop.f32.mrf.mxu0
        %v4479 = vadd.f32 %v4459, %v4478
        %4480 = vdwg.mxu0
        %4481 = vmatpush.msra.mxu0 %v2554
        %4482 = vmatpush.msra.mxu0 %v2552
        %4483 = vmatpush.msra.mxu0 %v2550
        %4484 = vmatpush.msra.mxu0 %v2548
        %4485 = vmatpush.msra.mxu0 %v2546
        %4486 = vmatpush.msra.mxu0 %v2544
        %4487 = vmatpush.msra.mxu0 %v2542
        %4488 = vmatpush.msra.mxu0 %v2540
        %4489 = vmatpush.msra.mxu0 %v2538
        %4490 = vmatpush.msra.mxu0 %v2536
        %4491 = vmatpush.msra.mxu0 %v2534
        %4492 = vmatpush.msra.mxu0 %v2532
        %4493 = vmatpush.msra.mxu0 %v2530
        %4494 = vmatpush.msra.mxu0 %v2528
        %4495 = vmatpush.msra.mxu0 %v2526
        %4496 = vmatpush.msra.mxu0 %v2524
        %4497 = vmatmul.f32.gmra.mxu0 %v3046
        %v4498 = vpop.f32.mrf.mxu0
        %v4499 = vadd.f32 %v4479, %v4498
        %4500 = vdwg.mxu0
        %4501 = vmatpush.msra.mxu0 %v2586
        %4502 = vmatpush.msra.mxu0 %v2584
        %4503 = vmatpush.msra.mxu0 %v2582
        %4504 = vmatpush.msra.mxu0 %v2580
        %4505 = vmatpush.msra.mxu0 %v2578
        %4506 = vmatpush.msra.mxu0 %v2576
        %4507 = vmatpush.msra.mxu0 %v2574
        %4508 = vmatpush.msra.mxu0 %v2572
        %4509 = vmatpush.msra.mxu0 %v2570
        %4510 = vmatpush.msra.mxu0 %v2568
        %4511 = vmatpush.msra.mxu0 %v2566
        %4512 = vmatpush.msra.mxu0 %v2564
        %4513 = vmatpush.msra.mxu0 %v2562
        %4514 = vmatpush.msra.mxu0 %v2560
        %4515 = vmatpush.msra.mxu0 %v2558
        %4516 = vmatpush.msra.mxu0 %v2556
        %4517 = vmatmul.f32.gmra.mxu0 %v3047
        %v4518 = vpop.f32.mrf.mxu0
        %v4519 = vadd.f32 %v4499, %v4518
        %4520 = vdwg.mxu0
        %4521 = vmatpush.msra.mxu0 %v2618
        %4522 = vmatpush.msra.mxu0 %v2616
        %4523 = vmatpush.msra.mxu0 %v2614
        %4524 = vmatpush.msra.mxu0 %v2612
        %4525 = vmatpush.msra.mxu0 %v2610
        %4526 = vmatpush.msra.mxu0 %v2608
        %4527 = vmatpush.msra.mxu0 %v2606
        %4528 = vmatpush.msra.mxu0 %v2604
        %4529 = vmatpush.msra.mxu0 %v2602
        %4530 = vmatpush.msra.mxu0 %v2600
        %4531 = vmatpush.msra.mxu0 %v2598
        %4532 = vmatpush.msra.mxu0 %v2596
        %4533 = vmatpush.msra.mxu0 %v2594
        %4534 = vmatpush.msra.mxu0 %v2592
        %4535 = vmatpush.msra.mxu0 %v2590
        %4536 = vmatpush.msra.mxu0 %v2588
        %4537 = vmatmul.f32.gmra.mxu0 %v3048
        %v4538 = vpop.f32.mrf.mxu0
        %v4539 = vadd.f32 %v4519, %v4538
        %4540 = vdwg.mxu0
        %4541 = vmatpush.msra.mxu0 %v2650
        %4542 = vmatpush.msra.mxu0 %v2648
        %4543 = vmatpush.msra.mxu0 %v2646
        %4544 = vmatpush.msra.mxu0 %v2644
        %4545 = vmatpush.msra.mxu0 %v2642
        %4546 = vmatpush.msra.mxu0 %v2640
        %4547 = vmatpush.msra.mxu0 %v2638
        %4548 = vmatpush.msra.mxu0 %v2636
        %4549 = vmatpush.msra.mxu0 %v2634
        %4550 = vmatpush.msra.mxu0 %v2632
        %4551 = vmatpush.msra.mxu0 %v2630
        %4552 = vmatpush.msra.mxu0 %v2628
        %4553 = vmatpush.msra.mxu0 %v2626
        %4554 = vmatpush.msra.mxu0 %v2624
        %4555 = vmatpush.msra.mxu0 %v2622
        %4556 = vmatpush.msra.mxu0 %v2620
        %4557 = vmatmul.f32.gmra.mxu0 %v3049
        %v4558 = vpop.f32.mrf.mxu0
        %v4559 = vadd.f32 %v4539, %v4558
        %4560 = vdwg.mxu0
        %4561 = vmatpush.msra.mxu0 %v2682
        %4562 = vmatpush.msra.mxu0 %v2680
        %4563 = vmatpush.msra.mxu0 %v2678
        %4564 = vmatpush.msra.mxu0 %v2676
        %4565 = vmatpush.msra.mxu0 %v2674
        %4566 = vmatpush.msra.mxu0 %v2672
        %4567 = vmatpush.msra.mxu0 %v2670
        %4568 = vmatpush.msra.mxu0 %v2668
        %4569 = vmatpush.msra.mxu0 %v2666
        %4570 = vmatpush.msra.mxu0 %v2664
        %4571 = vmatpush.msra.mxu0 %v2662
        %4572 = vmatpush.msra.mxu0 %v2660
        %4573 = vmatpush.msra.mxu0 %v2658
        %4574 = vmatpush.msra.mxu0 %v2656
        %4575 = vmatpush.msra.mxu0 %v2654
        %4576 = vmatpush.msra.mxu0 %v2652
        %4577 = vmatmul.f32.gmra.mxu0 %v3050
        %v4578 = vpop.f32.mrf.mxu0
        %v4579 = vadd.f32 %v4559, %v4578
        %4580 = vdwg.mxu0
        %4581 = vmatpush.msra.mxu0 %v2714
        %4582 = vmatpush.msra.mxu0 %v2712
        %4583 = vmatpush.msra.mxu0 %v2710
        %4584 = vmatpush.msra.mxu0 %v2708
        %4585 = vmatpush.msra.mxu0 %v2706
        %4586 = vmatpush.msra.mxu0 %v2704
        %4587 = vmatpush.msra.mxu0 %v2702
        %4588 = vmatpush.msra.mxu0 %v2700
        %4589 = vmatpush.msra.mxu0 %v2698
        %4590 = vmatpush.msra.mxu0 %v2696
        %4591 = vmatpush.msra.mxu0 %v2694
        %4592 = vmatpush.msra.mxu0 %v2692
        %4593 = vmatpush.msra.mxu0 %v2690
        %4594 = vmatpush.msra.mxu0 %v2688
        %4595 = vmatpush.msra.mxu0 %v2686
        %4596 = vmatpush.msra.mxu0 %v2684
        %4597 = vmatmul.f32.gmra.mxu0 %v3053
        %v4598 = vpop.f32.mrf.mxu0
        %v4599 = vadd.f32 %v4579, %v4598
        %4600 = vdwg.mxu0
        %4601 = vmatpush.msra.mxu0 %v2746
        %4602 = vmatpush.msra.mxu0 %v2744
        %4603 = vmatpush.msra.mxu0 %v2742
        %4604 = vmatpush.msra.mxu0 %v2740
        %4605 = vmatpush.msra.mxu0 %v2738
        %4606 = vmatpush.msra.mxu0 %v2736
        %4607 = vmatpush.msra.mxu0 %v2734
        %4608 = vmatpush.msra.mxu0 %v2732
        %4609 = vmatpush.msra.mxu0 %v2730
        %4610 = vmatpush.msra.mxu0 %v2728
        %4611 = vmatpush.msra.mxu0 %v2726
        %4612 = vmatpush.msra.mxu0 %v2724
        %4613 = vmatpush.msra.mxu0 %v2722
        %4614 = vmatpush.msra.mxu0 %v2720
        %4615 = vmatpush.msra.mxu0 %v2718
        %4616 = vmatpush.msra.mxu0 %v2716
        %4617 = vmatmul.f32.gmra.mxu0 %v3054
        %v4618 = vpop.f32.mrf.mxu0
        %v4619 = vadd.f32 %v4599, %v4618
        %4620 = vdwg.mxu0
        %4621 = vmatpush.msra.mxu0 %v2778
        %4622 = vmatpush.msra.mxu0 %v2776
        %4623 = vmatpush.msra.mxu0 %v2774
        %4624 = vmatpush.msra.mxu0 %v2772
        %4625 = vmatpush.msra.mxu0 %v2770
        %4626 = vmatpush.msra.mxu0 %v2768
        %4627 = vmatpush.msra.mxu0 %v2766
        %4628 = vmatpush.msra.mxu0 %v2764
        %4629 = vmatpush.msra.mxu0 %v2762
        %4630 = vmatpush.msra.mxu0 %v2760
        %4631 = vmatpush.msra.mxu0 %v2758
        %4632 = vmatpush.msra.mxu0 %v2756
        %4633 = vmatpush.msra.mxu0 %v2754
        %4634 = vmatpush.msra.mxu0 %v2752
        %4635 = vmatpush.msra.mxu0 %v2750
        %4636 = vmatpush.msra.mxu0 %v2748
        %4637 = vmatmul.f32.gmra.mxu0 %v3055
        %v4638 = vpop.f32.mrf.mxu0
        %v4639 = vadd.f32 %v4619, %v4638
        %4640 = vdwg.mxu0
        %4641 = vmatpush.msra.mxu0 %v2810
        %4642 = vmatpush.msra.mxu0 %v2808
        %4643 = vmatpush.msra.mxu0 %v2806
        %4644 = vmatpush.msra.mxu0 %v2804
        %4645 = vmatpush.msra.mxu0 %v2802
        %4646 = vmatpush.msra.mxu0 %v2800
        %4647 = vmatpush.msra.mxu0 %v2798
        %4648 = vmatpush.msra.mxu0 %v2796
        %4649 = vmatpush.msra.mxu0 %v2794
        %4650 = vmatpush.msra.mxu0 %v2792
        %4651 = vmatpush.msra.mxu0 %v2790
        %4652 = vmatpush.msra.mxu0 %v2788
        %4653 = vmatpush.msra.mxu0 %v2786
        %4654 = vmatpush.msra.mxu0 %v2784
        %4655 = vmatpush.msra.mxu0 %v2782
        %4656 = vmatpush.msra.mxu0 %v2780
        %4657 = vmatmul.f32.gmra.mxu0 %v3056
        %v4658 = vpop.f32.mrf.mxu0
        %v4659 = vadd.f32 %v4639, %v4658
        %4660 = vdwg.mxu0
        %4661 = vmatpush.msra.mxu0 %v2842
        %4662 = vmatpush.msra.mxu0 %v2840
        %4663 = vmatpush.msra.mxu0 %v2838
        %4664 = vmatpush.msra.mxu0 %v2836
        %4665 = vmatpush.msra.mxu0 %v2834
        %4666 = vmatpush.msra.mxu0 %v2832
        %4667 = vmatpush.msra.mxu0 %v2830
        %4668 = vmatpush.msra.mxu0 %v2828
        %4669 = vmatpush.msra.mxu0 %v2826
        %4670 = vmatpush.msra.mxu0 %v2824
        %4671 = vmatpush.msra.mxu0 %v2822
        %4672 = vmatpush.msra.mxu0 %v2820
        %4673 = vmatpush.msra.mxu0 %v2818
        %4674 = vmatpush.msra.mxu0 %v2816
        %4675 = vmatpush.msra.mxu0 %v2814
        %4676 = vmatpush.msra.mxu0 %v2812
        %4677 = vmatmul.f32.gmra.mxu0 %v3057
        %v4678 = vpop.f32.mrf.mxu0
        %v4679 = vadd.f32 %v4659, %v4678
        %4680 = vdwg.mxu0
        %4681 = vmatpush.msra.mxu0 %v2874
        %4682 = vmatpush.msra.mxu0 %v2872
        %4683 = vmatpush.msra.mxu0 %v2870
        %4684 = vmatpush.msra.mxu0 %v2868
        %4685 = vmatpush.msra.mxu0 %v2866
        %4686 = vmatpush.msra.mxu0 %v2864
        %4687 = vmatpush.msra.mxu0 %v2862
        %4688 = vmatpush.msra.mxu0 %v2860
        %4689 = vmatpush.msra.mxu0 %v2858
        %4690 = vmatpush.msra.mxu0 %v2856
        %4691 = vmatpush.msra.mxu0 %v2854
        %4692 = vmatpush.msra.mxu0 %v2852
        %4693 = vmatpush.msra.mxu0 %v2850
        %4694 = vmatpush.msra.mxu0 %v2848
        %4695 = vmatpush.msra.mxu0 %v2846
        %4696 = vmatpush.msra.mxu0 %v2844
        %4697 = vmatmul.f32.gmra.mxu0 %v3058
        %v4698 = vpop.f32.mrf.mxu0
        %v4699 = vadd.f32 %v4679, %v4698
        %4700 = vdwg.mxu0
        %4701 = vmatpush.msra.mxu0 %v2906
        %4702 = vmatpush.msra.mxu0 %v2904
        %4703 = vmatpush.msra.mxu0 %v2902
        %4704 = vmatpush.msra.mxu0 %v2900
        %4705 = vmatpush.msra.mxu0 %v2898
        %4706 = vmatpush.msra.mxu0 %v2896
        %4707 = vmatpush.msra.mxu0 %v2894
        %4708 = vmatpush.msra.mxu0 %v2892
        %4709 = vmatpush.msra.mxu0 %v2890
        %4710 = vmatpush.msra.mxu0 %v2888
        %4711 = vmatpush.msra.mxu0 %v2886
        %4712 = vmatpush.msra.mxu0 %v2884
        %4713 = vmatpush.msra.mxu0 %v2882
        %4714 = vmatpush.msra.mxu0 %v2880
        %4715 = vmatpush.msra.mxu0 %v2878
        %4716 = vmatpush.msra.mxu0 %v2876
        %4717 = vmatmul.f32.gmra.mxu0 %v3059
        %v4718 = vpop.f32.mrf.mxu0
        %v4719 = vadd.f32 %v4699, %v4718
        %4720 = vdwg.mxu0
        %4721 = vmatpush.msra.mxu0 %v2938
        %4722 = vmatpush.msra.mxu0 %v2936
        %4723 = vmatpush.msra.mxu0 %v2934
        %4724 = vmatpush.msra.mxu0 %v2932
        %4725 = vmatpush.msra.mxu0 %v2930
        %4726 = vmatpush.msra.mxu0 %v2928
        %4727 = vmatpush.msra.mxu0 %v2926
        %4728 = vmatpush.msra.mxu0 %v2924
        %4729 = vmatpush.msra.mxu0 %v2922
        %4730 = vmatpush.msra.mxu0 %v2920
        %4731 = vmatpush.msra.mxu0 %v2918
        %4732 = vmatpush.msra.mxu0 %v2916
        %4733 = vmatpush.msra.mxu0 %v2914
        %4734 = vmatpush.msra.mxu0 %v2912
        %4735 = vmatpush.msra.mxu0 %v2910
        %4736 = vmatpush.msra.mxu0 %v2908
        %4737 = vmatmul.f32.gmra.mxu0 %v3060
        %v4738 = vpop.f32.mrf.mxu0
        %v4739 = vadd.f32 %v4719, %v4738
        %4740 = vdwg.mxu0
        %4741 = vmatpush.msra.mxu0 %v411
        %4742 = vmatpush.msra.mxu0 %v409
        %4743 = vmatpush.msra.mxu0 %v407
        %4744 = vmatpush.msra.mxu0 %v405
        %4745 = vmatpush.msra.mxu0 %v403
        %4746 = vmatpush.msra.mxu0 %v401
        %4747 = vmatpush.msra.mxu0 %v399
        %4748 = vmatpush.msra.mxu0 %v397
        %4749 = vmatpush.msra.mxu0 %v395
        %4750 = vmatpush.msra.mxu0 %v393
        %4751 = vmatpush.msra.mxu0 %v391
        %4752 = vmatpush.msra.mxu0 %v389
        %4753 = vmatpush.msra.mxu0 %v387
        %4754 = vmatpush.msra.mxu0 %v385
        %4755 = vmatpush.msra.mxu0 %v383
        %4756 = vmatpush.msra.mxu0 %v381
        %4757 = vmatmul.f32.gmra.mxu0 %v2963
        %v4758 = vpop.f32.mrf.mxu0
        %v4759 = vadd.f32 0.0, %v4758
        %4760 = vdwg.mxu0
        %4761 = vmatpush.msra.mxu0 %v443
        %4762 = vmatpush.msra.mxu0 %v441
        %4763 = vmatpush.msra.mxu0 %v439
        %4764 = vmatpush.msra.mxu0 %v437
        %4765 = vmatpush.msra.mxu0 %v435
        %4766 = vmatpush.msra.mxu0 %v433
        %4767 = vmatpush.msra.mxu0 %v431
        %4768 = vmatpush.msra.mxu0 %v429
        %4769 = vmatpush.msra.mxu0 %v427
        %4770 = vmatpush.msra.mxu0 %v425
        %4771 = vmatpush.msra.mxu0 %v423
        %4772 = vmatpush.msra.mxu0 %v421
        %4773 = vmatpush.msra.mxu0 %v419
        %4774 = vmatpush.msra.mxu0 %v417
        %4775 = vmatpush.msra.mxu0 %v415
        %4776 = vmatpush.msra.mxu0 %v413
        %4777 = vmatmul.f32.gmra.mxu0 %v2964
        %v4778 = vpop.f32.mrf.mxu0
        %v4779 = vadd.f32 %v4759, %v4778
        %4780 = vdwg.mxu0
        %4781 = vmatpush.msra.mxu0 %v475
        %4782 = vmatpush.msra.mxu0 %v473
        %4783 = vmatpush.msra.mxu0 %v471
        %4784 = vmatpush.msra.mxu0 %v469
        %4785 = vmatpush.msra.mxu0 %v467
        %4786 = vmatpush.msra.mxu0 %v465
        %4787 = vmatpush.msra.mxu0 %v463
        %4788 = vmatpush.msra.mxu0 %v461
        %4789 = vmatpush.msra.mxu0 %v459
        %4790 = vmatpush.msra.mxu0 %v457
        %4791 = vmatpush.msra.mxu0 %v455
        %4792 = vmatpush.msra.mxu0 %v453
        %4793 = vmatpush.msra.mxu0 %v451
        %4794 = vmatpush.msra.mxu0 %v449
        %4795 = vmatpush.msra.mxu0 %v447
        %4796 = vmatpush.msra.mxu0 %v445
        %4797 = vmatmul.f32.gmra.mxu0 %v2965
        %v4798 = vpop.f32.mrf.mxu0
        %v4799 = vadd.f32 %v4779, %v4798
        %4800 = vdwg.mxu0
        %4801 = vmatpush.msra.mxu0 %v507
        %4802 = vmatpush.msra.mxu0 %v505
        %4803 = vmatpush.msra.mxu0 %v503
        %4804 = vmatpush.msra.mxu0 %v501
        %4805 = vmatpush.msra.mxu0 %v499
        %4806 = vmatpush.msra.mxu0 %v497
        %4807 = vmatpush.msra.mxu0 %v495
        %4808 = vmatpush.msra.mxu0 %v493
        %4809 = vmatpush.msra.mxu0 %v491
        %4810 = vmatpush.msra.mxu0 %v489
        %4811 = vmatpush.msra.mxu0 %v487
        %4812 = vmatpush.msra.mxu0 %v485
        %4813 = vmatpush.msra.mxu0 %v483
        %4814 = vmatpush.msra.mxu0 %v481
        %4815 = vmatpush.msra.mxu0 %v479
        %4816 = vmatpush.msra.mxu0 %v477
        %4817 = vmatmul.f32.gmra.mxu0 %v2966
        %v4818 = vpop.f32.mrf.mxu0
        %v4819 = vadd.f32 %v4799, %v4818
        %4820 = vdwg.mxu0
        %4821 = vmatpush.msra.mxu0 %v539
        %4822 = vmatpush.msra.mxu0 %v537
        %4823 = vmatpush.msra.mxu0 %v535
        %4824 = vmatpush.msra.mxu0 %v533
        %4825 = vmatpush.msra.mxu0 %v531
        %4826 = vmatpush.msra.mxu0 %v529
        %4827 = vmatpush.msra.mxu0 %v527
        %4828 = vmatpush.msra.mxu0 %v525
        %4829 = vmatpush.msra.mxu0 %v523
        %4830 = vmatpush.msra.mxu0 %v521
        %4831 = vmatpush.msra.mxu0 %v519
        %4832 = vmatpush.msra.mxu0 %v517
        %4833 = vmatpush.msra.mxu0 %v515
        %4834 = vmatpush.msra.mxu0 %v513
        %4835 = vmatpush.msra.mxu0 %v511
        %4836 = vmatpush.msra.mxu0 %v509
        %4837 = vmatmul.f32.gmra.mxu0 %v2967
        %v4838 = vpop.f32.mrf.mxu0
        %v4839 = vadd.f32 %v4819, %v4838
        %4840 = vdwg.mxu0
        %4841 = vmatpush.msra.mxu0 %v571
        %4842 = vmatpush.msra.mxu0 %v569
        %4843 = vmatpush.msra.mxu0 %v567
        %4844 = vmatpush.msra.mxu0 %v565
        %4845 = vmatpush.msra.mxu0 %v563
        %4846 = vmatpush.msra.mxu0 %v561
        %4847 = vmatpush.msra.mxu0 %v559
        %4848 = vmatpush.msra.mxu0 %v557
        %4849 = vmatpush.msra.mxu0 %v555
        %4850 = vmatpush.msra.mxu0 %v553
        %4851 = vmatpush.msra.mxu0 %v551
        %4852 = vmatpush.msra.mxu0 %v549
        %4853 = vmatpush.msra.mxu0 %v547
        %4854 = vmatpush.msra.mxu0 %v545
        %4855 = vmatpush.msra.mxu0 %v543
        %4856 = vmatpush.msra.mxu0 %v541
        %4857 = vmatmul.f32.gmra.mxu0 %v2968
        %v4858 = vpop.f32.mrf.mxu0
        %v4859 = vadd.f32 %v4839, %v4858
        %4860 = vdwg.mxu0
        %4861 = vmatpush.msra.mxu0 %v603
        %4862 = vmatpush.msra.mxu0 %v601
        %4863 = vmatpush.msra.mxu0 %v599
        %4864 = vmatpush.msra.mxu0 %v597
        %4865 = vmatpush.msra.mxu0 %v595
        %4866 = vmatpush.msra.mxu0 %v593
        %4867 = vmatpush.msra.mxu0 %v591
        %4868 = vmatpush.msra.mxu0 %v589
        %4869 = vmatpush.msra.mxu0 %v587
        %4870 = vmatpush.msra.mxu0 %v585
        %4871 = vmatpush.msra.mxu0 %v583
        %4872 = vmatpush.msra.mxu0 %v581
        %4873 = vmatpush.msra.mxu0 %v579
        %4874 = vmatpush.msra.mxu0 %v577
        %4875 = vmatpush.msra.mxu0 %v575
        %4876 = vmatpush.msra.mxu0 %v573
        %4877 = vmatmul.f32.gmra.mxu0 %v2969
        %v4878 = vpop.f32.mrf.mxu0
        %v4879 = vadd.f32 %v4859, %v4878
        %4880 = vdwg.mxu0
        %4881 = vmatpush.msra.mxu0 %v635
        %4882 = vmatpush.msra.mxu0 %v633
        %4883 = vmatpush.msra.mxu0 %v631
        %4884 = vmatpush.msra.mxu0 %v629
        %4885 = vmatpush.msra.mxu0 %v627
        %4886 = vmatpush.msra.mxu0 %v625
        %4887 = vmatpush.msra.mxu0 %v623
        %4888 = vmatpush.msra.mxu0 %v621
        %4889 = vmatpush.msra.mxu0 %v619
        %4890 = vmatpush.msra.mxu0 %v617
        %4891 = vmatpush.msra.mxu0 %v615
        %4892 = vmatpush.msra.mxu0 %v613
        %4893 = vmatpush.msra.mxu0 %v611
        %4894 = vmatpush.msra.mxu0 %v609
        %4895 = vmatpush.msra.mxu0 %v607
        %4896 = vmatpush.msra.mxu0 %v605
        %4897 = vmatmul.f32.gmra.mxu0 %v2970
        %v4898 = vpop.f32.mrf.mxu0
        %v4899 = vadd.f32 %v4879, %v4898
        %4900 = vdwg.mxu0
        %4901 = vmatpush.msra.mxu0 %v667
        %4902 = vmatpush.msra.mxu0 %v665
        %4903 = vmatpush.msra.mxu0 %v663
        %4904 = vmatpush.msra.mxu0 %v661
        %4905 = vmatpush.msra.mxu0 %v659
        %4906 = vmatpush.msra.mxu0 %v657
        %4907 = vmatpush.msra.mxu0 %v655
        %4908 = vmatpush.msra.mxu0 %v653
        %4909 = vmatpush.msra.mxu0 %v651
        %4910 = vmatpush.msra.mxu0 %v649
        %4911 = vmatpush.msra.mxu0 %v647
        %4912 = vmatpush.msra.mxu0 %v645
        %4913 = vmatpush.msra.mxu0 %v643
        %4914 = vmatpush.msra.mxu0 %v641
        %4915 = vmatpush.msra.mxu0 %v639
        %4916 = vmatpush.msra.mxu0 %v637
        %4917 = vmatmul.f32.gmra.mxu0 %v2973
        %v4918 = vpop.f32.mrf.mxu0
        %v4919 = vadd.f32 %v4899, %v4918
        %4920 = vdwg.mxu0
        %4921 = vmatpush.msra.mxu0 %v699
        %4922 = vmatpush.msra.mxu0 %v697
        %4923 = vmatpush.msra.mxu0 %v695
        %4924 = vmatpush.msra.mxu0 %v693
        %4925 = vmatpush.msra.mxu0 %v691
        %4926 = vmatpush.msra.mxu0 %v689
        %4927 = vmatpush.msra.mxu0 %v687
        %4928 = vmatpush.msra.mxu0 %v685
        %4929 = vmatpush.msra.mxu0 %v683
        %4930 = vmatpush.msra.mxu0 %v681
        %4931 = vmatpush.msra.mxu0 %v679
        %4932 = vmatpush.msra.mxu0 %v677
        %4933 = vmatpush.msra.mxu0 %v675
        %4934 = vmatpush.msra.mxu0 %v673
        %4935 = vmatpush.msra.mxu0 %v671
        %4936 = vmatpush.msra.mxu0 %v669
        %4937 = vmatmul.f32.gmra.mxu0 %v2974
        %v4938 = vpop.f32.mrf.mxu0
        %v4939 = vadd.f32 %v4919, %v4938
        %4940 = vdwg.mxu0
        %4941 = vmatpush.msra.mxu0 %v731
        %4942 = vmatpush.msra.mxu0 %v729
        %4943 = vmatpush.msra.mxu0 %v727
        %4944 = vmatpush.msra.mxu0 %v725
        %4945 = vmatpush.msra.mxu0 %v723
        %4946 = vmatpush.msra.mxu0 %v721
        %4947 = vmatpush.msra.mxu0 %v719
        %4948 = vmatpush.msra.mxu0 %v717
        %4949 = vmatpush.msra.mxu0 %v715
        %4950 = vmatpush.msra.mxu0 %v713
        %4951 = vmatpush.msra.mxu0 %v711
        %4952 = vmatpush.msra.mxu0 %v709
        %4953 = vmatpush.msra.mxu0 %v707
        %4954 = vmatpush.msra.mxu0 %v705
        %4955 = vmatpush.msra.mxu0 %v703
        %4956 = vmatpush.msra.mxu0 %v701
        %4957 = vmatmul.f32.gmra.mxu0 %v2975
        %v4958 = vpop.f32.mrf.mxu0
        %v4959 = vadd.f32 %v4939, %v4958
        %4960 = vdwg.mxu0
        %4961 = vmatpush.msra.mxu0 %v763
        %4962 = vmatpush.msra.mxu0 %v761
        %4963 = vmatpush.msra.mxu0 %v759
        %4964 = vmatpush.msra.mxu0 %v757
        %4965 = vmatpush.msra.mxu0 %v755
        %4966 = vmatpush.msra.mxu0 %v753
        %4967 = vmatpush.msra.mxu0 %v751
        %4968 = vmatpush.msra.mxu0 %v749
        %4969 = vmatpush.msra.mxu0 %v747
        %4970 = vmatpush.msra.mxu0 %v745
        %4971 = vmatpush.msra.mxu0 %v743
        %4972 = vmatpush.msra.mxu0 %v741
        %4973 = vmatpush.msra.mxu0 %v739
        %4974 = vmatpush.msra.mxu0 %v737
        %4975 = vmatpush.msra.mxu0 %v735
        %4976 = vmatpush.msra.mxu0 %v733
        %4977 = vmatmul.f32.gmra.mxu0 %v2976
        %v4978 = vpop.f32.mrf.mxu0
        %v4979 = vadd.f32 %v4959, %v4978
        %4980 = vdwg.mxu0
        %4981 = vmatpush.msra.mxu0 %v795
        %4982 = vmatpush.msra.mxu0 %v793
        %4983 = vmatpush.msra.mxu0 %v791
        %4984 = vmatpush.msra.mxu0 %v789
        %4985 = vmatpush.msra.mxu0 %v787
        %4986 = vmatpush.msra.mxu0 %v785
        %4987 = vmatpush.msra.mxu0 %v783
        %4988 = vmatpush.msra.mxu0 %v781
        %4989 = vmatpush.msra.mxu0 %v779
        %4990 = vmatpush.msra.mxu0 %v777
        %4991 = vmatpush.msra.mxu0 %v775
        %4992 = vmatpush.msra.mxu0 %v773
        %4993 = vmatpush.msra.mxu0 %v771
        %4994 = vmatpush.msra.mxu0 %v769
        %4995 = vmatpush.msra.mxu0 %v767
        %4996 = vmatpush.msra.mxu0 %v765
        %4997 = vmatmul.f32.gmra.mxu0 %v2977
        %v4998 = vpop.f32.mrf.mxu0
        %v4999 = vadd.f32 %v4979, %v4998
        %5000 = vdwg.mxu0
        %5001 = vmatpush.msra.mxu0 %v827
        %5002 = vmatpush.msra.mxu0 %v825
        %5003 = vmatpush.msra.mxu0 %v823
        %5004 = vmatpush.msra.mxu0 %v821
        %5005 = vmatpush.msra.mxu0 %v819
        %5006 = vmatpush.msra.mxu0 %v817
        %5007 = vmatpush.msra.mxu0 %v815
        %5008 = vmatpush.msra.mxu0 %v813
        %5009 = vmatpush.msra.mxu0 %v811
        %5010 = vmatpush.msra.mxu0 %v809
        %5011 = vmatpush.msra.mxu0 %v807
        %5012 = vmatpush.msra.mxu0 %v805
        %5013 = vmatpush.msra.mxu0 %v803
        %5014 = vmatpush.msra.mxu0 %v801
        %5015 = vmatpush.msra.mxu0 %v799
        %5016 = vmatpush.msra.mxu0 %v797
        %5017 = vmatmul.f32.gmra.mxu0 %v2978
        %v5018 = vpop.f32.mrf.mxu0
        %v5019 = vadd.f32 %v4999, %v5018
        %5020 = vdwg.mxu0
        %5021 = vmatpush.msra.mxu0 %v859
        %5022 = vmatpush.msra.mxu0 %v857
        %5023 = vmatpush.msra.mxu0 %v855
        %5024 = vmatpush.msra.mxu0 %v853
        %5025 = vmatpush.msra.mxu0 %v851
        %5026 = vmatpush.msra.mxu0 %v849
        %5027 = vmatpush.msra.mxu0 %v847
        %5028 = vmatpush.msra.mxu0 %v845
        %5029 = vmatpush.msra.mxu0 %v843
        %5030 = vmatpush.msra.mxu0 %v841
        %5031 = vmatpush.msra.mxu0 %v839
        %5032 = vmatpush.msra.mxu0 %v837
        %5033 = vmatpush.msra.mxu0 %v835
        %5034 = vmatpush.msra.mxu0 %v833
        %5035 = vmatpush.msra.mxu0 %v831
        %5036 = vmatpush.msra.mxu0 %v829
        %5037 = vmatmul.f32.gmra.mxu0 %v2979
        %v5038 = vpop.f32.mrf.mxu0
        %v5039 = vadd.f32 %v5019, %v5038
        %5040 = vdwg.mxu0
        %5041 = vmatpush.msra.mxu0 %v891
        %5042 = vmatpush.msra.mxu0 %v889
        %5043 = vmatpush.msra.mxu0 %v887
        %5044 = vmatpush.msra.mxu0 %v885
        %5045 = vmatpush.msra.mxu0 %v883
        %5046 = vmatpush.msra.mxu0 %v881
        %5047 = vmatpush.msra.mxu0 %v879
        %5048 = vmatpush.msra.mxu0 %v877
        %5049 = vmatpush.msra.mxu0 %v875
        %5050 = vmatpush.msra.mxu0 %v873
        %5051 = vmatpush.msra.mxu0 %v871
        %5052 = vmatpush.msra.mxu0 %v869
        %5053 = vmatpush.msra.mxu0 %v867
        %5054 = vmatpush.msra.mxu0 %v865
        %5055 = vmatpush.msra.mxu0 %v863
        %5056 = vmatpush.msra.mxu0 %v861
        %5057 = vmatmul.f32.gmra.mxu0 %v2980
        %v5058 = vpop.f32.mrf.mxu0
        %v5059 = vadd.f32 %v5039, %v5058
        %5060 = vdwg.mxu0
        %5061 = vmatpush.msra.mxu0 %v923
        %5062 = vmatpush.msra.mxu0 %v921
        %5063 = vmatpush.msra.mxu0 %v919
        %5064 = vmatpush.msra.mxu0 %v917
        %5065 = vmatpush.msra.mxu0 %v915
        %5066 = vmatpush.msra.mxu0 %v913
        %5067 = vmatpush.msra.mxu0 %v911
        %5068 = vmatpush.msra.mxu0 %v909
        %5069 = vmatpush.msra.mxu0 %v907
        %5070 = vmatpush.msra.mxu0 %v905
        %5071 = vmatpush.msra.mxu0 %v903
        %5072 = vmatpush.msra.mxu0 %v901
        %5073 = vmatpush.msra.mxu0 %v899
        %5074 = vmatpush.msra.mxu0 %v897
        %5075 = vmatpush.msra.mxu0 %v895
        %5076 = vmatpush.msra.mxu0 %v893
        %5077 = vmatmul.f32.gmra.mxu0 %v2983
        %v5078 = vpop.f32.mrf.mxu0
        %v5079 = vadd.f32 %v5059, %v5078
        %5080 = vdwg.mxu0
        %5081 = vmatpush.msra.mxu0 %v955
        %5082 = vmatpush.msra.mxu0 %v953
        %5083 = vmatpush.msra.mxu0 %v951
        %5084 = vmatpush.msra.mxu0 %v949
        %5085 = vmatpush.msra.mxu0 %v947
        %5086 = vmatpush.msra.mxu0 %v945
        %5087 = vmatpush.msra.mxu0 %v943
        %5088 = vmatpush.msra.mxu0 %v941
        %5089 = vmatpush.msra.mxu0 %v939
        %5090 = vmatpush.msra.mxu0 %v937
        %5091 = vmatpush.msra.mxu0 %v935
        %5092 = vmatpush.msra.mxu0 %v933
        %5093 = vmatpush.msra.mxu0 %v931
        %5094 = vmatpush.msra.mxu0 %v929
        %5095 = vmatpush.msra.mxu0 %v927
        %5096 = vmatpush.msra.mxu0 %v925
        %5097 = vmatmul.f32.gmra.mxu0 %v2984
        %v5098 = vpop.f32.mrf.mxu0
        %v5099 = vadd.f32 %v5079, %v5098
        %5100 = vdwg.mxu0
        %5101 = vmatpush.msra.mxu0 %v987
        %5102 = vmatpush.msra.mxu0 %v985
        %5103 = vmatpush.msra.mxu0 %v983
        %5104 = vmatpush.msra.mxu0 %v981
        %5105 = vmatpush.msra.mxu0 %v979
        %5106 = vmatpush.msra.mxu0 %v977
        %5107 = vmatpush.msra.mxu0 %v975
        %5108 = vmatpush.msra.mxu0 %v973
        %5109 = vmatpush.msra.mxu0 %v971
        %5110 = vmatpush.msra.mxu0 %v969
        %5111 = vmatpush.msra.mxu0 %v967
        %5112 = vmatpush.msra.mxu0 %v965
        %5113 = vmatpush.msra.mxu0 %v963
        %5114 = vmatpush.msra.mxu0 %v961
        %5115 = vmatpush.msra.mxu0 %v959
        %5116 = vmatpush.msra.mxu0 %v957
        %5117 = vmatmul.f32.gmra.mxu0 %v2985
        %v5118 = vpop.f32.mrf.mxu0
        %v5119 = vadd.f32 %v5099, %v5118
        %5120 = vdwg.mxu0
        %5121 = vmatpush.msra.mxu0 %v1019
        %5122 = vmatpush.msra.mxu0 %v1017
        %5123 = vmatpush.msra.mxu0 %v1015
        %5124 = vmatpush.msra.mxu0 %v1013
        %5125 = vmatpush.msra.mxu0 %v1011
        %5126 = vmatpush.msra.mxu0 %v1009
        %5127 = vmatpush.msra.mxu0 %v1007
        %5128 = vmatpush.msra.mxu0 %v1005
        %5129 = vmatpush.msra.mxu0 %v1003
        %5130 = vmatpush.msra.mxu0 %v1001
        %5131 = vmatpush.msra.mxu0 %v999
        %5132 = vmatpush.msra.mxu0 %v997
        %5133 = vmatpush.msra.mxu0 %v995
        %5134 = vmatpush.msra.mxu0 %v993
        %5135 = vmatpush.msra.mxu0 %v991
        %5136 = vmatpush.msra.mxu0 %v989
        %5137 = vmatmul.f32.gmra.mxu0 %v2986
        %v5138 = vpop.f32.mrf.mxu0
        %v5139 = vadd.f32 %v5119, %v5138
        %5140 = vdwg.mxu0
        %5141 = vmatpush.msra.mxu0 %v1051
        %5142 = vmatpush.msra.mxu0 %v1049
        %5143 = vmatpush.msra.mxu0 %v1047
        %5144 = vmatpush.msra.mxu0 %v1045
        %5145 = vmatpush.msra.mxu0 %v1043
        %5146 = vmatpush.msra.mxu0 %v1041
        %5147 = vmatpush.msra.mxu0 %v1039
        %5148 = vmatpush.msra.mxu0 %v1037
        %5149 = vmatpush.msra.mxu0 %v1035
        %5150 = vmatpush.msra.mxu0 %v1033
        %5151 = vmatpush.msra.mxu0 %v1031
        %5152 = vmatpush.msra.mxu0 %v1029
        %5153 = vmatpush.msra.mxu0 %v1027
        %5154 = vmatpush.msra.mxu0 %v1025
        %5155 = vmatpush.msra.mxu0 %v1023
        %5156 = vmatpush.msra.mxu0 %v1021
        %5157 = vmatmul.f32.gmra.mxu0 %v2987
        %v5158 = vpop.f32.mrf.mxu0
        %v5159 = vadd.f32 %v5139, %v5158
        %5160 = vdwg.mxu0
        %5161 = vmatpush.msra.mxu0 %v1083
        %5162 = vmatpush.msra.mxu0 %v1081
        %5163 = vmatpush.msra.mxu0 %v1079
        %5164 = vmatpush.msra.mxu0 %v1077
        %5165 = vmatpush.msra.mxu0 %v1075
        %5166 = vmatpush.msra.mxu0 %v1073
        %5167 = vmatpush.msra.mxu0 %v1071
        %5168 = vmatpush.msra.mxu0 %v1069
        %5169 = vmatpush.msra.mxu0 %v1067
        %5170 = vmatpush.msra.mxu0 %v1065
        %5171 = vmatpush.msra.mxu0 %v1063
        %5172 = vmatpush.msra.mxu0 %v1061
        %5173 = vmatpush.msra.mxu0 %v1059
        %5174 = vmatpush.msra.mxu0 %v1057
        %5175 = vmatpush.msra.mxu0 %v1055
        %5176 = vmatpush.msra.mxu0 %v1053
        %5177 = vmatmul.f32.gmra.mxu0 %v2988
        %v5178 = vpop.f32.mrf.mxu0
        %v5179 = vadd.f32 %v5159, %v5178
        %5180 = vdwg.mxu0
        %5181 = vmatpush.msra.mxu0 %v1115
        %5182 = vmatpush.msra.mxu0 %v1113
        %5183 = vmatpush.msra.mxu0 %v1111
        %5184 = vmatpush.msra.mxu0 %v1109
        %5185 = vmatpush.msra.mxu0 %v1107
        %5186 = vmatpush.msra.mxu0 %v1105
        %5187 = vmatpush.msra.mxu0 %v1103
        %5188 = vmatpush.msra.mxu0 %v1101
        %5189 = vmatpush.msra.mxu0 %v1099
        %5190 = vmatpush.msra.mxu0 %v1097
        %5191 = vmatpush.msra.mxu0 %v1095
        %5192 = vmatpush.msra.mxu0 %v1093
        %5193 = vmatpush.msra.mxu0 %v1091
        %5194 = vmatpush.msra.mxu0 %v1089
        %5195 = vmatpush.msra.mxu0 %v1087
        %5196 = vmatpush.msra.mxu0 %v1085
        %5197 = vmatmul.f32.gmra.mxu0 %v2989
        %v5198 = vpop.f32.mrf.mxu0
        %v5199 = vadd.f32 %v5179, %v5198
        %5200 = vdwg.mxu0
        %5201 = vmatpush.msra.mxu0 %v1147
        %5202 = vmatpush.msra.mxu0 %v1145
        %5203 = vmatpush.msra.mxu0 %v1143
        %5204 = vmatpush.msra.mxu0 %v1141
        %5205 = vmatpush.msra.mxu0 %v1139
        %5206 = vmatpush.msra.mxu0 %v1137
        %5207 = vmatpush.msra.mxu0 %v1135
        %5208 = vmatpush.msra.mxu0 %v1133
        %5209 = vmatpush.msra.mxu0 %v1131
        %5210 = vmatpush.msra.mxu0 %v1129
        %5211 = vmatpush.msra.mxu0 %v1127
        %5212 = vmatpush.msra.mxu0 %v1125
        %5213 = vmatpush.msra.mxu0 %v1123
        %5214 = vmatpush.msra.mxu0 %v1121
        %5215 = vmatpush.msra.mxu0 %v1119
        %5216 = vmatpush.msra.mxu0 %v1117
        %5217 = vmatmul.f32.gmra.mxu0 %v2990
        %v5218 = vpop.f32.mrf.mxu0
        %v5219 = vadd.f32 %v5199, %v5218
        %5220 = vdwg.mxu0
        %5221 = vmatpush.msra.mxu0 %v1179
        %5222 = vmatpush.msra.mxu0 %v1177
        %5223 = vmatpush.msra.mxu0 %v1175
        %5224 = vmatpush.msra.mxu0 %v1173
        %5225 = vmatpush.msra.mxu0 %v1171
        %5226 = vmatpush.msra.mxu0 %v1169
        %5227 = vmatpush.msra.mxu0 %v1167
        %5228 = vmatpush.msra.mxu0 %v1165
        %5229 = vmatpush.msra.mxu0 %v1163
        %5230 = vmatpush.msra.mxu0 %v1161
        %5231 = vmatpush.msra.mxu0 %v1159
        %5232 = vmatpush.msra.mxu0 %v1157
        %5233 = vmatpush.msra.mxu0 %v1155
        %5234 = vmatpush.msra.mxu0 %v1153
        %5235 = vmatpush.msra.mxu0 %v1151
        %5236 = vmatpush.msra.mxu0 %v1149
        %5237 = vmatmul.f32.gmra.mxu0 %v2993
        %v5238 = vpop.f32.mrf.mxu0
        %v5239 = vadd.f32 %v5219, %v5238
        %5240 = vdwg.mxu0
        %5241 = vmatpush.msra.mxu0 %v1211
        %5242 = vmatpush.msra.mxu0 %v1209
        %5243 = vmatpush.msra.mxu0 %v1207
        %5244 = vmatpush.msra.mxu0 %v1205
        %5245 = vmatpush.msra.mxu0 %v1203
        %5246 = vmatpush.msra.mxu0 %v1201
        %5247 = vmatpush.msra.mxu0 %v1199
        %5248 = vmatpush.msra.mxu0 %v1197
        %5249 = vmatpush.msra.mxu0 %v1195
        %5250 = vmatpush.msra.mxu0 %v1193
        %5251 = vmatpush.msra.mxu0 %v1191
        %5252 = vmatpush.msra.mxu0 %v1189
        %5253 = vmatpush.msra.mxu0 %v1187
        %5254 = vmatpush.msra.mxu0 %v1185
        %5255 = vmatpush.msra.mxu0 %v1183
        %5256 = vmatpush.msra.mxu0 %v1181
        %5257 = vmatmul.f32.gmra.mxu0 %v2994
        %v5258 = vpop.f32.mrf.mxu0
        %v5259 = vadd.f32 %v5239, %v5258
        %5260 = vdwg.mxu0
        %5261 = vmatpush.msra.mxu0 %v1243
        %5262 = vmatpush.msra.mxu0 %v1241
        %5263 = vmatpush.msra.mxu0 %v1239
        %5264 = vmatpush.msra.mxu0 %v1237
        %5265 = vmatpush.msra.mxu0 %v1235
        %5266 = vmatpush.msra.mxu0 %v1233
        %5267 = vmatpush.msra.mxu0 %v1231
        %5268 = vmatpush.msra.mxu0 %v1229
        %5269 = vmatpush.msra.mxu0 %v1227
        %5270 = vmatpush.msra.mxu0 %v1225
        %5271 = vmatpush.msra.mxu0 %v1223
        %5272 = vmatpush.msra.mxu0 %v1221
        %5273 = vmatpush.msra.mxu0 %v1219
        %5274 = vmatpush.msra.mxu0 %v1217
        %5275 = vmatpush.msra.mxu0 %v1215
        %5276 = vmatpush.msra.mxu0 %v1213
        %5277 = vmatmul.f32.gmra.mxu0 %v2995
        %v5278 = vpop.f32.mrf.mxu0
        %v5279 = vadd.f32 %v5259, %v5278
        %5280 = vdwg.mxu0
        %5281 = vmatpush.msra.mxu0 %v1275
        %5282 = vmatpush.msra.mxu0 %v1273
        %5283 = vmatpush.msra.mxu0 %v1271
        %5284 = vmatpush.msra.mxu0 %v1269
        %5285 = vmatpush.msra.mxu0 %v1267
        %5286 = vmatpush.msra.mxu0 %v1265
        %5287 = vmatpush.msra.mxu0 %v1263
        %5288 = vmatpush.msra.mxu0 %v1261
        %5289 = vmatpush.msra.mxu0 %v1259
        %5290 = vmatpush.msra.mxu0 %v1257
        %5291 = vmatpush.msra.mxu0 %v1255
        %5292 = vmatpush.msra.mxu0 %v1253
        %5293 = vmatpush.msra.mxu0 %v1251
        %5294 = vmatpush.msra.mxu0 %v1249
        %5295 = vmatpush.msra.mxu0 %v1247
        %5296 = vmatpush.msra.mxu0 %v1245
        %5297 = vmatmul.f32.gmra.mxu0 %v2996
        %v5298 = vpop.f32.mrf.mxu0
        %v5299 = vadd.f32 %v5279, %v5298
        %5300 = vdwg.mxu0
        %5301 = vmatpush.msra.mxu0 %v1307
        %5302 = vmatpush.msra.mxu0 %v1305
        %5303 = vmatpush.msra.mxu0 %v1303
        %5304 = vmatpush.msra.mxu0 %v1301
        %5305 = vmatpush.msra.mxu0 %v1299
        %5306 = vmatpush.msra.mxu0 %v1297
        %5307 = vmatpush.msra.mxu0 %v1295
        %5308 = vmatpush.msra.mxu0 %v1293
        %5309 = vmatpush.msra.mxu0 %v1291
        %5310 = vmatpush.msra.mxu0 %v1289
        %5311 = vmatpush.msra.mxu0 %v1287
        %5312 = vmatpush.msra.mxu0 %v1285
        %5313 = vmatpush.msra.mxu0 %v1283
        %5314 = vmatpush.msra.mxu0 %v1281
        %5315 = vmatpush.msra.mxu0 %v1279
        %5316 = vmatpush.msra.mxu0 %v1277
        %5317 = vmatmul.f32.gmra.mxu0 %v2997
        %v5318 = vpop.f32.mrf.mxu0
        %v5319 = vadd.f32 %v5299, %v5318
        %5320 = vdwg.mxu0
        %5321 = vmatpush.msra.mxu0 %v1339
        %5322 = vmatpush.msra.mxu0 %v1337
        %5323 = vmatpush.msra.mxu0 %v1335
        %5324 = vmatpush.msra.mxu0 %v1333
        %5325 = vmatpush.msra.mxu0 %v1331
        %5326 = vmatpush.msra.mxu0 %v1329
        %5327 = vmatpush.msra.mxu0 %v1327
        %5328 = vmatpush.msra.mxu0 %v1325
        %5329 = vmatpush.msra.mxu0 %v1323
        %5330 = vmatpush.msra.mxu0 %v1321
        %5331 = vmatpush.msra.mxu0 %v1319
        %5332 = vmatpush.msra.mxu0 %v1317
        %5333 = vmatpush.msra.mxu0 %v1315
        %5334 = vmatpush.msra.mxu0 %v1313
        %5335 = vmatpush.msra.mxu0 %v1311
        %5336 = vmatpush.msra.mxu0 %v1309
        %5337 = vmatmul.f32.gmra.mxu0 %v2998
        %v5338 = vpop.f32.mrf.mxu0
        %v5339 = vadd.f32 %v5319, %v5338
        %5340 = vdwg.mxu0
        %5341 = vmatpush.msra.mxu0 %v1371
        %5342 = vmatpush.msra.mxu0 %v1369
        %5343 = vmatpush.msra.mxu0 %v1367
        %5344 = vmatpush.msra.mxu0 %v1365
        %5345 = vmatpush.msra.mxu0 %v1363
        %5346 = vmatpush.msra.mxu0 %v1361
        %5347 = vmatpush.msra.mxu0 %v1359
        %5348 = vmatpush.msra.mxu0 %v1357
        %5349 = vmatpush.msra.mxu0 %v1355
        %5350 = vmatpush.msra.mxu0 %v1353
        %5351 = vmatpush.msra.mxu0 %v1351
        %5352 = vmatpush.msra.mxu0 %v1349
        %5353 = vmatpush.msra.mxu0 %v1347
        %5354 = vmatpush.msra.mxu0 %v1345
        %5355 = vmatpush.msra.mxu0 %v1343
        %5356 = vmatpush.msra.mxu0 %v1341
        %5357 = vmatmul.f32.gmra.mxu0 %v2999
        %v5358 = vpop.f32.mrf.mxu0
        %v5359 = vadd.f32 %v5339, %v5358
        %5360 = vdwg.mxu0
        %5361 = vmatpush.msra.mxu0 %v1403
        %5362 = vmatpush.msra.mxu0 %v1401
        %5363 = vmatpush.msra.mxu0 %v1399
        %5364 = vmatpush.msra.mxu0 %v1397
        %5365 = vmatpush.msra.mxu0 %v1395
        %5366 = vmatpush.msra.mxu0 %v1393
        %5367 = vmatpush.msra.mxu0 %v1391
        %5368 = vmatpush.msra.mxu0 %v1389
        %5369 = vmatpush.msra.mxu0 %v1387
        %5370 = vmatpush.msra.mxu0 %v1385
        %5371 = vmatpush.msra.mxu0 %v1383
        %5372 = vmatpush.msra.mxu0 %v1381
        %5373 = vmatpush.msra.mxu0 %v1379
        %5374 = vmatpush.msra.mxu0 %v1377
        %5375 = vmatpush.msra.mxu0 %v1375
        %5376 = vmatpush.msra.mxu0 %v1373
        %5377 = vmatmul.f32.gmra.mxu0 %v3000
        %v5378 = vpop.f32.mrf.mxu0
        %v5379 = vadd.f32 %v5359, %v5378
        %5380 = vdwg.mxu0
        %5381 = vmatpush.msra.mxu0 %v1435
        %5382 = vmatpush.msra.mxu0 %v1433
        %5383 = vmatpush.msra.mxu0 %v1431
        %5384 = vmatpush.msra.mxu0 %v1429
        %5385 = vmatpush.msra.mxu0 %v1427
        %5386 = vmatpush.msra.mxu0 %v1425
        %5387 = vmatpush.msra.mxu0 %v1423
        %5388 = vmatpush.msra.mxu0 %v1421
        %5389 = vmatpush.msra.mxu0 %v1419
        %5390 = vmatpush.msra.mxu0 %v1417
        %5391 = vmatpush.msra.mxu0 %v1415
        %5392 = vmatpush.msra.mxu0 %v1413
        %5393 = vmatpush.msra.mxu0 %v1411
        %5394 = vmatpush.msra.mxu0 %v1409
        %5395 = vmatpush.msra.mxu0 %v1407
        %5396 = vmatpush.msra.mxu0 %v1405
        %5397 = vmatmul.f32.gmra.mxu0 %v3003
        %v5398 = vpop.f32.mrf.mxu0
        %v5399 = vadd.f32 %v5379, %v5398
        %5400 = vdwg.mxu0
        %5401 = vmatpush.msra.mxu0 %v1467
        %5402 = vmatpush.msra.mxu0 %v1465
        %5403 = vmatpush.msra.mxu0 %v1463
        %5404 = vmatpush.msra.mxu0 %v1461
        %5405 = vmatpush.msra.mxu0 %v1459
        %5406 = vmatpush.msra.mxu0 %v1457
        %5407 = vmatpush.msra.mxu0 %v1455
        %5408 = vmatpush.msra.mxu0 %v1453
        %5409 = vmatpush.msra.mxu0 %v1451
        %5410 = vmatpush.msra.mxu0 %v1449
        %5411 = vmatpush.msra.mxu0 %v1447
        %5412 = vmatpush.msra.mxu0 %v1445
        %5413 = vmatpush.msra.mxu0 %v1443
        %5414 = vmatpush.msra.mxu0 %v1441
        %5415 = vmatpush.msra.mxu0 %v1439
        %5416 = vmatpush.msra.mxu0 %v1437
        %5417 = vmatmul.f32.gmra.mxu0 %v3004
        %v5418 = vpop.f32.mrf.mxu0
        %v5419 = vadd.f32 %v5399, %v5418
        %5420 = vdwg.mxu0
        %5421 = vmatpush.msra.mxu0 %v1499
        %5422 = vmatpush.msra.mxu0 %v1497
        %5423 = vmatpush.msra.mxu0 %v1495
        %5424 = vmatpush.msra.mxu0 %v1493
        %5425 = vmatpush.msra.mxu0 %v1491
        %5426 = vmatpush.msra.mxu0 %v1489
        %5427 = vmatpush.msra.mxu0 %v1487
        %5428 = vmatpush.msra.mxu0 %v1485
        %5429 = vmatpush.msra.mxu0 %v1483
        %5430 = vmatpush.msra.mxu0 %v1481
        %5431 = vmatpush.msra.mxu0 %v1479
        %5432 = vmatpush.msra.mxu0 %v1477
        %5433 = vmatpush.msra.mxu0 %v1475
        %5434 = vmatpush.msra.mxu0 %v1473
        %5435 = vmatpush.msra.mxu0 %v1471
        %5436 = vmatpush.msra.mxu0 %v1469
        %5437 = vmatmul.f32.gmra.mxu0 %v3005
        %v5438 = vpop.f32.mrf.mxu0
        %v5439 = vadd.f32 %v5419, %v5438
        %5440 = vdwg.mxu0
        %5441 = vmatpush.msra.mxu0 %v1531
        %5442 = vmatpush.msra.mxu0 %v1529
        %5443 = vmatpush.msra.mxu0 %v1527
        %5444 = vmatpush.msra.mxu0 %v1525
        %5445 = vmatpush.msra.mxu0 %v1523
        %5446 = vmatpush.msra.mxu0 %v1521
        %5447 = vmatpush.msra.mxu0 %v1519
        %5448 = vmatpush.msra.mxu0 %v1517
        %5449 = vmatpush.msra.mxu0 %v1515
        %5450 = vmatpush.msra.mxu0 %v1513
        %5451 = vmatpush.msra.mxu0 %v1511
        %5452 = vmatpush.msra.mxu0 %v1509
        %5453 = vmatpush.msra.mxu0 %v1507
        %5454 = vmatpush.msra.mxu0 %v1505
        %5455 = vmatpush.msra.mxu0 %v1503
        %5456 = vmatpush.msra.mxu0 %v1501
        %5457 = vmatmul.f32.gmra.mxu0 %v3006
        %v5458 = vpop.f32.mrf.mxu0
        %v5459 = vadd.f32 %v5439, %v5458
        %5460 = vdwg.mxu0
        %5461 = vmatpush.msra.mxu0 %v1563
        %5462 = vmatpush.msra.mxu0 %v1561
        %5463 = vmatpush.msra.mxu0 %v1559
        %5464 = vmatpush.msra.mxu0 %v1557
        %5465 = vmatpush.msra.mxu0 %v1555
        %5466 = vmatpush.msra.mxu0 %v1553
        %5467 = vmatpush.msra.mxu0 %v1551
        %5468 = vmatpush.msra.mxu0 %v1549
        %5469 = vmatpush.msra.mxu0 %v1547
        %5470 = vmatpush.msra.mxu0 %v1545
        %5471 = vmatpush.msra.mxu0 %v1543
        %5472 = vmatpush.msra.mxu0 %v1541
        %5473 = vmatpush.msra.mxu0 %v1539
        %5474 = vmatpush.msra.mxu0 %v1537
        %5475 = vmatpush.msra.mxu0 %v1535
        %5476 = vmatpush.msra.mxu0 %v1533
        %5477 = vmatmul.f32.gmra.mxu0 %v3007
        %v5478 = vpop.f32.mrf.mxu0
        %v5479 = vadd.f32 %v5459, %v5478
        %5480 = vdwg.mxu0
        %5481 = vmatpush.msra.mxu0 %v1595
        %5482 = vmatpush.msra.mxu0 %v1593
        %5483 = vmatpush.msra.mxu0 %v1591
        %5484 = vmatpush.msra.mxu0 %v1589
        %5485 = vmatpush.msra.mxu0 %v1587
        %5486 = vmatpush.msra.mxu0 %v1585
        %5487 = vmatpush.msra.mxu0 %v1583
        %5488 = vmatpush.msra.mxu0 %v1581
        %5489 = vmatpush.msra.mxu0 %v1579
        %5490 = vmatpush.msra.mxu0 %v1577
        %5491 = vmatpush.msra.mxu0 %v1575
        %5492 = vmatpush.msra.mxu0 %v1573
        %5493 = vmatpush.msra.mxu0 %v1571
        %5494 = vmatpush.msra.mxu0 %v1569
        %5495 = vmatpush.msra.mxu0 %v1567
        %5496 = vmatpush.msra.mxu0 %v1565
        %5497 = vmatmul.f32.gmra.mxu0 %v3008
        %v5498 = vpop.f32.mrf.mxu0
        %v5499 = vadd.f32 %v5479, %v5498
        %5500 = vdwg.mxu0
        %5501 = vmatpush.msra.mxu0 %v1627
        %5502 = vmatpush.msra.mxu0 %v1625
        %5503 = vmatpush.msra.mxu0 %v1623
        %5504 = vmatpush.msra.mxu0 %v1621
        %5505 = vmatpush.msra.mxu0 %v1619
        %5506 = vmatpush.msra.mxu0 %v1617
        %5507 = vmatpush.msra.mxu0 %v1615
        %5508 = vmatpush.msra.mxu0 %v1613
        %5509 = vmatpush.msra.mxu0 %v1611
        %5510 = vmatpush.msra.mxu0 %v1609
        %5511 = vmatpush.msra.mxu0 %v1607
        %5512 = vmatpush.msra.mxu0 %v1605
        %5513 = vmatpush.msra.mxu0 %v1603
        %5514 = vmatpush.msra.mxu0 %v1601
        %5515 = vmatpush.msra.mxu0 %v1599
        %5516 = vmatpush.msra.mxu0 %v1597
        %5517 = vmatmul.f32.gmra.mxu0 %v3009
        %v5518 = vpop.f32.mrf.mxu0
        %v5519 = vadd.f32 %v5499, %v5518
        %5520 = vdwg.mxu0
        %5521 = vmatpush.msra.mxu0 %v1659
        %5522 = vmatpush.msra.mxu0 %v1657
        %5523 = vmatpush.msra.mxu0 %v1655
        %5524 = vmatpush.msra.mxu0 %v1653
        %5525 = vmatpush.msra.mxu0 %v1651
        %5526 = vmatpush.msra.mxu0 %v1649
        %5527 = vmatpush.msra.mxu0 %v1647
        %5528 = vmatpush.msra.mxu0 %v1645
        %5529 = vmatpush.msra.mxu0 %v1643
        %5530 = vmatpush.msra.mxu0 %v1641
        %5531 = vmatpush.msra.mxu0 %v1639
        %5532 = vmatpush.msra.mxu0 %v1637
        %5533 = vmatpush.msra.mxu0 %v1635
        %5534 = vmatpush.msra.mxu0 %v1633
        %5535 = vmatpush.msra.mxu0 %v1631
        %5536 = vmatpush.msra.mxu0 %v1629
        %5537 = vmatmul.f32.gmra.mxu0 %v3010
        %v5538 = vpop.f32.mrf.mxu0
        %v5539 = vadd.f32 %v5519, %v5538
        %5540 = vdwg.mxu0
        %5541 = vmatpush.msra.mxu0 %v1691
        %5542 = vmatpush.msra.mxu0 %v1689
        %5543 = vmatpush.msra.mxu0 %v1687
        %5544 = vmatpush.msra.mxu0 %v1685
        %5545 = vmatpush.msra.mxu0 %v1683
        %5546 = vmatpush.msra.mxu0 %v1681
        %5547 = vmatpush.msra.mxu0 %v1679
        %5548 = vmatpush.msra.mxu0 %v1677
        %5549 = vmatpush.msra.mxu0 %v1675
        %5550 = vmatpush.msra.mxu0 %v1673
        %5551 = vmatpush.msra.mxu0 %v1671
        %5552 = vmatpush.msra.mxu0 %v1669
        %5553 = vmatpush.msra.mxu0 %v1667
        %5554 = vmatpush.msra.mxu0 %v1665
        %5555 = vmatpush.msra.mxu0 %v1663
        %5556 = vmatpush.msra.mxu0 %v1661
        %5557 = vmatmul.f32.gmra.mxu0 %v3013
        %v5558 = vpop.f32.mrf.mxu0
        %v5559 = vadd.f32 %v5539, %v5558
        %5560 = vdwg.mxu0
        %5561 = vmatpush.msra.mxu0 %v1723
        %5562 = vmatpush.msra.mxu0 %v1721
        %5563 = vmatpush.msra.mxu0 %v1719
        %5564 = vmatpush.msra.mxu0 %v1717
        %5565 = vmatpush.msra.mxu0 %v1715
        %5566 = vmatpush.msra.mxu0 %v1713
        %5567 = vmatpush.msra.mxu0 %v1711
        %5568 = vmatpush.msra.mxu0 %v1709
        %5569 = vmatpush.msra.mxu0 %v1707
        %5570 = vmatpush.msra.mxu0 %v1705
        %5571 = vmatpush.msra.mxu0 %v1703
        %5572 = vmatpush.msra.mxu0 %v1701
        %5573 = vmatpush.msra.mxu0 %v1699
        %5574 = vmatpush.msra.mxu0 %v1697
        %5575 = vmatpush.msra.mxu0 %v1695
        %5576 = vmatpush.msra.mxu0 %v1693
        %5577 = vmatmul.f32.gmra.mxu0 %v3014
        %v5578 = vpop.f32.mrf.mxu0
        %v5579 = vadd.f32 %v5559, %v5578
        %5580 = vdwg.mxu0
        %5581 = vmatpush.msra.mxu0 %v1755
        %5582 = vmatpush.msra.mxu0 %v1753
        %5583 = vmatpush.msra.mxu0 %v1751
        %5584 = vmatpush.msra.mxu0 %v1749
        %5585 = vmatpush.msra.mxu0 %v1747
        %5586 = vmatpush.msra.mxu0 %v1745
        %5587 = vmatpush.msra.mxu0 %v1743
        %5588 = vmatpush.msra.mxu0 %v1741
        %5589 = vmatpush.msra.mxu0 %v1739
        %5590 = vmatpush.msra.mxu0 %v1737
        %5591 = vmatpush.msra.mxu0 %v1735
        %5592 = vmatpush.msra.mxu0 %v1733
        %5593 = vmatpush.msra.mxu0 %v1731
        %5594 = vmatpush.msra.mxu0 %v1729
        %5595 = vmatpush.msra.mxu0 %v1727
        %5596 = vmatpush.msra.mxu0 %v1725
        %5597 = vmatmul.f32.gmra.mxu0 %v3015
        %v5598 = vpop.f32.mrf.mxu0
        %v5599 = vadd.f32 %v5579, %v5598
        %5600 = vdwg.mxu0
        %5601 = vmatpush.msra.mxu0 %v1787
        %5602 = vmatpush.msra.mxu0 %v1785
        %5603 = vmatpush.msra.mxu0 %v1783
        %5604 = vmatpush.msra.mxu0 %v1781
        %5605 = vmatpush.msra.mxu0 %v1779
        %5606 = vmatpush.msra.mxu0 %v1777
        %5607 = vmatpush.msra.mxu0 %v1775
        %5608 = vmatpush.msra.mxu0 %v1773
        %5609 = vmatpush.msra.mxu0 %v1771
        %5610 = vmatpush.msra.mxu0 %v1769
        %5611 = vmatpush.msra.mxu0 %v1767
        %5612 = vmatpush.msra.mxu0 %v1765
        %5613 = vmatpush.msra.mxu0 %v1763
        %5614 = vmatpush.msra.mxu0 %v1761
        %5615 = vmatpush.msra.mxu0 %v1759
        %5616 = vmatpush.msra.mxu0 %v1757
        %5617 = vmatmul.f32.gmra.mxu0 %v3016
        %v5618 = vpop.f32.mrf.mxu0
        %v5619 = vadd.f32 %v5599, %v5618
        %5620 = vdwg.mxu0
        %5621 = vmatpush.msra.mxu0 %v1819
        %5622 = vmatpush.msra.mxu0 %v1817
        %5623 = vmatpush.msra.mxu0 %v1815
        %5624 = vmatpush.msra.mxu0 %v1813
        %5625 = vmatpush.msra.mxu0 %v1811
        %5626 = vmatpush.msra.mxu0 %v1809
        %5627 = vmatpush.msra.mxu0 %v1807
        %5628 = vmatpush.msra.mxu0 %v1805
        %5629 = vmatpush.msra.mxu0 %v1803
        %5630 = vmatpush.msra.mxu0 %v1801
        %5631 = vmatpush.msra.mxu0 %v1799
        %5632 = vmatpush.msra.mxu0 %v1797
        %5633 = vmatpush.msra.mxu0 %v1795
        %5634 = vmatpush.msra.mxu0 %v1793
        %5635 = vmatpush.msra.mxu0 %v1791
        %5636 = vmatpush.msra.mxu0 %v1789
        %5637 = vmatmul.f32.gmra.mxu0 %v3017
        %v5638 = vpop.f32.mrf.mxu0
        %v5639 = vadd.f32 %v5619, %v5638
        %5640 = vdwg.mxu0
        %5641 = vmatpush.msra.mxu0 %v1851
        %5642 = vmatpush.msra.mxu0 %v1849
        %5643 = vmatpush.msra.mxu0 %v1847
        %5644 = vmatpush.msra.mxu0 %v1845
        %5645 = vmatpush.msra.mxu0 %v1843
        %5646 = vmatpush.msra.mxu0 %v1841
        %5647 = vmatpush.msra.mxu0 %v1839
        %5648 = vmatpush.msra.mxu0 %v1837
        %5649 = vmatpush.msra.mxu0 %v1835
        %5650 = vmatpush.msra.mxu0 %v1833
        %5651 = vmatpush.msra.mxu0 %v1831
        %5652 = vmatpush.msra.mxu0 %v1829
        %5653 = vmatpush.msra.mxu0 %v1827
        %5654 = vmatpush.msra.mxu0 %v1825
        %5655 = vmatpush.msra.mxu0 %v1823
        %5656 = vmatpush.msra.mxu0 %v1821
        %5657 = vmatmul.f32.gmra.mxu0 %v3018
        %v5658 = vpop.f32.mrf.mxu0
        %v5659 = vadd.f32 %v5639, %v5658
        %5660 = vdwg.mxu0
        %5661 = vmatpush.msra.mxu0 %v1883
        %5662 = vmatpush.msra.mxu0 %v1881
        %5663 = vmatpush.msra.mxu0 %v1879
        %5664 = vmatpush.msra.mxu0 %v1877
        %5665 = vmatpush.msra.mxu0 %v1875
        %5666 = vmatpush.msra.mxu0 %v1873
        %5667 = vmatpush.msra.mxu0 %v1871
        %5668 = vmatpush.msra.mxu0 %v1869
        %5669 = vmatpush.msra.mxu0 %v1867
        %5670 = vmatpush.msra.mxu0 %v1865
        %5671 = vmatpush.msra.mxu0 %v1863
        %5672 = vmatpush.msra.mxu0 %v1861
        %5673 = vmatpush.msra.mxu0 %v1859
        %5674 = vmatpush.msra.mxu0 %v1857
        %5675 = vmatpush.msra.mxu0 %v1855
        %5676 = vmatpush.msra.mxu0 %v1853
        %5677 = vmatmul.f32.gmra.mxu0 %v3019
        %v5678 = vpop.f32.mrf.mxu0
        %v5679 = vadd.f32 %v5659, %v5678
        %5680 = vdwg.mxu0
        %5681 = vmatpush.msra.mxu0 %v1915
        %5682 = vmatpush.msra.mxu0 %v1913
        %5683 = vmatpush.msra.mxu0 %v1911
        %5684 = vmatpush.msra.mxu0 %v1909
        %5685 = vmatpush.msra.mxu0 %v1907
        %5686 = vmatpush.msra.mxu0 %v1905
        %5687 = vmatpush.msra.mxu0 %v1903
        %5688 = vmatpush.msra.mxu0 %v1901
        %5689 = vmatpush.msra.mxu0 %v1899
        %5690 = vmatpush.msra.mxu0 %v1897
        %5691 = vmatpush.msra.mxu0 %v1895
        %5692 = vmatpush.msra.mxu0 %v1893
        %5693 = vmatpush.msra.mxu0 %v1891
        %5694 = vmatpush.msra.mxu0 %v1889
        %5695 = vmatpush.msra.mxu0 %v1887
        %5696 = vmatpush.msra.mxu0 %v1885
        %5697 = vmatmul.f32.gmra.mxu0 %v3020
        %v5698 = vpop.f32.mrf.mxu0
        %v5699 = vadd.f32 %v5679, %v5698
        %5700 = vdwg.mxu0
        %5701 = vmatpush.msra.mxu0 %v1947
        %5702 = vmatpush.msra.mxu0 %v1945
        %5703 = vmatpush.msra.mxu0 %v1943
        %5704 = vmatpush.msra.mxu0 %v1941
        %5705 = vmatpush.msra.mxu0 %v1939
        %5706 = vmatpush.msra.mxu0 %v1937
        %5707 = vmatpush.msra.mxu0 %v1935
        %5708 = vmatpush.msra.mxu0 %v1933
        %5709 = vmatpush.msra.mxu0 %v1931
        %5710 = vmatpush.msra.mxu0 %v1929
        %5711 = vmatpush.msra.mxu0 %v1927
        %5712 = vmatpush.msra.mxu0 %v1925
        %5713 = vmatpush.msra.mxu0 %v1923
        %5714 = vmatpush.msra.mxu0 %v1921
        %5715 = vmatpush.msra.mxu0 %v1919
        %5716 = vmatpush.msra.mxu0 %v1917
        %5717 = vmatmul.f32.gmra.mxu0 %v3023
        %v5718 = vpop.f32.mrf.mxu0
        %v5719 = vadd.f32 %v5699, %v5718
        %5720 = vdwg.mxu0
        %5721 = vmatpush.msra.mxu0 %v1979
        %5722 = vmatpush.msra.mxu0 %v1977
        %5723 = vmatpush.msra.mxu0 %v1975
        %5724 = vmatpush.msra.mxu0 %v1973
        %5725 = vmatpush.msra.mxu0 %v1971
        %5726 = vmatpush.msra.mxu0 %v1969
        %5727 = vmatpush.msra.mxu0 %v1967
        %5728 = vmatpush.msra.mxu0 %v1965
        %5729 = vmatpush.msra.mxu0 %v1963
        %5730 = vmatpush.msra.mxu0 %v1961
        %5731 = vmatpush.msra.mxu0 %v1959
        %5732 = vmatpush.msra.mxu0 %v1957
        %5733 = vmatpush.msra.mxu0 %v1955
        %5734 = vmatpush.msra.mxu0 %v1953
        %5735 = vmatpush.msra.mxu0 %v1951
        %5736 = vmatpush.msra.mxu0 %v1949
        %5737 = vmatmul.f32.gmra.mxu0 %v3024
        %v5738 = vpop.f32.mrf.mxu0
        %v5739 = vadd.f32 %v5719, %v5738
        %5740 = vdwg.mxu0
        %5741 = vmatpush.msra.mxu0 %v2011
        %5742 = vmatpush.msra.mxu0 %v2009
        %5743 = vmatpush.msra.mxu0 %v2007
        %5744 = vmatpush.msra.mxu0 %v2005
        %5745 = vmatpush.msra.mxu0 %v2003
        %5746 = vmatpush.msra.mxu0 %v2001
        %5747 = vmatpush.msra.mxu0 %v1999
        %5748 = vmatpush.msra.mxu0 %v1997
        %5749 = vmatpush.msra.mxu0 %v1995
        %5750 = vmatpush.msra.mxu0 %v1993
        %5751 = vmatpush.msra.mxu0 %v1991
        %5752 = vmatpush.msra.mxu0 %v1989
        %5753 = vmatpush.msra.mxu0 %v1987
        %5754 = vmatpush.msra.mxu0 %v1985
        %5755 = vmatpush.msra.mxu0 %v1983
        %5756 = vmatpush.msra.mxu0 %v1981
        %5757 = vmatmul.f32.gmra.mxu0 %v3025
        %v5758 = vpop.f32.mrf.mxu0
        %v5759 = vadd.f32 %v5739, %v5758
        %5760 = vdwg.mxu0
        %5761 = vmatpush.msra.mxu0 %v2043
        %5762 = vmatpush.msra.mxu0 %v2041
        %5763 = vmatpush.msra.mxu0 %v2039
        %5764 = vmatpush.msra.mxu0 %v2037
        %5765 = vmatpush.msra.mxu0 %v2035
        %5766 = vmatpush.msra.mxu0 %v2033
        %5767 = vmatpush.msra.mxu0 %v2031
        %5768 = vmatpush.msra.mxu0 %v2029
        %5769 = vmatpush.msra.mxu0 %v2027
        %5770 = vmatpush.msra.mxu0 %v2025
        %5771 = vmatpush.msra.mxu0 %v2023
        %5772 = vmatpush.msra.mxu0 %v2021
        %5773 = vmatpush.msra.mxu0 %v2019
        %5774 = vmatpush.msra.mxu0 %v2017
        %5775 = vmatpush.msra.mxu0 %v2015
        %5776 = vmatpush.msra.mxu0 %v2013
        %5777 = vmatmul.f32.gmra.mxu0 %v3026
        %v5778 = vpop.f32.mrf.mxu0
        %v5779 = vadd.f32 %v5759, %v5778
        %5780 = vdwg.mxu0
        %5781 = vmatpush.msra.mxu0 %v2075
        %5782 = vmatpush.msra.mxu0 %v2073
        %5783 = vmatpush.msra.mxu0 %v2071
        %5784 = vmatpush.msra.mxu0 %v2069
        %5785 = vmatpush.msra.mxu0 %v2067
        %5786 = vmatpush.msra.mxu0 %v2065
        %5787 = vmatpush.msra.mxu0 %v2063
        %5788 = vmatpush.msra.mxu0 %v2061
        %5789 = vmatpush.msra.mxu0 %v2059
        %5790 = vmatpush.msra.mxu0 %v2057
        %5791 = vmatpush.msra.mxu0 %v2055
        %5792 = vmatpush.msra.mxu0 %v2053
        %5793 = vmatpush.msra.mxu0 %v2051
        %5794 = vmatpush.msra.mxu0 %v2049
        %5795 = vmatpush.msra.mxu0 %v2047
        %5796 = vmatpush.msra.mxu0 %v2045
        %5797 = vmatmul.f32.gmra.mxu0 %v3027
        %v5798 = vpop.f32.mrf.mxu0
        %v5799 = vadd.f32 %v5779, %v5798
        %5800 = vdwg.mxu0
        %5801 = vmatpush.msra.mxu0 %v2107
        %5802 = vmatpush.msra.mxu0 %v2105
        %5803 = vmatpush.msra.mxu0 %v2103
        %5804 = vmatpush.msra.mxu0 %v2101
        %5805 = vmatpush.msra.mxu0 %v2099
        %5806 = vmatpush.msra.mxu0 %v2097
        %5807 = vmatpush.msra.mxu0 %v2095
        %5808 = vmatpush.msra.mxu0 %v2093
        %5809 = vmatpush.msra.mxu0 %v2091
        %5810 = vmatpush.msra.mxu0 %v2089
        %5811 = vmatpush.msra.mxu0 %v2087
        %5812 = vmatpush.msra.mxu0 %v2085
        %5813 = vmatpush.msra.mxu0 %v2083
        %5814 = vmatpush.msra.mxu0 %v2081
        %5815 = vmatpush.msra.mxu0 %v2079
        %5816 = vmatpush.msra.mxu0 %v2077
        %5817 = vmatmul.f32.gmra.mxu0 %v3028
        %v5818 = vpop.f32.mrf.mxu0
        %v5819 = vadd.f32 %v5799, %v5818
        %5820 = vdwg.mxu0
        %5821 = vmatpush.msra.mxu0 %v2139
        %5822 = vmatpush.msra.mxu0 %v2137
        %5823 = vmatpush.msra.mxu0 %v2135
        %5824 = vmatpush.msra.mxu0 %v2133
        %5825 = vmatpush.msra.mxu0 %v2131
        %5826 = vmatpush.msra.mxu0 %v2129
        %5827 = vmatpush.msra.mxu0 %v2127
        %5828 = vmatpush.msra.mxu0 %v2125
        %5829 = vmatpush.msra.mxu0 %v2123
        %5830 = vmatpush.msra.mxu0 %v2121
        %5831 = vmatpush.msra.mxu0 %v2119
        %5832 = vmatpush.msra.mxu0 %v2117
        %5833 = vmatpush.msra.mxu0 %v2115
        %5834 = vmatpush.msra.mxu0 %v2113
        %5835 = vmatpush.msra.mxu0 %v2111
        %5836 = vmatpush.msra.mxu0 %v2109
        %5837 = vmatmul.f32.gmra.mxu0 %v3029
        %v5838 = vpop.f32.mrf.mxu0
        %v5839 = vadd.f32 %v5819, %v5838
        %5840 = vdwg.mxu0
        %5841 = vmatpush.msra.mxu0 %v2171
        %5842 = vmatpush.msra.mxu0 %v2169
        %5843 = vmatpush.msra.mxu0 %v2167
        %5844 = vmatpush.msra.mxu0 %v2165
        %5845 = vmatpush.msra.mxu0 %v2163
        %5846 = vmatpush.msra.mxu0 %v2161
        %5847 = vmatpush.msra.mxu0 %v2159
        %5848 = vmatpush.msra.mxu0 %v2157
        %5849 = vmatpush.msra.mxu0 %v2155
        %5850 = vmatpush.msra.mxu0 %v2153
        %5851 = vmatpush.msra.mxu0 %v2151
        %5852 = vmatpush.msra.mxu0 %v2149
        %5853 = vmatpush.msra.mxu0 %v2147
        %5854 = vmatpush.msra.mxu0 %v2145
        %5855 = vmatpush.msra.mxu0 %v2143
        %5856 = vmatpush.msra.mxu0 %v2141
        %5857 = vmatmul.f32.gmra.mxu0 %v3030
        %v5858 = vpop.f32.mrf.mxu0
        %v5859 = vadd.f32 %v5839, %v5858
        %5860 = vdwg.mxu0
        %5861 = vmatpush.msra.mxu0 %v2203
        %5862 = vmatpush.msra.mxu0 %v2201
        %5863 = vmatpush.msra.mxu0 %v2199
        %5864 = vmatpush.msra.mxu0 %v2197
        %5865 = vmatpush.msra.mxu0 %v2195
        %5866 = vmatpush.msra.mxu0 %v2193
        %5867 = vmatpush.msra.mxu0 %v2191
        %5868 = vmatpush.msra.mxu0 %v2189
        %5869 = vmatpush.msra.mxu0 %v2187
        %5870 = vmatpush.msra.mxu0 %v2185
        %5871 = vmatpush.msra.mxu0 %v2183
        %5872 = vmatpush.msra.mxu0 %v2181
        %5873 = vmatpush.msra.mxu0 %v2179
        %5874 = vmatpush.msra.mxu0 %v2177
        %5875 = vmatpush.msra.mxu0 %v2175
        %5876 = vmatpush.msra.mxu0 %v2173
        %5877 = vmatmul.f32.gmra.mxu0 %v3033
        %v5878 = vpop.f32.mrf.mxu0
        %v5879 = vadd.f32 %v5859, %v5878
        %5880 = vdwg.mxu0
        %5881 = vmatpush.msra.mxu0 %v2235
        %5882 = vmatpush.msra.mxu0 %v2233
        %5883 = vmatpush.msra.mxu0 %v2231
        %5884 = vmatpush.msra.mxu0 %v2229
        %5885 = vmatpush.msra.mxu0 %v2227
        %5886 = vmatpush.msra.mxu0 %v2225
        %5887 = vmatpush.msra.mxu0 %v2223
        %5888 = vmatpush.msra.mxu0 %v2221
        %5889 = vmatpush.msra.mxu0 %v2219
        %5890 = vmatpush.msra.mxu0 %v2217
        %5891 = vmatpush.msra.mxu0 %v2215
        %5892 = vmatpush.msra.mxu0 %v2213
        %5893 = vmatpush.msra.mxu0 %v2211
        %5894 = vmatpush.msra.mxu0 %v2209
        %5895 = vmatpush.msra.mxu0 %v2207
        %5896 = vmatpush.msra.mxu0 %v2205
        %5897 = vmatmul.f32.gmra.mxu0 %v3034
        %v5898 = vpop.f32.mrf.mxu0
        %v5899 = vadd.f32 %v5879, %v5898
        %5900 = vdwg.mxu0
        %5901 = vmatpush.msra.mxu0 %v2267
        %5902 = vmatpush.msra.mxu0 %v2265
        %5903 = vmatpush.msra.mxu0 %v2263
        %5904 = vmatpush.msra.mxu0 %v2261
        %5905 = vmatpush.msra.mxu0 %v2259
        %5906 = vmatpush.msra.mxu0 %v2257
        %5907 = vmatpush.msra.mxu0 %v2255
        %5908 = vmatpush.msra.mxu0 %v2253
        %5909 = vmatpush.msra.mxu0 %v2251
        %5910 = vmatpush.msra.mxu0 %v2249
        %5911 = vmatpush.msra.mxu0 %v2247
        %5912 = vmatpush.msra.mxu0 %v2245
        %5913 = vmatpush.msra.mxu0 %v2243
        %5914 = vmatpush.msra.mxu0 %v2241
        %5915 = vmatpush.msra.mxu0 %v2239
        %5916 = vmatpush.msra.mxu0 %v2237
        %5917 = vmatmul.f32.gmra.mxu0 %v3035
        %v5918 = vpop.f32.mrf.mxu0
        %v5919 = vadd.f32 %v5899, %v5918
        %5920 = vdwg.mxu0
        %5921 = vmatpush.msra.mxu0 %v2299
        %5922 = vmatpush.msra.mxu0 %v2297
        %5923 = vmatpush.msra.mxu0 %v2295
        %5924 = vmatpush.msra.mxu0 %v2293
        %5925 = vmatpush.msra.mxu0 %v2291
        %5926 = vmatpush.msra.mxu0 %v2289
        %5927 = vmatpush.msra.mxu0 %v2287
        %5928 = vmatpush.msra.mxu0 %v2285
        %5929 = vmatpush.msra.mxu0 %v2283
        %5930 = vmatpush.msra.mxu0 %v2281
        %5931 = vmatpush.msra.mxu0 %v2279
        %5932 = vmatpush.msra.mxu0 %v2277
        %5933 = vmatpush.msra.mxu0 %v2275
        %5934 = vmatpush.msra.mxu0 %v2273
        %5935 = vmatpush.msra.mxu0 %v2271
        %5936 = vmatpush.msra.mxu0 %v2269
        %5937 = vmatmul.f32.gmra.mxu0 %v3036
        %v5938 = vpop.f32.mrf.mxu0
        %v5939 = vadd.f32 %v5919, %v5938
        %5940 = vdwg.mxu0
        %5941 = vmatpush.msra.mxu0 %v2331
        %5942 = vmatpush.msra.mxu0 %v2329
        %5943 = vmatpush.msra.mxu0 %v2327
        %5944 = vmatpush.msra.mxu0 %v2325
        %5945 = vmatpush.msra.mxu0 %v2323
        %5946 = vmatpush.msra.mxu0 %v2321
        %5947 = vmatpush.msra.mxu0 %v2319
        %5948 = vmatpush.msra.mxu0 %v2317
        %5949 = vmatpush.msra.mxu0 %v2315
        %5950 = vmatpush.msra.mxu0 %v2313
        %5951 = vmatpush.msra.mxu0 %v2311
        %5952 = vmatpush.msra.mxu0 %v2309
        %5953 = vmatpush.msra.mxu0 %v2307
        %5954 = vmatpush.msra.mxu0 %v2305
        %5955 = vmatpush.msra.mxu0 %v2303
        %5956 = vmatpush.msra.mxu0 %v2301
        %5957 = vmatmul.f32.gmra.mxu0 %v3037
        %v5958 = vpop.f32.mrf.mxu0
        %v5959 = vadd.f32 %v5939, %v5958
        %5960 = vdwg.mxu0
        %5961 = vmatpush.msra.mxu0 %v2363
        %5962 = vmatpush.msra.mxu0 %v2361
        %5963 = vmatpush.msra.mxu0 %v2359
        %5964 = vmatpush.msra.mxu0 %v2357
        %5965 = vmatpush.msra.mxu0 %v2355
        %5966 = vmatpush.msra.mxu0 %v2353
        %5967 = vmatpush.msra.mxu0 %v2351
        %5968 = vmatpush.msra.mxu0 %v2349
        %5969 = vmatpush.msra.mxu0 %v2347
        %5970 = vmatpush.msra.mxu0 %v2345
        %5971 = vmatpush.msra.mxu0 %v2343
        %5972 = vmatpush.msra.mxu0 %v2341
        %5973 = vmatpush.msra.mxu0 %v2339
        %5974 = vmatpush.msra.mxu0 %v2337
        %5975 = vmatpush.msra.mxu0 %v2335
        %5976 = vmatpush.msra.mxu0 %v2333
        %5977 = vmatmul.f32.gmra.mxu0 %v3038
        %v5978 = vpop.f32.mrf.mxu0
        %v5979 = vadd.f32 %v5959, %v5978
        %5980 = vdwg.mxu0
        %5981 = vmatpush.msra.mxu0 %v2395
        %5982 = vmatpush.msra.mxu0 %v2393
        %5983 = vmatpush.msra.mxu0 %v2391
        %5984 = vmatpush.msra.mxu0 %v2389
        %5985 = vmatpush.msra.mxu0 %v2387
        %5986 = vmatpush.msra.mxu0 %v2385
        %5987 = vmatpush.msra.mxu0 %v2383
        %5988 = vmatpush.msra.mxu0 %v2381
        %5989 = vmatpush.msra.mxu0 %v2379
        %5990 = vmatpush.msra.mxu0 %v2377
        %5991 = vmatpush.msra.mxu0 %v2375
        %5992 = vmatpush.msra.mxu0 %v2373
        %5993 = vmatpush.msra.mxu0 %v2371
        %5994 = vmatpush.msra.mxu0 %v2369
        %5995 = vmatpush.msra.mxu0 %v2367
        %5996 = vmatpush.msra.mxu0 %v2365
        %5997 = vmatmul.f32.gmra.mxu0 %v3039
        %v5998 = vpop.f32.mrf.mxu0
        %v5999 = vadd.f32 %v5979, %v5998
        %6000 = vdwg.mxu0
        %6001 = vmatpush.msra.mxu0 %v2427
        %6002 = vmatpush.msra.mxu0 %v2425
        %6003 = vmatpush.msra.mxu0 %v2423
        %6004 = vmatpush.msra.mxu0 %v2421
        %6005 = vmatpush.msra.mxu0 %v2419
        %6006 = vmatpush.msra.mxu0 %v2417
        %6007 = vmatpush.msra.mxu0 %v2415
        %6008 = vmatpush.msra.mxu0 %v2413
        %6009 = vmatpush.msra.mxu0 %v2411
        %6010 = vmatpush.msra.mxu0 %v2409
        %6011 = vmatpush.msra.mxu0 %v2407
        %6012 = vmatpush.msra.mxu0 %v2405
        %6013 = vmatpush.msra.mxu0 %v2403
        %6014 = vmatpush.msra.mxu0 %v2401
        %6015 = vmatpush.msra.mxu0 %v2399
        %6016 = vmatpush.msra.mxu0 %v2397
        %6017 = vmatmul.f32.gmra.mxu0 %v3040
        %v6018 = vpop.f32.mrf.mxu0
        %v6019 = vadd.f32 %v5999, %v6018
        %6020 = vdwg.mxu0
        %6021 = vmatpush.msra.mxu0 %v2459
        %6022 = vmatpush.msra.mxu0 %v2457
        %6023 = vmatpush.msra.mxu0 %v2455
        %6024 = vmatpush.msra.mxu0 %v2453
        %6025 = vmatpush.msra.mxu0 %v2451
        %6026 = vmatpush.msra.mxu0 %v2449
        %6027 = vmatpush.msra.mxu0 %v2447
        %6028 = vmatpush.msra.mxu0 %v2445
        %6029 = vmatpush.msra.mxu0 %v2443
        %6030 = vmatpush.msra.mxu0 %v2441
        %6031 = vmatpush.msra.mxu0 %v2439
        %6032 = vmatpush.msra.mxu0 %v2437
        %6033 = vmatpush.msra.mxu0 %v2435
        %6034 = vmatpush.msra.mxu0 %v2433
        %6035 = vmatpush.msra.mxu0 %v2431
        %6036 = vmatpush.msra.mxu0 %v2429
        %6037 = vmatmul.f32.gmra.mxu0 %v3043
        %v6038 = vpop.f32.mrf.mxu0
        %v6039 = vadd.f32 %v6019, %v6038
        %6040 = vdwg.mxu0
        %6041 = vmatpush.msra.mxu0 %v2491
        %6042 = vmatpush.msra.mxu0 %v2489
        %6043 = vmatpush.msra.mxu0 %v2487
        %6044 = vmatpush.msra.mxu0 %v2485
        %6045 = vmatpush.msra.mxu0 %v2483
        %6046 = vmatpush.msra.mxu0 %v2481
        %6047 = vmatpush.msra.mxu0 %v2479
        %6048 = vmatpush.msra.mxu0 %v2477
        %6049 = vmatpush.msra.mxu0 %v2475
        %6050 = vmatpush.msra.mxu0 %v2473
        %6051 = vmatpush.msra.mxu0 %v2471
        %6052 = vmatpush.msra.mxu0 %v2469
        %6053 = vmatpush.msra.mxu0 %v2467
        %6054 = vmatpush.msra.mxu0 %v2465
        %6055 = vmatpush.msra.mxu0 %v2463
        %6056 = vmatpush.msra.mxu0 %v2461
        %6057 = vmatmul.f32.gmra.mxu0 %v3044
        %v6058 = vpop.f32.mrf.mxu0
        %v6059 = vadd.f32 %v6039, %v6058
        %6060 = vdwg.mxu0
        %6061 = vmatpush.msra.mxu0 %v2523
        %6062 = vmatpush.msra.mxu0 %v2521
        %6063 = vmatpush.msra.mxu0 %v2519
        %6064 = vmatpush.msra.mxu0 %v2517
        %6065 = vmatpush.msra.mxu0 %v2515
        %6066 = vmatpush.msra.mxu0 %v2513
        %6067 = vmatpush.msra.mxu0 %v2511
        %6068 = vmatpush.msra.mxu0 %v2509
        %6069 = vmatpush.msra.mxu0 %v2507
        %6070 = vmatpush.msra.mxu0 %v2505
        %6071 = vmatpush.msra.mxu0 %v2503
        %6072 = vmatpush.msra.mxu0 %v2501
        %6073 = vmatpush.msra.mxu0 %v2499
        %6074 = vmatpush.msra.mxu0 %v2497
        %6075 = vmatpush.msra.mxu0 %v2495
        %6076 = vmatpush.msra.mxu0 %v2493
        %6077 = vmatmul.f32.gmra.mxu0 %v3045
        %v6078 = vpop.f32.mrf.mxu0
        %v6079 = vadd.f32 %v6059, %v6078
        %6080 = vdwg.mxu0
        %6081 = vmatpush.msra.mxu0 %v2555
        %6082 = vmatpush.msra.mxu0 %v2553
        %6083 = vmatpush.msra.mxu0 %v2551
        %6084 = vmatpush.msra.mxu0 %v2549
        %6085 = vmatpush.msra.mxu0 %v2547
        %6086 = vmatpush.msra.mxu0 %v2545
        %6087 = vmatpush.msra.mxu0 %v2543
        %6088 = vmatpush.msra.mxu0 %v2541
        %6089 = vmatpush.msra.mxu0 %v2539
        %6090 = vmatpush.msra.mxu0 %v2537
        %6091 = vmatpush.msra.mxu0 %v2535
        %6092 = vmatpush.msra.mxu0 %v2533
        %6093 = vmatpush.msra.mxu0 %v2531
        %6094 = vmatpush.msra.mxu0 %v2529
        %6095 = vmatpush.msra.mxu0 %v2527
        %6096 = vmatpush.msra.mxu0 %v2525
        %6097 = vmatmul.f32.gmra.mxu0 %v3046
        %v6098 = vpop.f32.mrf.mxu0
        %v6099 = vadd.f32 %v6079, %v6098
        %6100 = vdwg.mxu0
        %6101 = vmatpush.msra.mxu0 %v2587
        %6102 = vmatpush.msra.mxu0 %v2585
        %6103 = vmatpush.msra.mxu0 %v2583
        %6104 = vmatpush.msra.mxu0 %v2581
        %6105 = vmatpush.msra.mxu0 %v2579
        %6106 = vmatpush.msra.mxu0 %v2577
        %6107 = vmatpush.msra.mxu0 %v2575
        %6108 = vmatpush.msra.mxu0 %v2573
        %6109 = vmatpush.msra.mxu0 %v2571
        %6110 = vmatpush.msra.mxu0 %v2569
        %6111 = vmatpush.msra.mxu0 %v2567
        %6112 = vmatpush.msra.mxu0 %v2565
        %6113 = vmatpush.msra.mxu0 %v2563
        %6114 = vmatpush.msra.mxu0 %v2561
        %6115 = vmatpush.msra.mxu0 %v2559
        %6116 = vmatpush.msra.mxu0 %v2557
        %6117 = vmatmul.f32.gmra.mxu0 %v3047
        %v6118 = vpop.f32.mrf.mxu0
        %v6119 = vadd.f32 %v6099, %v6118
        %6120 = vdwg.mxu0
        %6121 = vmatpush.msra.mxu0 %v2619
        %6122 = vmatpush.msra.mxu0 %v2617
        %6123 = vmatpush.msra.mxu0 %v2615
        %6124 = vmatpush.msra.mxu0 %v2613
        %6125 = vmatpush.msra.mxu0 %v2611
        %6126 = vmatpush.msra.mxu0 %v2609
        %6127 = vmatpush.msra.mxu0 %v2607
        %6128 = vmatpush.msra.mxu0 %v2605
        %6129 = vmatpush.msra.mxu0 %v2603
        %6130 = vmatpush.msra.mxu0 %v2601
        %6131 = vmatpush.msra.mxu0 %v2599
        %6132 = vmatpush.msra.mxu0 %v2597
        %6133 = vmatpush.msra.mxu0 %v2595
        %6134 = vmatpush.msra.mxu0 %v2593
        %6135 = vmatpush.msra.mxu0 %v2591
        %6136 = vmatpush.msra.mxu0 %v2589
        %6137 = vmatmul.f32.gmra.mxu0 %v3048
        %v6138 = vpop.f32.mrf.mxu0
        %v6139 = vadd.f32 %v6119, %v6138
        %6140 = vdwg.mxu0
        %6141 = vmatpush.msra.mxu0 %v2651
        %6142 = vmatpush.msra.mxu0 %v2649
        %6143 = vmatpush.msra.mxu0 %v2647
        %6144 = vmatpush.msra.mxu0 %v2645
        %6145 = vmatpush.msra.mxu0 %v2643
        %6146 = vmatpush.msra.mxu0 %v2641
        %6147 = vmatpush.msra.mxu0 %v2639
        %6148 = vmatpush.msra.mxu0 %v2637
        %6149 = vmatpush.msra.mxu0 %v2635
        %6150 = vmatpush.msra.mxu0 %v2633
        %6151 = vmatpush.msra.mxu0 %v2631
        %6152 = vmatpush.msra.mxu0 %v2629
        %6153 = vmatpush.msra.mxu0 %v2627
        %6154 = vmatpush.msra.mxu0 %v2625
        %6155 = vmatpush.msra.mxu0 %v2623
        %6156 = vmatpush.msra.mxu0 %v2621
        %6157 = vmatmul.f32.gmra.mxu0 %v3049
        %v6158 = vpop.f32.mrf.mxu0
        %v6159 = vadd.f32 %v6139, %v6158
        %6160 = vdwg.mxu0
        %6161 = vmatpush.msra.mxu0 %v2683
        %6162 = vmatpush.msra.mxu0 %v2681
        %6163 = vmatpush.msra.mxu0 %v2679
        %6164 = vmatpush.msra.mxu0 %v2677
        %6165 = vmatpush.msra.mxu0 %v2675
        %6166 = vmatpush.msra.mxu0 %v2673
        %6167 = vmatpush.msra.mxu0 %v2671
        %6168 = vmatpush.msra.mxu0 %v2669
        %6169 = vmatpush.msra.mxu0 %v2667
        %6170 = vmatpush.msra.mxu0 %v2665
        %6171 = vmatpush.msra.mxu0 %v2663
        %6172 = vmatpush.msra.mxu0 %v2661
        %6173 = vmatpush.msra.mxu0 %v2659
        %6174 = vmatpush.msra.mxu0 %v2657
        %6175 = vmatpush.msra.mxu0 %v2655
        %6176 = vmatpush.msra.mxu0 %v2653
        %6177 = vmatmul.f32.gmra.mxu0 %v3050
        %v6178 = vpop.f32.mrf.mxu0
        %v6179 = vadd.f32 %v6159, %v6178
        %6180 = vdwg.mxu0
        %6181 = vmatpush.msra.mxu0 %v2715
        %6182 = vmatpush.msra.mxu0 %v2713
        %6183 = vmatpush.msra.mxu0 %v2711
        %6184 = vmatpush.msra.mxu0 %v2709
        %6185 = vmatpush.msra.mxu0 %v2707
        %6186 = vmatpush.msra.mxu0 %v2705
        %6187 = vmatpush.msra.mxu0 %v2703
        %6188 = vmatpush.msra.mxu0 %v2701
        %6189 = vmatpush.msra.mxu0 %v2699
        %6190 = vmatpush.msra.mxu0 %v2697
        %6191 = vmatpush.msra.mxu0 %v2695
        %6192 = vmatpush.msra.mxu0 %v2693
        %6193 = vmatpush.msra.mxu0 %v2691
        %6194 = vmatpush.msra.mxu0 %v2689
        %6195 = vmatpush.msra.mxu0 %v2687
        %6196 = vmatpush.msra.mxu0 %v2685
        %6197 = vmatmul.f32.gmra.mxu0 %v3053
        %v6198 = vpop.f32.mrf.mxu0
        %v6199 = vadd.f32 %v6179, %v6198
        %6200 = vdwg.mxu0
        %6201 = vmatpush.msra.mxu0 %v2747
        %6202 = vmatpush.msra.mxu0 %v2745
        %6203 = vmatpush.msra.mxu0 %v2743
        %6204 = vmatpush.msra.mxu0 %v2741
        %6205 = vmatpush.msra.mxu0 %v2739
        %6206 = vmatpush.msra.mxu0 %v2737
        %6207 = vmatpush.msra.mxu0 %v2735
        %6208 = vmatpush.msra.mxu0 %v2733
        %6209 = vmatpush.msra.mxu0 %v2731
        %6210 = vmatpush.msra.mxu0 %v2729
        %6211 = vmatpush.msra.mxu0 %v2727
        %6212 = vmatpush.msra.mxu0 %v2725
        %6213 = vmatpush.msra.mxu0 %v2723
        %6214 = vmatpush.msra.mxu0 %v2721
        %6215 = vmatpush.msra.mxu0 %v2719
        %6216 = vmatpush.msra.mxu0 %v2717
        %6217 = vmatmul.f32.gmra.mxu0 %v3054
        %v6218 = vpop.f32.mrf.mxu0
        %v6219 = vadd.f32 %v6199, %v6218
        %6220 = vdwg.mxu0
        %6221 = vmatpush.msra.mxu0 %v2779
        %6222 = vmatpush.msra.mxu0 %v2777
        %6223 = vmatpush.msra.mxu0 %v2775
        %6224 = vmatpush.msra.mxu0 %v2773
        %6225 = vmatpush.msra.mxu0 %v2771
        %6226 = vmatpush.msra.mxu0 %v2769
        %6227 = vmatpush.msra.mxu0 %v2767
        %6228 = vmatpush.msra.mxu0 %v2765
        %6229 = vmatpush.msra.mxu0 %v2763
        %6230 = vmatpush.msra.mxu0 %v2761
        %6231 = vmatpush.msra.mxu0 %v2759
        %6232 = vmatpush.msra.mxu0 %v2757
        %6233 = vmatpush.msra.mxu0 %v2755
        %6234 = vmatpush.msra.mxu0 %v2753
        %6235 = vmatpush.msra.mxu0 %v2751
        %6236 = vmatpush.msra.mxu0 %v2749
        %6237 = vmatmul.f32.gmra.mxu0 %v3055
        %v6238 = vpop.f32.mrf.mxu0
        %v6239 = vadd.f32 %v6219, %v6238
        %6240 = vdwg.mxu0
        %6241 = vmatpush.msra.mxu0 %v2811
        %6242 = vmatpush.msra.mxu0 %v2809
        %6243 = vmatpush.msra.mxu0 %v2807
        %6244 = vmatpush.msra.mxu0 %v2805
        %6245 = vmatpush.msra.mxu0 %v2803
        %6246 = vmatpush.msra.mxu0 %v2801
        %6247 = vmatpush.msra.mxu0 %v2799
        %6248 = vmatpush.msra.mxu0 %v2797
        %6249 = vmatpush.msra.mxu0 %v2795
        %6250 = vmatpush.msra.mxu0 %v2793
        %6251 = vmatpush.msra.mxu0 %v2791
        %6252 = vmatpush.msra.mxu0 %v2789
        %6253 = vmatpush.msra.mxu0 %v2787
        %6254 = vmatpush.msra.mxu0 %v2785
        %6255 = vmatpush.msra.mxu0 %v2783
        %6256 = vmatpush.msra.mxu0 %v2781
        %6257 = vmatmul.f32.gmra.mxu0 %v3056
        %v6258 = vpop.f32.mrf.mxu0
        %v6259 = vadd.f32 %v6239, %v6258
        %6260 = vdwg.mxu0
        %6261 = vmatpush.msra.mxu0 %v2843
        %6262 = vmatpush.msra.mxu0 %v2841
        %6263 = vmatpush.msra.mxu0 %v2839
        %6264 = vmatpush.msra.mxu0 %v2837
        %6265 = vmatpush.msra.mxu0 %v2835
        %6266 = vmatpush.msra.mxu0 %v2833
        %6267 = vmatpush.msra.mxu0 %v2831
        %6268 = vmatpush.msra.mxu0 %v2829
        %6269 = vmatpush.msra.mxu0 %v2827
        %6270 = vmatpush.msra.mxu0 %v2825
        %6271 = vmatpush.msra.mxu0 %v2823
        %6272 = vmatpush.msra.mxu0 %v2821
        %6273 = vmatpush.msra.mxu0 %v2819
        %6274 = vmatpush.msra.mxu0 %v2817
        %6275 = vmatpush.msra.mxu0 %v2815
        %6276 = vmatpush.msra.mxu0 %v2813
        %6277 = vmatmul.f32.gmra.mxu0 %v3057
        %v6278 = vpop.f32.mrf.mxu0
        %v6279 = vadd.f32 %v6259, %v6278
        %6280 = vdwg.mxu0
        %6281 = vmatpush.msra.mxu0 %v2875
        %6282 = vmatpush.msra.mxu0 %v2873
        %6283 = vmatpush.msra.mxu0 %v2871
        %6284 = vmatpush.msra.mxu0 %v2869
        %6285 = vmatpush.msra.mxu0 %v2867
        %6286 = vmatpush.msra.mxu0 %v2865
        %6287 = vmatpush.msra.mxu0 %v2863
        %6288 = vmatpush.msra.mxu0 %v2861
        %6289 = vmatpush.msra.mxu0 %v2859
        %6290 = vmatpush.msra.mxu0 %v2857
        %6291 = vmatpush.msra.mxu0 %v2855
        %6292 = vmatpush.msra.mxu0 %v2853
        %6293 = vmatpush.msra.mxu0 %v2851
        %6294 = vmatpush.msra.mxu0 %v2849
        %6295 = vmatpush.msra.mxu0 %v2847
        %6296 = vmatpush.msra.mxu0 %v2845
        %6297 = vmatmul.f32.gmra.mxu0 %v3058
        %v6298 = vpop.f32.mrf.mxu0
        %v6299 = vadd.f32 %v6279, %v6298
        %6300 = vdwg.mxu0
        %6301 = vmatpush.msra.mxu0 %v2907
        %6302 = vmatpush.msra.mxu0 %v2905
        %6303 = vmatpush.msra.mxu0 %v2903
        %6304 = vmatpush.msra.mxu0 %v2901
        %6305 = vmatpush.msra.mxu0 %v2899
        %6306 = vmatpush.msra.mxu0 %v2897
        %6307 = vmatpush.msra.mxu0 %v2895
        %6308 = vmatpush.msra.mxu0 %v2893
        %6309 = vmatpush.msra.mxu0 %v2891
        %6310 = vmatpush.msra.mxu0 %v2889
        %6311 = vmatpush.msra.mxu0 %v2887
        %6312 = vmatpush.msra.mxu0 %v2885
        %6313 = vmatpush.msra.mxu0 %v2883
        %6314 = vmatpush.msra.mxu0 %v2881
        %6315 = vmatpush.msra.mxu0 %v2879
        %6316 = vmatpush.msra.mxu0 %v2877
        %6317 = vmatmul.f32.gmra.mxu0 %v3059
        %v6318 = vpop.f32.mrf.mxu0
        %v6319 = vadd.f32 %v6299, %v6318
        %6320 = vdwg.mxu0
        %6321 = vmatpush.msra.mxu0 %v2939
        %6322 = vmatpush.msra.mxu0 %v2937
        %6323 = vmatpush.msra.mxu0 %v2935
        %6324 = vmatpush.msra.mxu0 %v2933
        %6325 = vmatpush.msra.mxu0 %v2931
        %6326 = vmatpush.msra.mxu0 %v2929
        %6327 = vmatpush.msra.mxu0 %v2927
        %6328 = vmatpush.msra.mxu0 %v2925
        %6329 = vmatpush.msra.mxu0 %v2923
        %6330 = vmatpush.msra.mxu0 %v2921
        %6331 = vmatpush.msra.mxu0 %v2919
        %6332 = vmatpush.msra.mxu0 %v2917
        %6333 = vmatpush.msra.mxu0 %v2915
        %6334 = vmatpush.msra.mxu0 %v2913
        %6335 = vmatpush.msra.mxu0 %v2911
        %6336 = vmatpush.msra.mxu0 %v2909
        %6337 = vmatmul.f32.gmra.mxu0 %v3060
        %v6338 = vpop.f32.mrf.mxu0
        %v6339 = vadd.f32 %v6319, %v6338
        %6340 = vdwg.mxu0
        %v6343 = vrot.slane %v6339, 6
        %vm6344 = vcmask 1041408
        %v6345 = vsel %vm6344, %v4739, %v6343
        %v6347 = vadd.f32 %v359, %v6345
        %6348 = vst [vmem:[#allocation2] sm:$0xf] %v6347
        %p6349 = scmp.eq.s32.totalorder %s27, 1
        // Predicated region
        $region53: #{effnet_moon_heads.1} parent=47 // pred_check
          %p6350 = pneg %p6349
        $region54: #{effnet_moon_heads.1} parent=47 // pred_check_branch
          %6352 = sbr.rel (%p6350) target = $region56
        $region55: #{effnet_moon_heads.1} parent=47 // pred_region
          %v6353 = vld [vmem:[#allocation2] sm:$0xf]
          %v6354 = vld [vmem:[%s2] sm:$0x3]
          %v6356 = vperm.slane %v6354, 0
          %v6357 = vperm.slane %v6354, 1
          %v6358 = vrot.slane %v6357, 6
          %v6359 = vsel %vm6344, %v6356, %v6358
          %v6361 = vadd.f32 %v6353, %v6359
          %v6362 = vmax.f32 %v6361, 0.0
          %v6363 = vld [vmem:[%s3] sm:$0xff]
          %v6364 = vld [vmem:[%s3 + $0x8] sm:$0xff]
          %v6365 = vld [vmem:[%s3 + $0x10] sm:$0xff]
          %v6366 = vld [vmem:[%s3 + $0x18] sm:$0xff]
          %v6367 = vld [vmem:[%s3 + $0x20] sm:$0xff]
          %v6368 = vld [vmem:[%s3 + $0x28] sm:$0xff]
          %v6369 = vld [vmem:[%s3 + $0x30] sm:$0xff]
          %v6370 = vld [vmem:[%s3 + $0x38] sm:$0xff]
          %v6371 = vld [vmem:[%s3 + $0x40] sm:$0xff]
          %v6372 = vld [vmem:[%s3 + $0x48] sm:$0xff]
          %v6373 = vld [vmem:[%s3 + $0x50] sm:$0xff]
          %v6374 = vld [vmem:[%s3 + $0x58] sm:$0xff]
          %v6375 = vld [vmem:[%s3 + $0x60] sm:$0xff]
          %v6376 = vld [vmem:[%s3 + $0x68] sm:$0xff]
          %v6377 = vld [vmem:[%s3 + $0x70] sm:$0xff]
          %v6378 = vld [vmem:[%s3 + $0x78] sm:$0xff]
          %v6379 = vld [vmem:[%s3 + $0x80] sm:$0xff]
          %v6380 = vld [vmem:[%s3 + $0x88] sm:$0xff]
          %v6381 = vld [vmem:[%s3 + $0x90] sm:$0xff]
          %v6382 = vld [vmem:[%s3 + $0x98] sm:$0xff]
          %v6383 = vld [vmem:[%s3 + $0xa0] sm:$0xff]
          %v6384 = vld [vmem:[%s3 + $0xa8] sm:$0xff]
          %v6385 = vld [vmem:[%s3 + $0xb0] sm:$0xff]
          %v6386 = vld [vmem:[%s3 + $0xb8] sm:$0xff]
          %v6387 = vld [vmem:[%s3 + $0xc0] sm:$0xff]
          %v6388 = vld [vmem:[%s3 + $0xc8] sm:$0xff]
          %v6389 = vld [vmem:[%s3 + $0xd0] sm:$0xff]
          %v6390 = vld [vmem:[%s3 + $0xd8] sm:$0xff]
          %v6391 = vld [vmem:[%s3 + $0xe0] sm:$0xff]
          %v6392 = vld [vmem:[%s3 + $0xe8] sm:$0xff]
          %v6393 = vld [vmem:[%s3 + $0xf0] sm:$0xff]
          %v6394 = vld [vmem:[%s3 + $0xf8] sm:$0xff]
          %v6395 = vld [vmem:[%s3 + $0x100] sm:$0xff]
          %v6396 = vld [vmem:[%s3 + $0x108] sm:$0xff]
          %v6397 = vld [vmem:[%s3 + $0x110] sm:$0xff]
          %v6398 = vld [vmem:[%s3 + $0x118] sm:$0xff]
          %v6399 = vld [vmem:[%s3 + $0x120] sm:$0xff]
          %v6400 = vld [vmem:[%s3 + $0x128] sm:$0xff]
          %v6401 = vld [vmem:[%s3 + $0x130] sm:$0xff]
          %v6402 = vld [vmem:[%s3 + $0x138] sm:$0xff]
          %v6403 = vld [vmem:[%s3 + $0x140] sm:$0xff]
          %v6404 = vld [vmem:[%s3 + $0x148] sm:$0xff]
          %v6405 = vld [vmem:[%s3 + $0x150] sm:$0xff]
          %v6406 = vld [vmem:[%s3 + $0x158] sm:$0xff]
          %v6407 = vld [vmem:[%s3 + $0x160] sm:$0xff]
          %v6408 = vld [vmem:[%s3 + $0x168] sm:$0xff]
          %v6409 = vld [vmem:[%s3 + $0x170] sm:$0xff]
          %v6410 = vld [vmem:[%s3 + $0x178] sm:$0xff]
          %v6411 = vld [vmem:[%s3 + $0x180] sm:$0xff]
          %v6412 = vld [vmem:[%s3 + $0x188] sm:$0xff]
          %v6413 = vld [vmem:[%s3 + $0x190] sm:$0xff]
          %v6414 = vld [vmem:[%s3 + $0x198] sm:$0xff]
          %v6415 = vld [vmem:[%s3 + $0x1a0] sm:$0xff]
          %v6416 = vld [vmem:[%s3 + $0x1a8] sm:$0xff]
          %v6417 = vld [vmem:[%s3 + $0x1b0] sm:$0xff]
          %v6418 = vld [vmem:[%s3 + $0x1b8] sm:$0xff]
          %v6419 = vld [vmem:[%s3 + $0x1c0] sm:$0xff]
          %v6420 = vld [vmem:[%s3 + $0x1c8] sm:$0xff]
          %v6421 = vld [vmem:[%s3 + $0x1d0] sm:$0xff]
          %v6422 = vld [vmem:[%s3 + $0x1d8] sm:$0xff]
          %v6423 = vld [vmem:[%s3 + $0x1e0] sm:$0xff]
          %v6424 = vld [vmem:[%s3 + $0x1e8] sm:$0xff]
          %v6425 = vld [vmem:[%s3 + $0x1f0] sm:$0xff]
          %v6426 = vld [vmem:[%s3 + $0x1f8] sm:$0xff]
          %v6427 = vld [vmem:[%s4] sm:$0x3]
          %v6429 = vperm.slane %v6427, 0
          %v6430 = vperm.slane %v6427, 1
          %6434 = vst [vmem:[#allocation1] ss:$4 sm:$0xff] %v6362
          %v6435 = vld.sshfl [vmem:[#allocation1] sm:$0xff pattern:$0x73625140]
          %v6436 = vld.sshfl [vmem:[#allocation1 + $0x8] sm:$0xff pattern:$0x73625140]
          %6439 = vmatpush.msra.mxu0 %v6393
          %6440 = vmatpush.msra.mxu0 %v6391
          %6441 = vmatpush.msra.mxu0 %v6389
          %6442 = vmatpush.msra.mxu0 %v6387
          %6443 = vmatpush.msra.mxu0 %v6385
          %6444 = vmatpush.msra.mxu0 %v6383
          %6445 = vmatpush.msra.mxu0 %v6381
          %6446 = vmatpush.msra.mxu0 %v6379
          %6447 = vmatpush.msra.mxu0 %v6377
          %6448 = vmatpush.msra.mxu0 %v6375
          %6449 = vmatpush.msra.mxu0 %v6373
          %6450 = vmatpush.msra.mxu0 %v6371
          %6451 = vmatpush.msra.mxu0 %v6369
          %6452 = vmatpush.msra.mxu0 %v6367
          %6453 = vmatpush.msra.mxu0 %v6365
          %6454 = vmatpush.msra.mxu0 %v6363
          %6455 = vmatmul.f32.gmra.mxu0 %v6435
          %v6456 = vpop.f32.mrf.mxu0
          %v6457 = vadd.f32 %v6429, %v6456
          %6458 = vdwg.mxu0
          %6459 = vmatpush.msra.mxu0 %v6425
          %6460 = vmatpush.msra.mxu0 %v6423
          %6461 = vmatpush.msra.mxu0 %v6421
          %6462 = vmatpush.msra.mxu0 %v6419
          %6463 = vmatpush.msra.mxu0 %v6417
          %6464 = vmatpush.msra.mxu0 %v6415
          %6465 = vmatpush.msra.mxu0 %v6413
          %6466 = vmatpush.msra.mxu0 %v6411
          %6467 = vmatpush.msra.mxu0 %v6409
          %6468 = vmatpush.msra.mxu0 %v6407
          %6469 = vmatpush.msra.mxu0 %v6405
          %6470 = vmatpush.msra.mxu0 %v6403
          %6471 = vmatpush.msra.mxu0 %v6401
          %6472 = vmatpush.msra.mxu0 %v6399
          %6473 = vmatpush.msra.mxu0 %v6397
          %6474 = vmatpush.msra.mxu0 %v6395
          %6475 = vmatmul.f32.gmra.mxu0 %v6436
          %v6476 = vpop.f32.mrf.mxu0
          %v6477 = vadd.f32 %v6457, %v6476
          %6478 = vdwg.mxu0
          %6479 = vmatpush.msra.mxu0 %v6394
          %6480 = vmatpush.msra.mxu0 %v6392
          %6481 = vmatpush.msra.mxu0 %v6390
          %6482 = vmatpush.msra.mxu0 %v6388
          %6483 = vmatpush.msra.mxu0 %v6386
          %6484 = vmatpush.msra.mxu0 %v6384
          %6485 = vmatpush.msra.mxu0 %v6382
          %6486 = vmatpush.msra.mxu0 %v6380
          %6487 = vmatpush.msra.mxu0 %v6378
          %6488 = vmatpush.msra.mxu0 %v6376
          %6489 = vmatpush.msra.mxu0 %v6374
          %6490 = vmatpush.msra.mxu0 %v6372
          %6491 = vmatpush.msra.mxu0 %v6370
          %6492 = vmatpush.msra.mxu0 %v6368
          %6493 = vmatpush.msra.mxu0 %v6366
          %6494 = vmatpush.msra.mxu0 %v6364
          %6495 = vmatmul.f32.gmra.mxu0 %v6435
          %v6496 = vpop.f32.mrf.mxu0
          %v6497 = vadd.f32 %v6430, %v6496
          %6498 = vdwg.mxu0
          %6499 = vmatpush.msra.mxu0 %v6426
          %6500 = vmatpush.msra.mxu0 %v6424
          %6501 = vmatpush.msra.mxu0 %v6422
          %6502 = vmatpush.msra.mxu0 %v6420
          %6503 = vmatpush.msra.mxu0 %v6418
          %6504 = vmatpush.msra.mxu0 %v6416
          %6505 = vmatpush.msra.mxu0 %v6414
          %6506 = vmatpush.msra.mxu0 %v6412
          %6507 = vmatpush.msra.mxu0 %v6410
          %6508 = vmatpush.msra.mxu0 %v6408
          %6509 = vmatpush.msra.mxu0 %v6406
          %6510 = vmatpush.msra.mxu0 %v6404
          %6511 = vmatpush.msra.mxu0 %v6402
          %6512 = vmatpush.msra.mxu0 %v6400
          %6513 = vmatpush.msra.mxu0 %v6398
          %6514 = vmatpush.msra.mxu0 %v6396
          %6515 = vmatmul.f32.gmra.mxu0 %v6436
          %v6516 = vpop.f32.mrf.mxu0
          %v6517 = vadd.f32 %v6497, %v6516
          %6518 = vdwg.mxu0
          %v6521 = vrot.slane %v6517, 6
          %v6522 = vsel %vm6344, %v6477, %v6521
          %6524 = vst [vmem:[#allocation3] sm:$0xf] %v6522
          %v6525 = vld [vmem:[%s5] sm:$0xff]
          %v6526 = vld [vmem:[%s5 + $0x8] sm:$0xff]
          %v6527 = vld [vmem:[%s5 + $0x10] sm:$0xff]
          %v6528 = vld [vmem:[%s5 + $0x18] sm:$0xff]
          %v6529 = vld [vmem:[%s5 + $0x20] sm:$0xff]
          %v6530 = vld [vmem:[%s5 + $0x28] sm:$0xff]
          %v6531 = vld [vmem:[%s5 + $0x30] sm:$0xff]
          %v6532 = vld [vmem:[%s5 + $0x38] sm:$0xff]
          %v6533 = vld [vmem:[%s5 + $0x40] sm:$0xff]
          %v6534 = vld [vmem:[%s5 + $0x48] sm:$0xff]
          %v6535 = vld [vmem:[%s5 + $0x50] sm:$0xff]
          %v6536 = vld [vmem:[%s5 + $0x58] sm:$0xff]
          %v6537 = vld [vmem:[%s5 + $0x60] sm:$0xff]
          %v6538 = vld [vmem:[%s5 + $0x68] sm:$0xff]
          %v6539 = vld [vmem:[%s5 + $0x70] sm:$0xff]
          %v6540 = vld [vmem:[%s5 + $0x78] sm:$0xff]
          %v6541 = vld [vmem:[%s5 + $0x80] sm:$0xff]
          %v6542 = vld [vmem:[%s5 + $0x88] sm:$0xff]
          %v6543 = vld [vmem:[%s5 + $0x90] sm:$0xff]
          %v6544 = vld [vmem:[%s5 + $0x98] sm:$0xff]
          %v6545 = vld [vmem:[%s5 + $0xa0] sm:$0xff]
          %v6546 = vld [vmem:[%s5 + $0xa8] sm:$0xff]
          %v6547 = vld [vmem:[%s5 + $0xb0] sm:$0xff]
          %v6548 = vld [vmem:[%s5 + $0xb8] sm:$0xff]
          %v6549 = vld [vmem:[%s5 + $0xc0] sm:$0xff]
          %v6550 = vld [vmem:[%s5 + $0xc8] sm:$0xff]
          %v6551 = vld [vmem:[%s5 + $0xd0] sm:$0xff]
          %v6552 = vld [vmem:[%s5 + $0xd8] sm:$0xff]
          %v6553 = vld [vmem:[%s5 + $0xe0] sm:$0xff]
          %v6554 = vld [vmem:[%s5 + $0xe8] sm:$0xff]
          %v6555 = vld [vmem:[%s5 + $0xf0] sm:$0xff]
          %v6556 = vld [vmem:[%s5 + $0xf8] sm:$0xff]
          %v6557 = vld [vmem:[%s6] sm:$0x1]
          %v6559 = vperm.slane %v6557, 0
          %6561 = vmatpush.msra.mxu0 %v6540
          %6562 = vmatpush.msra.mxu0 %v6539
          %6563 = vmatpush.msra.mxu0 %v6538
          %6564 = vmatpush.msra.mxu0 %v6537
          %6565 = vmatpush.msra.mxu0 %v6536
          %6566 = vmatpush.msra.mxu0 %v6535
          %6567 = vmatpush.msra.mxu0 %v6534
          %6568 = vmatpush.msra.mxu0 %v6533
          %6569 = vmatpush.msra.mxu0 %v6532
          %6570 = vmatpush.msra.mxu0 %v6531
          %6571 = vmatpush.msra.mxu0 %v6530
          %6572 = vmatpush.msra.mxu0 %v6529
          %6573 = vmatpush.msra.mxu0 %v6528
          %6574 = vmatpush.msra.mxu0 %v6527
          %6575 = vmatpush.msra.mxu0 %v6526
          %6576 = vmatpush.msra.mxu0 %v6525
          %6577 = vmatmul.f32.gmra.mxu0 %v6477
          %v6578 = vpop.f32.mrf.mxu0
          %v6579 = vadd.f32 %v6559, %v6578
          %6580 = vdwg.mxu0
          %6581 = vmatpush.msra.mxu0 %v6556
          %6582 = vmatpush.msra.mxu0 %v6555
          %6583 = vmatpush.msra.mxu0 %v6554
          %6584 = vmatpush.msra.mxu0 %v6553
          %6585 = vmatpush.msra.mxu0 %v6552
          %6586 = vmatpush.msra.mxu0 %v6551
          %6587 = vmatpush.msra.mxu0 %v6550
          %6588 = vmatpush.msra.mxu0 %v6549
          %6589 = vmatpush.msra.mxu0 %v6548
          %6590 = vmatpush.msra.mxu0 %v6547
          %6591 = vmatpush.msra.mxu0 %v6546
          %6592 = vmatpush.msra.mxu0 %v6545
          %6593 = vmatpush.msra.mxu0 %v6544
          %6594 = vmatpush.msra.mxu0 %v6543
          %6595 = vmatpush.msra.mxu0 %v6542
          %6596 = vmatpush.msra.mxu0 %v6541
          %6597 = vmatmul.f32.gmra.mxu0 %v6517
          %v6598 = vpop.f32.mrf.mxu0
          %v6599 = vadd.f32 %v6579, %v6598
          %6600 = vdwg.mxu0
          %vm6601 = vcmask 58368
          %6602 = vst.msk [vmem:[#allocation5] sm:$0x3] %vm6601, %v6599
        $region56: #{effnet_moon_heads.1} parent=47 // pred_fallthru
          _
        // Predicated region
        $region57: #{effnet_moon_heads.1} parent=47 // pred_check
          %p6603 = pneg %p211
        $region58: #{effnet_moon_heads.1} parent=47 // pred_check_branch
          %6605 = sbr.rel (%p6603) target = $region60
        $region59: #{effnet_moon_heads.1} parent=47 // pred_region
          %6607 = vsyncadd [#allocation4], 0
          %s6608 = smul.addr %s26, 2
          %s6609 = smul.addr %s6608, 2
          %s6610 = scalar_lea.hbm %s7, %s6609
          %s6612 = sshll.u32 [#allocation3], 4
          %s6613 = int_to_ptr.vmem [resolvable:$true] %s6612
          %s6614 = sshll.u32 %s6610, 4
          %s6615 = int_to_ptr.hbm [resolvable:$true] %s6614
          %6617 = dma.vmem_to_hbm [thread:$0]  %s6613, 64, %s6615, [#allocation4]
        $region60: #{effnet_moon_heads.1} parent=47 // pred_fallthru
          _
        // Predicated region
        $region61: #{effnet_moon_heads.1} parent=47 // pred_check
          %p6618 = pneg %p237
        $region62: #{effnet_moon_heads.1} parent=47 // pred_check_branch
          %6620 = sbr.rel (%p6618) target = $region64
        $region63: #{effnet_moon_heads.1} parent=47 // pred_region
          %6622 = vsyncadd [#allocation6], 0
          %s6623 = smul.addr %s26, 2
          %s6624 = scalar_lea.hbm %s8, %s6623
          %s6626 = sshll.u32 [#allocation5], 4
          %s6627 = int_to_ptr.vmem [resolvable:$true] %s6626
          %s6628 = sshll.u32 %s6624, 4
          %s6629 = int_to_ptr.hbm [resolvable:$true] %s6628
          %6631 = dma.vmem_to_hbm [thread:$0]  %s6627, 32, %s6629, [#allocation6]
        $region64: #{effnet_moon_heads.1} parent=47 // pred_fallthru
          _
        // Predicated region
        $region65: #{effnet_moon_heads.1} parent=47 // pred_check
          %p6632 = pneg %p211
        $region66: #{effnet_moon_heads.1} parent=47 // pred_check_branch
          %6634 = sbr.rel (%p6632) target = $region68
        $region67: #{effnet_moon_heads.1} parent=47 // pred_region
          %6636 = dma.done [#allocation4], 64
        $region68: #{effnet_moon_heads.1} parent=47 // pred_fallthru
          _
        // Predicated region
        $region69: #{effnet_moon_heads.1} parent=47 // pred_check
          %p6637 = pneg %p237
        $region70: #{effnet_moon_heads.1} parent=47 // pred_check_branch
          %6639 = sbr.rel (%p6637) target = $region72
        $region71: #{effnet_moon_heads.1} parent=47 // pred_region
          %6641 = dma.done [#allocation6], 32
        $region72: #{effnet_moon_heads.1} parent=47 // pred_fallthru
          _
      $region48: #{effnet_moon_heads.1} parent=5 // pred_fallthru
        _
      %p6642 = scmp.le.s32.totalorder 2, %s17
      // Predicated region
      $region73: #{effnet_moon_heads.1} parent=5 // pred_check
        %p6643 = pneg %p6642
      $region74: #{effnet_moon_heads.1} parent=5 // pred_check_branch
        %6645 = sbr.rel (%p6643) target = $region76
      $region75: #{effnet_moon_heads.1} parent=5 // pred_region
        %s6646 = ssub.s32 %s17, 2
      $region76: #{effnet_moon_heads.1} parent=5 // pred_fallthru
        _
    $region6: #{effnet_moon_heads.1} parent=1 // loop_footer
      %s21 = sadd.s32 1, %s17
    $region7: #{effnet_moon_heads.1} parent=1 // loop_footer_branch
      %16 = sbr.rel target = $region3
    $region8: #{effnet_moon_heads.1} parent=1 // loop_exit
      _
    %6647 = vsyncpa [#allocation4], 1
    %s6648 = scalar_lea.sflag [#allocation4], 1
    %6649 = vsyncpa %s6648, 1
    %6650 = vsyncpa [#allocation6], 1

</llo_original>
